<compile_context>
chip_gen: v7x
topology: tpu7x:2x2x1
jax: 0.10.0
libtpu: 0.0.40
codegen_flags: <defaults>
</compile_context>

<pallas_src>
import functools
import numpy as np
import jax
import jax.numpy as jnp
from jax import lax
from jax.experimental import pallas as pl
from jax.experimental.pallas import tpu as pltpu

# ----------------------- STOI constants (pystoi) -----------------------
FS = 10000          # internal STOI sample rate
FS_SIG = 16000      # module hard-codes 16000 Hz inputs
N_FRAME = 256       # analysis frame length
HOP = N_FRAME // 2  # 128
NFFT = 512
NUMBAND = 15
MINFREQ = 150
N_SEG = 30          # frames per intermediate-intelligibility segment
BETA = -15.0
DYN_RANGE = 40.0
EPS = float(np.finfo(np.float64).eps)
UP, DOWN = 5, 8     # 10000/16000 after gcd reduction

KPAD = 256          # rfft bins kept (octave bands only use bins < ~220; rest hit zero OBM rows)
BPAD = 16           # padded number of 1/3-octave bands (15 -> 16, zero band)

OUT_CHUNK = 1280                     # output samples per resample grid step (multiple of 5 & 128)
IN_STRIDE = OUT_CHUNK * DOWN // UP   # 2048 input samples consumed per chunk (5*2048 == 8*1280)


# ----------------------- resampling plan (numpy, host-side, independent of T) -----------------
def _resample_filter_oct():
    """pystoi.utils._resample_window_oct(10000, 16000)."""
    stopband_cutoff_f = 1.0 / (2 * max(UP, DOWN))
    roll_off_width = stopband_cutoff_f / 10.0
    rejection_db = 60.0
    l = int(np.ceil(rejection_db / (22.9 * roll_off_width)))
    t = np.arange(-l, l + 1)
    ideal = 2 * UP * stopband_cutoff_f * np.sinc(2 * stopband_cutoff_f * t)
    beta = 0.1102 * (rejection_db - 8.7)  # rejection_db > 50 branch
    return np.kaiser(2 * l + 1, beta) * ideal


@functools.lru_cache(maxsize=None)
def build_polyphase_plan():
    """Chunk-periodic polyphase plan reproducing scipy.signal.resample_poly exactly.

    Output sample j of resample_oct is  y[j] = sum_i x[i] * h_pad[(j+npr)*DOWN - UP*i].
    With j = c*OUT_CHUNK + r and i = c*IN_STRIDE + (w + i_off) the tap index is
    independent of c (because UP*IN_STRIDE == DOWN*OUT_CHUNK), so a single local matrix
    R[w, r] serves every chunk.  Returns (Ra [IN_STRIDE, OUT_CHUNK], Rb [tail, OUT_CHUNK],
    pad_left, tail) with the window split so both pieces are expressible as BlockSpecs.
    """
    h_oct = _resample_filter_oct()
    window = h_oct / np.sum(h_oct)
    half_len = (window.size - 1) // 2
    h = window * UP
    n_pre_pad = DOWN - half_len % DOWN
    n_pre_remove = (half_len + n_pre_pad) // DOWN
    h_pad = np.concatenate([np.zeros(n_pre_pad), h])   # trailing zero-pad of scipy is a no-op here
    lh = len(h_pad)

    r = np.arange(OUT_CHUNK, dtype=np.int64)
    J = (r + n_pre_remove) * DOWN                       # tap origin per output phase
    i_min = int(np.ceil((int(J[0]) - (lh - 1)) / UP))   # most negative contributing input index
    i_off = min(i_min, 0)
    i_max = int(np.floor(int(J[-1]) / UP))
    wlen = i_max - i_off + 1
    need = max(wlen - IN_STRIDE, 1)
    tail = 128
    while tail < need or IN_STRIDE % tail != 0:
        tail *= 2
    assert tail <= IN_STRIDE, "resample filter span exceeds two input chunks"
    wlen_pad = IN_STRIDE + tail

    w = np.arange(wlen_pad, dtype=np.int64)[:, None]
    tap = J[None, :] - UP * (w + i_off)
    valid = (tap >= 0) & (tap < lh)
    R = np.where(valid, h_pad[np.clip(tap, 0, lh - 1)], 0.0).astype(np.float32)  # [wlen_pad, OUT_CHUNK]
    return R[:IN_STRIDE], R[IN_STRIDE:], int(-i_off), tail


def hann_window(framelen):
    # matlab-style hanning, as in pystoi
    return np.hanning(framelen + 2)[1:-1]


def build_dft_mats_fused_t():
    """Windowed real-DFT matrix, transposed & fused: [2*KPAD, N_FRAME] = (cos rows | sin rows)."""
    w = hann_window(N_FRAME)
    n = np.arange(N_FRAME)[:, None]
    k = np.arange(KPAD)[None, :]
    ang = 2.0 * np.pi * n * k / NFFT
    C = (w[:, None] * np.cos(ang)).T          # [KPAD, N_FRAME]
    S = (w[:, None] * np.sin(ang)).T
    return np.concatenate([C, S], axis=0).astype(np.float32)   # [2*KPAD, N_FRAME]


def build_obm():
    """pystoi.utils.thirdoct, truncated to KPAD bins, padded to BPAD bands: [BPAD, KPAD]."""
    f = np.linspace(0, FS, NFFT + 1)[: NFFT // 2 + 1]
    k = np.arange(NUMBAND, dtype=float)
    freq_low = MINFREQ * np.power(2.0, (2 * k - 1) / 6)
    freq_high = MINFREQ * np.power(2.0, (2 * k + 1) / 6)
    obm = np.zeros((NUMBAND, len(f)))
    for i in range(NUMBAND):
        fl = int(np.argmin(np.square(f - freq_low[i])))
        fh = int(np.argmin(np.square(f - freq_high[i])))
        obm[i, fl:fh] = 1.0
    assert not obm[:, KPAD:].any(), "octave bands touch truncated rfft bins"
    obm_pad = np.zeros((BPAD, KPAD), dtype=np.float32)
    obm_pad[:NUMBAND] = obm[:, :KPAD]
    return obm_pad


# ----------------------- kernel 1: polyphase resampling (filter resident in VMEM) --------------
def _resample_kernel(x0_ref, x1_ref, ra_ref, rb_ref, o_ref):
    o_ref[...] = (
        jnp.dot(x0_ref[...], ra_ref[...], preferred_element_type=jnp.float32)
        + jnp.dot(x1_ref[...], rb_ref[...], preferred_element_type=jnp.float32))


def resample_pallas(xpad, ra, rb, n_chunks, tail):
    # xpad: [P2pad, (n_chunks+1)*IN_STRIDE] bf16 (left-padded, zero-padded signal)
    # ra:   [IN_STRIDE, OUT_CHUNK] bf16, rb: [tail, OUT_CHUNK] bf16 (constant across the grid)
    p2pad, _ = xpad.shape
    tail_mul = IN_STRIDE // tail
    return pl.pallas_call(
        _resample_kernel,
        out_shape=jax.ShapeDtypeStruct((p2pad, n_chunks * OUT_CHUNK), jnp.float32),
        grid_spec=pltpu.PrefetchScalarGridSpec(
            num_scalar_prefetch=0,
            grid=(n_chunks,),
            in_specs=[
                pl.BlockSpec((p2pad, IN_STRIDE), lambda c: (0, c)),                 # window head
                pl.BlockSpec((p2pad, tail), lambda c: (0, (c + 1) * tail_mul)),     # window tail
                pl.BlockSpec((IN_STRIDE, OUT_CHUNK), lambda c: (0, 0)),             # resident Ra
                pl.BlockSpec((tail, OUT_CHUNK), lambda c: (0, 0)),                  # resident Rb
            ],
            out_specs=pl.BlockSpec((p2pad, OUT_CHUNK), lambda c: (0, c)),
        ),
        compiler_params=pltpu.CompilerParams(
            dimension_semantics=("parallel",),
            vmem_limit_bytes=32 * 1024 * 1024),
    )(xpad, xpad, ra, rb)


# ----------------------- kernel 2: fused STFT + octave bands + lane-dense correlations ---------
def _stoi_core_kernel(f_ref, cs_ref, obm_ref, corr_ref, *, nf_lanes, w_out):
    frames_t = f_ref[0]                 # [N_FRAME, 2*nf_lanes] bf16 (clean | degraded on lanes)
    # one fused windowed rDFT matmul for clean+degraded, frames on the 128-lane axis
    spec = jnp.dot(cs_ref[...], frames_t, preferred_element_type=jnp.float32)   # [2*KPAD, 2*nf_lanes]
    re = spec[:KPAD]
    im = spec[KPAD:]
    power = re * re + im * im                                                   # lane-dense f32
    toct = jnp.sqrt(jnp.dot(obm_ref[...], power, preferred_element_type=jnp.float32))  # [BPAD, 2*nf]
    x_t = toct[:, :nf_lanes]            # clean    [BPAD, nf_lanes]
    y_t = toct[:, nf_lanes:]            # degraded [BPAD, nf_lanes]

    # sliding 30-frame segment windows; segment index j stays on the lane axis
    Xw = jnp.stack([x_t[:, s:s + w_out] for s in range(N_SEG)], axis=0)   # [N_SEG, BPAD, w_out]
    Yw = jnp.stack([y_t[:, s:s + w_out] for s in range(N_SEG)], axis=0)

    clip_val = 10.0 ** (-BETA / 20.0)
    nx = jnp.sqrt(jnp.sum(Xw * Xw, axis=0, keepdims=True))                # [1, BPAD, w_out]
    ny = jnp.sqrt(jnp.sum(Yw * Yw, axis=0, keepdims=True))
    Yn = Yw * (nx * pl.reciprocal(ny + EPS, approx=True))                 # divides on EUP
    Yp = jnp.minimum(Yn, Xw * (1.0 + clip_val))
    Yc = Yp - jnp.mean(Yp, axis=0, keepdims=True)
    Xc = Xw - jnp.mean(Xw, axis=0, keepdims=True)
    inv_ny = pl.reciprocal(jnp.sqrt(jnp.sum(Yc * Yc, axis=0, keepdims=True)) + EPS, approx=True)
    inv_nx = pl.reciprocal(jnp.sqrt(jnp.sum(Xc * Xc, axis=0, keepdims=True)) + EPS, approx=True)

    prod = (Yc * inv_ny) * (Xc * inv_nx)                                  # [N_SEG, BPAD, w_out]
    corr_bw = jnp.sum(prod, axis=0)                                       # [BPAD, w_out]
    corr_ref[...] = jnp.sum(corr_bw, axis=0, keepdims=True)[None]         # lane-dense [1, 1, w_out]


def stoi_core_pallas(frames_t, cs_t, obm, nf_lanes, w_out):
    # TODO(synk): for very long audio (nf_lanes in the thousands) the per-signal intermediates
    # exceed v7x's 64 MiB VMEM; tile the frame axis with an (N_SEG-1)-frame halo and batch
    # several signals per grid step.
    p, fl, _ = frames_t.shape
    kern = functools.partial(_stoi_core_kernel, nf_lanes=nf_lanes, w_out=w_out)
    out = pl.pallas_call(
        kern,
        out_shape=jax.ShapeDtypeStruct((p, 1, w_out), jnp.float32),
        grid_spec=pltpu.PrefetchScalarGridSpec(
            num_scalar_prefetch=0,
            grid=(p,),
            in_specs=[
                pl.BlockSpec((1, fl, 2 * nf_lanes), lambda i: (i, 0, 0)),
                pl.BlockSpec((2 * KPAD, fl), lambda i: (0, 0)),
                pl.BlockSpec((BPAD, KPAD), lambda i: (0, 0)),
            ],
            out_specs=pl.BlockSpec((1, 1, w_out), lambda i: (i, 0, 0)),
        ),
        compiler_params=pltpu.CompilerParams(dimension_semantics=("parallel",)),
    )(frames_t, cs_t, obm)
    return out[:, 0, :]


# ----------------------- full forward (Stoi.forward) -----------------------
def stoi_forward(preds, targets, batch_indices_separation=None):
    """preds, targets: [B, num_spk, T] float32 @ 16 kHz -> scalar mean STOI."""
    del batch_indices_separation  # unused by the reference module as well
    B, n_spk, T = preds.shape
    P = B * n_spk
    # stack clean (targets) then degraded (preds) signals for one resampling matmul
    x16 = jnp.concatenate(
        [targets.reshape(P, T), preds.reshape(P, T)], axis=0).astype(jnp.float32)
    P2 = 2 * P
    P2pad = int(np.ceil(P2 / 16) * 16)            # multiple of 16: full bf16 sublane packing

    n10 = T * UP // DOWN + (1 if (T * UP) % DOWN else 0)
    n_chunks = int(np.ceil(n10 / OUT_CHUNK))
    Ra_np, Rb_np, pad_l, tail = build_polyphase_plan()
    x_cols = (n_chunks + 1) * IN_STRIDE
    assert pad_l + T <= x_cols

    xpad = jnp.zeros((P2pad, x_cols), jnp.bfloat16).at[:P2, pad_l:pad_l + T].set(
        x16.astype(jnp.bfloat16))
    ra = jnp.asarray(Ra_np, jnp.bfloat16)
    rb = jnp.asarray(Rb_np, jnp.bfloat16)
    x10 = resample_pallas(xpad, ra, rb, n_chunks, tail)[:P2, :n10]   # [2P, n10] @ 10 kHz, f32

    # ---- remove_silent_frames (pystoi): frame, energy mask, compact, overlap-add ----
    n_fr = (n10 - N_FRAME) // HOP + 1
    assert n_fr >= N_SEG, "signal too short for STOI (need >= 30 frames at 10 kHz)"
    n_used = (n_fr + 1) * HOP
    rows = x10[:, :n_used].reshape(P2, n_fr + 1, HOP)
    frames10 = jnp.concatenate([rows[:, :-1], rows[:, 1:]], axis=-1)   # [2P, n_fr, 256]
    w = jnp.asarray(hann_window(N_FRAME), jnp.float32)
    frames_w = frames10 * w
    fx = frames_w[:P]     # clean frames (mask is computed on the clean signal)
    fy = frames_w[P:]

    energies = 20.0 * jnp.log10(jnp.sqrt(jnp.sum(fx * fx, axis=-1)) + EPS)
    mask = (jnp.max(energies, axis=-1, keepdims=True) - DYN_RANGE - energies) < 0
    n_keep = jnp.sum(mask, axis=-1)                            # [P] int
    # TODO(synk): reference pystoi raises when fewer than 30 frames survive; J is clamped instead.

    # kept-frame gather indices via cumsum + scatter (stable original order, no sort)
    # TODO(synk): for long signals move this gather + the two reframes into a scalar-prefetch
    # Pallas DMA-gather kernel; it stays in plain XLA glue here.
    def _one_row(m):
        dest = jnp.where(m, jnp.cumsum(m.astype(jnp.int32)) - 1, n_fr)
        return jnp.zeros((n_fr,), jnp.int32).at[dest].set(
            jnp.arange(n_fr, dtype=jnp.int32), mode="drop")
    src = jax.vmap(_one_row)(mask)                             # [P, n_fr]
    valid_m = (jnp.arange(n_fr)[None, :] < n_keep[:, None])[..., None]

    def compact(fr):
        idx3 = jnp.broadcast_to(src[..., None], fr.shape)
        g = jnp.take_along_axis(fr, idx3, axis=1)              # [P, n_fr, 256]
        return jnp.where(valid_m, g, 0.0)

    def overlap_add(fr):
        a, b = fr[:, :, :HOP], fr[:, :, HOP:]
        z = jnp.zeros((P, 1, HOP), jnp.float32)
        out_rows = jnp.concatenate([a, z], axis=1) + jnp.concatenate([z, b], axis=1)
        return out_rows.reshape(P, (n_fr + 1) * HOP)

    x_sil = overlap_add(compact(fx))
    y_sil = overlap_add(compact(fy))

    # ---- STFT framing of the silence-removed signals (window folded into the DFT matrix) ----
    rx = x_sil.reshape(P, n_fr + 1, HOP)
    ry = y_sil.reshape(P, n_fr + 1, HOP)
    xf = jnp.concatenate([rx[:, :-1], rx[:, 1:]], axis=-1)     # [P, n_fr, 256]
    yf = jnp.concatenate([ry[:, :-1], ry[:, 1:]], axis=-1)

    j_max = n_fr - N_SEG + 1
    w_out = int(np.ceil(j_max / 128) * 128)                    # lane-dense corr output width
    nf_lanes = w_out + 128                                     # >= n_fr and >= w_out + N_SEG - 1

    def to_lane_major(fr):       # [P, n_fr, 256] -> [P, 256, nf_lanes], frames on the lane axis
        fr_t = jnp.transpose(fr, (0, 2, 1))
        return jnp.pad(fr_t, ((0, 0), (0, 0), (0, nf_lanes - n_fr)))

    frames_t = jnp.concatenate([to_lane_major(xf), to_lane_major(yf)],
                               axis=2).astype(jnp.bfloat16)    # [P, 256, 2*nf_lanes]
    cs_t = jnp.asarray(build_dft_mats_fused_t(), jnp.bfloat16)
    obm = jnp.asarray(build_obm(), jnp.float32)
    corr = stoi_core_pallas(frames_t, cs_t, obm, nf_lanes, w_out)[:, :j_max]   # [P, j_max]

    # segment j valid iff all its frames are real (not zero padding): j + 30 <= n_keep
    seg_valid = (jnp.arange(j_max)[None, :] + N_SEG) <= n_keep[:, None]
    J = jnp.maximum(n_keep - N_SEG + 1, 1).astype(jnp.float32)  # segments per signal (clamped)
    d = jnp.sum(jnp.where(seg_valid, corr, 0.0), axis=1) / (J * NUMBAND)
    return jnp.mean(d)


if __name__ == "__main__":
    B, num_spk, T = 2, 2, 8192            # T must give >= 30 STFT frames at 10 kHz
    key = jax.random.PRNGKey(0)
    k1, k2 = jax.random.split(key)
    targets = jax.random.normal(k1, (B, num_spk, T), jnp.float32)
    preds = targets + 0.3 * jax.random.normal(k2, (B, num_spk, T), jnp.float32)
    batch_indices_separation = None

    mean_stoi = stoi_forward(preds, targets, batch_indices_separation)
    mean_stoi = jax.block_until_ready(mean_stoi)
    assert bool(jnp.isfinite(mean_stoi))
    print("KERNEL_OK")
</pallas_src>

<mosaic_0001>
module attributes {stable_mosaic.version = 11 : i64} {
  func.func @_resample_kernel(%arg0: i32, %arg1: memref<16x2048xbf16, #tpu.memory_space<vmem>>, %arg2: memref<16x256xbf16, #tpu.memory_space<vmem>>, %arg3: memref<2048x1280xbf16, #tpu.memory_space<vmem>>, %arg4: memref<256x1280xbf16, #tpu.memory_space<vmem>>, %arg5: memref<16x1280xf32, #tpu.memory_space<vmem>>) attributes {dimension_semantics = [#tpu.dimension_semantics<parallel>], iteration_bounds = array<i64: 4>, scalar_prefetch = 0 : i64, scratch_operands = 0 : i64, tpu.core_type = #tpu.core_type<tc>, window_params = [{transform_indices = @transform_0, window_bounds = array<i64: 16, 2048>}, {transform_indices = @transform_1, window_bounds = array<i64: 16, 256>}, {pipeline_mode = #tpu.pipeline_mode<synchronous>, transform_indices = @transform_2, window_bounds = array<i64: 2048, 1280>}, {pipeline_mode = #tpu.pipeline_mode<synchronous>, transform_indices = @transform_3, window_bounds = array<i64: 256, 1280>}, {transform_indices = @transform_4, window_bounds = array<i64: 16, 1280>}]} {
    %c0 = arith.constant 0 : index
    %c0_0 = arith.constant 0 : index
    %0 = vector.load %arg1[%c0, %c0_0] : memref<16x2048xbf16, #tpu.memory_space<vmem>>, vector<16x2048xbf16>
    %c0_1 = arith.constant 0 : index
    %c0_2 = arith.constant 0 : index
    %1 = vector.load %arg3[%c0_1, %c0_2] : memref<2048x1280xbf16, #tpu.memory_space<vmem>>, vector<2048x1280xbf16>
    %cst = arith.constant dense<0.000000e+00> : vector<16x1280xf32>
    %2 = tpu.matmul %0, %1, %cst {dimension_numbers = #tpu.dot_dimension_numbers<[1], [0], [0], [1], [0, 0, 1, 1], [], []>} : vector<16x2048xbf16>, vector<2048x1280xbf16>, vector<16x1280xf32> -> vector<16x1280xf32>
    %c0_3 = arith.constant 0 : index
    %c0_4 = arith.constant 0 : index
    %3 = vector.load %arg2[%c0_3, %c0_4] : memref<16x256xbf16, #tpu.memory_space<vmem>>, vector<16x256xbf16>
    %c0_5 = arith.constant 0 : index
    %c0_6 = arith.constant 0 : index
    %4 = vector.load %arg4[%c0_5, %c0_6] : memref<256x1280xbf16, #tpu.memory_space<vmem>>, vector<256x1280xbf16>
    %cst_7 = arith.constant dense<0.000000e+00> : vector<16x1280xf32>
    %5 = tpu.matmul %3, %4, %cst_7 {dimension_numbers = #tpu.dot_dimension_numbers<[1], [0], [0], [1], [0, 0, 1, 1], [], []>} : vector<16x256xbf16>, vector<256x1280xbf16>, vector<16x1280xf32> -> vector<16x1280xf32>
    %6 = arith.addf %2, %5 : vector<16x1280xf32>
    %c0_8 = arith.constant 0 : index
    %c0_9 = arith.constant 0 : index
    %7 = vector.load %arg5[%c0_8, %c0_9] : memref<16x1280xf32, #tpu.memory_space<vmem>>, vector<16x1280xf32>
    tpu.vector_store %arg5[%c0_8, %c0_9], %6 {strides = array<i32>} : memref<16x1280xf32, #tpu.memory_space<vmem>>, vector<16x1280xf32>,
    return
  }
  func.func @transform_0(%arg0: i32) -> (i32, i32) {
    %c0_i32 = arith.constant 0 : i32
    %c0_i32_0 = arith.constant 0 : i32
    return %c0_i32, %arg0 : i32, i32
  }
  func.func @transform_1(%arg0: i32) -> (i32, i32) {
    %c1_i32 = arith.constant 1 : i32
    %0 = arith.addi %arg0, %c1_i32 : i32
    %c8_i32 = arith.constant 8 : i32
    %1 = arith.muli %0, %c8_i32 : i32
    %c0_i32 = arith.constant 0 : i32
    %c0_i32_0 = arith.constant 0 : i32
    return %c0_i32, %1 : i32, i32
  }
  func.func @transform_2(%arg0: i32) -> (i32, i32) {
    %c0_i32 = arith.constant 0 : i32
    %c0_i32_0 = arith.constant 0 : i32
    %c0_i32_1 = arith.constant 0 : i32
    return %c0_i32, %c0_i32_0 : i32, i32
  }
  func.func @transform_3(%arg0: i32) -> (i32, i32) {
    %c0_i32 = arith.constant 0 : i32
    %c0_i32_0 = arith.constant 0 : i32
    %c0_i32_1 = arith.constant 0 : i32
    return %c0_i32, %c0_i32_0 : i32, i32
  }
  func.func @transform_4(%arg0: i32) -> (i32, i32) {
    %c0_i32 = arith.constant 0 : i32
    %c0_i32_0 = arith.constant 0 : i32
    return %c0_i32, %arg0 : i32, i32
  }
}

</mosaic_0001>

<llo_original>
// kernel: tpu_custom_call.1
$region0: #{tpu_custom_call.1}
  #allocation0 [shape = 'u32[]', space=smem, size = 0x4, offset = 0x4, fixed_abs, tag = 'smem constant byte address 0x4 - core index']
  #allocation1 [shape = 'u32[144,128]{1,0:T(1,128)}', space=vmem, size = 0x12000, scoped, tag = 'internal scratch']
  %s0 = inlined_call_operand.hbm [shape: bf16[16,10240], index: 0, kind: input, shape index: {}]
  %s1 = inlined_call_operand.hbm [shape: bf16[16,10240], index: 1, kind: input, shape index: {}]
  %s2 = inlined_call_operand.hbm [shape: bf16[2048,1280], index: 2, kind: input, shape index: {}]
  %s3 = inlined_call_operand.hbm [shape: bf16[256,1280], index: 3, kind: input, shape index: {}]
  %s4 = inlined_call_operand.hbm [shape: f32[16,5120], index: 4, kind: output, shape index: {}]
  %s5 = sld [smem:[#allocation0]]
  $region65: #{tpu_custom_call.1} parent=0
    _
  %s7 = ssub.s32 1, %s5
  %s8 = scalar_select 0, %s7, %s5
  $region1: #{tpu_custom_call.1} parent=0
    #allocation2 [shape = 'u8[131072]{0}', space=vmem, size = 0x20000, scoped, tag = 'input window, operand 0']
    #allocation3 [shape = 's32[2]{0}', space=sflag, size = 0x8, scoped, tag = 'scoped memory for tpu_custom_call.1']
    #allocation4 [shape = 's32[2]{0}', space=sflag, size = 0x8, scoped, tag = 'scoped memory for tpu_custom_call.1']
    #allocation5 [shape = 'u8[16384]{0}', space=vmem, size = 0x4000, scoped, tag = 'input window, operand 1']
    #allocation6 [shape = 's32[2]{0}', space=sflag, size = 0x8, scoped, tag = 'scoped memory for tpu_custom_call.1']
    #allocation7 [shape = 'u8[5242880]{0}', space=vmem, size = 0x500000, scoped, tag = 'input window, operand 2, single buffered']
    #allocation8 [shape = 'u8[655360]{0}', space=vmem, size = 0xa0000, scoped, tag = 'input window, operand 3, single buffered']
    #allocation9 [shape = 's32[1]{0}', space=sflag, size = 0x4, scoped, tag = 'scoped memory for tpu_custom_call.1']
    #allocation10 [shape = 'u8[163840]{0}', space=vmem, size = 0x28000, scoped, tag = 'output window, operand 0']
    %9 = vsyncpa [#allocation3], 0
    %s10 = scalar_lea.sflag [#allocation3], 1
    %11 = vsyncpa %s10, 0
    %12 = vsyncpa [#allocation6], 0
    %s13 = scalar_lea.sflag [#allocation6], 1
    %14 = vsyncpa %s13, 0
    %15 = vsyncpa [#allocation9], 0
    %16 = vsyncpa [#allocation4], 0
    %s17 = scalar_lea.sflag [#allocation4], 1
    %18 = vsyncpa %s17, 0
    loop: start=0, step=1, limit=6
    $region2: #{tpu_custom_call.1} parent=1 // loop_pre_header
      _
    $region3: #{tpu_custom_call.1} parent=1 // loop_header
      %s20 = sphi 0, %s24
      %p21 = scmp.ge.s32.totalorder %s20, 6
      %s30 = sphi 0, %s32
      %s33 = sphi 0, %s30
      %s34 = sphi 0, %s33
      %s50 = sphi 0, %s34
      %s60 = sphi 0, %s62
      %s63 = sphi 0, %s60
      %s64 = sphi 0, %s63
      %s80 = sphi 0, %s64
      %s84 = sphi 0, %s84
      %s86 = sphi 0, %s84
      %s87 = sphi 0, %s86
      %s101 = sphi 0, %s87
      %s105 = sphi 0, %s105
      %s107 = sphi 0, %s105
      %s108 = sphi 0, %s107
      %s122 = sphi 0, %s108
      %s128 = sphi 0, %s130
      %s131 = sphi 0, %s128
      %s132 = sphi 0, %s131
      %s148 = sphi 0, %s132
    $region4: #{tpu_custom_call.1} parent=1 // loop_header_branch
      %23 = sbr.rel (%p21) target = $region8
    $region5: #{tpu_custom_call.1} parent=1 // loop_body
      %s25 = ssub.s32 %s20, 1
      %s26 = ssub.s32 %s20, 2
      %s27 = sadd.s32 %s20, 1
      %s28 = ssub.s32 %s20, %s27
      %p29 = scmp.eq.s32.totalorder %s28, 0
      %s31 = sadd.s32 %s30, 1
      %s32 = scalar_select %p29, %s30, %s31
      %p35 = pneg %p29
      %p36 = scmp.eq.s32.totalorder %s20, 3
      %p37 = por %p35, %p36
      %p38 = scmp.ne.s32.totalorder %s30, %s33
      %p39 = scmp.eq.s32.totalorder %s20, 0
      %p40 = por %p38, %p39
      %p41 = scmp.ne.s32.totalorder %s30, %s33
      %p42 = scmp.eq.s32.totalorder %s25, 3
      %p43 = por %p41, %p42
      %p44 = scmp.ne.s32.totalorder %s33, %s34
      %p45 = scmp.eq.s32.totalorder %s25, 0
      %p46 = por %p44, %p45
      %p47 = scmp.ne.s32.totalorder %s33, %s34
      %p48 = scmp.eq.s32.totalorder %s26, 3
      %p49 = por %p47, %p48
      %p51 = scmp.ne.s32.totalorder %s34, %s50
      %p52 = scmp.eq.s32.totalorder %s26, 0
      %p53 = por %p51, %p52
      %s54 = sadd.s32 %s20, 1
      %s55 = smul.u32 %s54, 8
      %s56 = sadd.s32 %s27, 1
      %s57 = smul.u32 %s56, 8
      %s58 = ssub.s32 %s55, %s57
      %p59 = scmp.eq.s32.totalorder %s58, 0
      %s61 = sadd.s32 %s60, 1
      %s62 = scalar_select %p59, %s60, %s61
      %p65 = pneg %p59
      %p66 = scmp.eq.s32.totalorder %s20, 3
      %p67 = por %p65, %p66
      %p68 = scmp.ne.s32.totalorder %s60, %s63
      %p69 = scmp.eq.s32.totalorder %s20, 0
      %p70 = por %p68, %p69
      %p71 = scmp.ne.s32.totalorder %s60, %s63
      %p72 = scmp.eq.s32.totalorder %s25, 3
      %p73 = por %p71, %p72
      %p74 = scmp.ne.s32.totalorder %s63, %s64
      %p75 = scmp.eq.s32.totalorder %s25, 0
      %p76 = por %p74, %p75
      %p77 = scmp.ne.s32.totalorder %s63, %s64
      %p78 = scmp.eq.s32.totalorder %s26, 3
      %p79 = por %p77, %p78
      %p81 = scmp.ne.s32.totalorder %s64, %s80
      %p82 = scmp.eq.s32.totalorder %s26, 0
      %p83 = por %p81, %p82
      %s85 = sadd.s32 %s84, 1
      %p88 = scmp.eq.s32.totalorder %s20, 3
      %p89 = scmp.ne.s32.totalorder %s84, %s86
      %p90 = scmp.eq.s32.totalorder %s20, 0
      %p91 = por %p89, %p90
      %p92 = scmp.ne.s32.totalorder %s84, %s86
      %p93 = scmp.eq.s32.totalorder %s25, 3
      %p94 = por %p92, %p93
      %p95 = scmp.ne.s32.totalorder %s86, %s87
      %p96 = scmp.eq.s32.totalorder %s25, 0
      %p97 = por %p95, %p96
      %p98 = scmp.ne.s32.totalorder %s86, %s87
      %p99 = scmp.eq.s32.totalorder %s26, 3
      %p100 = por %p98, %p99
      %p102 = scmp.ne.s32.totalorder %s87, %s101
      %p103 = scmp.eq.s32.totalorder %s26, 0
      %p104 = por %p102, %p103
      %s106 = sadd.s32 %s105, 1
      %p109 = scmp.eq.s32.totalorder %s20, 3
      %p110 = scmp.ne.s32.totalorder %s105, %s107
      %p111 = scmp.eq.s32.totalorder %s20, 0
      %p112 = por %p110, %p111
      %p113 = scmp.ne.s32.totalorder %s105, %s107
      %p114 = scmp.eq.s32.totalorder %s25, 3
      %p115 = por %p113, %p114
      %p116 = scmp.ne.s32.totalorder %s107, %s108
      %p117 = scmp.eq.s32.totalorder %s25, 0
      %p118 = por %p116, %p117
      %p119 = scmp.ne.s32.totalorder %s107, %s108
      %p120 = scmp.eq.s32.totalorder %s26, 3
      %p121 = por %p119, %p120
      %p123 = scmp.ne.s32.totalorder %s108, %s122
      %p124 = scmp.eq.s32.totalorder %s26, 0
      %p125 = por %p123, %p124
      %s126 = ssub.s32 %s20, %s27
      %p127 = scmp.eq.s32.totalorder %s126, 0
      %s129 = sadd.s32 %s128, 1
      %s130 = scalar_select %p127, %s128, %s129
      %p133 = pneg %p127
      %p134 = scmp.eq.s32.totalorder %s20, 3
      %p135 = por %p133, %p134
      %p136 = scmp.ne.s32.totalorder %s128, %s131
      %p137 = scmp.eq.s32.totalorder %s20, 0
      %p138 = por %p136, %p137
      %p139 = scmp.ne.s32.totalorder %s128, %s131
      %p140 = scmp.eq.s32.totalorder %s25, 3
      %p141 = por %p139, %p140
      %p142 = scmp.ne.s32.totalorder %s131, %s132
      %p143 = scmp.eq.s32.totalorder %s25, 0
      %p144 = por %p142, %p143
      %p145 = scmp.ne.s32.totalorder %s131, %s132
      %p146 = scmp.eq.s32.totalorder %s26, 3
      %p147 = por %p145, %p146
      %p149 = scmp.ne.s32.totalorder %s132, %s148
      %p150 = scmp.eq.s32.totalorder %s26, 0
      %p151 = por %p149, %p150
      %p152 = scmp.le.s32.totalorder 1, %s20
      %p153 = scmp.lt.s32.totalorder %s20, 5
      %p154 = pnand %p152, %p153
      %p155 = pneg %p154
      // Predicated region
      $region9: #{tpu_custom_call.1} parent=5 // pred_check
        _
      $region10: #{tpu_custom_call.1} parent=5 // pred_check_branch
        %157 = sbr.rel (%p154) target = $region12
      $region11: #{tpu_custom_call.1} parent=5 // pred_region
        %s158 = ssub.s32 %s20, 1
        // Predicated region
        $region13: #{tpu_custom_call.1} parent=11 // pred_check
          %p159 = pneg %p97
        $region14: #{tpu_custom_call.1} parent=11 // pred_check_branch
          %161 = sbr.rel (%p159) target = $region16
        $region15: #{tpu_custom_call.1} parent=11 // pred_region
          %s163 = ssub.s32 163840, 163840
          %164 = vsyncadd [#allocation6], %s163
          %s165 = sshll.u32 [#allocation7], 4
          %s166 = int_to_ptr.vmem [resolvable:$true] %s165
          %171 = dma.hbm_to_vmem [thread:$0]  %s2, 163840, %s166, [#allocation6], 640, 640, 40
        $region16: #{tpu_custom_call.1} parent=11 // pred_fallthru
          _
        // Predicated region
        $region17: #{tpu_custom_call.1} parent=11 // pred_check
          %p172 = pneg %p118
        $region18: #{tpu_custom_call.1} parent=11 // pred_check_branch
          %174 = sbr.rel (%p172) target = $region20
        $region19: #{tpu_custom_call.1} parent=11 // pred_region
          %s176 = ssub.s32 20480, 20480
          %177 = vsyncadd [#allocation9], %s176
          %s178 = sshll.u32 [#allocation8], 4
          %s179 = int_to_ptr.vmem [resolvable:$true] %s178
          %184 = dma.hbm_to_vmem [thread:$0]  %s3, 20480, %s179, [#allocation9], 640, 640, 40
        $region20: #{tpu_custom_call.1} parent=11 // pred_fallthru
          _
      $region12: #{tpu_custom_call.1} parent=5 // pred_fallthru
        _
      %p185 = scmp.lt.s32.totalorder %s20, 4
      // Predicated region
      $region21: #{tpu_custom_call.1} parent=5 // pred_check
        %p186 = pneg %p185
      $region22: #{tpu_custom_call.1} parent=5 // pred_check_branch
        %188 = sbr.rel (%p186) target = $region24
      $region23: #{tpu_custom_call.1} parent=5 // pred_region
        // Predicated region
        $region25: #{tpu_custom_call.1} parent=23 // pred_check
          %p189 = pneg %p40
        $region26: #{tpu_custom_call.1} parent=23 // pred_check_branch
          %191 = sbr.rel (%p189) target = $region28
        $region27: #{tpu_custom_call.1} parent=23 // pred_region
          %s192 = sand.u32 %s30, 1
          %s193 = scalar_lea.sflag [#allocation3], %s192
          %s194 = sand.u32 %s30, 1
          %s195 = smul.addr %s194, 128
          %s196 = scalar_lea.vmem [#allocation2], %s195
          %s197 = smul.u32 16, %s20
          %s199 = ssub.s32 2048, 2048
          %200 = vsyncadd %s193, %s199
          %s201 = smul.addr %s197, 64
          %s202 = scalar_lea.hbm %s0, %s201
          %s203 = sshll.u32 %s196, 4
          %s204 = int_to_ptr.vmem [resolvable:$true] %s203
          %209 = dma.hbm_to_vmem [thread:$0]  %s202, 2048, %s204, %s193, 5120, 1024, 64
        $region28: #{tpu_custom_call.1} parent=23 // pred_fallthru
          _
        // Predicated region
        $region29: #{tpu_custom_call.1} parent=23 // pred_check
          %p210 = pneg %p70
        $region30: #{tpu_custom_call.1} parent=23 // pred_check_branch
          %212 = sbr.rel (%p210) target = $region32
        $region31: #{tpu_custom_call.1} parent=23 // pred_region
          %s213 = sand.u32 %s20, 1
          %s214 = scalar_lea.sflag [#allocation6], %s213
          %s215 = sand.u32 %s60, 1
          %s216 = smul.addr %s215, 16
          %s217 = scalar_lea.vmem [#allocation5], %s216
          %s218 = sadd.s32 %s20, 1
          %s219 = smul.u32 %s218, 8
          %s220 = smul.u32 2, %s219
          %s222 = ssub.s32 256, 256
          %223 = vsyncadd %s214, %s222
          %s224 = smul.addr %s220, 64
          %s225 = scalar_lea.hbm %s1, %s224
          %s226 = sshll.u32 %s217, 4
          %s227 = int_to_ptr.vmem [resolvable:$true] %s226
          %232 = dma.hbm_to_vmem [thread:$0]  %s225, 256, %s227, %s214, 5120, 128, 8
        $region32: #{tpu_custom_call.1} parent=23 // pred_fallthru
          _
      $region24: #{tpu_custom_call.1} parent=5 // pred_fallthru
        _
      %p233 = scmp.le.s32.totalorder 1, %s20
      %p234 = scmp.lt.s32.totalorder %s20, 5
      %p235 = pnand %p233, %p234
      %p236 = pneg %p235
      // Predicated region
      $region33: #{tpu_custom_call.1} parent=5 // pred_check
        _
      $region34: #{tpu_custom_call.1} parent=5 // pred_check_branch
        %238 = sbr.rel (%p235) target = $region36
      $region35: #{tpu_custom_call.1} parent=5 // pred_region
        %s239 = ssub.s32 %s20, 1
        %s240 = sand.u32 %s33, 1
        %s241 = scalar_lea.sflag [#allocation3], %s240
        %s242 = sand.u32 %s33, 1
        %s243 = smul.addr %s242, 128
        %s244 = scalar_lea.vmem [#allocation2], %s243
        // Predicated region
        $region37: #{tpu_custom_call.1} parent=35 // pred_check
          %p245 = pneg %p46
        $region38: #{tpu_custom_call.1} parent=35 // pred_check_branch
          %247 = sbr.rel (%p245) target = $region40
        $region39: #{tpu_custom_call.1} parent=35 // pred_region
          %248 = dma.done %s241, 2048
        $region40: #{tpu_custom_call.1} parent=35 // pred_fallthru
          _
        %s249 = sand.u32 %s25, 1
        %s250 = scalar_lea.sflag [#allocation6], %s249
        %s251 = sand.u32 %s63, 1
        %s252 = smul.addr %s251, 16
        %s253 = scalar_lea.vmem [#allocation5], %s252
        // Predicated region
        $region41: #{tpu_custom_call.1} parent=35 // pred_check
          %p254 = pneg %p76
        $region42: #{tpu_custom_call.1} parent=35 // pred_check_branch
          %256 = sbr.rel (%p254) target = $region44
        $region43: #{tpu_custom_call.1} parent=35 // pred_region
          %257 = dma.done %s250, 256
        $region44: #{tpu_custom_call.1} parent=35 // pred_fallthru
          _
        // Predicated region
        $region45: #{tpu_custom_call.1} parent=35 // pred_check
          %p258 = pneg %p97
        $region46: #{tpu_custom_call.1} parent=35 // pred_check_branch
          %260 = sbr.rel (%p258) target = $region48
        $region47: #{tpu_custom_call.1} parent=35 // pred_region
          %261 = dma.done [#allocation6], 163840
        $region48: #{tpu_custom_call.1} parent=35 // pred_fallthru
          _
        // Predicated region
        $region49: #{tpu_custom_call.1} parent=35 // pred_check
          %p262 = pneg %p118
        $region50: #{tpu_custom_call.1} parent=35 // pred_check_branch
          %264 = sbr.rel (%p262) target = $region52
        $region51: #{tpu_custom_call.1} parent=35 // pred_region
          %265 = dma.done [#allocation9], 20480
        $region52: #{tpu_custom_call.1} parent=35 // pred_fallthru
          _
        %s266 = sand.u32 %s33, 1
        %s267 = scalar_lea.sflag [#allocation3], %s266
        %s268 = sand.u32 %s33, 1
        %s269 = smul.addr %s268, 128
        %s270 = scalar_lea.vmem [#allocation2], %s269
        %p271 = pneg %p46
        %p272 = pneg %p43
        %s273 = sand.u32 %s25, 1
        %s274 = scalar_lea.sflag [#allocation6], %s273
        %s275 = sand.u32 %s63, 1
        %s276 = smul.addr %s275, 16
        %s277 = scalar_lea.vmem [#allocation5], %s276
        %p278 = pneg %p76
        %p279 = pneg %p73
        %p280 = pneg %p97
        %p281 = pneg %p94
        %p282 = pneg %p118
        %p283 = pneg %p115
        %p284 = pneg %p144
        %p285 = pneg %p141
        %s286 = sand.u32 %s131, 1
        %s287 = scalar_lea.sflag [#allocation4], %s286
        %s288 = sand.u32 %s131, 1
        %s289 = smul.addr %s288, 160
        %s290 = scalar_lea.vmem [#allocation10], %s289
        %s291 = smul.u32 16, %s25
        %s292 = sadd.s32 %s25, 1
        %s293 = smul.u32 %s292, 8
        %s294 = smul.u32 2, %s293
        %s295 = smul.u32 10, %s25
        %v296 = vld [vmem:[%s244] sm:$0xff]
        %v297 = vld [vmem:[%s244 + $0x8] sm:$0xff]
        %v298 = vld [vmem:[%s244 + $0x10] sm:$0xff]
        %v299 = vld [vmem:[%s244 + $0x18] sm:$0xff]
        %v300 = vld [vmem:[%s244 + $0x20] sm:$0xff]
        %v301 = vld [vmem:[%s244 + $0x28] sm:$0xff]
        %v302 = vld [vmem:[%s244 + $0x30] sm:$0xff]
        %v303 = vld [vmem:[%s244 + $0x38] sm:$0xff]
        %v304 = vld [vmem:[%s244 + $0x40] sm:$0xff]
        %v305 = vld [vmem:[%s244 + $0x48] sm:$0xff]
        %v306 = vld [vmem:[%s244 + $0x50] sm:$0xff]
        %v307 = vld [vmem:[%s244 + $0x58] sm:$0xff]
        %v308 = vld [vmem:[%s244 + $0x60] sm:$0xff]
        %v309 = vld [vmem:[%s244 + $0x68] sm:$0xff]
        %v310 = vld [vmem:[%s244 + $0x70] sm:$0xff]
        %v311 = vld [vmem:[%s244 + $0x78] sm:$0xff]
        %v312 = vld [vmem:[#allocation7] sm:$0xff]
        %v313 = vld [vmem:[#allocation7 + $0x8] sm:$0xff]
        %v314 = vld [vmem:[#allocation7 + $0x10] sm:$0xff]
        %v315 = vld [vmem:[#allocation7 + $0x18] sm:$0xff]
        %v316 = vld [vmem:[#allocation7 + $0x20] sm:$0xff]
        %v317 = vld [vmem:[#allocation7 + $0x28] sm:$0xff]
        %v318 = vld [vmem:[#allocation7 + $0x30] sm:$0xff]
        %v319 = vld [vmem:[#allocation7 + $0x38] sm:$0xff]
        %v320 = vld [vmem:[#allocation7 + $0x40] sm:$0xff]
        %v321 = vld [vmem:[#allocation7 + $0x48] sm:$0xff]
        %v322 = vld [vmem:[#allocation7 + $0x50] sm:$0xff]
        %v323 = vld [vmem:[#allocation7 + $0x58] sm:$0xff]
        %v324 = vld [vmem:[#allocation7 + $0x60] sm:$0xff]
        %v325 = vld [vmem:[#allocation7 + $0x68] sm:$0xff]
        %v326 = vld [vmem:[#allocation7 + $0x70] sm:$0xff]
        %v327 = vld [vmem:[#allocation7 + $0x78] sm:$0xff]
        %v328 = vld [vmem:[#allocation7 + $0x80] sm:$0xff]
        %v329 = vld [vmem:[#allocation7 + $0x88] sm:$0xff]
        %v330 = vld [vmem:[#allocation7 + $0x90] sm:$0xff]
        %v331 = vld [vmem:[#allocation7 + $0x98] sm:$0xff]
        %v332 = vld [vmem:[#allocation7 + $0xa0] sm:$0xff]
        %v333 = vld [vmem:[#allocation7 + $0xa8] sm:$0xff]
        %v334 = vld [vmem:[#allocation7 + $0xb0] sm:$0xff]
        %v335 = vld [vmem:[#allocation7 + $0xb8] sm:$0xff]
        %v336 = vld [vmem:[#allocation7 + $0xc0] sm:$0xff]
        %v337 = vld [vmem:[#allocation7 + $0xc8] sm:$0xff]
        %v338 = vld [vmem:[#allocation7 + $0xd0] sm:$0xff]
        %v339 = vld [vmem:[#allocation7 + $0xd8] sm:$0xff]
        %v340 = vld [vmem:[#allocation7 + $0xe0] sm:$0xff]
        %v341 = vld [vmem:[#allocation7 + $0xe8] sm:$0xff]
        %v342 = vld [vmem:[#allocation7 + $0xf0] sm:$0xff]
        %v343 = vld [vmem:[#allocation7 + $0xf8] sm:$0xff]
        %v344 = vld [vmem:[#allocation7 + $0x100] sm:$0xff]
        %v345 = vld [vmem:[#allocation7 + $0x108] sm:$0xff]
        %v346 = vld [vmem:[#allocation7 + $0x110] sm:$0xff]
        %v347 = vld [vmem:[#allocation7 + $0x118] sm:$0xff]
        %v348 = vld [vmem:[#allocation7 + $0x120] sm:$0xff]
        %v349 = vld [vmem:[#allocation7 + $0x128] sm:$0xff]
        %v350 = vld [vmem:[#allocation7 + $0x130] sm:$0xff]
        %v351 = vld [vmem:[#allocation7 + $0x138] sm:$0xff]
        %v352 = vld [vmem:[#allocation7 + $0x140] sm:$0xff]
        %v353 = vld [vmem:[#allocation7 + $0x148] sm:$0xff]
        %v354 = vld [vmem:[#allocation7 + $0x150] sm:$0xff]
        %v355 = vld [vmem:[#allocation7 + $0x158] sm:$0xff]
        %v356 = vld [vmem:[#allocation7 + $0x160] sm:$0xff]
        %v357 = vld [vmem:[#allocation7 + $0x168] sm:$0xff]
        %v358 = vld [vmem:[#allocation7 + $0x170] sm:$0xff]
        %v359 = vld [vmem:[#allocation7 + $0x178] sm:$0xff]
        %v360 = vld [vmem:[#allocation7 + $0x180] sm:$0xff]
        %v361 = vld [vmem:[#allocation7 + $0x188] sm:$0xff]
        %v362 = vld [vmem:[#allocation7 + $0x190] sm:$0xff]
        %v363 = vld [vmem:[#allocation7 + $0x198] sm:$0xff]
        %v364 = vld [vmem:[#allocation7 + $0x1a0] sm:$0xff]
        %v365 = vld [vmem:[#allocation7 + $0x1a8] sm:$0xff]
        %v366 = vld [vmem:[#allocation7 + $0x1b0] sm:$0xff]
        %v367 = vld [vmem:[#allocation7 + $0x1b8] sm:$0xff]
        %v368 = vld [vmem:[#allocation7 + $0x1c0] sm:$0xff]
        %v369 = vld [vmem:[#allocation7 + $0x1c8] sm:$0xff]
        %v370 = vld [vmem:[#allocation7 + $0x1d0] sm:$0xff]
        %v371 = vld [vmem:[#allocation7 + $0x1d8] sm:$0xff]
        %v372 = vld [vmem:[#allocation7 + $0x1e0] sm:$0xff]
        %v373 = vld [vmem:[#allocation7 + $0x1e8] sm:$0xff]
        %v374 = vld [vmem:[#allocation7 + $0x1f0] sm:$0xff]
        %v375 = vld [vmem:[#allocation7 + $0x1f8] sm:$0xff]
        %v376 = vld [vmem:[#allocation7 + $0x200] sm:$0xff]
        %v377 = vld [vmem:[#allocation7 + $0x208] sm:$0xff]
        %v378 = vld [vmem:[#allocation7 + $0x210] sm:$0xff]
        %v379 = vld [vmem:[#allocation7 + $0x218] sm:$0xff]
        %v380 = vld [vmem:[#allocation7 + $0x220] sm:$0xff]
        %v381 = vld [vmem:[#allocation7 + $0x228] sm:$0xff]
        %v382 = vld [vmem:[#allocation7 + $0x230] sm:$0xff]
        %v383 = vld [vmem:[#allocation7 + $0x238] sm:$0xff]
        %v384 = vld [vmem:[#allocation7 + $0x240] sm:$0xff]
        %v385 = vld [vmem:[#allocation7 + $0x248] sm:$0xff]
        %v386 = vld [vmem:[#allocation7 + $0x250] sm:$0xff]
        %v387 = vld [vmem:[#allocation7 + $0x258] sm:$0xff]
        %v388 = vld [vmem:[#allocation7 + $0x260] sm:$0xff]
        %v389 = vld [vmem:[#allocation7 + $0x268] sm:$0xff]
        %v390 = vld [vmem:[#allocation7 + $0x270] sm:$0xff]
        %v391 = vld [vmem:[#allocation7 + $0x278] sm:$0xff]
        %v392 = vld [vmem:[#allocation7 + $0x280] sm:$0xff]
        %v393 = vld [vmem:[#allocation7 + $0x288] sm:$0xff]
        %v394 = vld [vmem:[#allocation7 + $0x290] sm:$0xff]
        %v395 = vld [vmem:[#allocation7 + $0x298] sm:$0xff]
        %v396 = vld [vmem:[#allocation7 + $0x2a0] sm:$0xff]
        %v397 = vld [vmem:[#allocation7 + $0x2a8] sm:$0xff]
        %v398 = vld [vmem:[#allocation7 + $0x2b0] sm:$0xff]
        %v399 = vld [vmem:[#allocation7 + $0x2b8] sm:$0xff]
        %v400 = vld [vmem:[#allocation7 + $0x2c0] sm:$0xff]
        %v401 = vld [vmem:[#allocation7 + $0x2c8] sm:$0xff]
        %v402 = vld [vmem:[#allocation7 + $0x2d0] sm:$0xff]
        %v403 = vld [vmem:[#allocation7 + $0x2d8] sm:$0xff]
        %v404 = vld [vmem:[#allocation7 + $0x2e0] sm:$0xff]
        %v405 = vld [vmem:[#allocation7 + $0x2e8] sm:$0xff]
        %v406 = vld [vmem:[#allocation7 + $0x2f0] sm:$0xff]
        %v407 = vld [vmem:[#allocation7 + $0x2f8] sm:$0xff]
        %v408 = vld [vmem:[#allocation7 + $0x300] sm:$0xff]
        %v409 = vld [vmem:[#allocation7 + $0x308] sm:$0xff]
        %v410 = vld [vmem:[#allocation7 + $0x310] sm:$0xff]
        %v411 = vld [vmem:[#allocation7 + $0x318] sm:$0xff]
        %v412 = vld [vmem:[#allocation7 + $0x320] sm:$0xff]
        %v413 = vld [vmem:[#allocation7 + $0x328] sm:$0xff]
        %v414 = vld [vmem:[#allocation7 + $0x330] sm:$0xff]
        %v415 = vld [vmem:[#allocation7 + $0x338] sm:$0xff]
        %v416 = vld [vmem:[#allocation7 + $0x340] sm:$0xff]
        %v417 = vld [vmem:[#allocation7 + $0x348] sm:$0xff]
        %v418 = vld [vmem:[#allocation7 + $0x350] sm:$0xff]
        %v419 = vld [vmem:[#allocation7 + $0x358] sm:$0xff]
        %v420 = vld [vmem:[#allocation7 + $0x360] sm:$0xff]
        %v421 = vld [vmem:[#allocation7 + $0x368] sm:$0xff]
        %v422 = vld [vmem:[#allocation7 + $0x370] sm:$0xff]
        %v423 = vld [vmem:[#allocation7 + $0x378] sm:$0xff]
        %v424 = vld [vmem:[#allocation7 + $0x380] sm:$0xff]
        %v425 = vld [vmem:[#allocation7 + $0x388] sm:$0xff]
        %v426 = vld [vmem:[#allocation7 + $0x390] sm:$0xff]
        %v427 = vld [vmem:[#allocation7 + $0x398] sm:$0xff]
        %v428 = vld [vmem:[#allocation7 + $0x3a0] sm:$0xff]
        %v429 = vld [vmem:[#allocation7 + $0x3a8] sm:$0xff]
        %v430 = vld [vmem:[#allocation7 + $0x3b0] sm:$0xff]
        %v431 = vld [vmem:[#allocation7 + $0x3b8] sm:$0xff]
        %v432 = vld [vmem:[#allocation7 + $0x3c0] sm:$0xff]
        %v433 = vld [vmem:[#allocation7 + $0x3c8] sm:$0xff]
        %v434 = vld [vmem:[#allocation7 + $0x3d0] sm:$0xff]
        %v435 = vld [vmem:[#allocation7 + $0x3d8] sm:$0xff]
        %v436 = vld [vmem:[#allocation7 + $0x3e0] sm:$0xff]
        %v437 = vld [vmem:[#allocation7 + $0x3e8] sm:$0xff]
        %v438 = vld [vmem:[#allocation7 + $0x3f0] sm:$0xff]
        %v439 = vld [vmem:[#allocation7 + $0x3f8] sm:$0xff]
        %v440 = vld [vmem:[#allocation7 + $0x400] sm:$0xff]
        %v441 = vld [vmem:[#allocation7 + $0x408] sm:$0xff]
        %v442 = vld [vmem:[#allocation7 + $0x410] sm:$0xff]
        %v443 = vld [vmem:[#allocation7 + $0x418] sm:$0xff]
        %v444 = vld [vmem:[#allocation7 + $0x420] sm:$0xff]
        %v445 = vld [vmem:[#allocation7 + $0x428] sm:$0xff]
        %v446 = vld [vmem:[#allocation7 + $0x430] sm:$0xff]
        %v447 = vld [vmem:[#allocation7 + $0x438] sm:$0xff]
        %v448 = vld [vmem:[#allocation7 + $0x440] sm:$0xff]
        %v449 = vld [vmem:[#allocation7 + $0x448] sm:$0xff]
        %v450 = vld [vmem:[#allocation7 + $0x450] sm:$0xff]
        %v451 = vld [vmem:[#allocation7 + $0x458] sm:$0xff]
        %v452 = vld [vmem:[#allocation7 + $0x460] sm:$0xff]
        %v453 = vld [vmem:[#allocation7 + $0x468] sm:$0xff]
        %v454 = vld [vmem:[#allocation7 + $0x470] sm:$0xff]
        %v455 = vld [vmem:[#allocation7 + $0x478] sm:$0xff]
        %v456 = vld [vmem:[#allocation7 + $0x480] sm:$0xff]
        %v457 = vld [vmem:[#allocation7 + $0x488] sm:$0xff]
        %v458 = vld [vmem:[#allocation7 + $0x490] sm:$0xff]
        %v459 = vld [vmem:[#allocation7 + $0x498] sm:$0xff]
        %v460 = vld [vmem:[#allocation7 + $0x4a0] sm:$0xff]
        %v461 = vld [vmem:[#allocation7 + $0x4a8] sm:$0xff]
        %v462 = vld [vmem:[#allocation7 + $0x4b0] sm:$0xff]
        %v463 = vld [vmem:[#allocation7 + $0x4b8] sm:$0xff]
        %v464 = vld [vmem:[#allocation7 + $0x4c0] sm:$0xff]
        %v465 = vld [vmem:[#allocation7 + $0x4c8] sm:$0xff]
        %v466 = vld [vmem:[#allocation7 + $0x4d0] sm:$0xff]
        %v467 = vld [vmem:[#allocation7 + $0x4d8] sm:$0xff]
        %v468 = vld [vmem:[#allocation7 + $0x4e0] sm:$0xff]
        %v469 = vld [vmem:[#allocation7 + $0x4e8] sm:$0xff]
        %v470 = vld [vmem:[#allocation7 + $0x4f0] sm:$0xff]
        %v471 = vld [vmem:[#allocation7 + $0x4f8] sm:$0xff]
        %v472 = vld [vmem:[#allocation7 + $0x500] sm:$0xff]
        %v473 = vld [vmem:[#allocation7 + $0x508] sm:$0xff]
        %v474 = vld [vmem:[#allocation7 + $0x510] sm:$0xff]
        %v475 = vld [vmem:[#allocation7 + $0x518] sm:$0xff]
        %v476 = vld [vmem:[#allocation7 + $0x520] sm:$0xff]
        %v477 = vld [vmem:[#allocation7 + $0x528] sm:$0xff]
        %v478 = vld [vmem:[#allocation7 + $0x530] sm:$0xff]
        %v479 = vld [vmem:[#allocation7 + $0x538] sm:$0xff]
        %v480 = vld [vmem:[#allocation7 + $0x540] sm:$0xff]
        %v481 = vld [vmem:[#allocation7 + $0x548] sm:$0xff]
        %v482 = vld [vmem:[#allocation7 + $0x550] sm:$0xff]
        %v483 = vld [vmem:[#allocation7 + $0x558] sm:$0xff]
        %v484 = vld [vmem:[#allocation7 + $0x560] sm:$0xff]
        %v485 = vld [vmem:[#allocation7 + $0x568] sm:$0xff]
        %v486 = vld [vmem:[#allocation7 + $0x570] sm:$0xff]
        %v487 = vld [vmem:[#allocation7 + $0x578] sm:$0xff]
        %v488 = vld [vmem:[#allocation7 + $0x580] sm:$0xff]
        %v489 = vld [vmem:[#allocation7 + $0x588] sm:$0xff]
        %v490 = vld [vmem:[#allocation7 + $0x590] sm:$0xff]
        %v491 = vld [vmem:[#allocation7 + $0x598] sm:$0xff]
        %v492 = vld [vmem:[#allocation7 + $0x5a0] sm:$0xff]
        %v493 = vld [vmem:[#allocation7 + $0x5a8] sm:$0xff]
        %v494 = vld [vmem:[#allocation7 + $0x5b0] sm:$0xff]
        %v495 = vld [vmem:[#allocation7 + $0x5b8] sm:$0xff]
        %v496 = vld [vmem:[#allocation7 + $0x5c0] sm:$0xff]
        %v497 = vld [vmem:[#allocation7 + $0x5c8] sm:$0xff]
        %v498 = vld [vmem:[#allocation7 + $0x5d0] sm:$0xff]
        %v499 = vld [vmem:[#allocation7 + $0x5d8] sm:$0xff]
        %v500 = vld [vmem:[#allocation7 + $0x5e0] sm:$0xff]
        %v501 = vld [vmem:[#allocation7 + $0x5e8] sm:$0xff]
        %v502 = vld [vmem:[#allocation7 + $0x5f0] sm:$0xff]
        %v503 = vld [vmem:[#allocation7 + $0x5f8] sm:$0xff]
        %v504 = vld [vmem:[#allocation7 + $0x600] sm:$0xff]
        %v505 = vld [vmem:[#allocation7 + $0x608] sm:$0xff]
        %v506 = vld [vmem:[#allocation7 + $0x610] sm:$0xff]
        %v507 = vld [vmem:[#allocation7 + $0x618] sm:$0xff]
        %v508 = vld [vmem:[#allocation7 + $0x620] sm:$0xff]
        %v509 = vld [vmem:[#allocation7 + $0x628] sm:$0xff]
        %v510 = vld [vmem:[#allocation7 + $0x630] sm:$0xff]
        %v511 = vld [vmem:[#allocation7 + $0x638] sm:$0xff]
        %v512 = vld [vmem:[#allocation7 + $0x640] sm:$0xff]
        %v513 = vld [vmem:[#allocation7 + $0x648] sm:$0xff]
        %v514 = vld [vmem:[#allocation7 + $0x650] sm:$0xff]
        %v515 = vld [vmem:[#allocation7 + $0x658] sm:$0xff]
        %v516 = vld [vmem:[#allocation7 + $0x660] sm:$0xff]
        %v517 = vld [vmem:[#allocation7 + $0x668] sm:$0xff]
        %v518 = vld [vmem:[#allocation7 + $0x670] sm:$0xff]
        %v519 = vld [vmem:[#allocation7 + $0x678] sm:$0xff]
        %v520 = vld [vmem:[#allocation7 + $0x680] sm:$0xff]
        %v521 = vld [vmem:[#allocation7 + $0x688] sm:$0xff]
        %v522 = vld [vmem:[#allocation7 + $0x690] sm:$0xff]
        %v523 = vld [vmem:[#allocation7 + $0x698] sm:$0xff]
        %v524 = vld [vmem:[#allocation7 + $0x6a0] sm:$0xff]
        %v525 = vld [vmem:[#allocation7 + $0x6a8] sm:$0xff]
        %v526 = vld [vmem:[#allocation7 + $0x6b0] sm:$0xff]
        %v527 = vld [vmem:[#allocation7 + $0x6b8] sm:$0xff]
        %v528 = vld [vmem:[#allocation7 + $0x6c0] sm:$0xff]
        %v529 = vld [vmem:[#allocation7 + $0x6c8] sm:$0xff]
        %v530 = vld [vmem:[#allocation7 + $0x6d0] sm:$0xff]
        %v531 = vld [vmem:[#allocation7 + $0x6d8] sm:$0xff]
        %v532 = vld [vmem:[#allocation7 + $0x6e0] sm:$0xff]
        %v533 = vld [vmem:[#allocation7 + $0x6e8] sm:$0xff]
        %v534 = vld [vmem:[#allocation7 + $0x6f0] sm:$0xff]
        %v535 = vld [vmem:[#allocation7 + $0x6f8] sm:$0xff]
        %v536 = vld [vmem:[#allocation7 + $0x700] sm:$0xff]
        %v537 = vld [vmem:[#allocation7 + $0x708] sm:$0xff]
        %v538 = vld [vmem:[#allocation7 + $0x710] sm:$0xff]
        %v539 = vld [vmem:[#allocation7 + $0x718] sm:$0xff]
        %v540 = vld [vmem:[#allocation7 + $0x720] sm:$0xff]
        %v541 = vld [vmem:[#allocation7 + $0x728] sm:$0xff]
        %v542 = vld [vmem:[#allocation7 + $0x730] sm:$0xff]
        %v543 = vld [vmem:[#allocation7 + $0x738] sm:$0xff]
        %v544 = vld [vmem:[#allocation7 + $0x740] sm:$0xff]
        %v545 = vld [vmem:[#allocation7 + $0x748] sm:$0xff]
        %v546 = vld [vmem:[#allocation7 + $0x750] sm:$0xff]
        %v547 = vld [vmem:[#allocation7 + $0x758] sm:$0xff]
        %v548 = vld [vmem:[#allocation7 + $0x760] sm:$0xff]
        %v549 = vld [vmem:[#allocation7 + $0x768] sm:$0xff]
        %v550 = vld [vmem:[#allocation7 + $0x770] sm:$0xff]
        %v551 = vld [vmem:[#allocation7 + $0x778] sm:$0xff]
        %v552 = vld [vmem:[#allocation7 + $0x780] sm:$0xff]
        %v553 = vld [vmem:[#allocation7 + $0x788] sm:$0xff]
        %v554 = vld [vmem:[#allocation7 + $0x790] sm:$0xff]
        %v555 = vld [vmem:[#allocation7 + $0x798] sm:$0xff]
        %v556 = vld [vmem:[#allocation7 + $0x7a0] sm:$0xff]
        %v557 = vld [vmem:[#allocation7 + $0x7a8] sm:$0xff]
        %v558 = vld [vmem:[#allocation7 + $0x7b0] sm:$0xff]
        %v559 = vld [vmem:[#allocation7 + $0x7b8] sm:$0xff]
        %v560 = vld [vmem:[#allocation7 + $0x7c0] sm:$0xff]
        %v561 = vld [vmem:[#allocation7 + $0x7c8] sm:$0xff]
        %v562 = vld [vmem:[#allocation7 + $0x7d0] sm:$0xff]
        %v563 = vld [vmem:[#allocation7 + $0x7d8] sm:$0xff]
        %v564 = vld [vmem:[#allocation7 + $0x7e0] sm:$0xff]
        %v565 = vld [vmem:[#allocation7 + $0x7e8] sm:$0xff]
        %v566 = vld [vmem:[#allocation7 + $0x7f0] sm:$0xff]
        %v567 = vld [vmem:[#allocation7 + $0x7f8] sm:$0xff]
        %v568 = vld [vmem:[#allocation7 + $0x800] sm:$0xff]
        %v569 = vld [vmem:[#allocation7 + $0x808] sm:$0xff]
        %v570 = vld [vmem:[#allocation7 + $0x810] sm:$0xff]
        %v571 = vld [vmem:[#allocation7 + $0x818] sm:$0xff]
        %v572 = vld [vmem:[#allocation7 + $0x820] sm:$0xff]
        %v573 = vld [vmem:[#allocation7 + $0x828] sm:$0xff]
        %v574 = vld [vmem:[#allocation7 + $0x830] sm:$0xff]
        %v575 = vld [vmem:[#allocation7 + $0x838] sm:$0xff]
        %v576 = vld [vmem:[#allocation7 + $0x840] sm:$0xff]
        %v577 = vld [vmem:[#allocation7 + $0x848] sm:$0xff]
        %v578 = vld [vmem:[#allocation7 + $0x850] sm:$0xff]
        %v579 = vld [vmem:[#allocation7 + $0x858] sm:$0xff]
        %v580 = vld [vmem:[#allocation7 + $0x860] sm:$0xff]
        %v581 = vld [vmem:[#allocation7 + $0x868] sm:$0xff]
        %v582 = vld [vmem:[#allocation7 + $0x870] sm:$0xff]
        %v583 = vld [vmem:[#allocation7 + $0x878] sm:$0xff]
        %v584 = vld [vmem:[#allocation7 + $0x880] sm:$0xff]
        %v585 = vld [vmem:[#allocation7 + $0x888] sm:$0xff]
        %v586 = vld [vmem:[#allocation7 + $0x890] sm:$0xff]
        %v587 = vld [vmem:[#allocation7 + $0x898] sm:$0xff]
        %v588 = vld [vmem:[#allocation7 + $0x8a0] sm:$0xff]
        %v589 = vld [vmem:[#allocation7 + $0x8a8] sm:$0xff]
        %v590 = vld [vmem:[#allocation7 + $0x8b0] sm:$0xff]
        %v591 = vld [vmem:[#allocation7 + $0x8b8] sm:$0xff]
        %v592 = vld [vmem:[#allocation7 + $0x8c0] sm:$0xff]
        %v593 = vld [vmem:[#allocation7 + $0x8c8] sm:$0xff]
        %v594 = vld [vmem:[#allocation7 + $0x8d0] sm:$0xff]
        %v595 = vld [vmem:[#allocation7 + $0x8d8] sm:$0xff]
        %v596 = vld [vmem:[#allocation7 + $0x8e0] sm:$0xff]
        %v597 = vld [vmem:[#allocation7 + $0x8e8] sm:$0xff]
        %v598 = vld [vmem:[#allocation7 + $0x8f0] sm:$0xff]
        %v599 = vld [vmem:[#allocation7 + $0x8f8] sm:$0xff]
        %v600 = vld [vmem:[#allocation7 + $0x900] sm:$0xff]
        %v601 = vld [vmem:[#allocation7 + $0x908] sm:$0xff]
        %v602 = vld [vmem:[#allocation7 + $0x910] sm:$0xff]
        %v603 = vld [vmem:[#allocation7 + $0x918] sm:$0xff]
        %v604 = vld [vmem:[#allocation7 + $0x920] sm:$0xff]
        %v605 = vld [vmem:[#allocation7 + $0x928] sm:$0xff]
        %v606 = vld [vmem:[#allocation7 + $0x930] sm:$0xff]
        %v607 = vld [vmem:[#allocation7 + $0x938] sm:$0xff]
        %v608 = vld [vmem:[#allocation7 + $0x940] sm:$0xff]
        %v609 = vld [vmem:[#allocation7 + $0x948] sm:$0xff]
        %v610 = vld [vmem:[#allocation7 + $0x950] sm:$0xff]
        %v611 = vld [vmem:[#allocation7 + $0x958] sm:$0xff]
        %v612 = vld [vmem:[#allocation7 + $0x960] sm:$0xff]
        %v613 = vld [vmem:[#allocation7 + $0x968] sm:$0xff]
        %v614 = vld [vmem:[#allocation7 + $0x970] sm:$0xff]
        %v615 = vld [vmem:[#allocation7 + $0x978] sm:$0xff]
        %v616 = vld [vmem:[#allocation7 + $0x980] sm:$0xff]
        %v617 = vld [vmem:[#allocation7 + $0x988] sm:$0xff]
        %v618 = vld [vmem:[#allocation7 + $0x990] sm:$0xff]
        %v619 = vld [vmem:[#allocation7 + $0x998] sm:$0xff]
        %v620 = vld [vmem:[#allocation7 + $0x9a0] sm:$0xff]
        %v621 = vld [vmem:[#allocation7 + $0x9a8] sm:$0xff]
        %v622 = vld [vmem:[#allocation7 + $0x9b0] sm:$0xff]
        %v623 = vld [vmem:[#allocation7 + $0x9b8] sm:$0xff]
        %v624 = vld [vmem:[#allocation7 + $0x9c0] sm:$0xff]
        %v625 = vld [vmem:[#allocation7 + $0x9c8] sm:$0xff]
        %v626 = vld [vmem:[#allocation7 + $0x9d0] sm:$0xff]
        %v627 = vld [vmem:[#allocation7 + $0x9d8] sm:$0xff]
        %v628 = vld [vmem:[#allocation7 + $0x9e0] sm:$0xff]
        %v629 = vld [vmem:[#allocation7 + $0x9e8] sm:$0xff]
        %v630 = vld [vmem:[#allocation7 + $0x9f0] sm:$0xff]
        %v631 = vld [vmem:[#allocation7 + $0x9f8] sm:$0xff]
        %v632 = vld [vmem:[#allocation7 + $0xa00] sm:$0xff]
        %v633 = vld [vmem:[#allocation7 + $0xa08] sm:$0xff]
        %v634 = vld [vmem:[#allocation7 + $0xa10] sm:$0xff]
        %v635 = vld [vmem:[#allocation7 + $0xa18] sm:$0xff]
        %v636 = vld [vmem:[#allocation7 + $0xa20] sm:$0xff]
        %v637 = vld [vmem:[#allocation7 + $0xa28] sm:$0xff]
        %v638 = vld [vmem:[#allocation7 + $0xa30] sm:$0xff]
        %v639 = vld [vmem:[#allocation7 + $0xa38] sm:$0xff]
        %v640 = vld [vmem:[#allocation7 + $0xa40] sm:$0xff]
        %v641 = vld [vmem:[#allocation7 + $0xa48] sm:$0xff]
        %v642 = vld [vmem:[#allocation7 + $0xa50] sm:$0xff]
        %v643 = vld [vmem:[#allocation7 + $0xa58] sm:$0xff]
        %v644 = vld [vmem:[#allocation7 + $0xa60] sm:$0xff]
        %v645 = vld [vmem:[#allocation7 + $0xa68] sm:$0xff]
        %v646 = vld [vmem:[#allocation7 + $0xa70] sm:$0xff]
        %v647 = vld [vmem:[#allocation7 + $0xa78] sm:$0xff]
        %v648 = vld [vmem:[#allocation7 + $0xa80] sm:$0xff]
        %v649 = vld [vmem:[#allocation7 + $0xa88] sm:$0xff]
        %v650 = vld [vmem:[#allocation7 + $0xa90] sm:$0xff]
        %v651 = vld [vmem:[#allocation7 + $0xa98] sm:$0xff]
        %v652 = vld [vmem:[#allocation7 + $0xaa0] sm:$0xff]
        %v653 = vld [vmem:[#allocation7 + $0xaa8] sm:$0xff]
        %v654 = vld [vmem:[#allocation7 + $0xab0] sm:$0xff]
        %v655 = vld [vmem:[#allocation7 + $0xab8] sm:$0xff]
        %v656 = vld [vmem:[#allocation7 + $0xac0] sm:$0xff]
        %v657 = vld [vmem:[#allocation7 + $0xac8] sm:$0xff]
        %v658 = vld [vmem:[#allocation7 + $0xad0] sm:$0xff]
        %v659 = vld [vmem:[#allocation7 + $0xad8] sm:$0xff]
        %v660 = vld [vmem:[#allocation7 + $0xae0] sm:$0xff]
        %v661 = vld [vmem:[#allocation7 + $0xae8] sm:$0xff]
        %v662 = vld [vmem:[#allocation7 + $0xaf0] sm:$0xff]
        %v663 = vld [vmem:[#allocation7 + $0xaf8] sm:$0xff]
        %v664 = vld [vmem:[#allocation7 + $0xb00] sm:$0xff]
        %v665 = vld [vmem:[#allocation7 + $0xb08] sm:$0xff]
        %v666 = vld [vmem:[#allocation7 + $0xb10] sm:$0xff]
        %v667 = vld [vmem:[#allocation7 + $0xb18] sm:$0xff]
        %v668 = vld [vmem:[#allocation7 + $0xb20] sm:$0xff]
        %v669 = vld [vmem:[#allocation7 + $0xb28] sm:$0xff]
        %v670 = vld [vmem:[#allocation7 + $0xb30] sm:$0xff]
        %v671 = vld [vmem:[#allocation7 + $0xb38] sm:$0xff]
        %v672 = vld [vmem:[#allocation7 + $0xb40] sm:$0xff]
        %v673 = vld [vmem:[#allocation7 + $0xb48] sm:$0xff]
        %v674 = vld [vmem:[#allocation7 + $0xb50] sm:$0xff]
        %v675 = vld [vmem:[#allocation7 + $0xb58] sm:$0xff]
        %v676 = vld [vmem:[#allocation7 + $0xb60] sm:$0xff]
        %v677 = vld [vmem:[#allocation7 + $0xb68] sm:$0xff]
        %v678 = vld [vmem:[#allocation7 + $0xb70] sm:$0xff]
        %v679 = vld [vmem:[#allocation7 + $0xb78] sm:$0xff]
        %v680 = vld [vmem:[#allocation7 + $0xb80] sm:$0xff]
        %v681 = vld [vmem:[#allocation7 + $0xb88] sm:$0xff]
        %v682 = vld [vmem:[#allocation7 + $0xb90] sm:$0xff]
        %v683 = vld [vmem:[#allocation7 + $0xb98] sm:$0xff]
        %v684 = vld [vmem:[#allocation7 + $0xba0] sm:$0xff]
        %v685 = vld [vmem:[#allocation7 + $0xba8] sm:$0xff]
        %v686 = vld [vmem:[#allocation7 + $0xbb0] sm:$0xff]
        %v687 = vld [vmem:[#allocation7 + $0xbb8] sm:$0xff]
        %v688 = vld [vmem:[#allocation7 + $0xbc0] sm:$0xff]
        %v689 = vld [vmem:[#allocation7 + $0xbc8] sm:$0xff]
        %v690 = vld [vmem:[#allocation7 + $0xbd0] sm:$0xff]
        %v691 = vld [vmem:[#allocation7 + $0xbd8] sm:$0xff]
        %v692 = vld [vmem:[#allocation7 + $0xbe0] sm:$0xff]
        %v693 = vld [vmem:[#allocation7 + $0xbe8] sm:$0xff]
        %v694 = vld [vmem:[#allocation7 + $0xbf0] sm:$0xff]
        %v695 = vld [vmem:[#allocation7 + $0xbf8] sm:$0xff]
        %v696 = vld [vmem:[#allocation7 + $0xc00] sm:$0xff]
        %v697 = vld [vmem:[#allocation7 + $0xc08] sm:$0xff]
        %v698 = vld [vmem:[#allocation7 + $0xc10] sm:$0xff]
        %v699 = vld [vmem:[#allocation7 + $0xc18] sm:$0xff]
        %v700 = vld [vmem:[#allocation7 + $0xc20] sm:$0xff]
        %v701 = vld [vmem:[#allocation7 + $0xc28] sm:$0xff]
        %v702 = vld [vmem:[#allocation7 + $0xc30] sm:$0xff]
        %v703 = vld [vmem:[#allocation7 + $0xc38] sm:$0xff]
        %v704 = vld [vmem:[#allocation7 + $0xc40] sm:$0xff]
        %v705 = vld [vmem:[#allocation7 + $0xc48] sm:$0xff]
        %v706 = vld [vmem:[#allocation7 + $0xc50] sm:$0xff]
        %v707 = vld [vmem:[#allocation7 + $0xc58] sm:$0xff]
        %v708 = vld [vmem:[#allocation7 + $0xc60] sm:$0xff]
        %v709 = vld [vmem:[#allocation7 + $0xc68] sm:$0xff]
        %v710 = vld [vmem:[#allocation7 + $0xc70] sm:$0xff]
        %v711 = vld [vmem:[#allocation7 + $0xc78] sm:$0xff]
        %v712 = vld [vmem:[#allocation7 + $0xc80] sm:$0xff]
        %v713 = vld [vmem:[#allocation7 + $0xc88] sm:$0xff]
        %v714 = vld [vmem:[#allocation7 + $0xc90] sm:$0xff]
        %v715 = vld [vmem:[#allocation7 + $0xc98] sm:$0xff]
        %v716 = vld [vmem:[#allocation7 + $0xca0] sm:$0xff]
        %v717 = vld [vmem:[#allocation7 + $0xca8] sm:$0xff]
        %v718 = vld [vmem:[#allocation7 + $0xcb0] sm:$0xff]
        %v719 = vld [vmem:[#allocation7 + $0xcb8] sm:$0xff]
        %v720 = vld [vmem:[#allocation7 + $0xcc0] sm:$0xff]
        %v721 = vld [vmem:[#allocation7 + $0xcc8] sm:$0xff]
        %v722 = vld [vmem:[#allocation7 + $0xcd0] sm:$0xff]
        %v723 = vld [vmem:[#allocation7 + $0xcd8] sm:$0xff]
        %v724 = vld [vmem:[#allocation7 + $0xce0] sm:$0xff]
        %v725 = vld [vmem:[#allocation7 + $0xce8] sm:$0xff]
        %v726 = vld [vmem:[#allocation7 + $0xcf0] sm:$0xff]
        %v727 = vld [vmem:[#allocation7 + $0xcf8] sm:$0xff]
        %v728 = vld [vmem:[#allocation7 + $0xd00] sm:$0xff]
        %v729 = vld [vmem:[#allocation7 + $0xd08] sm:$0xff]
        %v730 = vld [vmem:[#allocation7 + $0xd10] sm:$0xff]
        %v731 = vld [vmem:[#allocation7 + $0xd18] sm:$0xff]
        %v732 = vld [vmem:[#allocation7 + $0xd20] sm:$0xff]
        %v733 = vld [vmem:[#allocation7 + $0xd28] sm:$0xff]
        %v734 = vld [vmem:[#allocation7 + $0xd30] sm:$0xff]
        %v735 = vld [vmem:[#allocation7 + $0xd38] sm:$0xff]
        %v736 = vld [vmem:[#allocation7 + $0xd40] sm:$0xff]
        %v737 = vld [vmem:[#allocation7 + $0xd48] sm:$0xff]
        %v738 = vld [vmem:[#allocation7 + $0xd50] sm:$0xff]
        %v739 = vld [vmem:[#allocation7 + $0xd58] sm:$0xff]
        %v740 = vld [vmem:[#allocation7 + $0xd60] sm:$0xff]
        %v741 = vld [vmem:[#allocation7 + $0xd68] sm:$0xff]
        %v742 = vld [vmem:[#allocation7 + $0xd70] sm:$0xff]
        %v743 = vld [vmem:[#allocation7 + $0xd78] sm:$0xff]
        %v744 = vld [vmem:[#allocation7 + $0xd80] sm:$0xff]
        %v745 = vld [vmem:[#allocation7 + $0xd88] sm:$0xff]
        %v746 = vld [vmem:[#allocation7 + $0xd90] sm:$0xff]
        %v747 = vld [vmem:[#allocation7 + $0xd98] sm:$0xff]
        %v748 = vld [vmem:[#allocation7 + $0xda0] sm:$0xff]
        %v749 = vld [vmem:[#allocation7 + $0xda8] sm:$0xff]
        %v750 = vld [vmem:[#allocation7 + $0xdb0] sm:$0xff]
        %v751 = vld [vmem:[#allocation7 + $0xdb8] sm:$0xff]
        %v752 = vld [vmem:[#allocation7 + $0xdc0] sm:$0xff]
        %v753 = vld [vmem:[#allocation7 + $0xdc8] sm:$0xff]
        %v754 = vld [vmem:[#allocation7 + $0xdd0] sm:$0xff]
        %v755 = vld [vmem:[#allocation7 + $0xdd8] sm:$0xff]
        %v756 = vld [vmem:[#allocation7 + $0xde0] sm:$0xff]
        %v757 = vld [vmem:[#allocation7 + $0xde8] sm:$0xff]
        %v758 = vld [vmem:[#allocation7 + $0xdf0] sm:$0xff]
        %v759 = vld [vmem:[#allocation7 + $0xdf8] sm:$0xff]
        %v760 = vld [vmem:[#allocation7 + $0xe00] sm:$0xff]
        %v761 = vld [vmem:[#allocation7 + $0xe08] sm:$0xff]
        %v762 = vld [vmem:[#allocation7 + $0xe10] sm:$0xff]
        %v763 = vld [vmem:[#allocation7 + $0xe18] sm:$0xff]
        %v764 = vld [vmem:[#allocation7 + $0xe20] sm:$0xff]
        %v765 = vld [vmem:[#allocation7 + $0xe28] sm:$0xff]
        %v766 = vld [vmem:[#allocation7 + $0xe30] sm:$0xff]
        %v767 = vld [vmem:[#allocation7 + $0xe38] sm:$0xff]
        %v768 = vld [vmem:[#allocation7 + $0xe40] sm:$0xff]
        %v769 = vld [vmem:[#allocation7 + $0xe48] sm:$0xff]
        %v770 = vld [vmem:[#allocation7 + $0xe50] sm:$0xff]
        %v771 = vld [vmem:[#allocation7 + $0xe58] sm:$0xff]
        %v772 = vld [vmem:[#allocation7 + $0xe60] sm:$0xff]
        %v773 = vld [vmem:[#allocation7 + $0xe68] sm:$0xff]
        %v774 = vld [vmem:[#allocation7 + $0xe70] sm:$0xff]
        %v775 = vld [vmem:[#allocation7 + $0xe78] sm:$0xff]
        %v776 = vld [vmem:[#allocation7 + $0xe80] sm:$0xff]
        %v777 = vld [vmem:[#allocation7 + $0xe88] sm:$0xff]
        %v778 = vld [vmem:[#allocation7 + $0xe90] sm:$0xff]
        %v779 = vld [vmem:[#allocation7 + $0xe98] sm:$0xff]
        %v780 = vld [vmem:[#allocation7 + $0xea0] sm:$0xff]
        %v781 = vld [vmem:[#allocation7 + $0xea8] sm:$0xff]
        %v782 = vld [vmem:[#allocation7 + $0xeb0] sm:$0xff]
        %v783 = vld [vmem:[#allocation7 + $0xeb8] sm:$0xff]
        %v784 = vld [vmem:[#allocation7 + $0xec0] sm:$0xff]
        %v785 = vld [vmem:[#allocation7 + $0xec8] sm:$0xff]
        %v786 = vld [vmem:[#allocation7 + $0xed0] sm:$0xff]
        %v787 = vld [vmem:[#allocation7 + $0xed8] sm:$0xff]
        %v788 = vld [vmem:[#allocation7 + $0xee0] sm:$0xff]
        %v789 = vld [vmem:[#allocation7 + $0xee8] sm:$0xff]
        %v790 = vld [vmem:[#allocation7 + $0xef0] sm:$0xff]
        %v791 = vld [vmem:[#allocation7 + $0xef8] sm:$0xff]
        %v792 = vld [vmem:[#allocation7 + $0xf00] sm:$0xff]
        %v793 = vld [vmem:[#allocation7 + $0xf08] sm:$0xff]
        %v794 = vld [vmem:[#allocation7 + $0xf10] sm:$0xff]
        %v795 = vld [vmem:[#allocation7 + $0xf18] sm:$0xff]
        %v796 = vld [vmem:[#allocation7 + $0xf20] sm:$0xff]
        %v797 = vld [vmem:[#allocation7 + $0xf28] sm:$0xff]
        %v798 = vld [vmem:[#allocation7 + $0xf30] sm:$0xff]
        %v799 = vld [vmem:[#allocation7 + $0xf38] sm:$0xff]
        %v800 = vld [vmem:[#allocation7 + $0xf40] sm:$0xff]
        %v801 = vld [vmem:[#allocation7 + $0xf48] sm:$0xff]
        %v802 = vld [vmem:[#allocation7 + $0xf50] sm:$0xff]
        %v803 = vld [vmem:[#allocation7 + $0xf58] sm:$0xff]
        %v804 = vld [vmem:[#allocation7 + $0xf60] sm:$0xff]
        %v805 = vld [vmem:[#allocation7 + $0xf68] sm:$0xff]
        %v806 = vld [vmem:[#allocation7 + $0xf70] sm:$0xff]
        %v807 = vld [vmem:[#allocation7 + $0xf78] sm:$0xff]
        %v808 = vld [vmem:[#allocation7 + $0xf80] sm:$0xff]
        %v809 = vld [vmem:[#allocation7 + $0xf88] sm:$0xff]
        %v810 = vld [vmem:[#allocation7 + $0xf90] sm:$0xff]
        %v811 = vld [vmem:[#allocation7 + $0xf98] sm:$0xff]
        %v812 = vld [vmem:[#allocation7 + $0xfa0] sm:$0xff]
        %v813 = vld [vmem:[#allocation7 + $0xfa8] sm:$0xff]
        %v814 = vld [vmem:[#allocation7 + $0xfb0] sm:$0xff]
        %v815 = vld [vmem:[#allocation7 + $0xfb8] sm:$0xff]
        %v816 = vld [vmem:[#allocation7 + $0xfc0] sm:$0xff]
        %v817 = vld [vmem:[#allocation7 + $0xfc8] sm:$0xff]
        %v818 = vld [vmem:[#allocation7 + $0xfd0] sm:$0xff]
        %v819 = vld [vmem:[#allocation7 + $0xfd8] sm:$0xff]
        %v820 = vld [vmem:[#allocation7 + $0xfe0] sm:$0xff]
        %v821 = vld [vmem:[#allocation7 + $0xfe8] sm:$0xff]
        %v822 = vld [vmem:[#allocation7 + $0xff0] sm:$0xff]
        %v823 = vld [vmem:[#allocation7 + $0xff8] sm:$0xff]
        %v824 = vld [vmem:[#allocation7 + $0x1000] sm:$0xff]
        %v825 = vld [vmem:[#allocation7 + $0x1008] sm:$0xff]
        %v826 = vld [vmem:[#allocation7 + $0x1010] sm:$0xff]
        %v827 = vld [vmem:[#allocation7 + $0x1018] sm:$0xff]
        %v828 = vld [vmem:[#allocation7 + $0x1020] sm:$0xff]
        %v829 = vld [vmem:[#allocation7 + $0x1028] sm:$0xff]
        %v830 = vld [vmem:[#allocation7 + $0x1030] sm:$0xff]
        %v831 = vld [vmem:[#allocation7 + $0x1038] sm:$0xff]
        %v832 = vld [vmem:[#allocation7 + $0x1040] sm:$0xff]
        %v833 = vld [vmem:[#allocation7 + $0x1048] sm:$0xff]
        %v834 = vld [vmem:[#allocation7 + $0x1050] sm:$0xff]
        %v835 = vld [vmem:[#allocation7 + $0x1058] sm:$0xff]
        %v836 = vld [vmem:[#allocation7 + $0x1060] sm:$0xff]
        %v837 = vld [vmem:[#allocation7 + $0x1068] sm:$0xff]
        %v838 = vld [vmem:[#allocation7 + $0x1070] sm:$0xff]
        %v839 = vld [vmem:[#allocation7 + $0x1078] sm:$0xff]
        %v840 = vld [vmem:[#allocation7 + $0x1080] sm:$0xff]
        %v841 = vld [vmem:[#allocation7 + $0x1088] sm:$0xff]
        %v842 = vld [vmem:[#allocation7 + $0x1090] sm:$0xff]
        %v843 = vld [vmem:[#allocation7 + $0x1098] sm:$0xff]
        %v844 = vld [vmem:[#allocation7 + $0x10a0] sm:$0xff]
        %v845 = vld [vmem:[#allocation7 + $0x10a8] sm:$0xff]
        %v846 = vld [vmem:[#allocation7 + $0x10b0] sm:$0xff]
        %v847 = vld [vmem:[#allocation7 + $0x10b8] sm:$0xff]
        %v848 = vld [vmem:[#allocation7 + $0x10c0] sm:$0xff]
        %v849 = vld [vmem:[#allocation7 + $0x10c8] sm:$0xff]
        %v850 = vld [vmem:[#allocation7 + $0x10d0] sm:$0xff]
        %v851 = vld [vmem:[#allocation7 + $0x10d8] sm:$0xff]
        %v852 = vld [vmem:[#allocation7 + $0x10e0] sm:$0xff]
        %v853 = vld [vmem:[#allocation7 + $0x10e8] sm:$0xff]
        %v854 = vld [vmem:[#allocation7 + $0x10f0] sm:$0xff]
        %v855 = vld [vmem:[#allocation7 + $0x10f8] sm:$0xff]
        %v856 = vld [vmem:[#allocation7 + $0x1100] sm:$0xff]
        %v857 = vld [vmem:[#allocation7 + $0x1108] sm:$0xff]
        %v858 = vld [vmem:[#allocation7 + $0x1110] sm:$0xff]
        %v859 = vld [vmem:[#allocation7 + $0x1118] sm:$0xff]
        %v860 = vld [vmem:[#allocation7 + $0x1120] sm:$0xff]
        %v861 = vld [vmem:[#allocation7 + $0x1128] sm:$0xff]
        %v862 = vld [vmem:[#allocation7 + $0x1130] sm:$0xff]
        %v863 = vld [vmem:[#allocation7 + $0x1138] sm:$0xff]
        %v864 = vld [vmem:[#allocation7 + $0x1140] sm:$0xff]
        %v865 = vld [vmem:[#allocation7 + $0x1148] sm:$0xff]
        %v866 = vld [vmem:[#allocation7 + $0x1150] sm:$0xff]
        %v867 = vld [vmem:[#allocation7 + $0x1158] sm:$0xff]
        %v868 = vld [vmem:[#allocation7 + $0x1160] sm:$0xff]
        %v869 = vld [vmem:[#allocation7 + $0x1168] sm:$0xff]
        %v870 = vld [vmem:[#allocation7 + $0x1170] sm:$0xff]
        %v871 = vld [vmem:[#allocation7 + $0x1178] sm:$0xff]
        %v872 = vld [vmem:[#allocation7 + $0x1180] sm:$0xff]
        %v873 = vld [vmem:[#allocation7 + $0x1188] sm:$0xff]
        %v874 = vld [vmem:[#allocation7 + $0x1190] sm:$0xff]
        %v875 = vld [vmem:[#allocation7 + $0x1198] sm:$0xff]
        %v876 = vld [vmem:[#allocation7 + $0x11a0] sm:$0xff]
        %v877 = vld [vmem:[#allocation7 + $0x11a8] sm:$0xff]
        %v878 = vld [vmem:[#allocation7 + $0x11b0] sm:$0xff]
        %v879 = vld [vmem:[#allocation7 + $0x11b8] sm:$0xff]
        %v880 = vld [vmem:[#allocation7 + $0x11c0] sm:$0xff]
        %v881 = vld [vmem:[#allocation7 + $0x11c8] sm:$0xff]
        %v882 = vld [vmem:[#allocation7 + $0x11d0] sm:$0xff]
        %v883 = vld [vmem:[#allocation7 + $0x11d8] sm:$0xff]
        %v884 = vld [vmem:[#allocation7 + $0x11e0] sm:$0xff]
        %v885 = vld [vmem:[#allocation7 + $0x11e8] sm:$0xff]
        %v886 = vld [vmem:[#allocation7 + $0x11f0] sm:$0xff]
        %v887 = vld [vmem:[#allocation7 + $0x11f8] sm:$0xff]
        %v888 = vld [vmem:[#allocation7 + $0x1200] sm:$0xff]
        %v889 = vld [vmem:[#allocation7 + $0x1208] sm:$0xff]
        %v890 = vld [vmem:[#allocation7 + $0x1210] sm:$0xff]
        %v891 = vld [vmem:[#allocation7 + $0x1218] sm:$0xff]
        %v892 = vld [vmem:[#allocation7 + $0x1220] sm:$0xff]
        %v893 = vld [vmem:[#allocation7 + $0x1228] sm:$0xff]
        %v894 = vld [vmem:[#allocation7 + $0x1230] sm:$0xff]
        %v895 = vld [vmem:[#allocation7 + $0x1238] sm:$0xff]
        %v896 = vld [vmem:[#allocation7 + $0x1240] sm:$0xff]
        %v897 = vld [vmem:[#allocation7 + $0x1248] sm:$0xff]
        %v898 = vld [vmem:[#allocation7 + $0x1250] sm:$0xff]
        %v899 = vld [vmem:[#allocation7 + $0x1258] sm:$0xff]
        %v900 = vld [vmem:[#allocation7 + $0x1260] sm:$0xff]
        %v901 = vld [vmem:[#allocation7 + $0x1268] sm:$0xff]
        %v902 = vld [vmem:[#allocation7 + $0x1270] sm:$0xff]
        %v903 = vld [vmem:[#allocation7 + $0x1278] sm:$0xff]
        %v904 = vld [vmem:[#allocation7 + $0x1280] sm:$0xff]
        %v905 = vld [vmem:[#allocation7 + $0x1288] sm:$0xff]
        %v906 = vld [vmem:[#allocation7 + $0x1290] sm:$0xff]
        %v907 = vld [vmem:[#allocation7 + $0x1298] sm:$0xff]
        %v908 = vld [vmem:[#allocation7 + $0x12a0] sm:$0xff]
        %v909 = vld [vmem:[#allocation7 + $0x12a8] sm:$0xff]
        %v910 = vld [vmem:[#allocation7 + $0x12b0] sm:$0xff]
        %v911 = vld [vmem:[#allocation7 + $0x12b8] sm:$0xff]
        %v912 = vld [vmem:[#allocation7 + $0x12c0] sm:$0xff]
        %v913 = vld [vmem:[#allocation7 + $0x12c8] sm:$0xff]
        %v914 = vld [vmem:[#allocation7 + $0x12d0] sm:$0xff]
        %v915 = vld [vmem:[#allocation7 + $0x12d8] sm:$0xff]
        %v916 = vld [vmem:[#allocation7 + $0x12e0] sm:$0xff]
        %v917 = vld [vmem:[#allocation7 + $0x12e8] sm:$0xff]
        %v918 = vld [vmem:[#allocation7 + $0x12f0] sm:$0xff]
        %v919 = vld [vmem:[#allocation7 + $0x12f8] sm:$0xff]
        %v920 = vld [vmem:[#allocation7 + $0x1300] sm:$0xff]
        %v921 = vld [vmem:[#allocation7 + $0x1308] sm:$0xff]
        %v922 = vld [vmem:[#allocation7 + $0x1310] sm:$0xff]
        %v923 = vld [vmem:[#allocation7 + $0x1318] sm:$0xff]
        %v924 = vld [vmem:[#allocation7 + $0x1320] sm:$0xff]
        %v925 = vld [vmem:[#allocation7 + $0x1328] sm:$0xff]
        %v926 = vld [vmem:[#allocation7 + $0x1330] sm:$0xff]
        %v927 = vld [vmem:[#allocation7 + $0x1338] sm:$0xff]
        %v928 = vld [vmem:[#allocation7 + $0x1340] sm:$0xff]
        %v929 = vld [vmem:[#allocation7 + $0x1348] sm:$0xff]
        %v930 = vld [vmem:[#allocation7 + $0x1350] sm:$0xff]
        %v931 = vld [vmem:[#allocation7 + $0x1358] sm:$0xff]
        %v932 = vld [vmem:[#allocation7 + $0x1360] sm:$0xff]
        %v933 = vld [vmem:[#allocation7 + $0x1368] sm:$0xff]
        %v934 = vld [vmem:[#allocation7 + $0x1370] sm:$0xff]
        %v935 = vld [vmem:[#allocation7 + $0x1378] sm:$0xff]
        %v936 = vld [vmem:[#allocation7 + $0x1380] sm:$0xff]
        %v937 = vld [vmem:[#allocation7 + $0x1388] sm:$0xff]
        %v938 = vld [vmem:[#allocation7 + $0x1390] sm:$0xff]
        %v939 = vld [vmem:[#allocation7 + $0x1398] sm:$0xff]
        %v940 = vld [vmem:[#allocation7 + $0x13a0] sm:$0xff]
        %v941 = vld [vmem:[#allocation7 + $0x13a8] sm:$0xff]
        %v942 = vld [vmem:[#allocation7 + $0x13b0] sm:$0xff]
        %v943 = vld [vmem:[#allocation7 + $0x13b8] sm:$0xff]
        %v944 = vld [vmem:[#allocation7 + $0x13c0] sm:$0xff]
        %v945 = vld [vmem:[#allocation7 + $0x13c8] sm:$0xff]
        %v946 = vld [vmem:[#allocation7 + $0x13d0] sm:$0xff]
        %v947 = vld [vmem:[#allocation7 + $0x13d8] sm:$0xff]
        %v948 = vld [vmem:[#allocation7 + $0x13e0] sm:$0xff]
        %v949 = vld [vmem:[#allocation7 + $0x13e8] sm:$0xff]
        %v950 = vld [vmem:[#allocation7 + $0x13f0] sm:$0xff]
        %v951 = vld [vmem:[#allocation7 + $0x13f8] sm:$0xff]
        %v952 = vld [vmem:[#allocation7 + $0x1400] sm:$0xff]
        %v953 = vld [vmem:[#allocation7 + $0x1408] sm:$0xff]
        %v954 = vld [vmem:[#allocation7 + $0x1410] sm:$0xff]
        %v955 = vld [vmem:[#allocation7 + $0x1418] sm:$0xff]
        %v956 = vld [vmem:[#allocation7 + $0x1420] sm:$0xff]
        %v957 = vld [vmem:[#allocation7 + $0x1428] sm:$0xff]
        %v958 = vld [vmem:[#allocation7 + $0x1430] sm:$0xff]
        %v959 = vld [vmem:[#allocation7 + $0x1438] sm:$0xff]
        %v960 = vld [vmem:[#allocation7 + $0x1440] sm:$0xff]
        %v961 = vld [vmem:[#allocation7 + $0x1448] sm:$0xff]
        %v962 = vld [vmem:[#allocation7 + $0x1450] sm:$0xff]
        %v963 = vld [vmem:[#allocation7 + $0x1458] sm:$0xff]
        %v964 = vld [vmem:[#allocation7 + $0x1460] sm:$0xff]
        %v965 = vld [vmem:[#allocation7 + $0x1468] sm:$0xff]
        %v966 = vld [vmem:[#allocation7 + $0x1470] sm:$0xff]
        %v967 = vld [vmem:[#allocation7 + $0x1478] sm:$0xff]
        %v968 = vld [vmem:[#allocation7 + $0x1480] sm:$0xff]
        %v969 = vld [vmem:[#allocation7 + $0x1488] sm:$0xff]
        %v970 = vld [vmem:[#allocation7 + $0x1490] sm:$0xff]
        %v971 = vld [vmem:[#allocation7 + $0x1498] sm:$0xff]
        %v972 = vld [vmem:[#allocation7 + $0x14a0] sm:$0xff]
        %v973 = vld [vmem:[#allocation7 + $0x14a8] sm:$0xff]
        %v974 = vld [vmem:[#allocation7 + $0x14b0] sm:$0xff]
        %v975 = vld [vmem:[#allocation7 + $0x14b8] sm:$0xff]
        %v976 = vld [vmem:[#allocation7 + $0x14c0] sm:$0xff]
        %v977 = vld [vmem:[#allocation7 + $0x14c8] sm:$0xff]
        %v978 = vld [vmem:[#allocation7 + $0x14d0] sm:$0xff]
        %v979 = vld [vmem:[#allocation7 + $0x14d8] sm:$0xff]
        %v980 = vld [vmem:[#allocation7 + $0x14e0] sm:$0xff]
        %v981 = vld [vmem:[#allocation7 + $0x14e8] sm:$0xff]
        %v982 = vld [vmem:[#allocation7 + $0x14f0] sm:$0xff]
        %v983 = vld [vmem:[#allocation7 + $0x14f8] sm:$0xff]
        %v984 = vld [vmem:[#allocation7 + $0x1500] sm:$0xff]
        %v985 = vld [vmem:[#allocation7 + $0x1508] sm:$0xff]
        %v986 = vld [vmem:[#allocation7 + $0x1510] sm:$0xff]
        %v987 = vld [vmem:[#allocation7 + $0x1518] sm:$0xff]
        %v988 = vld [vmem:[#allocation7 + $0x1520] sm:$0xff]
        %v989 = vld [vmem:[#allocation7 + $0x1528] sm:$0xff]
        %v990 = vld [vmem:[#allocation7 + $0x1530] sm:$0xff]
        %v991 = vld [vmem:[#allocation7 + $0x1538] sm:$0xff]
        %v992 = vld [vmem:[#allocation7 + $0x1540] sm:$0xff]
        %v993 = vld [vmem:[#allocation7 + $0x1548] sm:$0xff]
        %v994 = vld [vmem:[#allocation7 + $0x1550] sm:$0xff]
        %v995 = vld [vmem:[#allocation7 + $0x1558] sm:$0xff]
        %v996 = vld [vmem:[#allocation7 + $0x1560] sm:$0xff]
        %v997 = vld [vmem:[#allocation7 + $0x1568] sm:$0xff]
        %v998 = vld [vmem:[#allocation7 + $0x1570] sm:$0xff]
        %v999 = vld [vmem:[#allocation7 + $0x1578] sm:$0xff]
        %v1000 = vld [vmem:[#allocation7 + $0x1580] sm:$0xff]
        %v1001 = vld [vmem:[#allocation7 + $0x1588] sm:$0xff]
        %v1002 = vld [vmem:[#allocation7 + $0x1590] sm:$0xff]
        %v1003 = vld [vmem:[#allocation7 + $0x1598] sm:$0xff]
        %v1004 = vld [vmem:[#allocation7 + $0x15a0] sm:$0xff]
        %v1005 = vld [vmem:[#allocation7 + $0x15a8] sm:$0xff]
        %v1006 = vld [vmem:[#allocation7 + $0x15b0] sm:$0xff]
        %v1007 = vld [vmem:[#allocation7 + $0x15b8] sm:$0xff]
        %v1008 = vld [vmem:[#allocation7 + $0x15c0] sm:$0xff]
        %v1009 = vld [vmem:[#allocation7 + $0x15c8] sm:$0xff]
        %v1010 = vld [vmem:[#allocation7 + $0x15d0] sm:$0xff]
        %v1011 = vld [vmem:[#allocation7 + $0x15d8] sm:$0xff]
        %v1012 = vld [vmem:[#allocation7 + $0x15e0] sm:$0xff]
        %v1013 = vld [vmem:[#allocation7 + $0x15e8] sm:$0xff]
        %v1014 = vld [vmem:[#allocation7 + $0x15f0] sm:$0xff]
        %v1015 = vld [vmem:[#allocation7 + $0x15f8] sm:$0xff]
        %v1016 = vld [vmem:[#allocation7 + $0x1600] sm:$0xff]
        %v1017 = vld [vmem:[#allocation7 + $0x1608] sm:$0xff]
        %v1018 = vld [vmem:[#allocation7 + $0x1610] sm:$0xff]
        %v1019 = vld [vmem:[#allocation7 + $0x1618] sm:$0xff]
        %v1020 = vld [vmem:[#allocation7 + $0x1620] sm:$0xff]
        %v1021 = vld [vmem:[#allocation7 + $0x1628] sm:$0xff]
        %v1022 = vld [vmem:[#allocation7 + $0x1630] sm:$0xff]
        %v1023 = vld [vmem:[#allocation7 + $0x1638] sm:$0xff]
        %v1024 = vld [vmem:[#allocation7 + $0x1640] sm:$0xff]
        %v1025 = vld [vmem:[#allocation7 + $0x1648] sm:$0xff]
        %v1026 = vld [vmem:[#allocation7 + $0x1650] sm:$0xff]
        %v1027 = vld [vmem:[#allocation7 + $0x1658] sm:$0xff]
        %v1028 = vld [vmem:[#allocation7 + $0x1660] sm:$0xff]
        %v1029 = vld [vmem:[#allocation7 + $0x1668] sm:$0xff]
        %v1030 = vld [vmem:[#allocation7 + $0x1670] sm:$0xff]
        %v1031 = vld [vmem:[#allocation7 + $0x1678] sm:$0xff]
        %v1032 = vld [vmem:[#allocation7 + $0x1680] sm:$0xff]
        %v1033 = vld [vmem:[#allocation7 + $0x1688] sm:$0xff]
        %v1034 = vld [vmem:[#allocation7 + $0x1690] sm:$0xff]
        %v1035 = vld [vmem:[#allocation7 + $0x1698] sm:$0xff]
        %v1036 = vld [vmem:[#allocation7 + $0x16a0] sm:$0xff]
        %v1037 = vld [vmem:[#allocation7 + $0x16a8] sm:$0xff]
        %v1038 = vld [vmem:[#allocation7 + $0x16b0] sm:$0xff]
        %v1039 = vld [vmem:[#allocation7 + $0x16b8] sm:$0xff]
        %v1040 = vld [vmem:[#allocation7 + $0x16c0] sm:$0xff]
        %v1041 = vld [vmem:[#allocation7 + $0x16c8] sm:$0xff]
        %v1042 = vld [vmem:[#allocation7 + $0x16d0] sm:$0xff]
        %v1043 = vld [vmem:[#allocation7 + $0x16d8] sm:$0xff]
        %v1044 = vld [vmem:[#allocation7 + $0x16e0] sm:$0xff]
        %v1045 = vld [vmem:[#allocation7 + $0x16e8] sm:$0xff]
        %v1046 = vld [vmem:[#allocation7 + $0x16f0] sm:$0xff]
        %v1047 = vld [vmem:[#allocation7 + $0x16f8] sm:$0xff]
        %v1048 = vld [vmem:[#allocation7 + $0x1700] sm:$0xff]
        %v1049 = vld [vmem:[#allocation7 + $0x1708] sm:$0xff]
        %v1050 = vld [vmem:[#allocation7 + $0x1710] sm:$0xff]
        %v1051 = vld [vmem:[#allocation7 + $0x1718] sm:$0xff]
        %v1052 = vld [vmem:[#allocation7 + $0x1720] sm:$0xff]
        %v1053 = vld [vmem:[#allocation7 + $0x1728] sm:$0xff]
        %v1054 = vld [vmem:[#allocation7 + $0x1730] sm:$0xff]
        %v1055 = vld [vmem:[#allocation7 + $0x1738] sm:$0xff]
        %v1056 = vld [vmem:[#allocation7 + $0x1740] sm:$0xff]
        %v1057 = vld [vmem:[#allocation7 + $0x1748] sm:$0xff]
        %v1058 = vld [vmem:[#allocation7 + $0x1750] sm:$0xff]
        %v1059 = vld [vmem:[#allocation7 + $0x1758] sm:$0xff]
        %v1060 = vld [vmem:[#allocation7 + $0x1760] sm:$0xff]
        %v1061 = vld [vmem:[#allocation7 + $0x1768] sm:$0xff]
        %v1062 = vld [vmem:[#allocation7 + $0x1770] sm:$0xff]
        %v1063 = vld [vmem:[#allocation7 + $0x1778] sm:$0xff]
        %v1064 = vld [vmem:[#allocation7 + $0x1780] sm:$0xff]
        %v1065 = vld [vmem:[#allocation7 + $0x1788] sm:$0xff]
        %v1066 = vld [vmem:[#allocation7 + $0x1790] sm:$0xff]
        %v1067 = vld [vmem:[#allocation7 + $0x1798] sm:$0xff]
        %v1068 = vld [vmem:[#allocation7 + $0x17a0] sm:$0xff]
        %v1069 = vld [vmem:[#allocation7 + $0x17a8] sm:$0xff]
        %v1070 = vld [vmem:[#allocation7 + $0x17b0] sm:$0xff]
        %v1071 = vld [vmem:[#allocation7 + $0x17b8] sm:$0xff]
        %v1072 = vld [vmem:[#allocation7 + $0x17c0] sm:$0xff]
        %v1073 = vld [vmem:[#allocation7 + $0x17c8] sm:$0xff]
        %v1074 = vld [vmem:[#allocation7 + $0x17d0] sm:$0xff]
        %v1075 = vld [vmem:[#allocation7 + $0x17d8] sm:$0xff]
        %v1076 = vld [vmem:[#allocation7 + $0x17e0] sm:$0xff]
        %v1077 = vld [vmem:[#allocation7 + $0x17e8] sm:$0xff]
        %v1078 = vld [vmem:[#allocation7 + $0x17f0] sm:$0xff]
        %v1079 = vld [vmem:[#allocation7 + $0x17f8] sm:$0xff]
        %v1080 = vld [vmem:[#allocation7 + $0x1800] sm:$0xff]
        %v1081 = vld [vmem:[#allocation7 + $0x1808] sm:$0xff]
        %v1082 = vld [vmem:[#allocation7 + $0x1810] sm:$0xff]
        %v1083 = vld [vmem:[#allocation7 + $0x1818] sm:$0xff]
        %v1084 = vld [vmem:[#allocation7 + $0x1820] sm:$0xff]
        %v1085 = vld [vmem:[#allocation7 + $0x1828] sm:$0xff]
        %v1086 = vld [vmem:[#allocation7 + $0x1830] sm:$0xff]
        %v1087 = vld [vmem:[#allocation7 + $0x1838] sm:$0xff]
        %v1088 = vld [vmem:[#allocation7 + $0x1840] sm:$0xff]
        %v1089 = vld [vmem:[#allocation7 + $0x1848] sm:$0xff]
        %v1090 = vld [vmem:[#allocation7 + $0x1850] sm:$0xff]
        %v1091 = vld [vmem:[#allocation7 + $0x1858] sm:$0xff]
        %v1092 = vld [vmem:[#allocation7 + $0x1860] sm:$0xff]
        %v1093 = vld [vmem:[#allocation7 + $0x1868] sm:$0xff]
        %v1094 = vld [vmem:[#allocation7 + $0x1870] sm:$0xff]
        %v1095 = vld [vmem:[#allocation7 + $0x1878] sm:$0xff]
        %v1096 = vld [vmem:[#allocation7 + $0x1880] sm:$0xff]
        %v1097 = vld [vmem:[#allocation7 + $0x1888] sm:$0xff]
        %v1098 = vld [vmem:[#allocation7 + $0x1890] sm:$0xff]
        %v1099 = vld [vmem:[#allocation7 + $0x1898] sm:$0xff]
        %v1100 = vld [vmem:[#allocation7 + $0x18a0] sm:$0xff]
        %v1101 = vld [vmem:[#allocation7 + $0x18a8] sm:$0xff]
        %v1102 = vld [vmem:[#allocation7 + $0x18b0] sm:$0xff]
        %v1103 = vld [vmem:[#allocation7 + $0x18b8] sm:$0xff]
        %v1104 = vld [vmem:[#allocation7 + $0x18c0] sm:$0xff]
        %v1105 = vld [vmem:[#allocation7 + $0x18c8] sm:$0xff]
        %v1106 = vld [vmem:[#allocation7 + $0x18d0] sm:$0xff]
        %v1107 = vld [vmem:[#allocation7 + $0x18d8] sm:$0xff]
        %v1108 = vld [vmem:[#allocation7 + $0x18e0] sm:$0xff]
        %v1109 = vld [vmem:[#allocation7 + $0x18e8] sm:$0xff]
        %v1110 = vld [vmem:[#allocation7 + $0x18f0] sm:$0xff]
        %v1111 = vld [vmem:[#allocation7 + $0x18f8] sm:$0xff]
        %v1112 = vld [vmem:[#allocation7 + $0x1900] sm:$0xff]
        %v1113 = vld [vmem:[#allocation7 + $0x1908] sm:$0xff]
        %v1114 = vld [vmem:[#allocation7 + $0x1910] sm:$0xff]
        %v1115 = vld [vmem:[#allocation7 + $0x1918] sm:$0xff]
        %v1116 = vld [vmem:[#allocation7 + $0x1920] sm:$0xff]
        %v1117 = vld [vmem:[#allocation7 + $0x1928] sm:$0xff]
        %v1118 = vld [vmem:[#allocation7 + $0x1930] sm:$0xff]
        %v1119 = vld [vmem:[#allocation7 + $0x1938] sm:$0xff]
        %v1120 = vld [vmem:[#allocation7 + $0x1940] sm:$0xff]
        %v1121 = vld [vmem:[#allocation7 + $0x1948] sm:$0xff]
        %v1122 = vld [vmem:[#allocation7 + $0x1950] sm:$0xff]
        %v1123 = vld [vmem:[#allocation7 + $0x1958] sm:$0xff]
        %v1124 = vld [vmem:[#allocation7 + $0x1960] sm:$0xff]
        %v1125 = vld [vmem:[#allocation7 + $0x1968] sm:$0xff]
        %v1126 = vld [vmem:[#allocation7 + $0x1970] sm:$0xff]
        %v1127 = vld [vmem:[#allocation7 + $0x1978] sm:$0xff]
        %v1128 = vld [vmem:[#allocation7 + $0x1980] sm:$0xff]
        %v1129 = vld [vmem:[#allocation7 + $0x1988] sm:$0xff]
        %v1130 = vld [vmem:[#allocation7 + $0x1990] sm:$0xff]
        %v1131 = vld [vmem:[#allocation7 + $0x1998] sm:$0xff]
        %v1132 = vld [vmem:[#allocation7 + $0x19a0] sm:$0xff]
        %v1133 = vld [vmem:[#allocation7 + $0x19a8] sm:$0xff]
        %v1134 = vld [vmem:[#allocation7 + $0x19b0] sm:$0xff]
        %v1135 = vld [vmem:[#allocation7 + $0x19b8] sm:$0xff]
        %v1136 = vld [vmem:[#allocation7 + $0x19c0] sm:$0xff]
        %v1137 = vld [vmem:[#allocation7 + $0x19c8] sm:$0xff]
        %v1138 = vld [vmem:[#allocation7 + $0x19d0] sm:$0xff]
        %v1139 = vld [vmem:[#allocation7 + $0x19d8] sm:$0xff]
        %v1140 = vld [vmem:[#allocation7 + $0x19e0] sm:$0xff]
        %v1141 = vld [vmem:[#allocation7 + $0x19e8] sm:$0xff]
        %v1142 = vld [vmem:[#allocation7 + $0x19f0] sm:$0xff]
        %v1143 = vld [vmem:[#allocation7 + $0x19f8] sm:$0xff]
        %v1144 = vld [vmem:[#allocation7 + $0x1a00] sm:$0xff]
        %v1145 = vld [vmem:[#allocation7 + $0x1a08] sm:$0xff]
        %v1146 = vld [vmem:[#allocation7 + $0x1a10] sm:$0xff]
        %v1147 = vld [vmem:[#allocation7 + $0x1a18] sm:$0xff]
        %v1148 = vld [vmem:[#allocation7 + $0x1a20] sm:$0xff]
        %v1149 = vld [vmem:[#allocation7 + $0x1a28] sm:$0xff]
        %v1150 = vld [vmem:[#allocation7 + $0x1a30] sm:$0xff]
        %v1151 = vld [vmem:[#allocation7 + $0x1a38] sm:$0xff]
        %v1152 = vld [vmem:[#allocation7 + $0x1a40] sm:$0xff]
        %v1153 = vld [vmem:[#allocation7 + $0x1a48] sm:$0xff]
        %v1154 = vld [vmem:[#allocation7 + $0x1a50] sm:$0xff]
        %v1155 = vld [vmem:[#allocation7 + $0x1a58] sm:$0xff]
        %v1156 = vld [vmem:[#allocation7 + $0x1a60] sm:$0xff]
        %v1157 = vld [vmem:[#allocation7 + $0x1a68] sm:$0xff]
        %v1158 = vld [vmem:[#allocation7 + $0x1a70] sm:$0xff]
        %v1159 = vld [vmem:[#allocation7 + $0x1a78] sm:$0xff]
        %v1160 = vld [vmem:[#allocation7 + $0x1a80] sm:$0xff]
        %v1161 = vld [vmem:[#allocation7 + $0x1a88] sm:$0xff]
        %v1162 = vld [vmem:[#allocation7 + $0x1a90] sm:$0xff]
        %v1163 = vld [vmem:[#allocation7 + $0x1a98] sm:$0xff]
        %v1164 = vld [vmem:[#allocation7 + $0x1aa0] sm:$0xff]
        %v1165 = vld [vmem:[#allocation7 + $0x1aa8] sm:$0xff]
        %v1166 = vld [vmem:[#allocation7 + $0x1ab0] sm:$0xff]
        %v1167 = vld [vmem:[#allocation7 + $0x1ab8] sm:$0xff]
        %v1168 = vld [vmem:[#allocation7 + $0x1ac0] sm:$0xff]
        %v1169 = vld [vmem:[#allocation7 + $0x1ac8] sm:$0xff]
        %v1170 = vld [vmem:[#allocation7 + $0x1ad0] sm:$0xff]
        %v1171 = vld [vmem:[#allocation7 + $0x1ad8] sm:$0xff]
        %v1172 = vld [vmem:[#allocation7 + $0x1ae0] sm:$0xff]
        %v1173 = vld [vmem:[#allocation7 + $0x1ae8] sm:$0xff]
        %v1174 = vld [vmem:[#allocation7 + $0x1af0] sm:$0xff]
        %v1175 = vld [vmem:[#allocation7 + $0x1af8] sm:$0xff]
        %v1176 = vld [vmem:[#allocation7 + $0x1b00] sm:$0xff]
        %v1177 = vld [vmem:[#allocation7 + $0x1b08] sm:$0xff]
        %v1178 = vld [vmem:[#allocation7 + $0x1b10] sm:$0xff]
        %v1179 = vld [vmem:[#allocation7 + $0x1b18] sm:$0xff]
        %v1180 = vld [vmem:[#allocation7 + $0x1b20] sm:$0xff]
        %v1181 = vld [vmem:[#allocation7 + $0x1b28] sm:$0xff]
        %v1182 = vld [vmem:[#allocation7 + $0x1b30] sm:$0xff]
        %v1183 = vld [vmem:[#allocation7 + $0x1b38] sm:$0xff]
        %v1184 = vld [vmem:[#allocation7 + $0x1b40] sm:$0xff]
        %v1185 = vld [vmem:[#allocation7 + $0x1b48] sm:$0xff]
        %v1186 = vld [vmem:[#allocation7 + $0x1b50] sm:$0xff]
        %v1187 = vld [vmem:[#allocation7 + $0x1b58] sm:$0xff]
        %v1188 = vld [vmem:[#allocation7 + $0x1b60] sm:$0xff]
        %v1189 = vld [vmem:[#allocation7 + $0x1b68] sm:$0xff]
        %v1190 = vld [vmem:[#allocation7 + $0x1b70] sm:$0xff]
        %v1191 = vld [vmem:[#allocation7 + $0x1b78] sm:$0xff]
        %v1192 = vld [vmem:[#allocation7 + $0x1b80] sm:$0xff]
        %v1193 = vld [vmem:[#allocation7 + $0x1b88] sm:$0xff]
        %v1194 = vld [vmem:[#allocation7 + $0x1b90] sm:$0xff]
        %v1195 = vld [vmem:[#allocation7 + $0x1b98] sm:$0xff]
        %v1196 = vld [vmem:[#allocation7 + $0x1ba0] sm:$0xff]
        %v1197 = vld [vmem:[#allocation7 + $0x1ba8] sm:$0xff]
        %v1198 = vld [vmem:[#allocation7 + $0x1bb0] sm:$0xff]
        %v1199 = vld [vmem:[#allocation7 + $0x1bb8] sm:$0xff]
        %v1200 = vld [vmem:[#allocation7 + $0x1bc0] sm:$0xff]
        %v1201 = vld [vmem:[#allocation7 + $0x1bc8] sm:$0xff]
        %v1202 = vld [vmem:[#allocation7 + $0x1bd0] sm:$0xff]
        %v1203 = vld [vmem:[#allocation7 + $0x1bd8] sm:$0xff]
        %v1204 = vld [vmem:[#allocation7 + $0x1be0] sm:$0xff]
        %v1205 = vld [vmem:[#allocation7 + $0x1be8] sm:$0xff]
        %v1206 = vld [vmem:[#allocation7 + $0x1bf0] sm:$0xff]
        %v1207 = vld [vmem:[#allocation7 + $0x1bf8] sm:$0xff]
        %v1208 = vld [vmem:[#allocation7 + $0x1c00] sm:$0xff]
        %v1209 = vld [vmem:[#allocation7 + $0x1c08] sm:$0xff]
        %v1210 = vld [vmem:[#allocation7 + $0x1c10] sm:$0xff]
        %v1211 = vld [vmem:[#allocation7 + $0x1c18] sm:$0xff]
        %v1212 = vld [vmem:[#allocation7 + $0x1c20] sm:$0xff]
        %v1213 = vld [vmem:[#allocation7 + $0x1c28] sm:$0xff]
        %v1214 = vld [vmem:[#allocation7 + $0x1c30] sm:$0xff]
        %v1215 = vld [vmem:[#allocation7 + $0x1c38] sm:$0xff]
        %v1216 = vld [vmem:[#allocation7 + $0x1c40] sm:$0xff]
        %v1217 = vld [vmem:[#allocation7 + $0x1c48] sm:$0xff]
        %v1218 = vld [vmem:[#allocation7 + $0x1c50] sm:$0xff]
        %v1219 = vld [vmem:[#allocation7 + $0x1c58] sm:$0xff]
        %v1220 = vld [vmem:[#allocation7 + $0x1c60] sm:$0xff]
        %v1221 = vld [vmem:[#allocation7 + $0x1c68] sm:$0xff]
        %v1222 = vld [vmem:[#allocation7 + $0x1c70] sm:$0xff]
        %v1223 = vld [vmem:[#allocation7 + $0x1c78] sm:$0xff]
        %v1224 = vld [vmem:[#allocation7 + $0x1c80] sm:$0xff]
        %v1225 = vld [vmem:[#allocation7 + $0x1c88] sm:$0xff]
        %v1226 = vld [vmem:[#allocation7 + $0x1c90] sm:$0xff]
        %v1227 = vld [vmem:[#allocation7 + $0x1c98] sm:$0xff]
        %v1228 = vld [vmem:[#allocation7 + $0x1ca0] sm:$0xff]
        %v1229 = vld [vmem:[#allocation7 + $0x1ca8] sm:$0xff]
        %v1230 = vld [vmem:[#allocation7 + $0x1cb0] sm:$0xff]
        %v1231 = vld [vmem:[#allocation7 + $0x1cb8] sm:$0xff]
        %v1232 = vld [vmem:[#allocation7 + $0x1cc0] sm:$0xff]
        %v1233 = vld [vmem:[#allocation7 + $0x1cc8] sm:$0xff]
        %v1234 = vld [vmem:[#allocation7 + $0x1cd0] sm:$0xff]
        %v1235 = vld [vmem:[#allocation7 + $0x1cd8] sm:$0xff]
        %v1236 = vld [vmem:[#allocation7 + $0x1ce0] sm:$0xff]
        %v1237 = vld [vmem:[#allocation7 + $0x1ce8] sm:$0xff]
        %v1238 = vld [vmem:[#allocation7 + $0x1cf0] sm:$0xff]
        %v1239 = vld [vmem:[#allocation7 + $0x1cf8] sm:$0xff]
        %v1240 = vld [vmem:[#allocation7 + $0x1d00] sm:$0xff]
        %v1241 = vld [vmem:[#allocation7 + $0x1d08] sm:$0xff]
        %v1242 = vld [vmem:[#allocation7 + $0x1d10] sm:$0xff]
        %v1243 = vld [vmem:[#allocation7 + $0x1d18] sm:$0xff]
        %v1244 = vld [vmem:[#allocation7 + $0x1d20] sm:$0xff]
        %v1245 = vld [vmem:[#allocation7 + $0x1d28] sm:$0xff]
        %v1246 = vld [vmem:[#allocation7 + $0x1d30] sm:$0xff]
        %v1247 = vld [vmem:[#allocation7 + $0x1d38] sm:$0xff]
        %v1248 = vld [vmem:[#allocation7 + $0x1d40] sm:$0xff]
        %v1249 = vld [vmem:[#allocation7 + $0x1d48] sm:$0xff]
        %v1250 = vld [vmem:[#allocation7 + $0x1d50] sm:$0xff]
        %v1251 = vld [vmem:[#allocation7 + $0x1d58] sm:$0xff]
        %v1252 = vld [vmem:[#allocation7 + $0x1d60] sm:$0xff]
        %v1253 = vld [vmem:[#allocation7 + $0x1d68] sm:$0xff]
        %v1254 = vld [vmem:[#allocation7 + $0x1d70] sm:$0xff]
        %v1255 = vld [vmem:[#allocation7 + $0x1d78] sm:$0xff]
        %v1256 = vld [vmem:[#allocation7 + $0x1d80] sm:$0xff]
        %v1257 = vld [vmem:[#allocation7 + $0x1d88] sm:$0xff]
        %v1258 = vld [vmem:[#allocation7 + $0x1d90] sm:$0xff]
        %v1259 = vld [vmem:[#allocation7 + $0x1d98] sm:$0xff]
        %v1260 = vld [vmem:[#allocation7 + $0x1da0] sm:$0xff]
        %v1261 = vld [vmem:[#allocation7 + $0x1da8] sm:$0xff]
        %v1262 = vld [vmem:[#allocation7 + $0x1db0] sm:$0xff]
        %v1263 = vld [vmem:[#allocation7 + $0x1db8] sm:$0xff]
        %v1264 = vld [vmem:[#allocation7 + $0x1dc0] sm:$0xff]
        %v1265 = vld [vmem:[#allocation7 + $0x1dc8] sm:$0xff]
        %v1266 = vld [vmem:[#allocation7 + $0x1dd0] sm:$0xff]
        %v1267 = vld [vmem:[#allocation7 + $0x1dd8] sm:$0xff]
        %v1268 = vld [vmem:[#allocation7 + $0x1de0] sm:$0xff]
        %v1269 = vld [vmem:[#allocation7 + $0x1de8] sm:$0xff]
        %v1270 = vld [vmem:[#allocation7 + $0x1df0] sm:$0xff]
        %v1271 = vld [vmem:[#allocation7 + $0x1df8] sm:$0xff]
        %v1272 = vld [vmem:[#allocation7 + $0x1e00] sm:$0xff]
        %v1273 = vld [vmem:[#allocation7 + $0x1e08] sm:$0xff]
        %v1274 = vld [vmem:[#allocation7 + $0x1e10] sm:$0xff]
        %v1275 = vld [vmem:[#allocation7 + $0x1e18] sm:$0xff]
        %v1276 = vld [vmem:[#allocation7 + $0x1e20] sm:$0xff]
        %v1277 = vld [vmem:[#allocation7 + $0x1e28] sm:$0xff]
        %v1278 = vld [vmem:[#allocation7 + $0x1e30] sm:$0xff]
        %v1279 = vld [vmem:[#allocation7 + $0x1e38] sm:$0xff]
        %v1280 = vld [vmem:[#allocation7 + $0x1e40] sm:$0xff]
        %v1281 = vld [vmem:[#allocation7 + $0x1e48] sm:$0xff]
        %v1282 = vld [vmem:[#allocation7 + $0x1e50] sm:$0xff]
        %v1283 = vld [vmem:[#allocation7 + $0x1e58] sm:$0xff]
        %v1284 = vld [vmem:[#allocation7 + $0x1e60] sm:$0xff]
        %v1285 = vld [vmem:[#allocation7 + $0x1e68] sm:$0xff]
        %v1286 = vld [vmem:[#allocation7 + $0x1e70] sm:$0xff]
        %v1287 = vld [vmem:[#allocation7 + $0x1e78] sm:$0xff]
        %v1288 = vld [vmem:[#allocation7 + $0x1e80] sm:$0xff]
        %v1289 = vld [vmem:[#allocation7 + $0x1e88] sm:$0xff]
        %v1290 = vld [vmem:[#allocation7 + $0x1e90] sm:$0xff]
        %v1291 = vld [vmem:[#allocation7 + $0x1e98] sm:$0xff]
        %v1292 = vld [vmem:[#allocation7 + $0x1ea0] sm:$0xff]
        %v1293 = vld [vmem:[#allocation7 + $0x1ea8] sm:$0xff]
        %v1294 = vld [vmem:[#allocation7 + $0x1eb0] sm:$0xff]
        %v1295 = vld [vmem:[#allocation7 + $0x1eb8] sm:$0xff]
        %v1296 = vld [vmem:[#allocation7 + $0x1ec0] sm:$0xff]
        %v1297 = vld [vmem:[#allocation7 + $0x1ec8] sm:$0xff]
        %v1298 = vld [vmem:[#allocation7 + $0x1ed0] sm:$0xff]
        %v1299 = vld [vmem:[#allocation7 + $0x1ed8] sm:$0xff]
        %v1300 = vld [vmem:[#allocation7 + $0x1ee0] sm:$0xff]
        %v1301 = vld [vmem:[#allocation7 + $0x1ee8] sm:$0xff]
        %v1302 = vld [vmem:[#allocation7 + $0x1ef0] sm:$0xff]
        %v1303 = vld [vmem:[#allocation7 + $0x1ef8] sm:$0xff]
        %v1304 = vld [vmem:[#allocation7 + $0x1f00] sm:$0xff]
        %v1305 = vld [vmem:[#allocation7 + $0x1f08] sm:$0xff]
        %v1306 = vld [vmem:[#allocation7 + $0x1f10] sm:$0xff]
        %v1307 = vld [vmem:[#allocation7 + $0x1f18] sm:$0xff]
        %v1308 = vld [vmem:[#allocation7 + $0x1f20] sm:$0xff]
        %v1309 = vld [vmem:[#allocation7 + $0x1f28] sm:$0xff]
        %v1310 = vld [vmem:[#allocation7 + $0x1f30] sm:$0xff]
        %v1311 = vld [vmem:[#allocation7 + $0x1f38] sm:$0xff]
        %v1312 = vld [vmem:[#allocation7 + $0x1f40] sm:$0xff]
        %v1313 = vld [vmem:[#allocation7 + $0x1f48] sm:$0xff]
        %v1314 = vld [vmem:[#allocation7 + $0x1f50] sm:$0xff]
        %v1315 = vld [vmem:[#allocation7 + $0x1f58] sm:$0xff]
        %v1316 = vld [vmem:[#allocation7 + $0x1f60] sm:$0xff]
        %v1317 = vld [vmem:[#allocation7 + $0x1f68] sm:$0xff]
        %v1318 = vld [vmem:[#allocation7 + $0x1f70] sm:$0xff]
        %v1319 = vld [vmem:[#allocation7 + $0x1f78] sm:$0xff]
        %v1320 = vld [vmem:[#allocation7 + $0x1f80] sm:$0xff]
        %v1321 = vld [vmem:[#allocation7 + $0x1f88] sm:$0xff]
        %v1322 = vld [vmem:[#allocation7 + $0x1f90] sm:$0xff]
        %v1323 = vld [vmem:[#allocation7 + $0x1f98] sm:$0xff]
        %v1324 = vld [vmem:[#allocation7 + $0x1fa0] sm:$0xff]
        %v1325 = vld [vmem:[#allocation7 + $0x1fa8] sm:$0xff]
        %v1326 = vld [vmem:[#allocation7 + $0x1fb0] sm:$0xff]
        %v1327 = vld [vmem:[#allocation7 + $0x1fb8] sm:$0xff]
        %v1328 = vld [vmem:[#allocation7 + $0x1fc0] sm:$0xff]
        %v1329 = vld [vmem:[#allocation7 + $0x1fc8] sm:$0xff]
        %v1330 = vld [vmem:[#allocation7 + $0x1fd0] sm:$0xff]
        %v1331 = vld [vmem:[#allocation7 + $0x1fd8] sm:$0xff]
        %v1332 = vld [vmem:[#allocation7 + $0x1fe0] sm:$0xff]
        %v1333 = vld [vmem:[#allocation7 + $0x1fe8] sm:$0xff]
        %v1334 = vld [vmem:[#allocation7 + $0x1ff0] sm:$0xff]
        %v1335 = vld [vmem:[#allocation7 + $0x1ff8] sm:$0xff]
        %v1336 = vld [vmem:[#allocation7 + $0x2000] sm:$0xff]
        %v1337 = vld [vmem:[#allocation7 + $0x2008] sm:$0xff]
        %v1338 = vld [vmem:[#allocation7 + $0x2010] sm:$0xff]
        %v1339 = vld [vmem:[#allocation7 + $0x2018] sm:$0xff]
        %v1340 = vld [vmem:[#allocation7 + $0x2020] sm:$0xff]
        %v1341 = vld [vmem:[#allocation7 + $0x2028] sm:$0xff]
        %v1342 = vld [vmem:[#allocation7 + $0x2030] sm:$0xff]
        %v1343 = vld [vmem:[#allocation7 + $0x2038] sm:$0xff]
        %v1344 = vld [vmem:[#allocation7 + $0x2040] sm:$0xff]
        %v1345 = vld [vmem:[#allocation7 + $0x2048] sm:$0xff]
        %v1346 = vld [vmem:[#allocation7 + $0x2050] sm:$0xff]
        %v1347 = vld [vmem:[#allocation7 + $0x2058] sm:$0xff]
        %v1348 = vld [vmem:[#allocation7 + $0x2060] sm:$0xff]
        %v1349 = vld [vmem:[#allocation7 + $0x2068] sm:$0xff]
        %v1350 = vld [vmem:[#allocation7 + $0x2070] sm:$0xff]
        %v1351 = vld [vmem:[#allocation7 + $0x2078] sm:$0xff]
        %v1352 = vld [vmem:[#allocation7 + $0x2080] sm:$0xff]
        %v1353 = vld [vmem:[#allocation7 + $0x2088] sm:$0xff]
        %v1354 = vld [vmem:[#allocation7 + $0x2090] sm:$0xff]
        %v1355 = vld [vmem:[#allocation7 + $0x2098] sm:$0xff]
        %v1356 = vld [vmem:[#allocation7 + $0x20a0] sm:$0xff]
        %v1357 = vld [vmem:[#allocation7 + $0x20a8] sm:$0xff]
        %v1358 = vld [vmem:[#allocation7 + $0x20b0] sm:$0xff]
        %v1359 = vld [vmem:[#allocation7 + $0x20b8] sm:$0xff]
        %v1360 = vld [vmem:[#allocation7 + $0x20c0] sm:$0xff]
        %v1361 = vld [vmem:[#allocation7 + $0x20c8] sm:$0xff]
        %v1362 = vld [vmem:[#allocation7 + $0x20d0] sm:$0xff]
        %v1363 = vld [vmem:[#allocation7 + $0x20d8] sm:$0xff]
        %v1364 = vld [vmem:[#allocation7 + $0x20e0] sm:$0xff]
        %v1365 = vld [vmem:[#allocation7 + $0x20e8] sm:$0xff]
        %v1366 = vld [vmem:[#allocation7 + $0x20f0] sm:$0xff]
        %v1367 = vld [vmem:[#allocation7 + $0x20f8] sm:$0xff]
        %v1368 = vld [vmem:[#allocation7 + $0x2100] sm:$0xff]
        %v1369 = vld [vmem:[#allocation7 + $0x2108] sm:$0xff]
        %v1370 = vld [vmem:[#allocation7 + $0x2110] sm:$0xff]
        %v1371 = vld [vmem:[#allocation7 + $0x2118] sm:$0xff]
        %v1372 = vld [vmem:[#allocation7 + $0x2120] sm:$0xff]
        %v1373 = vld [vmem:[#allocation7 + $0x2128] sm:$0xff]
        %v1374 = vld [vmem:[#allocation7 + $0x2130] sm:$0xff]
        %v1375 = vld [vmem:[#allocation7 + $0x2138] sm:$0xff]
        %v1376 = vld [vmem:[#allocation7 + $0x2140] sm:$0xff]
        %v1377 = vld [vmem:[#allocation7 + $0x2148] sm:$0xff]
        %v1378 = vld [vmem:[#allocation7 + $0x2150] sm:$0xff]
        %v1379 = vld [vmem:[#allocation7 + $0x2158] sm:$0xff]
        %v1380 = vld [vmem:[#allocation7 + $0x2160] sm:$0xff]
        %v1381 = vld [vmem:[#allocation7 + $0x2168] sm:$0xff]
        %v1382 = vld [vmem:[#allocation7 + $0x2170] sm:$0xff]
        %v1383 = vld [vmem:[#allocation7 + $0x2178] sm:$0xff]
        %v1384 = vld [vmem:[#allocation7 + $0x2180] sm:$0xff]
        %v1385 = vld [vmem:[#allocation7 + $0x2188] sm:$0xff]
        %v1386 = vld [vmem:[#allocation7 + $0x2190] sm:$0xff]
        %v1387 = vld [vmem:[#allocation7 + $0x2198] sm:$0xff]
        %v1388 = vld [vmem:[#allocation7 + $0x21a0] sm:$0xff]
        %v1389 = vld [vmem:[#allocation7 + $0x21a8] sm:$0xff]
        %v1390 = vld [vmem:[#allocation7 + $0x21b0] sm:$0xff]
        %v1391 = vld [vmem:[#allocation7 + $0x21b8] sm:$0xff]
        %v1392 = vld [vmem:[#allocation7 + $0x21c0] sm:$0xff]
        %v1393 = vld [vmem:[#allocation7 + $0x21c8] sm:$0xff]
        %v1394 = vld [vmem:[#allocation7 + $0x21d0] sm:$0xff]
        %v1395 = vld [vmem:[#allocation7 + $0x21d8] sm:$0xff]
        %v1396 = vld [vmem:[#allocation7 + $0x21e0] sm:$0xff]
        %v1397 = vld [vmem:[#allocation7 + $0x21e8] sm:$0xff]
        %v1398 = vld [vmem:[#allocation7 + $0x21f0] sm:$0xff]
        %v1399 = vld [vmem:[#allocation7 + $0x21f8] sm:$0xff]
        %v1400 = vld [vmem:[#allocation7 + $0x2200] sm:$0xff]
        %v1401 = vld [vmem:[#allocation7 + $0x2208] sm:$0xff]
        %v1402 = vld [vmem:[#allocation7 + $0x2210] sm:$0xff]
        %v1403 = vld [vmem:[#allocation7 + $0x2218] sm:$0xff]
        %v1404 = vld [vmem:[#allocation7 + $0x2220] sm:$0xff]
        %v1405 = vld [vmem:[#allocation7 + $0x2228] sm:$0xff]
        %v1406 = vld [vmem:[#allocation7 + $0x2230] sm:$0xff]
        %v1407 = vld [vmem:[#allocation7 + $0x2238] sm:$0xff]
        %v1408 = vld [vmem:[#allocation7 + $0x2240] sm:$0xff]
        %v1409 = vld [vmem:[#allocation7 + $0x2248] sm:$0xff]
        %v1410 = vld [vmem:[#allocation7 + $0x2250] sm:$0xff]
        %v1411 = vld [vmem:[#allocation7 + $0x2258] sm:$0xff]
        %v1412 = vld [vmem:[#allocation7 + $0x2260] sm:$0xff]
        %v1413 = vld [vmem:[#allocation7 + $0x2268] sm:$0xff]
        %v1414 = vld [vmem:[#allocation7 + $0x2270] sm:$0xff]
        %v1415 = vld [vmem:[#allocation7 + $0x2278] sm:$0xff]
        %v1416 = vld [vmem:[#allocation7 + $0x2280] sm:$0xff]
        %v1417 = vld [vmem:[#allocation7 + $0x2288] sm:$0xff]
        %v1418 = vld [vmem:[#allocation7 + $0x2290] sm:$0xff]
        %v1419 = vld [vmem:[#allocation7 + $0x2298] sm:$0xff]
        %v1420 = vld [vmem:[#allocation7 + $0x22a0] sm:$0xff]
        %v1421 = vld [vmem:[#allocation7 + $0x22a8] sm:$0xff]
        %v1422 = vld [vmem:[#allocation7 + $0x22b0] sm:$0xff]
        %v1423 = vld [vmem:[#allocation7 + $0x22b8] sm:$0xff]
        %v1424 = vld [vmem:[#allocation7 + $0x22c0] sm:$0xff]
        %v1425 = vld [vmem:[#allocation7 + $0x22c8] sm:$0xff]
        %v1426 = vld [vmem:[#allocation7 + $0x22d0] sm:$0xff]
        %v1427 = vld [vmem:[#allocation7 + $0x22d8] sm:$0xff]
        %v1428 = vld [vmem:[#allocation7 + $0x22e0] sm:$0xff]
        %v1429 = vld [vmem:[#allocation7 + $0x22e8] sm:$0xff]
        %v1430 = vld [vmem:[#allocation7 + $0x22f0] sm:$0xff]
        %v1431 = vld [vmem:[#allocation7 + $0x22f8] sm:$0xff]
        %v1432 = vld [vmem:[#allocation7 + $0x2300] sm:$0xff]
        %v1433 = vld [vmem:[#allocation7 + $0x2308] sm:$0xff]
        %v1434 = vld [vmem:[#allocation7 + $0x2310] sm:$0xff]
        %v1435 = vld [vmem:[#allocation7 + $0x2318] sm:$0xff]
        %v1436 = vld [vmem:[#allocation7 + $0x2320] sm:$0xff]
        %v1437 = vld [vmem:[#allocation7 + $0x2328] sm:$0xff]
        %v1438 = vld [vmem:[#allocation7 + $0x2330] sm:$0xff]
        %v1439 = vld [vmem:[#allocation7 + $0x2338] sm:$0xff]
        %v1440 = vld [vmem:[#allocation7 + $0x2340] sm:$0xff]
        %v1441 = vld [vmem:[#allocation7 + $0x2348] sm:$0xff]
        %v1442 = vld [vmem:[#allocation7 + $0x2350] sm:$0xff]
        %v1443 = vld [vmem:[#allocation7 + $0x2358] sm:$0xff]
        %v1444 = vld [vmem:[#allocation7 + $0x2360] sm:$0xff]
        %v1445 = vld [vmem:[#allocation7 + $0x2368] sm:$0xff]
        %v1446 = vld [vmem:[#allocation7 + $0x2370] sm:$0xff]
        %v1447 = vld [vmem:[#allocation7 + $0x2378] sm:$0xff]
        %v1448 = vld [vmem:[#allocation7 + $0x2380] sm:$0xff]
        %v1449 = vld [vmem:[#allocation7 + $0x2388] sm:$0xff]
        %v1450 = vld [vmem:[#allocation7 + $0x2390] sm:$0xff]
        %v1451 = vld [vmem:[#allocation7 + $0x2398] sm:$0xff]
        %v1452 = vld [vmem:[#allocation7 + $0x23a0] sm:$0xff]
        %v1453 = vld [vmem:[#allocation7 + $0x23a8] sm:$0xff]
        %v1454 = vld [vmem:[#allocation7 + $0x23b0] sm:$0xff]
        %v1455 = vld [vmem:[#allocation7 + $0x23b8] sm:$0xff]
        %v1456 = vld [vmem:[#allocation7 + $0x23c0] sm:$0xff]
        %v1457 = vld [vmem:[#allocation7 + $0x23c8] sm:$0xff]
        %v1458 = vld [vmem:[#allocation7 + $0x23d0] sm:$0xff]
        %v1459 = vld [vmem:[#allocation7 + $0x23d8] sm:$0xff]
        %v1460 = vld [vmem:[#allocation7 + $0x23e0] sm:$0xff]
        %v1461 = vld [vmem:[#allocation7 + $0x23e8] sm:$0xff]
        %v1462 = vld [vmem:[#allocation7 + $0x23f0] sm:$0xff]
        %v1463 = vld [vmem:[#allocation7 + $0x23f8] sm:$0xff]
        %v1464 = vld [vmem:[#allocation7 + $0x2400] sm:$0xff]
        %v1465 = vld [vmem:[#allocation7 + $0x2408] sm:$0xff]
        %v1466 = vld [vmem:[#allocation7 + $0x2410] sm:$0xff]
        %v1467 = vld [vmem:[#allocation7 + $0x2418] sm:$0xff]
        %v1468 = vld [vmem:[#allocation7 + $0x2420] sm:$0xff]
        %v1469 = vld [vmem:[#allocation7 + $0x2428] sm:$0xff]
        %v1470 = vld [vmem:[#allocation7 + $0x2430] sm:$0xff]
        %v1471 = vld [vmem:[#allocation7 + $0x2438] sm:$0xff]
        %v1472 = vld [vmem:[#allocation7 + $0x2440] sm:$0xff]
        %v1473 = vld [vmem:[#allocation7 + $0x2448] sm:$0xff]
        %v1474 = vld [vmem:[#allocation7 + $0x2450] sm:$0xff]
        %v1475 = vld [vmem:[#allocation7 + $0x2458] sm:$0xff]
        %v1476 = vld [vmem:[#allocation7 + $0x2460] sm:$0xff]
        %v1477 = vld [vmem:[#allocation7 + $0x2468] sm:$0xff]
        %v1478 = vld [vmem:[#allocation7 + $0x2470] sm:$0xff]
        %v1479 = vld [vmem:[#allocation7 + $0x2478] sm:$0xff]
        %v1480 = vld [vmem:[#allocation7 + $0x2480] sm:$0xff]
        %v1481 = vld [vmem:[#allocation7 + $0x2488] sm:$0xff]
        %v1482 = vld [vmem:[#allocation7 + $0x2490] sm:$0xff]
        %v1483 = vld [vmem:[#allocation7 + $0x2498] sm:$0xff]
        %v1484 = vld [vmem:[#allocation7 + $0x24a0] sm:$0xff]
        %v1485 = vld [vmem:[#allocation7 + $0x24a8] sm:$0xff]
        %v1486 = vld [vmem:[#allocation7 + $0x24b0] sm:$0xff]
        %v1487 = vld [vmem:[#allocation7 + $0x24b8] sm:$0xff]
        %v1488 = vld [vmem:[#allocation7 + $0x24c0] sm:$0xff]
        %v1489 = vld [vmem:[#allocation7 + $0x24c8] sm:$0xff]
        %v1490 = vld [vmem:[#allocation7 + $0x24d0] sm:$0xff]
        %v1491 = vld [vmem:[#allocation7 + $0x24d8] sm:$0xff]
        %v1492 = vld [vmem:[#allocation7 + $0x24e0] sm:$0xff]
        %v1493 = vld [vmem:[#allocation7 + $0x24e8] sm:$0xff]
        %v1494 = vld [vmem:[#allocation7 + $0x24f0] sm:$0xff]
        %v1495 = vld [vmem:[#allocation7 + $0x24f8] sm:$0xff]
        %v1496 = vld [vmem:[#allocation7 + $0x2500] sm:$0xff]
        %v1497 = vld [vmem:[#allocation7 + $0x2508] sm:$0xff]
        %v1498 = vld [vmem:[#allocation7 + $0x2510] sm:$0xff]
        %v1499 = vld [vmem:[#allocation7 + $0x2518] sm:$0xff]
        %v1500 = vld [vmem:[#allocation7 + $0x2520] sm:$0xff]
        %v1501 = vld [vmem:[#allocation7 + $0x2528] sm:$0xff]
        %v1502 = vld [vmem:[#allocation7 + $0x2530] sm:$0xff]
        %v1503 = vld [vmem:[#allocation7 + $0x2538] sm:$0xff]
        %v1504 = vld [vmem:[#allocation7 + $0x2540] sm:$0xff]
        %v1505 = vld [vmem:[#allocation7 + $0x2548] sm:$0xff]
        %v1506 = vld [vmem:[#allocation7 + $0x2550] sm:$0xff]
        %v1507 = vld [vmem:[#allocation7 + $0x2558] sm:$0xff]
        %v1508 = vld [vmem:[#allocation7 + $0x2560] sm:$0xff]
        %v1509 = vld [vmem:[#allocation7 + $0x2568] sm:$0xff]
        %v1510 = vld [vmem:[#allocation7 + $0x2570] sm:$0xff]
        %v1511 = vld [vmem:[#allocation7 + $0x2578] sm:$0xff]
        %v1512 = vld [vmem:[#allocation7 + $0x2580] sm:$0xff]
        %v1513 = vld [vmem:[#allocation7 + $0x2588] sm:$0xff]
        %v1514 = vld [vmem:[#allocation7 + $0x2590] sm:$0xff]
        %v1515 = vld [vmem:[#allocation7 + $0x2598] sm:$0xff]
        %v1516 = vld [vmem:[#allocation7 + $0x25a0] sm:$0xff]
        %v1517 = vld [vmem:[#allocation7 + $0x25a8] sm:$0xff]
        %v1518 = vld [vmem:[#allocation7 + $0x25b0] sm:$0xff]
        %v1519 = vld [vmem:[#allocation7 + $0x25b8] sm:$0xff]
        %v1520 = vld [vmem:[#allocation7 + $0x25c0] sm:$0xff]
        %v1521 = vld [vmem:[#allocation7 + $0x25c8] sm:$0xff]
        %v1522 = vld [vmem:[#allocation7 + $0x25d0] sm:$0xff]
        %v1523 = vld [vmem:[#allocation7 + $0x25d8] sm:$0xff]
        %v1524 = vld [vmem:[#allocation7 + $0x25e0] sm:$0xff]
        %v1525 = vld [vmem:[#allocation7 + $0x25e8] sm:$0xff]
        %v1526 = vld [vmem:[#allocation7 + $0x25f0] sm:$0xff]
        %v1527 = vld [vmem:[#allocation7 + $0x25f8] sm:$0xff]
        %v1528 = vld [vmem:[#allocation7 + $0x2600] sm:$0xff]
        %v1529 = vld [vmem:[#allocation7 + $0x2608] sm:$0xff]
        %v1530 = vld [vmem:[#allocation7 + $0x2610] sm:$0xff]
        %v1531 = vld [vmem:[#allocation7 + $0x2618] sm:$0xff]
        %v1532 = vld [vmem:[#allocation7 + $0x2620] sm:$0xff]
        %v1533 = vld [vmem:[#allocation7 + $0x2628] sm:$0xff]
        %v1534 = vld [vmem:[#allocation7 + $0x2630] sm:$0xff]
        %v1535 = vld [vmem:[#allocation7 + $0x2638] sm:$0xff]
        %v1536 = vld [vmem:[#allocation7 + $0x2640] sm:$0xff]
        %v1537 = vld [vmem:[#allocation7 + $0x2648] sm:$0xff]
        %v1538 = vld [vmem:[#allocation7 + $0x2650] sm:$0xff]
        %v1539 = vld [vmem:[#allocation7 + $0x2658] sm:$0xff]
        %v1540 = vld [vmem:[#allocation7 + $0x2660] sm:$0xff]
        %v1541 = vld [vmem:[#allocation7 + $0x2668] sm:$0xff]
        %v1542 = vld [vmem:[#allocation7 + $0x2670] sm:$0xff]
        %v1543 = vld [vmem:[#allocation7 + $0x2678] sm:$0xff]
        %v1544 = vld [vmem:[#allocation7 + $0x2680] sm:$0xff]
        %v1545 = vld [vmem:[#allocation7 + $0x2688] sm:$0xff]
        %v1546 = vld [vmem:[#allocation7 + $0x2690] sm:$0xff]
        %v1547 = vld [vmem:[#allocation7 + $0x2698] sm:$0xff]
        %v1548 = vld [vmem:[#allocation7 + $0x26a0] sm:$0xff]
        %v1549 = vld [vmem:[#allocation7 + $0x26a8] sm:$0xff]
        %v1550 = vld [vmem:[#allocation7 + $0x26b0] sm:$0xff]
        %v1551 = vld [vmem:[#allocation7 + $0x26b8] sm:$0xff]
        %v1552 = vld [vmem:[#allocation7 + $0x26c0] sm:$0xff]
        %v1553 = vld [vmem:[#allocation7 + $0x26c8] sm:$0xff]
        %v1554 = vld [vmem:[#allocation7 + $0x26d0] sm:$0xff]
        %v1555 = vld [vmem:[#allocation7 + $0x26d8] sm:$0xff]
        %v1556 = vld [vmem:[#allocation7 + $0x26e0] sm:$0xff]
        %v1557 = vld [vmem:[#allocation7 + $0x26e8] sm:$0xff]
        %v1558 = vld [vmem:[#allocation7 + $0x26f0] sm:$0xff]
        %v1559 = vld [vmem:[#allocation7 + $0x26f8] sm:$0xff]
        %v1560 = vld [vmem:[#allocation7 + $0x2700] sm:$0xff]
        %v1561 = vld [vmem:[#allocation7 + $0x2708] sm:$0xff]
        %v1562 = vld [vmem:[#allocation7 + $0x2710] sm:$0xff]
        %v1563 = vld [vmem:[#allocation7 + $0x2718] sm:$0xff]
        %v1564 = vld [vmem:[#allocation7 + $0x2720] sm:$0xff]
        %v1565 = vld [vmem:[#allocation7 + $0x2728] sm:$0xff]
        %v1566 = vld [vmem:[#allocation7 + $0x2730] sm:$0xff]
        %v1567 = vld [vmem:[#allocation7 + $0x2738] sm:$0xff]
        %v1568 = vld [vmem:[#allocation7 + $0x2740] sm:$0xff]
        %v1569 = vld [vmem:[#allocation7 + $0x2748] sm:$0xff]
        %v1570 = vld [vmem:[#allocation7 + $0x2750] sm:$0xff]
        %v1571 = vld [vmem:[#allocation7 + $0x2758] sm:$0xff]
        %v1572 = vld [vmem:[#allocation7 + $0x2760] sm:$0xff]
        %v1573 = vld [vmem:[#allocation7 + $0x2768] sm:$0xff]
        %v1574 = vld [vmem:[#allocation7 + $0x2770] sm:$0xff]
        %v1575 = vld [vmem:[#allocation7 + $0x2778] sm:$0xff]
        %v1576 = vld [vmem:[#allocation7 + $0x2780] sm:$0xff]
        %v1577 = vld [vmem:[#allocation7 + $0x2788] sm:$0xff]
        %v1578 = vld [vmem:[#allocation7 + $0x2790] sm:$0xff]
        %v1579 = vld [vmem:[#allocation7 + $0x2798] sm:$0xff]
        %v1580 = vld [vmem:[#allocation7 + $0x27a0] sm:$0xff]
        %v1581 = vld [vmem:[#allocation7 + $0x27a8] sm:$0xff]
        %v1582 = vld [vmem:[#allocation7 + $0x27b0] sm:$0xff]
        %v1583 = vld [vmem:[#allocation7 + $0x27b8] sm:$0xff]
        %v1584 = vld [vmem:[#allocation7 + $0x27c0] sm:$0xff]
        %v1585 = vld [vmem:[#allocation7 + $0x27c8] sm:$0xff]
        %v1586 = vld [vmem:[#allocation7 + $0x27d0] sm:$0xff]
        %v1587 = vld [vmem:[#allocation7 + $0x27d8] sm:$0xff]
        %v1588 = vld [vmem:[#allocation7 + $0x27e0] sm:$0xff]
        %v1589 = vld [vmem:[#allocation7 + $0x27e8] sm:$0xff]
        %v1590 = vld [vmem:[#allocation7 + $0x27f0] sm:$0xff]
        %v1591 = vld [vmem:[#allocation7 + $0x27f8] sm:$0xff]
        %v1592 = vld [vmem:[%s253] sm:$0xff]
        %v1593 = vld [vmem:[%s253 + $0x8] sm:$0xff]
        %v1594 = vld [vmem:[#allocation8] sm:$0xff]
        %v1595 = vld [vmem:[#allocation8 + $0x8] sm:$0xff]
        %v1596 = vld [vmem:[#allocation8 + $0x10] sm:$0xff]
        %v1597 = vld [vmem:[#allocation8 + $0x18] sm:$0xff]
        %v1598 = vld [vmem:[#allocation8 + $0x20] sm:$0xff]
        %v1599 = vld [vmem:[#allocation8 + $0x28] sm:$0xff]
        %v1600 = vld [vmem:[#allocation8 + $0x30] sm:$0xff]
        %v1601 = vld [vmem:[#allocation8 + $0x38] sm:$0xff]
        %v1602 = vld [vmem:[#allocation8 + $0x40] sm:$0xff]
        %v1603 = vld [vmem:[#allocation8 + $0x48] sm:$0xff]
        %v1604 = vld [vmem:[#allocation8 + $0x50] sm:$0xff]
        %v1605 = vld [vmem:[#allocation8 + $0x58] sm:$0xff]
        %v1606 = vld [vmem:[#allocation8 + $0x60] sm:$0xff]
        %v1607 = vld [vmem:[#allocation8 + $0x68] sm:$0xff]
        %v1608 = vld [vmem:[#allocation8 + $0x70] sm:$0xff]
        %v1609 = vld [vmem:[#allocation8 + $0x78] sm:$0xff]
        %v1610 = vld [vmem:[#allocation8 + $0x80] sm:$0xff]
        %v1611 = vld [vmem:[#allocation8 + $0x88] sm:$0xff]
        %v1612 = vld [vmem:[#allocation8 + $0x90] sm:$0xff]
        %v1613 = vld [vmem:[#allocation8 + $0x98] sm:$0xff]
        %v1614 = vld [vmem:[#allocation8 + $0xa0] sm:$0xff]
        %v1615 = vld [vmem:[#allocation8 + $0xa8] sm:$0xff]
        %v1616 = vld [vmem:[#allocation8 + $0xb0] sm:$0xff]
        %v1617 = vld [vmem:[#allocation8 + $0xb8] sm:$0xff]
        %v1618 = vld [vmem:[#allocation8 + $0xc0] sm:$0xff]
        %v1619 = vld [vmem:[#allocation8 + $0xc8] sm:$0xff]
        %v1620 = vld [vmem:[#allocation8 + $0xd0] sm:$0xff]
        %v1621 = vld [vmem:[#allocation8 + $0xd8] sm:$0xff]
        %v1622 = vld [vmem:[#allocation8 + $0xe0] sm:$0xff]
        %v1623 = vld [vmem:[#allocation8 + $0xe8] sm:$0xff]
        %v1624 = vld [vmem:[#allocation8 + $0xf0] sm:$0xff]
        %v1625 = vld [vmem:[#allocation8 + $0xf8] sm:$0xff]
        %v1626 = vld [vmem:[#allocation8 + $0x100] sm:$0xff]
        %v1627 = vld [vmem:[#allocation8 + $0x108] sm:$0xff]
        %v1628 = vld [vmem:[#allocation8 + $0x110] sm:$0xff]
        %v1629 = vld [vmem:[#allocation8 + $0x118] sm:$0xff]
        %v1630 = vld [vmem:[#allocation8 + $0x120] sm:$0xff]
        %v1631 = vld [vmem:[#allocation8 + $0x128] sm:$0xff]
        %v1632 = vld [vmem:[#allocation8 + $0x130] sm:$0xff]
        %v1633 = vld [vmem:[#allocation8 + $0x138] sm:$0xff]
        %v1634 = vld [vmem:[#allocation8 + $0x140] sm:$0xff]
        %v1635 = vld [vmem:[#allocation8 + $0x148] sm:$0xff]
        %v1636 = vld [vmem:[#allocation8 + $0x150] sm:$0xff]
        %v1637 = vld [vmem:[#allocation8 + $0x158] sm:$0xff]
        %v1638 = vld [vmem:[#allocation8 + $0x160] sm:$0xff]
        %v1639 = vld [vmem:[#allocation8 + $0x168] sm:$0xff]
        %v1640 = vld [vmem:[#allocation8 + $0x170] sm:$0xff]
        %v1641 = vld [vmem:[#allocation8 + $0x178] sm:$0xff]
        %v1642 = vld [vmem:[#allocation8 + $0x180] sm:$0xff]
        %v1643 = vld [vmem:[#allocation8 + $0x188] sm:$0xff]
        %v1644 = vld [vmem:[#allocation8 + $0x190] sm:$0xff]
        %v1645 = vld [vmem:[#allocation8 + $0x198] sm:$0xff]
        %v1646 = vld [vmem:[#allocation8 + $0x1a0] sm:$0xff]
        %v1647 = vld [vmem:[#allocation8 + $0x1a8] sm:$0xff]
        %v1648 = vld [vmem:[#allocation8 + $0x1b0] sm:$0xff]
        %v1649 = vld [vmem:[#allocation8 + $0x1b8] sm:$0xff]
        %v1650 = vld [vmem:[#allocation8 + $0x1c0] sm:$0xff]
        %v1651 = vld [vmem:[#allocation8 + $0x1c8] sm:$0xff]
        %v1652 = vld [vmem:[#allocation8 + $0x1d0] sm:$0xff]
        %v1653 = vld [vmem:[#allocation8 + $0x1d8] sm:$0xff]
        %v1654 = vld [vmem:[#allocation8 + $0x1e0] sm:$0xff]
        %v1655 = vld [vmem:[#allocation8 + $0x1e8] sm:$0xff]
        %v1656 = vld [vmem:[#allocation8 + $0x1f0] sm:$0xff]
        %v1657 = vld [vmem:[#allocation8 + $0x1f8] sm:$0xff]
        %v1658 = vld [vmem:[#allocation8 + $0x200] sm:$0xff]
        %v1659 = vld [vmem:[#allocation8 + $0x208] sm:$0xff]
        %v1660 = vld [vmem:[#allocation8 + $0x210] sm:$0xff]
        %v1661 = vld [vmem:[#allocation8 + $0x218] sm:$0xff]
        %v1662 = vld [vmem:[#allocation8 + $0x220] sm:$0xff]
        %v1663 = vld [vmem:[#allocation8 + $0x228] sm:$0xff]
        %v1664 = vld [vmem:[#allocation8 + $0x230] sm:$0xff]
        %v1665 = vld [vmem:[#allocation8 + $0x238] sm:$0xff]
        %v1666 = vld [vmem:[#allocation8 + $0x240] sm:$0xff]
        %v1667 = vld [vmem:[#allocation8 + $0x248] sm:$0xff]
        %v1668 = vld [vmem:[#allocation8 + $0x250] sm:$0xff]
        %v1669 = vld [vmem:[#allocation8 + $0x258] sm:$0xff]
        %v1670 = vld [vmem:[#allocation8 + $0x260] sm:$0xff]
        %v1671 = vld [vmem:[#allocation8 + $0x268] sm:$0xff]
        %v1672 = vld [vmem:[#allocation8 + $0x270] sm:$0xff]
        %v1673 = vld [vmem:[#allocation8 + $0x278] sm:$0xff]
        %v1674 = vld [vmem:[#allocation8 + $0x280] sm:$0xff]
        %v1675 = vld [vmem:[#allocation8 + $0x288] sm:$0xff]
        %v1676 = vld [vmem:[#allocation8 + $0x290] sm:$0xff]
        %v1677 = vld [vmem:[#allocation8 + $0x298] sm:$0xff]
        %v1678 = vld [vmem:[#allocation8 + $0x2a0] sm:$0xff]
        %v1679 = vld [vmem:[#allocation8 + $0x2a8] sm:$0xff]
        %v1680 = vld [vmem:[#allocation8 + $0x2b0] sm:$0xff]
        %v1681 = vld [vmem:[#allocation8 + $0x2b8] sm:$0xff]
        %v1682 = vld [vmem:[#allocation8 + $0x2c0] sm:$0xff]
        %v1683 = vld [vmem:[#allocation8 + $0x2c8] sm:$0xff]
        %v1684 = vld [vmem:[#allocation8 + $0x2d0] sm:$0xff]
        %v1685 = vld [vmem:[#allocation8 + $0x2d8] sm:$0xff]
        %v1686 = vld [vmem:[#allocation8 + $0x2e0] sm:$0xff]
        %v1687 = vld [vmem:[#allocation8 + $0x2e8] sm:$0xff]
        %v1688 = vld [vmem:[#allocation8 + $0x2f0] sm:$0xff]
        %v1689 = vld [vmem:[#allocation8 + $0x2f8] sm:$0xff]
        %v1690 = vld [vmem:[#allocation8 + $0x300] sm:$0xff]
        %v1691 = vld [vmem:[#allocation8 + $0x308] sm:$0xff]
        %v1692 = vld [vmem:[#allocation8 + $0x310] sm:$0xff]
        %v1693 = vld [vmem:[#allocation8 + $0x318] sm:$0xff]
        %v1694 = vld [vmem:[#allocation8 + $0x320] sm:$0xff]
        %v1695 = vld [vmem:[#allocation8 + $0x328] sm:$0xff]
        %v1696 = vld [vmem:[#allocation8 + $0x330] sm:$0xff]
        %v1697 = vld [vmem:[#allocation8 + $0x338] sm:$0xff]
        %v1698 = vld [vmem:[#allocation8 + $0x340] sm:$0xff]
        %v1699 = vld [vmem:[#allocation8 + $0x348] sm:$0xff]
        %v1700 = vld [vmem:[#allocation8 + $0x350] sm:$0xff]
        %v1701 = vld [vmem:[#allocation8 + $0x358] sm:$0xff]
        %v1702 = vld [vmem:[#allocation8 + $0x360] sm:$0xff]
        %v1703 = vld [vmem:[#allocation8 + $0x368] sm:$0xff]
        %v1704 = vld [vmem:[#allocation8 + $0x370] sm:$0xff]
        %v1705 = vld [vmem:[#allocation8 + $0x378] sm:$0xff]
        %v1706 = vld [vmem:[#allocation8 + $0x380] sm:$0xff]
        %v1707 = vld [vmem:[#allocation8 + $0x388] sm:$0xff]
        %v1708 = vld [vmem:[#allocation8 + $0x390] sm:$0xff]
        %v1709 = vld [vmem:[#allocation8 + $0x398] sm:$0xff]
        %v1710 = vld [vmem:[#allocation8 + $0x3a0] sm:$0xff]
        %v1711 = vld [vmem:[#allocation8 + $0x3a8] sm:$0xff]
        %v1712 = vld [vmem:[#allocation8 + $0x3b0] sm:$0xff]
        %v1713 = vld [vmem:[#allocation8 + $0x3b8] sm:$0xff]
        %v1714 = vld [vmem:[#allocation8 + $0x3c0] sm:$0xff]
        %v1715 = vld [vmem:[#allocation8 + $0x3c8] sm:$0xff]
        %v1716 = vld [vmem:[#allocation8 + $0x3d0] sm:$0xff]
        %v1717 = vld [vmem:[#allocation8 + $0x3d8] sm:$0xff]
        %v1718 = vld [vmem:[#allocation8 + $0x3e0] sm:$0xff]
        %v1719 = vld [vmem:[#allocation8 + $0x3e8] sm:$0xff]
        %v1720 = vld [vmem:[#allocation8 + $0x3f0] sm:$0xff]
        %v1721 = vld [vmem:[#allocation8 + $0x3f8] sm:$0xff]
        %v1722 = vld [vmem:[#allocation8 + $0x400] sm:$0xff]
        %v1723 = vld [vmem:[#allocation8 + $0x408] sm:$0xff]
        %v1724 = vld [vmem:[#allocation8 + $0x410] sm:$0xff]
        %v1725 = vld [vmem:[#allocation8 + $0x418] sm:$0xff]
        %v1726 = vld [vmem:[#allocation8 + $0x420] sm:$0xff]
        %v1727 = vld [vmem:[#allocation8 + $0x428] sm:$0xff]
        %v1728 = vld [vmem:[#allocation8 + $0x430] sm:$0xff]
        %v1729 = vld [vmem:[#allocation8 + $0x438] sm:$0xff]
        %v1730 = vld [vmem:[#allocation8 + $0x440] sm:$0xff]
        %v1731 = vld [vmem:[#allocation8 + $0x448] sm:$0xff]
        %v1732 = vld [vmem:[#allocation8 + $0x450] sm:$0xff]
        %v1733 = vld [vmem:[#allocation8 + $0x458] sm:$0xff]
        %v1734 = vld [vmem:[#allocation8 + $0x460] sm:$0xff]
        %v1735 = vld [vmem:[#allocation8 + $0x468] sm:$0xff]
        %v1736 = vld [vmem:[#allocation8 + $0x470] sm:$0xff]
        %v1737 = vld [vmem:[#allocation8 + $0x478] sm:$0xff]
        %v1738 = vld [vmem:[#allocation8 + $0x480] sm:$0xff]
        %v1739 = vld [vmem:[#allocation8 + $0x488] sm:$0xff]
        %v1740 = vld [vmem:[#allocation8 + $0x490] sm:$0xff]
        %v1741 = vld [vmem:[#allocation8 + $0x498] sm:$0xff]
        %v1742 = vld [vmem:[#allocation8 + $0x4a0] sm:$0xff]
        %v1743 = vld [vmem:[#allocation8 + $0x4a8] sm:$0xff]
        %v1744 = vld [vmem:[#allocation8 + $0x4b0] sm:$0xff]
        %v1745 = vld [vmem:[#allocation8 + $0x4b8] sm:$0xff]
        %v1746 = vld [vmem:[#allocation8 + $0x4c0] sm:$0xff]
        %v1747 = vld [vmem:[#allocation8 + $0x4c8] sm:$0xff]
        %v1748 = vld [vmem:[#allocation8 + $0x4d0] sm:$0xff]
        %v1749 = vld [vmem:[#allocation8 + $0x4d8] sm:$0xff]
        %v1750 = vld [vmem:[#allocation8 + $0x4e0] sm:$0xff]
        %v1751 = vld [vmem:[#allocation8 + $0x4e8] sm:$0xff]
        %v1752 = vld [vmem:[#allocation8 + $0x4f0] sm:$0xff]
        %v1753 = vld [vmem:[#allocation8 + $0x4f8] sm:$0xff]
        %v1756 = vunpack.c.l.b16 %v1592
        %v1757 = vunpack.c.h.b16 %v1592
        %v1758 = vunpack.c.l.b16 %v1593
        %v1759 = vunpack.c.h.b16 %v1593
        %v1760 = vpack.c.b16 %v1758, %v1756
        %v1761 = vpack.c.b16 %v1759, %v1757
        %v1924 = vunpack.c.l.b16 %v1594
        %v1925 = vunpack.c.h.b16 %v1594
        %v1926 = vunpack.c.l.b16 %v1595
        %v1927 = vunpack.c.h.b16 %v1595
        %v1928 = vunpack.c.l.b16 %v1596
        %v1929 = vunpack.c.h.b16 %v1596
        %v1930 = vunpack.c.l.b16 %v1597
        %v1931 = vunpack.c.h.b16 %v1597
        %v1932 = vunpack.c.l.b16 %v1598
        %v1933 = vunpack.c.h.b16 %v1598
        %v1934 = vunpack.c.l.b16 %v1599
        %v1935 = vunpack.c.h.b16 %v1599
        %v1936 = vunpack.c.l.b16 %v1600
        %v1937 = vunpack.c.h.b16 %v1600
        %v1938 = vunpack.c.l.b16 %v1601
        %v1939 = vunpack.c.h.b16 %v1601
        %v1940 = vunpack.c.l.b16 %v1602
        %v1941 = vunpack.c.h.b16 %v1602
        %v1942 = vunpack.c.l.b16 %v1603
        %v1943 = vunpack.c.h.b16 %v1603
        %v1944 = vunpack.c.l.b16 %v1604
        %v1945 = vunpack.c.h.b16 %v1604
        %v1946 = vunpack.c.l.b16 %v1605
        %v1947 = vunpack.c.h.b16 %v1605
        %v1948 = vunpack.c.l.b16 %v1606
        %v1949 = vunpack.c.h.b16 %v1606
        %v1950 = vunpack.c.l.b16 %v1607
        %v1951 = vunpack.c.h.b16 %v1607
        %v1952 = vunpack.c.l.b16 %v1608
        %v1953 = vunpack.c.h.b16 %v1608
        %v1954 = vunpack.c.l.b16 %v1609
        %v1955 = vunpack.c.h.b16 %v1609
        %v1956 = vunpack.c.l.b16 %v1610
        %v1957 = vunpack.c.h.b16 %v1610
        %v1958 = vunpack.c.l.b16 %v1611
        %v1959 = vunpack.c.h.b16 %v1611
        %v1960 = vunpack.c.l.b16 %v1612
        %v1961 = vunpack.c.h.b16 %v1612
        %v1962 = vunpack.c.l.b16 %v1613
        %v1963 = vunpack.c.h.b16 %v1613
        %v1964 = vunpack.c.l.b16 %v1614
        %v1965 = vunpack.c.h.b16 %v1614
        %v1966 = vunpack.c.l.b16 %v1615
        %v1967 = vunpack.c.h.b16 %v1615
        %v1968 = vunpack.c.l.b16 %v1616
        %v1969 = vunpack.c.h.b16 %v1616
        %v1970 = vunpack.c.l.b16 %v1617
        %v1971 = vunpack.c.h.b16 %v1617
        %v1972 = vunpack.c.l.b16 %v1618
        %v1973 = vunpack.c.h.b16 %v1618
        %v1974 = vunpack.c.l.b16 %v1619
        %v1975 = vunpack.c.h.b16 %v1619
        %v1976 = vunpack.c.l.b16 %v1620
        %v1977 = vunpack.c.h.b16 %v1620
        %v1978 = vunpack.c.l.b16 %v1621
        %v1979 = vunpack.c.h.b16 %v1621
        %v1980 = vunpack.c.l.b16 %v1622
        %v1981 = vunpack.c.h.b16 %v1622
        %v1982 = vunpack.c.l.b16 %v1623
        %v1983 = vunpack.c.h.b16 %v1623
        %v1984 = vunpack.c.l.b16 %v1624
        %v1985 = vunpack.c.h.b16 %v1624
        %v1986 = vunpack.c.l.b16 %v1625
        %v1987 = vunpack.c.h.b16 %v1625
        %v1988 = vunpack.c.l.b16 %v1626
        %v1989 = vunpack.c.h.b16 %v1626
        %v1990 = vunpack.c.l.b16 %v1627
        %v1991 = vunpack.c.h.b16 %v1627
        %v1992 = vunpack.c.l.b16 %v1628
        %v1993 = vunpack.c.h.b16 %v1628
        %v1994 = vunpack.c.l.b16 %v1629
        %v1995 = vunpack.c.h.b16 %v1629
        %v1996 = vunpack.c.l.b16 %v1630
        %v1997 = vunpack.c.h.b16 %v1630
        %v1998 = vunpack.c.l.b16 %v1631
        %v1999 = vunpack.c.h.b16 %v1631
        %v2000 = vunpack.c.l.b16 %v1632
        %v2001 = vunpack.c.h.b16 %v1632
        %v2002 = vunpack.c.l.b16 %v1633
        %v2003 = vunpack.c.h.b16 %v1633
        %v2004 = vunpack.c.l.b16 %v1634
        %v2005 = vunpack.c.h.b16 %v1634
        %v2006 = vunpack.c.l.b16 %v1635
        %v2007 = vunpack.c.h.b16 %v1635
        %v2008 = vunpack.c.l.b16 %v1636
        %v2009 = vunpack.c.h.b16 %v1636
        %v2010 = vunpack.c.l.b16 %v1637
        %v2011 = vunpack.c.h.b16 %v1637
        %v2012 = vunpack.c.l.b16 %v1638
        %v2013 = vunpack.c.h.b16 %v1638
        %v2014 = vunpack.c.l.b16 %v1639
        %v2015 = vunpack.c.h.b16 %v1639
        %v2016 = vunpack.c.l.b16 %v1640
        %v2017 = vunpack.c.h.b16 %v1640
        %v2018 = vunpack.c.l.b16 %v1641
        %v2019 = vunpack.c.h.b16 %v1641
        %v2020 = vunpack.c.l.b16 %v1642
        %v2021 = vunpack.c.h.b16 %v1642
        %v2022 = vunpack.c.l.b16 %v1643
        %v2023 = vunpack.c.h.b16 %v1643
        %v2024 = vunpack.c.l.b16 %v1644
        %v2025 = vunpack.c.h.b16 %v1644
        %v2026 = vunpack.c.l.b16 %v1645
        %v2027 = vunpack.c.h.b16 %v1645
        %v2028 = vunpack.c.l.b16 %v1646
        %v2029 = vunpack.c.h.b16 %v1646
        %v2030 = vunpack.c.l.b16 %v1647
        %v2031 = vunpack.c.h.b16 %v1647
        %v2032 = vunpack.c.l.b16 %v1648
        %v2033 = vunpack.c.h.b16 %v1648
        %v2034 = vunpack.c.l.b16 %v1649
        %v2035 = vunpack.c.h.b16 %v1649
        %v2036 = vunpack.c.l.b16 %v1650
        %v2037 = vunpack.c.h.b16 %v1650
        %v2038 = vunpack.c.l.b16 %v1651
        %v2039 = vunpack.c.h.b16 %v1651
        %v2040 = vunpack.c.l.b16 %v1652
        %v2041 = vunpack.c.h.b16 %v1652
        %v2042 = vunpack.c.l.b16 %v1653
        %v2043 = vunpack.c.h.b16 %v1653
        %v2044 = vunpack.c.l.b16 %v1654
        %v2045 = vunpack.c.h.b16 %v1654
        %v2046 = vunpack.c.l.b16 %v1655
        %v2047 = vunpack.c.h.b16 %v1655
        %v2048 = vunpack.c.l.b16 %v1656
        %v2049 = vunpack.c.h.b16 %v1656
        %v2050 = vunpack.c.l.b16 %v1657
        %v2051 = vunpack.c.h.b16 %v1657
        %v2052 = vunpack.c.l.b16 %v1658
        %v2053 = vunpack.c.h.b16 %v1658
        %v2054 = vunpack.c.l.b16 %v1659
        %v2055 = vunpack.c.h.b16 %v1659
        %v2056 = vunpack.c.l.b16 %v1660
        %v2057 = vunpack.c.h.b16 %v1660
        %v2058 = vunpack.c.l.b16 %v1661
        %v2059 = vunpack.c.h.b16 %v1661
        %v2060 = vunpack.c.l.b16 %v1662
        %v2061 = vunpack.c.h.b16 %v1662
        %v2062 = vunpack.c.l.b16 %v1663
        %v2063 = vunpack.c.h.b16 %v1663
        %v2064 = vunpack.c.l.b16 %v1664
        %v2065 = vunpack.c.h.b16 %v1664
        %v2066 = vunpack.c.l.b16 %v1665
        %v2067 = vunpack.c.h.b16 %v1665
        %v2068 = vunpack.c.l.b16 %v1666
        %v2069 = vunpack.c.h.b16 %v1666
        %v2070 = vunpack.c.l.b16 %v1667
        %v2071 = vunpack.c.h.b16 %v1667
        %v2072 = vunpack.c.l.b16 %v1668
        %v2073 = vunpack.c.h.b16 %v1668
        %v2074 = vunpack.c.l.b16 %v1669
        %v2075 = vunpack.c.h.b16 %v1669
        %v2076 = vunpack.c.l.b16 %v1670
        %v2077 = vunpack.c.h.b16 %v1670
        %v2078 = vunpack.c.l.b16 %v1671
        %v2079 = vunpack.c.h.b16 %v1671
        %v2080 = vunpack.c.l.b16 %v1672
        %v2081 = vunpack.c.h.b16 %v1672
        %v2082 = vunpack.c.l.b16 %v1673
        %v2083 = vunpack.c.h.b16 %v1673
        %v2084 = vunpack.c.l.b16 %v1674
        %v2085 = vunpack.c.h.b16 %v1674
        %v2086 = vunpack.c.l.b16 %v1675
        %v2087 = vunpack.c.h.b16 %v1675
        %v2088 = vunpack.c.l.b16 %v1676
        %v2089 = vunpack.c.h.b16 %v1676
        %v2090 = vunpack.c.l.b16 %v1677
        %v2091 = vunpack.c.h.b16 %v1677
        %v2092 = vunpack.c.l.b16 %v1678
        %v2093 = vunpack.c.h.b16 %v1678
        %v2094 = vunpack.c.l.b16 %v1679
        %v2095 = vunpack.c.h.b16 %v1679
        %v2096 = vunpack.c.l.b16 %v1680
        %v2097 = vunpack.c.h.b16 %v1680
        %v2098 = vunpack.c.l.b16 %v1681
        %v2099 = vunpack.c.h.b16 %v1681
        %v2100 = vunpack.c.l.b16 %v1682
        %v2101 = vunpack.c.h.b16 %v1682
        %v2102 = vunpack.c.l.b16 %v1683
        %v2103 = vunpack.c.h.b16 %v1683
        %v2104 = vunpack.c.l.b16 %v1684
        %v2105 = vunpack.c.h.b16 %v1684
        %v2106 = vunpack.c.l.b16 %v1685
        %v2107 = vunpack.c.h.b16 %v1685
        %v2108 = vunpack.c.l.b16 %v1686
        %v2109 = vunpack.c.h.b16 %v1686
        %v2110 = vunpack.c.l.b16 %v1687
        %v2111 = vunpack.c.h.b16 %v1687
        %v2112 = vunpack.c.l.b16 %v1688
        %v2113 = vunpack.c.h.b16 %v1688
        %v2114 = vunpack.c.l.b16 %v1689
        %v2115 = vunpack.c.h.b16 %v1689
        %v2116 = vunpack.c.l.b16 %v1690
        %v2117 = vunpack.c.h.b16 %v1690
        %v2118 = vunpack.c.l.b16 %v1691
        %v2119 = vunpack.c.h.b16 %v1691
        %v2120 = vunpack.c.l.b16 %v1692
        %v2121 = vunpack.c.h.b16 %v1692
        %v2122 = vunpack.c.l.b16 %v1693
        %v2123 = vunpack.c.h.b16 %v1693
        %v2124 = vunpack.c.l.b16 %v1694
        %v2125 = vunpack.c.h.b16 %v1694
        %v2126 = vunpack.c.l.b16 %v1695
        %v2127 = vunpack.c.h.b16 %v1695
        %v2128 = vunpack.c.l.b16 %v1696
        %v2129 = vunpack.c.h.b16 %v1696
        %v2130 = vunpack.c.l.b16 %v1697
        %v2131 = vunpack.c.h.b16 %v1697
        %v2132 = vunpack.c.l.b16 %v1698
        %v2133 = vunpack.c.h.b16 %v1698
        %v2134 = vunpack.c.l.b16 %v1699
        %v2135 = vunpack.c.h.b16 %v1699
        %v2136 = vunpack.c.l.b16 %v1700
        %v2137 = vunpack.c.h.b16 %v1700
        %v2138 = vunpack.c.l.b16 %v1701
        %v2139 = vunpack.c.h.b16 %v1701
        %v2140 = vunpack.c.l.b16 %v1702
        %v2141 = vunpack.c.h.b16 %v1702
        %v2142 = vunpack.c.l.b16 %v1703
        %v2143 = vunpack.c.h.b16 %v1703
        %v2144 = vunpack.c.l.b16 %v1704
        %v2145 = vunpack.c.h.b16 %v1704
        %v2146 = vunpack.c.l.b16 %v1705
        %v2147 = vunpack.c.h.b16 %v1705
        %v2148 = vunpack.c.l.b16 %v1706
        %v2149 = vunpack.c.h.b16 %v1706
        %v2150 = vunpack.c.l.b16 %v1707
        %v2151 = vunpack.c.h.b16 %v1707
        %v2152 = vunpack.c.l.b16 %v1708
        %v2153 = vunpack.c.h.b16 %v1708
        %v2154 = vunpack.c.l.b16 %v1709
        %v2155 = vunpack.c.h.b16 %v1709
        %v2156 = vunpack.c.l.b16 %v1710
        %v2157 = vunpack.c.h.b16 %v1710
        %v2158 = vunpack.c.l.b16 %v1711
        %v2159 = vunpack.c.h.b16 %v1711
        %v2160 = vunpack.c.l.b16 %v1712
        %v2161 = vunpack.c.h.b16 %v1712
        %v2162 = vunpack.c.l.b16 %v1713
        %v2163 = vunpack.c.h.b16 %v1713
        %v2164 = vunpack.c.l.b16 %v1714
        %v2165 = vunpack.c.h.b16 %v1714
        %v2166 = vunpack.c.l.b16 %v1715
        %v2167 = vunpack.c.h.b16 %v1715
        %v2168 = vunpack.c.l.b16 %v1716
        %v2169 = vunpack.c.h.b16 %v1716
        %v2170 = vunpack.c.l.b16 %v1717
        %v2171 = vunpack.c.h.b16 %v1717
        %v2172 = vunpack.c.l.b16 %v1718
        %v2173 = vunpack.c.h.b16 %v1718
        %v2174 = vunpack.c.l.b16 %v1719
        %v2175 = vunpack.c.h.b16 %v1719
        %v2176 = vunpack.c.l.b16 %v1720
        %v2177 = vunpack.c.h.b16 %v1720
        %v2178 = vunpack.c.l.b16 %v1721
        %v2179 = vunpack.c.h.b16 %v1721
        %v2180 = vunpack.c.l.b16 %v1722
        %v2181 = vunpack.c.h.b16 %v1722
        %v2182 = vunpack.c.l.b16 %v1723
        %v2183 = vunpack.c.h.b16 %v1723
        %v2184 = vunpack.c.l.b16 %v1724
        %v2185 = vunpack.c.h.b16 %v1724
        %v2186 = vunpack.c.l.b16 %v1725
        %v2187 = vunpack.c.h.b16 %v1725
        %v2188 = vunpack.c.l.b16 %v1726
        %v2189 = vunpack.c.h.b16 %v1726
        %v2190 = vunpack.c.l.b16 %v1727
        %v2191 = vunpack.c.h.b16 %v1727
        %v2192 = vunpack.c.l.b16 %v1728
        %v2193 = vunpack.c.h.b16 %v1728
        %v2194 = vunpack.c.l.b16 %v1729
        %v2195 = vunpack.c.h.b16 %v1729
        %v2196 = vunpack.c.l.b16 %v1730
        %v2197 = vunpack.c.h.b16 %v1730
        %v2198 = vunpack.c.l.b16 %v1731
        %v2199 = vunpack.c.h.b16 %v1731
        %v2200 = vunpack.c.l.b16 %v1732
        %v2201 = vunpack.c.h.b16 %v1732
        %v2202 = vunpack.c.l.b16 %v1733
        %v2203 = vunpack.c.h.b16 %v1733
        %v2204 = vunpack.c.l.b16 %v1734
        %v2205 = vunpack.c.h.b16 %v1734
        %v2206 = vunpack.c.l.b16 %v1735
        %v2207 = vunpack.c.h.b16 %v1735
        %v2208 = vunpack.c.l.b16 %v1736
        %v2209 = vunpack.c.h.b16 %v1736
        %v2210 = vunpack.c.l.b16 %v1737
        %v2211 = vunpack.c.h.b16 %v1737
        %v2212 = vunpack.c.l.b16 %v1738
        %v2213 = vunpack.c.h.b16 %v1738
        %v2214 = vunpack.c.l.b16 %v1739
        %v2215 = vunpack.c.h.b16 %v1739
        %v2216 = vunpack.c.l.b16 %v1740
        %v2217 = vunpack.c.h.b16 %v1740
        %v2218 = vunpack.c.l.b16 %v1741
        %v2219 = vunpack.c.h.b16 %v1741
        %v2220 = vunpack.c.l.b16 %v1742
        %v2221 = vunpack.c.h.b16 %v1742
        %v2222 = vunpack.c.l.b16 %v1743
        %v2223 = vunpack.c.h.b16 %v1743
        %v2224 = vunpack.c.l.b16 %v1744
        %v2225 = vunpack.c.h.b16 %v1744
        %v2226 = vunpack.c.l.b16 %v1745
        %v2227 = vunpack.c.h.b16 %v1745
        %v2228 = vunpack.c.l.b16 %v1746
        %v2229 = vunpack.c.h.b16 %v1746
        %v2230 = vunpack.c.l.b16 %v1747
        %v2231 = vunpack.c.h.b16 %v1747
        %v2232 = vunpack.c.l.b16 %v1748
        %v2233 = vunpack.c.h.b16 %v1748
        %v2234 = vunpack.c.l.b16 %v1749
        %v2235 = vunpack.c.h.b16 %v1749
        %v2236 = vunpack.c.l.b16 %v1750
        %v2237 = vunpack.c.h.b16 %v1750
        %v2238 = vunpack.c.l.b16 %v1751
        %v2239 = vunpack.c.h.b16 %v1751
        %v2240 = vunpack.c.l.b16 %v1752
        %v2241 = vunpack.c.h.b16 %v1752
        %v2242 = vunpack.c.l.b16 %v1753
        %v2243 = vunpack.c.h.b16 %v1753
        %v2244 = vpack.c.b16 %v1934, %v1924
        %v2245 = vpack.c.b16 %v1935, %v1925
        %v2246 = vpack.c.b16 %v1936, %v1926
        %v2247 = vpack.c.b16 %v1937, %v1927
        %v2248 = vpack.c.b16 %v1938, %v1928
        %v2249 = vpack.c.b16 %v1939, %v1929
        %v2250 = vpack.c.b16 %v1940, %v1930
        %v2251 = vpack.c.b16 %v1941, %v1931
        %v2252 = vpack.c.b16 %v1942, %v1932
        %v2253 = vpack.c.b16 %v1943, %v1933
        %v2254 = vpack.c.b16 %v1954, %v1944
        %v2255 = vpack.c.b16 %v1955, %v1945
        %v2256 = vpack.c.b16 %v1956, %v1946
        %v2257 = vpack.c.b16 %v1957, %v1947
        %v2258 = vpack.c.b16 %v1958, %v1948
        %v2259 = vpack.c.b16 %v1959, %v1949
        %v2260 = vpack.c.b16 %v1960, %v1950
        %v2261 = vpack.c.b16 %v1961, %v1951
        %v2262 = vpack.c.b16 %v1962, %v1952
        %v2263 = vpack.c.b16 %v1963, %v1953
        %v2264 = vpack.c.b16 %v1974, %v1964
        %v2265 = vpack.c.b16 %v1975, %v1965
        %v2266 = vpack.c.b16 %v1976, %v1966
        %v2267 = vpack.c.b16 %v1977, %v1967
        %v2268 = vpack.c.b16 %v1978, %v1968
        %v2269 = vpack.c.b16 %v1979, %v1969
        %v2270 = vpack.c.b16 %v1980, %v1970
        %v2271 = vpack.c.b16 %v1981, %v1971
        %v2272 = vpack.c.b16 %v1982, %v1972
        %v2273 = vpack.c.b16 %v1983, %v1973
        %v2274 = vpack.c.b16 %v1994, %v1984
        %v2275 = vpack.c.b16 %v1995, %v1985
        %v2276 = vpack.c.b16 %v1996, %v1986
        %v2277 = vpack.c.b16 %v1997, %v1987
        %v2278 = vpack.c.b16 %v1998, %v1988
        %v2279 = vpack.c.b16 %v1999, %v1989
        %v2280 = vpack.c.b16 %v2000, %v1990
        %v2281 = vpack.c.b16 %v2001, %v1991
        %v2282 = vpack.c.b16 %v2002, %v1992
        %v2283 = vpack.c.b16 %v2003, %v1993
        %v2284 = vpack.c.b16 %v2014, %v2004
        %v2285 = vpack.c.b16 %v2015, %v2005
        %v2286 = vpack.c.b16 %v2016, %v2006
        %v2287 = vpack.c.b16 %v2017, %v2007
        %v2288 = vpack.c.b16 %v2018, %v2008
        %v2289 = vpack.c.b16 %v2019, %v2009
        %v2290 = vpack.c.b16 %v2020, %v2010
        %v2291 = vpack.c.b16 %v2021, %v2011
        %v2292 = vpack.c.b16 %v2022, %v2012
        %v2293 = vpack.c.b16 %v2023, %v2013
        %v2294 = vpack.c.b16 %v2034, %v2024
        %v2295 = vpack.c.b16 %v2035, %v2025
        %v2296 = vpack.c.b16 %v2036, %v2026
        %v2297 = vpack.c.b16 %v2037, %v2027
        %v2298 = vpack.c.b16 %v2038, %v2028
        %v2299 = vpack.c.b16 %v2039, %v2029
        %v2300 = vpack.c.b16 %v2040, %v2030
        %v2301 = vpack.c.b16 %v2041, %v2031
        %v2302 = vpack.c.b16 %v2042, %v2032
        %v2303 = vpack.c.b16 %v2043, %v2033
        %v2304 = vpack.c.b16 %v2054, %v2044
        %v2305 = vpack.c.b16 %v2055, %v2045
        %v2306 = vpack.c.b16 %v2056, %v2046
        %v2307 = vpack.c.b16 %v2057, %v2047
        %v2308 = vpack.c.b16 %v2058, %v2048
        %v2309 = vpack.c.b16 %v2059, %v2049
        %v2310 = vpack.c.b16 %v2060, %v2050
        %v2311 = vpack.c.b16 %v2061, %v2051
        %v2312 = vpack.c.b16 %v2062, %v2052
        %v2313 = vpack.c.b16 %v2063, %v2053
        %v2314 = vpack.c.b16 %v2074, %v2064
        %v2315 = vpack.c.b16 %v2075, %v2065
        %v2316 = vpack.c.b16 %v2076, %v2066
        %v2317 = vpack.c.b16 %v2077, %v2067
        %v2318 = vpack.c.b16 %v2078, %v2068
        %v2319 = vpack.c.b16 %v2079, %v2069
        %v2320 = vpack.c.b16 %v2080, %v2070
        %v2321 = vpack.c.b16 %v2081, %v2071
        %v2322 = vpack.c.b16 %v2082, %v2072
        %v2323 = vpack.c.b16 %v2083, %v2073
        %v2324 = vpack.c.b16 %v2094, %v2084
        %v2325 = vpack.c.b16 %v2095, %v2085
        %v2326 = vpack.c.b16 %v2096, %v2086
        %v2327 = vpack.c.b16 %v2097, %v2087
        %v2328 = vpack.c.b16 %v2098, %v2088
        %v2329 = vpack.c.b16 %v2099, %v2089
        %v2330 = vpack.c.b16 %v2100, %v2090
        %v2331 = vpack.c.b16 %v2101, %v2091
        %v2332 = vpack.c.b16 %v2102, %v2092
        %v2333 = vpack.c.b16 %v2103, %v2093
        %v2334 = vpack.c.b16 %v2114, %v2104
        %v2335 = vpack.c.b16 %v2115, %v2105
        %v2336 = vpack.c.b16 %v2116, %v2106
        %v2337 = vpack.c.b16 %v2117, %v2107
        %v2338 = vpack.c.b16 %v2118, %v2108
        %v2339 = vpack.c.b16 %v2119, %v2109
        %v2340 = vpack.c.b16 %v2120, %v2110
        %v2341 = vpack.c.b16 %v2121, %v2111
        %v2342 = vpack.c.b16 %v2122, %v2112
        %v2343 = vpack.c.b16 %v2123, %v2113
        %v2344 = vpack.c.b16 %v2134, %v2124
        %v2345 = vpack.c.b16 %v2135, %v2125
        %v2346 = vpack.c.b16 %v2136, %v2126
        %v2347 = vpack.c.b16 %v2137, %v2127
        %v2348 = vpack.c.b16 %v2138, %v2128
        %v2349 = vpack.c.b16 %v2139, %v2129
        %v2350 = vpack.c.b16 %v2140, %v2130
        %v2351 = vpack.c.b16 %v2141, %v2131
        %v2352 = vpack.c.b16 %v2142, %v2132
        %v2353 = vpack.c.b16 %v2143, %v2133
        %v2354 = vpack.c.b16 %v2154, %v2144
        %v2355 = vpack.c.b16 %v2155, %v2145
        %v2356 = vpack.c.b16 %v2156, %v2146
        %v2357 = vpack.c.b16 %v2157, %v2147
        %v2358 = vpack.c.b16 %v2158, %v2148
        %v2359 = vpack.c.b16 %v2159, %v2149
        %v2360 = vpack.c.b16 %v2160, %v2150
        %v2361 = vpack.c.b16 %v2161, %v2151
        %v2362 = vpack.c.b16 %v2162, %v2152
        %v2363 = vpack.c.b16 %v2163, %v2153
        %v2364 = vpack.c.b16 %v2174, %v2164
        %v2365 = vpack.c.b16 %v2175, %v2165
        %v2366 = vpack.c.b16 %v2176, %v2166
        %v2367 = vpack.c.b16 %v2177, %v2167
        %v2368 = vpack.c.b16 %v2178, %v2168
        %v2369 = vpack.c.b16 %v2179, %v2169
        %v2370 = vpack.c.b16 %v2180, %v2170
        %v2371 = vpack.c.b16 %v2181, %v2171
        %v2372 = vpack.c.b16 %v2182, %v2172
        %v2373 = vpack.c.b16 %v2183, %v2173
        %v2374 = vpack.c.b16 %v2194, %v2184
        %v2375 = vpack.c.b16 %v2195, %v2185
        %v2376 = vpack.c.b16 %v2196, %v2186
        %v2377 = vpack.c.b16 %v2197, %v2187
        %v2378 = vpack.c.b16 %v2198, %v2188
        %v2379 = vpack.c.b16 %v2199, %v2189
        %v2380 = vpack.c.b16 %v2200, %v2190
        %v2381 = vpack.c.b16 %v2201, %v2191
        %v2382 = vpack.c.b16 %v2202, %v2192
        %v2383 = vpack.c.b16 %v2203, %v2193
        %v2384 = vpack.c.b16 %v2214, %v2204
        %v2385 = vpack.c.b16 %v2215, %v2205
        %v2386 = vpack.c.b16 %v2216, %v2206
        %v2387 = vpack.c.b16 %v2217, %v2207
        %v2388 = vpack.c.b16 %v2218, %v2208
        %v2389 = vpack.c.b16 %v2219, %v2209
        %v2390 = vpack.c.b16 %v2220, %v2210
        %v2391 = vpack.c.b16 %v2221, %v2211
        %v2392 = vpack.c.b16 %v2222, %v2212
        %v2393 = vpack.c.b16 %v2223, %v2213
        %v2394 = vpack.c.b16 %v2234, %v2224
        %v2395 = vpack.c.b16 %v2235, %v2225
        %v2396 = vpack.c.b16 %v2236, %v2226
        %v2397 = vpack.c.b16 %v2237, %v2227
        %v2398 = vpack.c.b16 %v2238, %v2228
        %v2399 = vpack.c.b16 %v2239, %v2229
        %v2400 = vpack.c.b16 %v2240, %v2230
        %v2401 = vpack.c.b16 %v2241, %v2231
        %v2402 = vpack.c.b16 %v2242, %v2232
        %v2403 = vpack.c.b16 %v2243, %v2233
        %2564 = vmatprep.subr.bf16.mxu0 %v2245
        %2565 = vmatpush1.bf16.msra.mxu0 %v2244
        %2566 = vmatprep.subr.bf16.mxu0 %v2255
        %2567 = vmatpush1.bf16.msra.mxu0 %v2254
        %2568 = vmatprep.subr.bf16.mxu0 %v2265
        %2569 = vmatpush1.bf16.msra.mxu0 %v2264
        %2570 = vmatprep.subr.bf16.mxu0 %v2275
        %2571 = vmatpush1.bf16.msra.mxu0 %v2274
        %2572 = vmatprep.subr.bf16.mxu0 %v2285
        %2573 = vmatpush1.bf16.msra.mxu0 %v2284
        %2574 = vmatprep.subr.bf16.mxu0 %v2295
        %2575 = vmatpush1.bf16.msra.mxu0 %v2294
        %2576 = vmatprep.subr.bf16.mxu0 %v2305
        %2577 = vmatpush1.bf16.msra.mxu0 %v2304
        %2578 = vmatprep.subr.bf16.mxu0 %v2315
        %2579 = vmatpush1.bf16.msra.mxu0 %v2314
        %2580 = vmatprep.subr.bf16.mxu0 %v2325
        %2581 = vmatpush1.bf16.msra.mxu0 %v2324
        %2582 = vmatprep.subr.bf16.mxu0 %v2335
        %2583 = vmatpush1.bf16.msra.mxu0 %v2334
        %2584 = vmatprep.subr.bf16.mxu0 %v2345
        %2585 = vmatpush1.bf16.msra.mxu0 %v2344
        %2586 = vmatprep.subr.bf16.mxu0 %v2355
        %2587 = vmatpush1.bf16.msra.mxu0 %v2354
        %2588 = vmatprep.subr.bf16.mxu0 %v2365
        %2589 = vmatpush1.bf16.msra.mxu0 %v2364
        %2590 = vmatprep.subr.bf16.mxu0 %v2375
        %2591 = vmatpush1.bf16.msra.mxu0 %v2374
        %2592 = vmatprep.subr.bf16.mxu0 %v2385
        %2593 = vmatpush1.bf16.msra.mxu0 %v2384
        %2594 = vmatprep.subr.bf16.mxu0 %v2395
        %2595 = vmatpush1.bf16.msra.mxu0 %v2394
        %2596 = vmatprep.mubr.bf16.mxu0 %v1761
        %2597 = vmatmul.mubr.bf16.gmra.mrb[0].mxu0 %v1760
        %v2598 = vpop.f32.mrb[0].mxu0
        %v2599 = vadd.f32 0.0, %v2598
        %v2600 = vpop.f32.mrb[0].mxu0
        %v2601 = vadd.f32 0.0, %v2600
        %v2602 = vpop.f32.mrb[0].mxu0
        %v2603 = vadd.f32 0.0, %v2602
        %v2604 = vpop.f32.mrb[0].mxu0
        %v2605 = vadd.f32 0.0, %v2604
        %2606 = vdwg.mxu0
        %2607 = vmatprep.subr.bf16.mxu0 %v2247
        %2608 = vmatpush1.bf16.msra.mxu0 %v2246
        %2609 = vmatprep.subr.bf16.mxu0 %v2257
        %2610 = vmatpush1.bf16.msra.mxu0 %v2256
        %2611 = vmatprep.subr.bf16.mxu0 %v2267
        %2612 = vmatpush1.bf16.msra.mxu0 %v2266
        %2613 = vmatprep.subr.bf16.mxu0 %v2277
        %2614 = vmatpush1.bf16.msra.mxu0 %v2276
        %2615 = vmatprep.subr.bf16.mxu0 %v2287
        %2616 = vmatpush1.bf16.msra.mxu0 %v2286
        %2617 = vmatprep.subr.bf16.mxu0 %v2297
        %2618 = vmatpush1.bf16.msra.mxu0 %v2296
        %2619 = vmatprep.subr.bf16.mxu0 %v2307
        %2620 = vmatpush1.bf16.msra.mxu0 %v2306
        %2621 = vmatprep.subr.bf16.mxu0 %v2317
        %2622 = vmatpush1.bf16.msra.mxu0 %v2316
        %2623 = vmatprep.subr.bf16.mxu0 %v2327
        %2624 = vmatpush1.bf16.msra.mxu0 %v2326
        %2625 = vmatprep.subr.bf16.mxu0 %v2337
        %2626 = vmatpush1.bf16.msra.mxu0 %v2336
        %2627 = vmatprep.subr.bf16.mxu0 %v2347
        %2628 = vmatpush1.bf16.msra.mxu0 %v2346
        %2629 = vmatprep.subr.bf16.mxu0 %v2357
        %2630 = vmatpush1.bf16.msra.mxu0 %v2356
        %2631 = vmatprep.subr.bf16.mxu0 %v2367
        %2632 = vmatpush1.bf16.msra.mxu0 %v2366
        %2633 = vmatprep.subr.bf16.mxu0 %v2377
        %2634 = vmatpush1.bf16.msra.mxu0 %v2376
        %2635 = vmatprep.subr.bf16.mxu0 %v2387
        %2636 = vmatpush1.bf16.msra.mxu0 %v2386
        %2637 = vmatprep.subr.bf16.mxu0 %v2397
        %2638 = vmatpush1.bf16.msra.mxu0 %v2396
        %2639 = vmatprep.mubr.bf16.mxu0 %v1761
        %2640 = vmatmul.mubr.bf16.gmra.mrb[0].mxu0 %v1760
        %v2641 = vpop.f32.mrb[0].mxu0
        %v2642 = vadd.f32 0.0, %v2641
        %v2643 = vpop.f32.mrb[0].mxu0
        %v2644 = vadd.f32 0.0, %v2643
        %v2645 = vpop.f32.mrb[0].mxu0
        %v2646 = vadd.f32 0.0, %v2645
        %v2647 = vpop.f32.mrb[0].mxu0
        %v2648 = vadd.f32 0.0, %v2647
        %2649 = vdwg.mxu0
        %2650 = vmatprep.subr.bf16.mxu0 %v2249
        %2651 = vmatpush1.bf16.msra.mxu0 %v2248
        %2652 = vmatprep.subr.bf16.mxu0 %v2259
        %2653 = vmatpush1.bf16.msra.mxu0 %v2258
        %2654 = vmatprep.subr.bf16.mxu0 %v2269
        %2655 = vmatpush1.bf16.msra.mxu0 %v2268
        %2656 = vmatprep.subr.bf16.mxu0 %v2279
        %2657 = vmatpush1.bf16.msra.mxu0 %v2278
        %2658 = vmatprep.subr.bf16.mxu0 %v2289
        %2659 = vmatpush1.bf16.msra.mxu0 %v2288
        %2660 = vmatprep.subr.bf16.mxu0 %v2299
        %2661 = vmatpush1.bf16.msra.mxu0 %v2298
        %2662 = vmatprep.subr.bf16.mxu0 %v2309
        %2663 = vmatpush1.bf16.msra.mxu0 %v2308
        %2664 = vmatprep.subr.bf16.mxu0 %v2319
        %2665 = vmatpush1.bf16.msra.mxu0 %v2318
        %2666 = vmatprep.subr.bf16.mxu0 %v2329
        %2667 = vmatpush1.bf16.msra.mxu0 %v2328
        %2668 = vmatprep.subr.bf16.mxu0 %v2339
        %2669 = vmatpush1.bf16.msra.mxu0 %v2338
        %2670 = vmatprep.subr.bf16.mxu0 %v2349
        %2671 = vmatpush1.bf16.msra.mxu0 %v2348
        %2672 = vmatprep.subr.bf16.mxu0 %v2359
        %2673 = vmatpush1.bf16.msra.mxu0 %v2358
        %2674 = vmatprep.subr.bf16.mxu0 %v2369
        %2675 = vmatpush1.bf16.msra.mxu0 %v2368
        %2676 = vmatprep.subr.bf16.mxu0 %v2379
        %2677 = vmatpush1.bf16.msra.mxu0 %v2378
        %2678 = vmatprep.subr.bf16.mxu0 %v2389
        %2679 = vmatpush1.bf16.msra.mxu0 %v2388
        %2680 = vmatprep.subr.bf16.mxu0 %v2399
        %2681 = vmatpush1.bf16.msra.mxu0 %v2398
        %2682 = vmatprep.mubr.bf16.mxu0 %v1761
        %2683 = vmatmul.mubr.bf16.gmra.mrb[0].mxu0 %v1760
        %v2684 = vpop.f32.mrb[0].mxu0
        %v2685 = vadd.f32 0.0, %v2684
        %v2686 = vpop.f32.mrb[0].mxu0
        %v2687 = vadd.f32 0.0, %v2686
        %v2688 = vpop.f32.mrb[0].mxu0
        %v2689 = vadd.f32 0.0, %v2688
        %v2690 = vpop.f32.mrb[0].mxu0
        %v2691 = vadd.f32 0.0, %v2690
        %2692 = vdwg.mxu0
        %2693 = vmatprep.subr.bf16.mxu0 %v2251
        %2694 = vmatpush1.bf16.msra.mxu0 %v2250
        %2695 = vmatprep.subr.bf16.mxu0 %v2261
        %2696 = vmatpush1.bf16.msra.mxu0 %v2260
        %2697 = vmatprep.subr.bf16.mxu0 %v2271
        %2698 = vmatpush1.bf16.msra.mxu0 %v2270
        %2699 = vmatprep.subr.bf16.mxu0 %v2281
        %2700 = vmatpush1.bf16.msra.mxu0 %v2280
        %2701 = vmatprep.subr.bf16.mxu0 %v2291
        %2702 = vmatpush1.bf16.msra.mxu0 %v2290
        %2703 = vmatprep.subr.bf16.mxu0 %v2301
        %2704 = vmatpush1.bf16.msra.mxu0 %v2300
        %2705 = vmatprep.subr.bf16.mxu0 %v2311
        %2706 = vmatpush1.bf16.msra.mxu0 %v2310
        %2707 = vmatprep.subr.bf16.mxu0 %v2321
        %2708 = vmatpush1.bf16.msra.mxu0 %v2320
        %2709 = vmatprep.subr.bf16.mxu0 %v2331
        %2710 = vmatpush1.bf16.msra.mxu0 %v2330
        %2711 = vmatprep.subr.bf16.mxu0 %v2341
        %2712 = vmatpush1.bf16.msra.mxu0 %v2340
        %2713 = vmatprep.subr.bf16.mxu0 %v2351
        %2714 = vmatpush1.bf16.msra.mxu0 %v2350
        %2715 = vmatprep.subr.bf16.mxu0 %v2361
        %2716 = vmatpush1.bf16.msra.mxu0 %v2360
        %2717 = vmatprep.subr.bf16.mxu0 %v2371
        %2718 = vmatpush1.bf16.msra.mxu0 %v2370
        %2719 = vmatprep.subr.bf16.mxu0 %v2381
        %2720 = vmatpush1.bf16.msra.mxu0 %v2380
        %2721 = vmatprep.subr.bf16.mxu0 %v2391
        %2722 = vmatpush1.bf16.msra.mxu0 %v2390
        %2723 = vmatprep.subr.bf16.mxu0 %v2401
        %2724 = vmatpush1.bf16.msra.mxu0 %v2400
        %2725 = vmatprep.mubr.bf16.mxu0 %v1761
        %2726 = vmatmul.mubr.bf16.gmra.mrb[0].mxu0 %v1760
        %v2727 = vpop.f32.mrb[0].mxu0
        %v2728 = vadd.f32 0.0, %v2727
        %v2729 = vpop.f32.mrb[0].mxu0
        %v2730 = vadd.f32 0.0, %v2729
        %v2731 = vpop.f32.mrb[0].mxu0
        %v2732 = vadd.f32 0.0, %v2731
        %v2733 = vpop.f32.mrb[0].mxu0
        %v2734 = vadd.f32 0.0, %v2733
        %2735 = vdwg.mxu0
        %2736 = vmatprep.subr.bf16.mxu0 %v2253
        %2737 = vmatpush1.bf16.msra.mxu0 %v2252
        %2738 = vmatprep.subr.bf16.mxu0 %v2263
        %2739 = vmatpush1.bf16.msra.mxu0 %v2262
        %2740 = vmatprep.subr.bf16.mxu0 %v2273
        %2741 = vmatpush1.bf16.msra.mxu0 %v2272
        %2742 = vmatprep.subr.bf16.mxu0 %v2283
        %2743 = vmatpush1.bf16.msra.mxu0 %v2282
        %2744 = vmatprep.subr.bf16.mxu0 %v2293
        %2745 = vmatpush1.bf16.msra.mxu0 %v2292
        %2746 = vmatprep.subr.bf16.mxu0 %v2303
        %2747 = vmatpush1.bf16.msra.mxu0 %v2302
        %2748 = vmatprep.subr.bf16.mxu0 %v2313
        %2749 = vmatpush1.bf16.msra.mxu0 %v2312
        %2750 = vmatprep.subr.bf16.mxu0 %v2323
        %2751 = vmatpush1.bf16.msra.mxu0 %v2322
        %2752 = vmatprep.subr.bf16.mxu0 %v2333
        %2753 = vmatpush1.bf16.msra.mxu0 %v2332
        %2754 = vmatprep.subr.bf16.mxu0 %v2343
        %2755 = vmatpush1.bf16.msra.mxu0 %v2342
        %2756 = vmatprep.subr.bf16.mxu0 %v2353
        %2757 = vmatpush1.bf16.msra.mxu0 %v2352
        %2758 = vmatprep.subr.bf16.mxu0 %v2363
        %2759 = vmatpush1.bf16.msra.mxu0 %v2362
        %2760 = vmatprep.subr.bf16.mxu0 %v2373
        %2761 = vmatpush1.bf16.msra.mxu0 %v2372
        %2762 = vmatprep.subr.bf16.mxu0 %v2383
        %2763 = vmatpush1.bf16.msra.mxu0 %v2382
        %2764 = vmatprep.subr.bf16.mxu0 %v2393
        %2765 = vmatpush1.bf16.msra.mxu0 %v2392
        %2766 = vmatprep.subr.bf16.mxu0 %v2403
        %2767 = vmatpush1.bf16.msra.mxu0 %v2402
        %2768 = vmatprep.mubr.bf16.mxu0 %v1761
        %2769 = vmatmul.mubr.bf16.gmra.mrb[0].mxu0 %v1760
        %v2770 = vpop.f32.mrb[0].mxu0
        %v2771 = vadd.f32 0.0, %v2770
        %v2772 = vpop.f32.mrb[0].mxu0
        %v2773 = vadd.f32 0.0, %v2772
        %v2774 = vpop.f32.mrb[0].mxu0
        %v2775 = vadd.f32 0.0, %v2774
        %v2776 = vpop.f32.mrb[0].mxu0
        %v2777 = vadd.f32 0.0, %v2776
        %2778 = vdwg.mxu0
        %v2795 = vunpack.c.l.b16 %v296
        %v2796 = vunpack.c.h.b16 %v296
        %v2797 = vunpack.c.l.b16 %v297
        %v2798 = vunpack.c.h.b16 %v297
        %v2799 = vunpack.c.l.b16 %v298
        %v2800 = vunpack.c.h.b16 %v298
        %v2801 = vunpack.c.l.b16 %v299
        %v2802 = vunpack.c.h.b16 %v299
        %v2803 = vunpack.c.l.b16 %v300
        %v2804 = vunpack.c.h.b16 %v300
        %v2805 = vunpack.c.l.b16 %v301
        %v2806 = vunpack.c.h.b16 %v301
        %v2807 = vunpack.c.l.b16 %v302
        %v2808 = vunpack.c.h.b16 %v302
        %v2809 = vunpack.c.l.b16 %v303
        %v2810 = vunpack.c.h.b16 %v303
        %v2811 = vunpack.c.l.b16 %v304
        %v2812 = vunpack.c.h.b16 %v304
        %v2813 = vunpack.c.l.b16 %v305
        %v2814 = vunpack.c.h.b16 %v305
        %v2815 = vunpack.c.l.b16 %v306
        %v2816 = vunpack.c.h.b16 %v306
        %v2817 = vunpack.c.l.b16 %v307
        %v2818 = vunpack.c.h.b16 %v307
        %v2819 = vunpack.c.l.b16 %v308
        %v2820 = vunpack.c.h.b16 %v308
        %v2821 = vunpack.c.l.b16 %v309
        %v2822 = vunpack.c.h.b16 %v309
        %v2823 = vunpack.c.l.b16 %v310
        %v2824 = vunpack.c.h.b16 %v310
        %v2825 = vunpack.c.l.b16 %v311
        %v2826 = vunpack.c.h.b16 %v311
        %v2827 = vpack.c.b16 %v2811, %v2795
        %v2828 = vpack.c.b16 %v2812, %v2796
        %v2829 = vpack.c.b16 %v2813, %v2797
        %v2830 = vpack.c.b16 %v2814, %v2798
        %v2831 = vpack.c.b16 %v2815, %v2799
        %v2832 = vpack.c.b16 %v2816, %v2800
        %v2833 = vpack.c.b16 %v2817, %v2801
        %v2834 = vpack.c.b16 %v2818, %v2802
        %v2835 = vpack.c.b16 %v2819, %v2803
        %v2836 = vpack.c.b16 %v2820, %v2804
        %v2837 = vpack.c.b16 %v2821, %v2805
        %v2838 = vpack.c.b16 %v2822, %v2806
        %v2839 = vpack.c.b16 %v2823, %v2807
        %v2840 = vpack.c.b16 %v2824, %v2808
        %v2841 = vpack.c.b16 %v2825, %v2809
        %v2842 = vpack.c.b16 %v2826, %v2810
        %v4139 = vunpack.c.l.b16 %v312
        %v4140 = vunpack.c.h.b16 %v312
        %v4141 = vunpack.c.l.b16 %v313
        %v4142 = vunpack.c.h.b16 %v313
        %v4143 = vunpack.c.l.b16 %v314
        %v4144 = vunpack.c.h.b16 %v314
        %v4145 = vunpack.c.l.b16 %v315
        %v4146 = vunpack.c.h.b16 %v315
        %v4147 = vunpack.c.l.b16 %v316
        %v4148 = vunpack.c.h.b16 %v316
        %v4149 = vunpack.c.l.b16 %v317
        %v4150 = vunpack.c.h.b16 %v317
        %v4151 = vunpack.c.l.b16 %v318
        %v4152 = vunpack.c.h.b16 %v318
        %v4153 = vunpack.c.l.b16 %v319
        %v4154 = vunpack.c.h.b16 %v319
        %v4155 = vunpack.c.l.b16 %v320
        %v4156 = vunpack.c.h.b16 %v320
        %v4157 = vunpack.c.l.b16 %v321
        %v4158 = vunpack.c.h.b16 %v321
        %v4159 = vunpack.c.l.b16 %v322
        %v4160 = vunpack.c.h.b16 %v322
        %v4161 = vunpack.c.l.b16 %v323
        %v4162 = vunpack.c.h.b16 %v323
        %v4163 = vunpack.c.l.b16 %v324
        %v4164 = vunpack.c.h.b16 %v324
        %v4165 = vunpack.c.l.b16 %v325
        %v4166 = vunpack.c.h.b16 %v325
        %v4167 = vunpack.c.l.b16 %v326
        %v4168 = vunpack.c.h.b16 %v326
        %v4169 = vunpack.c.l.b16 %v327
        %v4170 = vunpack.c.h.b16 %v327
        %v4171 = vunpack.c.l.b16 %v328
        %v4172 = vunpack.c.h.b16 %v328
        %v4173 = vunpack.c.l.b16 %v329
        %v4174 = vunpack.c.h.b16 %v329
        %v4175 = vunpack.c.l.b16 %v330
        %v4176 = vunpack.c.h.b16 %v330
        %v4177 = vunpack.c.l.b16 %v331
        %v4178 = vunpack.c.h.b16 %v331
        %v4179 = vunpack.c.l.b16 %v332
        %v4180 = vunpack.c.h.b16 %v332
        %v4181 = vunpack.c.l.b16 %v333
        %v4182 = vunpack.c.h.b16 %v333
        %v4183 = vunpack.c.l.b16 %v334
        %v4184 = vunpack.c.h.b16 %v334
        %v4185 = vunpack.c.l.b16 %v335
        %v4186 = vunpack.c.h.b16 %v335
        %v4187 = vunpack.c.l.b16 %v336
        %v4188 = vunpack.c.h.b16 %v336
        %v4189 = vunpack.c.l.b16 %v337
        %v4190 = vunpack.c.h.b16 %v337
        %v4191 = vunpack.c.l.b16 %v338
        %v4192 = vunpack.c.h.b16 %v338
        %v4193 = vunpack.c.l.b16 %v339
        %v4194 = vunpack.c.h.b16 %v339
        %v4195 = vunpack.c.l.b16 %v340
        %v4196 = vunpack.c.h.b16 %v340
        %v4197 = vunpack.c.l.b16 %v341
        %v4198 = vunpack.c.h.b16 %v341
        %v4199 = vunpack.c.l.b16 %v342
        %v4200 = vunpack.c.h.b16 %v342
        %v4201 = vunpack.c.l.b16 %v343
        %v4202 = vunpack.c.h.b16 %v343
        %v4203 = vunpack.c.l.b16 %v344
        %v4204 = vunpack.c.h.b16 %v344
        %v4205 = vunpack.c.l.b16 %v345
        %v4206 = vunpack.c.h.b16 %v345
        %v4207 = vunpack.c.l.b16 %v346
        %v4208 = vunpack.c.h.b16 %v346
        %v4209 = vunpack.c.l.b16 %v347
        %v4210 = vunpack.c.h.b16 %v347
        %v4211 = vunpack.c.l.b16 %v348
        %v4212 = vunpack.c.h.b16 %v348
        %v4213 = vunpack.c.l.b16 %v349
        %v4214 = vunpack.c.h.b16 %v349
        %v4215 = vunpack.c.l.b16 %v350
        %v4216 = vunpack.c.h.b16 %v350
        %v4217 = vunpack.c.l.b16 %v351
        %v4218 = vunpack.c.h.b16 %v351
        %v4219 = vunpack.c.l.b16 %v352
        %v4220 = vunpack.c.h.b16 %v352
        %v4221 = vunpack.c.l.b16 %v353
        %v4222 = vunpack.c.h.b16 %v353
        %v4223 = vunpack.c.l.b16 %v354
        %v4224 = vunpack.c.h.b16 %v354
        %v4225 = vunpack.c.l.b16 %v355
        %v4226 = vunpack.c.h.b16 %v355
        %v4227 = vunpack.c.l.b16 %v356
        %v4228 = vunpack.c.h.b16 %v356
        %v4229 = vunpack.c.l.b16 %v357
        %v4230 = vunpack.c.h.b16 %v357
        %v4231 = vunpack.c.l.b16 %v358
        %v4232 = vunpack.c.h.b16 %v358
        %v4233 = vunpack.c.l.b16 %v359
        %v4234 = vunpack.c.h.b16 %v359
        %v4235 = vunpack.c.l.b16 %v360
        %v4236 = vunpack.c.h.b16 %v360
        %v4237 = vunpack.c.l.b16 %v361
        %v4238 = vunpack.c.h.b16 %v361
        %v4239 = vunpack.c.l.b16 %v362
        %v4240 = vunpack.c.h.b16 %v362
        %v4241 = vunpack.c.l.b16 %v363
        %v4242 = vunpack.c.h.b16 %v363
        %v4243 = vunpack.c.l.b16 %v364
        %v4244 = vunpack.c.h.b16 %v364
        %v4245 = vunpack.c.l.b16 %v365
        %v4246 = vunpack.c.h.b16 %v365
        %v4247 = vunpack.c.l.b16 %v366
        %v4248 = vunpack.c.h.b16 %v366
        %v4249 = vunpack.c.l.b16 %v367
        %v4250 = vunpack.c.h.b16 %v367
        %v4251 = vunpack.c.l.b16 %v368
        %v4252 = vunpack.c.h.b16 %v368
        %v4253 = vunpack.c.l.b16 %v369
        %v4254 = vunpack.c.h.b16 %v369
        %v4255 = vunpack.c.l.b16 %v370
        %v4256 = vunpack.c.h.b16 %v370
        %v4257 = vunpack.c.l.b16 %v371
        %v4258 = vunpack.c.h.b16 %v371
        %v4259 = vunpack.c.l.b16 %v372
        %v4260 = vunpack.c.h.b16 %v372
        %v4261 = vunpack.c.l.b16 %v373
        %v4262 = vunpack.c.h.b16 %v373
        %v4263 = vunpack.c.l.b16 %v374
        %v4264 = vunpack.c.h.b16 %v374
        %v4265 = vunpack.c.l.b16 %v375
        %v4266 = vunpack.c.h.b16 %v375
        %v4267 = vunpack.c.l.b16 %v376
        %v4268 = vunpack.c.h.b16 %v376
        %v4269 = vunpack.c.l.b16 %v377
        %v4270 = vunpack.c.h.b16 %v377
        %v4271 = vunpack.c.l.b16 %v378
        %v4272 = vunpack.c.h.b16 %v378
        %v4273 = vunpack.c.l.b16 %v379
        %v4274 = vunpack.c.h.b16 %v379
        %v4275 = vunpack.c.l.b16 %v380
        %v4276 = vunpack.c.h.b16 %v380
        %v4277 = vunpack.c.l.b16 %v381
        %v4278 = vunpack.c.h.b16 %v381
        %v4279 = vunpack.c.l.b16 %v382
        %v4280 = vunpack.c.h.b16 %v382
        %v4281 = vunpack.c.l.b16 %v383
        %v4282 = vunpack.c.h.b16 %v383
        %v4283 = vunpack.c.l.b16 %v384
        %v4284 = vunpack.c.h.b16 %v384
        %v4285 = vunpack.c.l.b16 %v385
        %v4286 = vunpack.c.h.b16 %v385
        %v4287 = vunpack.c.l.b16 %v386
        %v4288 = vunpack.c.h.b16 %v386
        %v4289 = vunpack.c.l.b16 %v387
        %v4290 = vunpack.c.h.b16 %v387
        %v4291 = vunpack.c.l.b16 %v388
        %v4292 = vunpack.c.h.b16 %v388
        %v4293 = vunpack.c.l.b16 %v389
        %v4294 = vunpack.c.h.b16 %v389
        %v4295 = vunpack.c.l.b16 %v390
        %v4296 = vunpack.c.h.b16 %v390
        %v4297 = vunpack.c.l.b16 %v391
        %v4298 = vunpack.c.h.b16 %v391
        %v4299 = vunpack.c.l.b16 %v392
        %v4300 = vunpack.c.h.b16 %v392
        %v4301 = vunpack.c.l.b16 %v393
        %v4302 = vunpack.c.h.b16 %v393
        %v4303 = vunpack.c.l.b16 %v394
        %v4304 = vunpack.c.h.b16 %v394
        %v4305 = vunpack.c.l.b16 %v395
        %v4306 = vunpack.c.h.b16 %v395
        %v4307 = vunpack.c.l.b16 %v396
        %v4308 = vunpack.c.h.b16 %v396
        %v4309 = vunpack.c.l.b16 %v397
        %v4310 = vunpack.c.h.b16 %v397
        %v4311 = vunpack.c.l.b16 %v398
        %v4312 = vunpack.c.h.b16 %v398
        %v4313 = vunpack.c.l.b16 %v399
        %v4314 = vunpack.c.h.b16 %v399
        %v4315 = vunpack.c.l.b16 %v400
        %v4316 = vunpack.c.h.b16 %v400
        %v4317 = vunpack.c.l.b16 %v401
        %v4318 = vunpack.c.h.b16 %v401
        %v4319 = vunpack.c.l.b16 %v402
        %v4320 = vunpack.c.h.b16 %v402
        %v4321 = vunpack.c.l.b16 %v403
        %v4322 = vunpack.c.h.b16 %v403
        %v4323 = vunpack.c.l.b16 %v404
        %v4324 = vunpack.c.h.b16 %v404
        %v4325 = vunpack.c.l.b16 %v405
        %v4326 = vunpack.c.h.b16 %v405
        %v4327 = vunpack.c.l.b16 %v406
        %v4328 = vunpack.c.h.b16 %v406
        %v4329 = vunpack.c.l.b16 %v407
        %v4330 = vunpack.c.h.b16 %v407
        %v4331 = vunpack.c.l.b16 %v408
        %v4332 = vunpack.c.h.b16 %v408
        %v4333 = vunpack.c.l.b16 %v409
        %v4334 = vunpack.c.h.b16 %v409
        %v4335 = vunpack.c.l.b16 %v410
        %v4336 = vunpack.c.h.b16 %v410
        %v4337 = vunpack.c.l.b16 %v411
        %v4338 = vunpack.c.h.b16 %v411
        %v4339 = vunpack.c.l.b16 %v412
        %v4340 = vunpack.c.h.b16 %v412
        %v4341 = vunpack.c.l.b16 %v413
        %v4342 = vunpack.c.h.b16 %v413
        %v4343 = vunpack.c.l.b16 %v414
        %v4344 = vunpack.c.h.b16 %v414
        %v4345 = vunpack.c.l.b16 %v415
        %v4346 = vunpack.c.h.b16 %v415
        %v4347 = vunpack.c.l.b16 %v416
        %v4348 = vunpack.c.h.b16 %v416
        %v4349 = vunpack.c.l.b16 %v417
        %v4350 = vunpack.c.h.b16 %v417
        %v4351 = vunpack.c.l.b16 %v418
        %v4352 = vunpack.c.h.b16 %v418
        %v4353 = vunpack.c.l.b16 %v419
        %v4354 = vunpack.c.h.b16 %v419
        %v4355 = vunpack.c.l.b16 %v420
        %v4356 = vunpack.c.h.b16 %v420
        %v4357 = vunpack.c.l.b16 %v421
        %v4358 = vunpack.c.h.b16 %v421
        %v4359 = vunpack.c.l.b16 %v422
        %v4360 = vunpack.c.h.b16 %v422
        %v4361 = vunpack.c.l.b16 %v423
        %v4362 = vunpack.c.h.b16 %v423
        %v4363 = vunpack.c.l.b16 %v424
        %v4364 = vunpack.c.h.b16 %v424
        %v4365 = vunpack.c.l.b16 %v425
        %v4366 = vunpack.c.h.b16 %v425
        %v4367 = vunpack.c.l.b16 %v426
        %v4368 = vunpack.c.h.b16 %v426
        %v4369 = vunpack.c.l.b16 %v427
        %v4370 = vunpack.c.h.b16 %v427
        %v4371 = vunpack.c.l.b16 %v428
        %v4372 = vunpack.c.h.b16 %v428
        %v4373 = vunpack.c.l.b16 %v429
        %v4374 = vunpack.c.h.b16 %v429
        %v4375 = vunpack.c.l.b16 %v430
        %v4376 = vunpack.c.h.b16 %v430
        %v4377 = vunpack.c.l.b16 %v431
        %v4378 = vunpack.c.h.b16 %v431
        %v4379 = vunpack.c.l.b16 %v432
        %v4380 = vunpack.c.h.b16 %v432
        %v4381 = vunpack.c.l.b16 %v433
        %v4382 = vunpack.c.h.b16 %v433
        %v4383 = vunpack.c.l.b16 %v434
        %v4384 = vunpack.c.h.b16 %v434
        %v4385 = vunpack.c.l.b16 %v435
        %v4386 = vunpack.c.h.b16 %v435
        %v4387 = vunpack.c.l.b16 %v436
        %v4388 = vunpack.c.h.b16 %v436
        %v4389 = vunpack.c.l.b16 %v437
        %v4390 = vunpack.c.h.b16 %v437
        %v4391 = vunpack.c.l.b16 %v438
        %v4392 = vunpack.c.h.b16 %v438
        %v4393 = vunpack.c.l.b16 %v439
        %v4394 = vunpack.c.h.b16 %v439
        %v4395 = vunpack.c.l.b16 %v440
        %v4396 = vunpack.c.h.b16 %v440
        %v4397 = vunpack.c.l.b16 %v441
        %v4398 = vunpack.c.h.b16 %v441
        %v4399 = vunpack.c.l.b16 %v442
        %v4400 = vunpack.c.h.b16 %v442
        %v4401 = vunpack.c.l.b16 %v443
        %v4402 = vunpack.c.h.b16 %v443
        %v4403 = vunpack.c.l.b16 %v444
        %v4404 = vunpack.c.h.b16 %v444
        %v4405 = vunpack.c.l.b16 %v445
        %v4406 = vunpack.c.h.b16 %v445
        %v4407 = vunpack.c.l.b16 %v446
        %v4408 = vunpack.c.h.b16 %v446
        %v4409 = vunpack.c.l.b16 %v447
        %v4410 = vunpack.c.h.b16 %v447
        %v4411 = vunpack.c.l.b16 %v448
        %v4412 = vunpack.c.h.b16 %v448
        %v4413 = vunpack.c.l.b16 %v449
        %v4414 = vunpack.c.h.b16 %v449
        %v4415 = vunpack.c.l.b16 %v450
        %v4416 = vunpack.c.h.b16 %v450
        %v4417 = vunpack.c.l.b16 %v451
        %v4418 = vunpack.c.h.b16 %v451
        %v4419 = vunpack.c.l.b16 %v452
        %v4420 = vunpack.c.h.b16 %v452
        %v4421 = vunpack.c.l.b16 %v453
        %v4422 = vunpack.c.h.b16 %v453
        %v4423 = vunpack.c.l.b16 %v454
        %v4424 = vunpack.c.h.b16 %v454
        %v4425 = vunpack.c.l.b16 %v455
        %v4426 = vunpack.c.h.b16 %v455
        %v4427 = vunpack.c.l.b16 %v456
        %v4428 = vunpack.c.h.b16 %v456
        %v4429 = vunpack.c.l.b16 %v457
        %v4430 = vunpack.c.h.b16 %v457
        %v4431 = vunpack.c.l.b16 %v458
        %v4432 = vunpack.c.h.b16 %v458
        %v4433 = vunpack.c.l.b16 %v459
        %v4434 = vunpack.c.h.b16 %v459
        %v4435 = vunpack.c.l.b16 %v460
        %v4436 = vunpack.c.h.b16 %v460
        %v4437 = vunpack.c.l.b16 %v461
        %v4438 = vunpack.c.h.b16 %v461
        %v4439 = vunpack.c.l.b16 %v462
        %v4440 = vunpack.c.h.b16 %v462
        %v4441 = vunpack.c.l.b16 %v463
        %v4442 = vunpack.c.h.b16 %v463
        %v4443 = vunpack.c.l.b16 %v464
        %v4444 = vunpack.c.h.b16 %v464
        %v4445 = vunpack.c.l.b16 %v465
        %v4446 = vunpack.c.h.b16 %v465
        %v4447 = vunpack.c.l.b16 %v466
        %v4448 = vunpack.c.h.b16 %v466
        %v4449 = vunpack.c.l.b16 %v467
        %v4450 = vunpack.c.h.b16 %v467
        %v4451 = vunpack.c.l.b16 %v468
        %v4452 = vunpack.c.h.b16 %v468
        %v4453 = vunpack.c.l.b16 %v469
        %v4454 = vunpack.c.h.b16 %v469
        %v4455 = vunpack.c.l.b16 %v470
        %v4456 = vunpack.c.h.b16 %v470
        %v4457 = vunpack.c.l.b16 %v471
        %v4458 = vunpack.c.h.b16 %v471
        %v4459 = vunpack.c.l.b16 %v472
        %v4460 = vunpack.c.h.b16 %v472
        %v4461 = vunpack.c.l.b16 %v473
        %v4462 = vunpack.c.h.b16 %v473
        %v4463 = vunpack.c.l.b16 %v474
        %v4464 = vunpack.c.h.b16 %v474
        %v4465 = vunpack.c.l.b16 %v475
        %v4466 = vunpack.c.h.b16 %v475
        %v4467 = vunpack.c.l.b16 %v476
        %v4468 = vunpack.c.h.b16 %v476
        %v4469 = vunpack.c.l.b16 %v477
        %v4470 = vunpack.c.h.b16 %v477
        %v4471 = vunpack.c.l.b16 %v478
        %v4472 = vunpack.c.h.b16 %v478
        %v4473 = vunpack.c.l.b16 %v479
        %v4474 = vunpack.c.h.b16 %v479
        %v4475 = vunpack.c.l.b16 %v480
        %v4476 = vunpack.c.h.b16 %v480
        %v4477 = vunpack.c.l.b16 %v481
        %v4478 = vunpack.c.h.b16 %v481
        %v4479 = vunpack.c.l.b16 %v482
        %v4480 = vunpack.c.h.b16 %v482
        %v4481 = vunpack.c.l.b16 %v483
        %v4482 = vunpack.c.h.b16 %v483
        %v4483 = vunpack.c.l.b16 %v484
        %v4484 = vunpack.c.h.b16 %v484
        %v4485 = vunpack.c.l.b16 %v485
        %v4486 = vunpack.c.h.b16 %v485
        %v4487 = vunpack.c.l.b16 %v486
        %v4488 = vunpack.c.h.b16 %v486
        %v4489 = vunpack.c.l.b16 %v487
        %v4490 = vunpack.c.h.b16 %v487
        %v4491 = vunpack.c.l.b16 %v488
        %v4492 = vunpack.c.h.b16 %v488
        %v4493 = vunpack.c.l.b16 %v489
        %v4494 = vunpack.c.h.b16 %v489
        %v4495 = vunpack.c.l.b16 %v490
        %v4496 = vunpack.c.h.b16 %v490
        %v4497 = vunpack.c.l.b16 %v491
        %v4498 = vunpack.c.h.b16 %v491
        %v4499 = vunpack.c.l.b16 %v492
        %v4500 = vunpack.c.h.b16 %v492
        %v4501 = vunpack.c.l.b16 %v493
        %v4502 = vunpack.c.h.b16 %v493
        %v4503 = vunpack.c.l.b16 %v494
        %v4504 = vunpack.c.h.b16 %v494
        %v4505 = vunpack.c.l.b16 %v495
        %v4506 = vunpack.c.h.b16 %v495
        %v4507 = vunpack.c.l.b16 %v496
        %v4508 = vunpack.c.h.b16 %v496
        %v4509 = vunpack.c.l.b16 %v497
        %v4510 = vunpack.c.h.b16 %v497
        %v4511 = vunpack.c.l.b16 %v498
        %v4512 = vunpack.c.h.b16 %v498
        %v4513 = vunpack.c.l.b16 %v499
        %v4514 = vunpack.c.h.b16 %v499
        %v4515 = vunpack.c.l.b16 %v500
        %v4516 = vunpack.c.h.b16 %v500
        %v4517 = vunpack.c.l.b16 %v501
        %v4518 = vunpack.c.h.b16 %v501
        %v4519 = vunpack.c.l.b16 %v502
        %v4520 = vunpack.c.h.b16 %v502
        %v4521 = vunpack.c.l.b16 %v503
        %v4522 = vunpack.c.h.b16 %v503
        %v4523 = vunpack.c.l.b16 %v504
        %v4524 = vunpack.c.h.b16 %v504
        %v4525 = vunpack.c.l.b16 %v505
        %v4526 = vunpack.c.h.b16 %v505
        %v4527 = vunpack.c.l.b16 %v506
        %v4528 = vunpack.c.h.b16 %v506
        %v4529 = vunpack.c.l.b16 %v507
        %v4530 = vunpack.c.h.b16 %v507
        %v4531 = vunpack.c.l.b16 %v508
        %v4532 = vunpack.c.h.b16 %v508
        %v4533 = vunpack.c.l.b16 %v509
        %v4534 = vunpack.c.h.b16 %v509
        %v4535 = vunpack.c.l.b16 %v510
        %v4536 = vunpack.c.h.b16 %v510
        %v4537 = vunpack.c.l.b16 %v511
        %v4538 = vunpack.c.h.b16 %v511
        %v4539 = vunpack.c.l.b16 %v512
        %v4540 = vunpack.c.h.b16 %v512
        %v4541 = vunpack.c.l.b16 %v513
        %v4542 = vunpack.c.h.b16 %v513
        %v4543 = vunpack.c.l.b16 %v514
        %v4544 = vunpack.c.h.b16 %v514
        %v4545 = vunpack.c.l.b16 %v515
        %v4546 = vunpack.c.h.b16 %v515
        %v4547 = vunpack.c.l.b16 %v516
        %v4548 = vunpack.c.h.b16 %v516
        %v4549 = vunpack.c.l.b16 %v517
        %v4550 = vunpack.c.h.b16 %v517
        %v4551 = vunpack.c.l.b16 %v518
        %v4552 = vunpack.c.h.b16 %v518
        %v4553 = vunpack.c.l.b16 %v519
        %v4554 = vunpack.c.h.b16 %v519
        %v4555 = vunpack.c.l.b16 %v520
        %v4556 = vunpack.c.h.b16 %v520
        %v4557 = vunpack.c.l.b16 %v521
        %v4558 = vunpack.c.h.b16 %v521
        %v4559 = vunpack.c.l.b16 %v522
        %v4560 = vunpack.c.h.b16 %v522
        %v4561 = vunpack.c.l.b16 %v523
        %v4562 = vunpack.c.h.b16 %v523
        %v4563 = vunpack.c.l.b16 %v524
        %v4564 = vunpack.c.h.b16 %v524
        %v4565 = vunpack.c.l.b16 %v525
        %v4566 = vunpack.c.h.b16 %v525
        %v4567 = vunpack.c.l.b16 %v526
        %v4568 = vunpack.c.h.b16 %v526
        %v4569 = vunpack.c.l.b16 %v527
        %v4570 = vunpack.c.h.b16 %v527
        %v4571 = vunpack.c.l.b16 %v528
        %v4572 = vunpack.c.h.b16 %v528
        %v4573 = vunpack.c.l.b16 %v529
        %v4574 = vunpack.c.h.b16 %v529
        %v4575 = vunpack.c.l.b16 %v530
        %v4576 = vunpack.c.h.b16 %v530
        %v4577 = vunpack.c.l.b16 %v531
        %v4578 = vunpack.c.h.b16 %v531
        %v4579 = vunpack.c.l.b16 %v532
        %v4580 = vunpack.c.h.b16 %v532
        %v4581 = vunpack.c.l.b16 %v533
        %v4582 = vunpack.c.h.b16 %v533
        %v4583 = vunpack.c.l.b16 %v534
        %v4584 = vunpack.c.h.b16 %v534
        %v4585 = vunpack.c.l.b16 %v535
        %v4586 = vunpack.c.h.b16 %v535
        %v4587 = vunpack.c.l.b16 %v536
        %v4588 = vunpack.c.h.b16 %v536
        %v4589 = vunpack.c.l.b16 %v537
        %v4590 = vunpack.c.h.b16 %v537
        %v4591 = vunpack.c.l.b16 %v538
        %v4592 = vunpack.c.h.b16 %v538
        %v4593 = vunpack.c.l.b16 %v539
        %v4594 = vunpack.c.h.b16 %v539
        %v4595 = vunpack.c.l.b16 %v540
        %v4596 = vunpack.c.h.b16 %v540
        %v4597 = vunpack.c.l.b16 %v541
        %v4598 = vunpack.c.h.b16 %v541
        %v4599 = vunpack.c.l.b16 %v542
        %v4600 = vunpack.c.h.b16 %v542
        %v4601 = vunpack.c.l.b16 %v543
        %v4602 = vunpack.c.h.b16 %v543
        %v4603 = vunpack.c.l.b16 %v544
        %v4604 = vunpack.c.h.b16 %v544
        %v4605 = vunpack.c.l.b16 %v545
        %v4606 = vunpack.c.h.b16 %v545
        %v4607 = vunpack.c.l.b16 %v546
        %v4608 = vunpack.c.h.b16 %v546
        %v4609 = vunpack.c.l.b16 %v547
        %v4610 = vunpack.c.h.b16 %v547
        %v4611 = vunpack.c.l.b16 %v548
        %v4612 = vunpack.c.h.b16 %v548
        %v4613 = vunpack.c.l.b16 %v549
        %v4614 = vunpack.c.h.b16 %v549
        %v4615 = vunpack.c.l.b16 %v550
        %v4616 = vunpack.c.h.b16 %v550
        %v4617 = vunpack.c.l.b16 %v551
        %v4618 = vunpack.c.h.b16 %v551
        %v4619 = vunpack.c.l.b16 %v552
        %v4620 = vunpack.c.h.b16 %v552
        %v4621 = vunpack.c.l.b16 %v553
        %v4622 = vunpack.c.h.b16 %v553
        %v4623 = vunpack.c.l.b16 %v554
        %v4624 = vunpack.c.h.b16 %v554
        %v4625 = vunpack.c.l.b16 %v555
        %v4626 = vunpack.c.h.b16 %v555
        %v4627 = vunpack.c.l.b16 %v556
        %v4628 = vunpack.c.h.b16 %v556
        %v4629 = vunpack.c.l.b16 %v557
        %v4630 = vunpack.c.h.b16 %v557
        %v4631 = vunpack.c.l.b16 %v558
        %v4632 = vunpack.c.h.b16 %v558
        %v4633 = vunpack.c.l.b16 %v559
        %v4634 = vunpack.c.h.b16 %v559
        %v4635 = vunpack.c.l.b16 %v560
        %v4636 = vunpack.c.h.b16 %v560
        %v4637 = vunpack.c.l.b16 %v561
        %v4638 = vunpack.c.h.b16 %v561
        %v4639 = vunpack.c.l.b16 %v562
        %v4640 = vunpack.c.h.b16 %v562
        %v4641 = vunpack.c.l.b16 %v563
        %v4642 = vunpack.c.h.b16 %v563
        %v4643 = vunpack.c.l.b16 %v564
        %v4644 = vunpack.c.h.b16 %v564
        %v4645 = vunpack.c.l.b16 %v565
        %v4646 = vunpack.c.h.b16 %v565
        %v4647 = vunpack.c.l.b16 %v566
        %v4648 = vunpack.c.h.b16 %v566
        %v4649 = vunpack.c.l.b16 %v567
        %v4650 = vunpack.c.h.b16 %v567
        %v4651 = vunpack.c.l.b16 %v568
        %v4652 = vunpack.c.h.b16 %v568
        %v4653 = vunpack.c.l.b16 %v569
        %v4654 = vunpack.c.h.b16 %v569
        %v4655 = vunpack.c.l.b16 %v570
        %v4656 = vunpack.c.h.b16 %v570
        %v4657 = vunpack.c.l.b16 %v571
        %v4658 = vunpack.c.h.b16 %v571
        %v4659 = vunpack.c.l.b16 %v572
        %v4660 = vunpack.c.h.b16 %v572
        %v4661 = vunpack.c.l.b16 %v573
        %v4662 = vunpack.c.h.b16 %v573
        %v4663 = vunpack.c.l.b16 %v574
        %v4664 = vunpack.c.h.b16 %v574
        %v4665 = vunpack.c.l.b16 %v575
        %v4666 = vunpack.c.h.b16 %v575
        %v4667 = vunpack.c.l.b16 %v576
        %v4668 = vunpack.c.h.b16 %v576
        %v4669 = vunpack.c.l.b16 %v577
        %v4670 = vunpack.c.h.b16 %v577
        %v4671 = vunpack.c.l.b16 %v578
        %v4672 = vunpack.c.h.b16 %v578
        %v4673 = vunpack.c.l.b16 %v579
        %v4674 = vunpack.c.h.b16 %v579
        %v4675 = vunpack.c.l.b16 %v580
        %v4676 = vunpack.c.h.b16 %v580
        %v4677 = vunpack.c.l.b16 %v581
        %v4678 = vunpack.c.h.b16 %v581
        %v4679 = vunpack.c.l.b16 %v582
        %v4680 = vunpack.c.h.b16 %v582
        %v4681 = vunpack.c.l.b16 %v583
        %v4682 = vunpack.c.h.b16 %v583
        %v4683 = vunpack.c.l.b16 %v584
        %v4684 = vunpack.c.h.b16 %v584
        %v4685 = vunpack.c.l.b16 %v585
        %v4686 = vunpack.c.h.b16 %v585
        %v4687 = vunpack.c.l.b16 %v586
        %v4688 = vunpack.c.h.b16 %v586
        %v4689 = vunpack.c.l.b16 %v587
        %v4690 = vunpack.c.h.b16 %v587
        %v4691 = vunpack.c.l.b16 %v588
        %v4692 = vunpack.c.h.b16 %v588
        %v4693 = vunpack.c.l.b16 %v589
        %v4694 = vunpack.c.h.b16 %v589
        %v4695 = vunpack.c.l.b16 %v590
        %v4696 = vunpack.c.h.b16 %v590
        %v4697 = vunpack.c.l.b16 %v591
        %v4698 = vunpack.c.h.b16 %v591
        %v4699 = vunpack.c.l.b16 %v592
        %v4700 = vunpack.c.h.b16 %v592
        %v4701 = vunpack.c.l.b16 %v593
        %v4702 = vunpack.c.h.b16 %v593
        %v4703 = vunpack.c.l.b16 %v594
        %v4704 = vunpack.c.h.b16 %v594
        %v4705 = vunpack.c.l.b16 %v595
        %v4706 = vunpack.c.h.b16 %v595
        %v4707 = vunpack.c.l.b16 %v596
        %v4708 = vunpack.c.h.b16 %v596
        %v4709 = vunpack.c.l.b16 %v597
        %v4710 = vunpack.c.h.b16 %v597
        %v4711 = vunpack.c.l.b16 %v598
        %v4712 = vunpack.c.h.b16 %v598
        %v4713 = vunpack.c.l.b16 %v599
        %v4714 = vunpack.c.h.b16 %v599
        %v4715 = vunpack.c.l.b16 %v600
        %v4716 = vunpack.c.h.b16 %v600
        %v4717 = vunpack.c.l.b16 %v601
        %v4718 = vunpack.c.h.b16 %v601
        %v4719 = vunpack.c.l.b16 %v602
        %v4720 = vunpack.c.h.b16 %v602
        %v4721 = vunpack.c.l.b16 %v603
        %v4722 = vunpack.c.h.b16 %v603
        %v4723 = vunpack.c.l.b16 %v604
        %v4724 = vunpack.c.h.b16 %v604
        %v4725 = vunpack.c.l.b16 %v605
        %v4726 = vunpack.c.h.b16 %v605
        %v4727 = vunpack.c.l.b16 %v606
        %v4728 = vunpack.c.h.b16 %v606
        %v4729 = vunpack.c.l.b16 %v607
        %v4730 = vunpack.c.h.b16 %v607
        %v4731 = vunpack.c.l.b16 %v608
        %v4732 = vunpack.c.h.b16 %v608
        %v4733 = vunpack.c.l.b16 %v609
        %v4734 = vunpack.c.h.b16 %v609
        %v4735 = vunpack.c.l.b16 %v610
        %v4736 = vunpack.c.h.b16 %v610
        %v4737 = vunpack.c.l.b16 %v611
        %v4738 = vunpack.c.h.b16 %v611
        %v4739 = vunpack.c.l.b16 %v612
        %v4740 = vunpack.c.h.b16 %v612
        %v4741 = vunpack.c.l.b16 %v613
        %v4742 = vunpack.c.h.b16 %v613
        %v4743 = vunpack.c.l.b16 %v614
        %v4744 = vunpack.c.h.b16 %v614
        %v4745 = vunpack.c.l.b16 %v615
        %v4746 = vunpack.c.h.b16 %v615
        %v4747 = vunpack.c.l.b16 %v616
        %v4748 = vunpack.c.h.b16 %v616
        %v4749 = vunpack.c.l.b16 %v617
        %v4750 = vunpack.c.h.b16 %v617
        %v4751 = vunpack.c.l.b16 %v618
        %v4752 = vunpack.c.h.b16 %v618
        %v4753 = vunpack.c.l.b16 %v619
        %v4754 = vunpack.c.h.b16 %v619
        %v4755 = vunpack.c.l.b16 %v620
        %v4756 = vunpack.c.h.b16 %v620
        %v4757 = vunpack.c.l.b16 %v621
        %v4758 = vunpack.c.h.b16 %v621
        %v4759 = vunpack.c.l.b16 %v622
        %v4760 = vunpack.c.h.b16 %v622
        %v4761 = vunpack.c.l.b16 %v623
        %v4762 = vunpack.c.h.b16 %v623
        %v4763 = vunpack.c.l.b16 %v624
        %v4764 = vunpack.c.h.b16 %v624
        %v4765 = vunpack.c.l.b16 %v625
        %v4766 = vunpack.c.h.b16 %v625
        %v4767 = vunpack.c.l.b16 %v626
        %v4768 = vunpack.c.h.b16 %v626
        %v4769 = vunpack.c.l.b16 %v627
        %v4770 = vunpack.c.h.b16 %v627
        %v4771 = vunpack.c.l.b16 %v628
        %v4772 = vunpack.c.h.b16 %v628
        %v4773 = vunpack.c.l.b16 %v629
        %v4774 = vunpack.c.h.b16 %v629
        %v4775 = vunpack.c.l.b16 %v630
        %v4776 = vunpack.c.h.b16 %v630
        %v4777 = vunpack.c.l.b16 %v631
        %v4778 = vunpack.c.h.b16 %v631
        %v4779 = vunpack.c.l.b16 %v632
        %v4780 = vunpack.c.h.b16 %v632
        %v4781 = vunpack.c.l.b16 %v633
        %v4782 = vunpack.c.h.b16 %v633
        %v4783 = vunpack.c.l.b16 %v634
        %v4784 = vunpack.c.h.b16 %v634
        %v4785 = vunpack.c.l.b16 %v635
        %v4786 = vunpack.c.h.b16 %v635
        %v4787 = vunpack.c.l.b16 %v636
        %v4788 = vunpack.c.h.b16 %v636
        %v4789 = vunpack.c.l.b16 %v637
        %v4790 = vunpack.c.h.b16 %v637
        %v4791 = vunpack.c.l.b16 %v638
        %v4792 = vunpack.c.h.b16 %v638
        %v4793 = vunpack.c.l.b16 %v639
        %v4794 = vunpack.c.h.b16 %v639
        %v4795 = vunpack.c.l.b16 %v640
        %v4796 = vunpack.c.h.b16 %v640
        %v4797 = vunpack.c.l.b16 %v641
        %v4798 = vunpack.c.h.b16 %v641
        %v4799 = vunpack.c.l.b16 %v642
        %v4800 = vunpack.c.h.b16 %v642
        %v4801 = vunpack.c.l.b16 %v643
        %v4802 = vunpack.c.h.b16 %v643
        %v4803 = vunpack.c.l.b16 %v644
        %v4804 = vunpack.c.h.b16 %v644
        %v4805 = vunpack.c.l.b16 %v645
        %v4806 = vunpack.c.h.b16 %v645
        %v4807 = vunpack.c.l.b16 %v646
        %v4808 = vunpack.c.h.b16 %v646
        %v4809 = vunpack.c.l.b16 %v647
        %v4810 = vunpack.c.h.b16 %v647
        %v4811 = vunpack.c.l.b16 %v648
        %v4812 = vunpack.c.h.b16 %v648
        %v4813 = vunpack.c.l.b16 %v649
        %v4814 = vunpack.c.h.b16 %v649
        %v4815 = vunpack.c.l.b16 %v650
        %v4816 = vunpack.c.h.b16 %v650
        %v4817 = vunpack.c.l.b16 %v651
        %v4818 = vunpack.c.h.b16 %v651
        %v4819 = vunpack.c.l.b16 %v652
        %v4820 = vunpack.c.h.b16 %v652
        %v4821 = vunpack.c.l.b16 %v653
        %v4822 = vunpack.c.h.b16 %v653
        %v4823 = vunpack.c.l.b16 %v654
        %v4824 = vunpack.c.h.b16 %v654
        %v4825 = vunpack.c.l.b16 %v655
        %v4826 = vunpack.c.h.b16 %v655
        %v4827 = vunpack.c.l.b16 %v656
        %v4828 = vunpack.c.h.b16 %v656
        %v4829 = vunpack.c.l.b16 %v657
        %v4830 = vunpack.c.h.b16 %v657
        %v4831 = vunpack.c.l.b16 %v658
        %v4832 = vunpack.c.h.b16 %v658
        %v4833 = vunpack.c.l.b16 %v659
        %v4834 = vunpack.c.h.b16 %v659
        %v4835 = vunpack.c.l.b16 %v660
        %v4836 = vunpack.c.h.b16 %v660
        %v4837 = vunpack.c.l.b16 %v661
        %v4838 = vunpack.c.h.b16 %v661
        %v4839 = vunpack.c.l.b16 %v662
        %v4840 = vunpack.c.h.b16 %v662
        %v4841 = vunpack.c.l.b16 %v663
        %v4842 = vunpack.c.h.b16 %v663
        %v4843 = vunpack.c.l.b16 %v664
        %v4844 = vunpack.c.h.b16 %v664
        %v4845 = vunpack.c.l.b16 %v665
        %v4846 = vunpack.c.h.b16 %v665
        %v4847 = vunpack.c.l.b16 %v666
        %v4848 = vunpack.c.h.b16 %v666
        %v4849 = vunpack.c.l.b16 %v667
        %v4850 = vunpack.c.h.b16 %v667
        %v4851 = vunpack.c.l.b16 %v668
        %v4852 = vunpack.c.h.b16 %v668
        %v4853 = vunpack.c.l.b16 %v669
        %v4854 = vunpack.c.h.b16 %v669
        %v4855 = vunpack.c.l.b16 %v670
        %v4856 = vunpack.c.h.b16 %v670
        %v4857 = vunpack.c.l.b16 %v671
        %v4858 = vunpack.c.h.b16 %v671
        %v4859 = vunpack.c.l.b16 %v672
        %v4860 = vunpack.c.h.b16 %v672
        %v4861 = vunpack.c.l.b16 %v673
        %v4862 = vunpack.c.h.b16 %v673
        %v4863 = vunpack.c.l.b16 %v674
        %v4864 = vunpack.c.h.b16 %v674
        %v4865 = vunpack.c.l.b16 %v675
        %v4866 = vunpack.c.h.b16 %v675
        %v4867 = vunpack.c.l.b16 %v676
        %v4868 = vunpack.c.h.b16 %v676
        %v4869 = vunpack.c.l.b16 %v677
        %v4870 = vunpack.c.h.b16 %v677
        %v4871 = vunpack.c.l.b16 %v678
        %v4872 = vunpack.c.h.b16 %v678
        %v4873 = vunpack.c.l.b16 %v679
        %v4874 = vunpack.c.h.b16 %v679
        %v4875 = vunpack.c.l.b16 %v680
        %v4876 = vunpack.c.h.b16 %v680
        %v4877 = vunpack.c.l.b16 %v681
        %v4878 = vunpack.c.h.b16 %v681
        %v4879 = vunpack.c.l.b16 %v682
        %v4880 = vunpack.c.h.b16 %v682
        %v4881 = vunpack.c.l.b16 %v683
        %v4882 = vunpack.c.h.b16 %v683
        %v4883 = vunpack.c.l.b16 %v684
        %v4884 = vunpack.c.h.b16 %v684
        %v4885 = vunpack.c.l.b16 %v685
        %v4886 = vunpack.c.h.b16 %v685
        %v4887 = vunpack.c.l.b16 %v686
        %v4888 = vunpack.c.h.b16 %v686
        %v4889 = vunpack.c.l.b16 %v687
        %v4890 = vunpack.c.h.b16 %v687
        %v4891 = vunpack.c.l.b16 %v688
        %v4892 = vunpack.c.h.b16 %v688
        %v4893 = vunpack.c.l.b16 %v689
        %v4894 = vunpack.c.h.b16 %v689
        %v4895 = vunpack.c.l.b16 %v690
        %v4896 = vunpack.c.h.b16 %v690
        %v4897 = vunpack.c.l.b16 %v691
        %v4898 = vunpack.c.h.b16 %v691
        %v4899 = vunpack.c.l.b16 %v692
        %v4900 = vunpack.c.h.b16 %v692
        %v4901 = vunpack.c.l.b16 %v693
        %v4902 = vunpack.c.h.b16 %v693
        %v4903 = vunpack.c.l.b16 %v694
        %v4904 = vunpack.c.h.b16 %v694
        %v4905 = vunpack.c.l.b16 %v695
        %v4906 = vunpack.c.h.b16 %v695
        %v4907 = vunpack.c.l.b16 %v696
        %v4908 = vunpack.c.h.b16 %v696
        %v4909 = vunpack.c.l.b16 %v697
        %v4910 = vunpack.c.h.b16 %v697
        %v4911 = vunpack.c.l.b16 %v698
        %v4912 = vunpack.c.h.b16 %v698
        %v4913 = vunpack.c.l.b16 %v699
        %v4914 = vunpack.c.h.b16 %v699
        %v4915 = vunpack.c.l.b16 %v700
        %v4916 = vunpack.c.h.b16 %v700
        %v4917 = vunpack.c.l.b16 %v701
        %v4918 = vunpack.c.h.b16 %v701
        %v4919 = vunpack.c.l.b16 %v702
        %v4920 = vunpack.c.h.b16 %v702
        %v4921 = vunpack.c.l.b16 %v703
        %v4922 = vunpack.c.h.b16 %v703
        %v4923 = vunpack.c.l.b16 %v704
        %v4924 = vunpack.c.h.b16 %v704
        %v4925 = vunpack.c.l.b16 %v705
        %v4926 = vunpack.c.h.b16 %v705
        %v4927 = vunpack.c.l.b16 %v706
        %v4928 = vunpack.c.h.b16 %v706
        %v4929 = vunpack.c.l.b16 %v707
        %v4930 = vunpack.c.h.b16 %v707
        %v4931 = vunpack.c.l.b16 %v708
        %v4932 = vunpack.c.h.b16 %v708
        %v4933 = vunpack.c.l.b16 %v709
        %v4934 = vunpack.c.h.b16 %v709
        %v4935 = vunpack.c.l.b16 %v710
        %v4936 = vunpack.c.h.b16 %v710
        %v4937 = vunpack.c.l.b16 %v711
        %v4938 = vunpack.c.h.b16 %v711
        %v4939 = vunpack.c.l.b16 %v712
        %v4940 = vunpack.c.h.b16 %v712
        %v4941 = vunpack.c.l.b16 %v713
        %v4942 = vunpack.c.h.b16 %v713
        %v4943 = vunpack.c.l.b16 %v714
        %v4944 = vunpack.c.h.b16 %v714
        %v4945 = vunpack.c.l.b16 %v715
        %v4946 = vunpack.c.h.b16 %v715
        %v4947 = vunpack.c.l.b16 %v716
        %v4948 = vunpack.c.h.b16 %v716
        %v4949 = vunpack.c.l.b16 %v717
        %v4950 = vunpack.c.h.b16 %v717
        %v4951 = vunpack.c.l.b16 %v718
        %v4952 = vunpack.c.h.b16 %v718
        %v4953 = vunpack.c.l.b16 %v719
        %v4954 = vunpack.c.h.b16 %v719
        %v4955 = vunpack.c.l.b16 %v720
        %v4956 = vunpack.c.h.b16 %v720
        %v4957 = vunpack.c.l.b16 %v721
        %v4958 = vunpack.c.h.b16 %v721
        %v4959 = vunpack.c.l.b16 %v722
        %v4960 = vunpack.c.h.b16 %v722
        %v4961 = vunpack.c.l.b16 %v723
        %v4962 = vunpack.c.h.b16 %v723
        %v4963 = vunpack.c.l.b16 %v724
        %v4964 = vunpack.c.h.b16 %v724
        %v4965 = vunpack.c.l.b16 %v725
        %v4966 = vunpack.c.h.b16 %v725
        %v4967 = vunpack.c.l.b16 %v726
        %v4968 = vunpack.c.h.b16 %v726
        %v4969 = vunpack.c.l.b16 %v727
        %v4970 = vunpack.c.h.b16 %v727
        %v4971 = vunpack.c.l.b16 %v728
        %v4972 = vunpack.c.h.b16 %v728
        %v4973 = vunpack.c.l.b16 %v729
        %v4974 = vunpack.c.h.b16 %v729
        %v4975 = vunpack.c.l.b16 %v730
        %v4976 = vunpack.c.h.b16 %v730
        %v4977 = vunpack.c.l.b16 %v731
        %v4978 = vunpack.c.h.b16 %v731
        %v4979 = vunpack.c.l.b16 %v732
        %v4980 = vunpack.c.h.b16 %v732
        %v4981 = vunpack.c.l.b16 %v733
        %v4982 = vunpack.c.h.b16 %v733
        %v4983 = vunpack.c.l.b16 %v734
        %v4984 = vunpack.c.h.b16 %v734
        %v4985 = vunpack.c.l.b16 %v735
        %v4986 = vunpack.c.h.b16 %v735
        %v4987 = vunpack.c.l.b16 %v736
        %v4988 = vunpack.c.h.b16 %v736
        %v4989 = vunpack.c.l.b16 %v737
        %v4990 = vunpack.c.h.b16 %v737
        %v4991 = vunpack.c.l.b16 %v738
        %v4992 = vunpack.c.h.b16 %v738
        %v4993 = vunpack.c.l.b16 %v739
        %v4994 = vunpack.c.h.b16 %v739
        %v4995 = vunpack.c.l.b16 %v740
        %v4996 = vunpack.c.h.b16 %v740
        %v4997 = vunpack.c.l.b16 %v741
        %v4998 = vunpack.c.h.b16 %v741
        %v4999 = vunpack.c.l.b16 %v742
        %v5000 = vunpack.c.h.b16 %v742
        %v5001 = vunpack.c.l.b16 %v743
        %v5002 = vunpack.c.h.b16 %v743
        %v5003 = vunpack.c.l.b16 %v744
        %v5004 = vunpack.c.h.b16 %v744
        %v5005 = vunpack.c.l.b16 %v745
        %v5006 = vunpack.c.h.b16 %v745
        %v5007 = vunpack.c.l.b16 %v746
        %v5008 = vunpack.c.h.b16 %v746
        %v5009 = vunpack.c.l.b16 %v747
        %v5010 = vunpack.c.h.b16 %v747
        %v5011 = vunpack.c.l.b16 %v748
        %v5012 = vunpack.c.h.b16 %v748
        %v5013 = vunpack.c.l.b16 %v749
        %v5014 = vunpack.c.h.b16 %v749
        %v5015 = vunpack.c.l.b16 %v750
        %v5016 = vunpack.c.h.b16 %v750
        %v5017 = vunpack.c.l.b16 %v751
        %v5018 = vunpack.c.h.b16 %v751
        %v5019 = vunpack.c.l.b16 %v752
        %v5020 = vunpack.c.h.b16 %v752
        %v5021 = vunpack.c.l.b16 %v753
        %v5022 = vunpack.c.h.b16 %v753
        %v5023 = vunpack.c.l.b16 %v754
        %v5024 = vunpack.c.h.b16 %v754
        %v5025 = vunpack.c.l.b16 %v755
        %v5026 = vunpack.c.h.b16 %v755
        %v5027 = vunpack.c.l.b16 %v756
        %v5028 = vunpack.c.h.b16 %v756
        %v5029 = vunpack.c.l.b16 %v757
        %v5030 = vunpack.c.h.b16 %v757
        %v5031 = vunpack.c.l.b16 %v758
        %v5032 = vunpack.c.h.b16 %v758
        %v5033 = vunpack.c.l.b16 %v759
        %v5034 = vunpack.c.h.b16 %v759
        %v5035 = vunpack.c.l.b16 %v760
        %v5036 = vunpack.c.h.b16 %v760
        %v5037 = vunpack.c.l.b16 %v761
        %v5038 = vunpack.c.h.b16 %v761
        %v5039 = vunpack.c.l.b16 %v762
        %v5040 = vunpack.c.h.b16 %v762
        %v5041 = vunpack.c.l.b16 %v763
        %v5042 = vunpack.c.h.b16 %v763
        %v5043 = vunpack.c.l.b16 %v764
        %v5044 = vunpack.c.h.b16 %v764
        %v5045 = vunpack.c.l.b16 %v765
        %v5046 = vunpack.c.h.b16 %v765
        %v5047 = vunpack.c.l.b16 %v766
        %v5048 = vunpack.c.h.b16 %v766
        %v5049 = vunpack.c.l.b16 %v767
        %v5050 = vunpack.c.h.b16 %v767
        %v5051 = vunpack.c.l.b16 %v768
        %v5052 = vunpack.c.h.b16 %v768
        %v5053 = vunpack.c.l.b16 %v769
        %v5054 = vunpack.c.h.b16 %v769
        %v5055 = vunpack.c.l.b16 %v770
        %v5056 = vunpack.c.h.b16 %v770
        %v5057 = vunpack.c.l.b16 %v771
        %v5058 = vunpack.c.h.b16 %v771
        %v5059 = vunpack.c.l.b16 %v772
        %v5060 = vunpack.c.h.b16 %v772
        %v5061 = vunpack.c.l.b16 %v773
        %v5062 = vunpack.c.h.b16 %v773
        %v5063 = vunpack.c.l.b16 %v774
        %v5064 = vunpack.c.h.b16 %v774
        %v5065 = vunpack.c.l.b16 %v775
        %v5066 = vunpack.c.h.b16 %v775
        %v5067 = vunpack.c.l.b16 %v776
        %v5068 = vunpack.c.h.b16 %v776
        %v5069 = vunpack.c.l.b16 %v777
        %v5070 = vunpack.c.h.b16 %v777
        %v5071 = vunpack.c.l.b16 %v778
        %v5072 = vunpack.c.h.b16 %v778
        %v5073 = vunpack.c.l.b16 %v779
        %v5074 = vunpack.c.h.b16 %v779
        %v5075 = vunpack.c.l.b16 %v780
        %v5076 = vunpack.c.h.b16 %v780
        %v5077 = vunpack.c.l.b16 %v781
        %v5078 = vunpack.c.h.b16 %v781
        %v5079 = vunpack.c.l.b16 %v782
        %v5080 = vunpack.c.h.b16 %v782
        %v5081 = vunpack.c.l.b16 %v783
        %v5082 = vunpack.c.h.b16 %v783
        %v5083 = vunpack.c.l.b16 %v784
        %v5084 = vunpack.c.h.b16 %v784
        %v5085 = vunpack.c.l.b16 %v785
        %v5086 = vunpack.c.h.b16 %v785
        %v5087 = vunpack.c.l.b16 %v786
        %v5088 = vunpack.c.h.b16 %v786
        %v5089 = vunpack.c.l.b16 %v787
        %v5090 = vunpack.c.h.b16 %v787
        %v5091 = vunpack.c.l.b16 %v788
        %v5092 = vunpack.c.h.b16 %v788
        %v5093 = vunpack.c.l.b16 %v789
        %v5094 = vunpack.c.h.b16 %v789
        %v5095 = vunpack.c.l.b16 %v790
        %v5096 = vunpack.c.h.b16 %v790
        %v5097 = vunpack.c.l.b16 %v791
        %v5098 = vunpack.c.h.b16 %v791
        %v5099 = vunpack.c.l.b16 %v792
        %v5100 = vunpack.c.h.b16 %v792
        %v5101 = vunpack.c.l.b16 %v793
        %v5102 = vunpack.c.h.b16 %v793
        %v5103 = vunpack.c.l.b16 %v794
        %v5104 = vunpack.c.h.b16 %v794
        %v5105 = vunpack.c.l.b16 %v795
        %v5106 = vunpack.c.h.b16 %v795
        %v5107 = vunpack.c.l.b16 %v796
        %v5108 = vunpack.c.h.b16 %v796
        %v5109 = vunpack.c.l.b16 %v797
        %v5110 = vunpack.c.h.b16 %v797
        %v5111 = vunpack.c.l.b16 %v798
        %v5112 = vunpack.c.h.b16 %v798
        %v5113 = vunpack.c.l.b16 %v799
        %v5114 = vunpack.c.h.b16 %v799
        %v5115 = vunpack.c.l.b16 %v800
        %v5116 = vunpack.c.h.b16 %v800
        %v5117 = vunpack.c.l.b16 %v801
        %v5118 = vunpack.c.h.b16 %v801
        %v5119 = vunpack.c.l.b16 %v802
        %v5120 = vunpack.c.h.b16 %v802
        %v5121 = vunpack.c.l.b16 %v803
        %v5122 = vunpack.c.h.b16 %v803
        %v5123 = vunpack.c.l.b16 %v804
        %v5124 = vunpack.c.h.b16 %v804
        %v5125 = vunpack.c.l.b16 %v805
        %v5126 = vunpack.c.h.b16 %v805
        %v5127 = vunpack.c.l.b16 %v806
        %v5128 = vunpack.c.h.b16 %v806
        %v5129 = vunpack.c.l.b16 %v807
        %v5130 = vunpack.c.h.b16 %v807
        %v5131 = vunpack.c.l.b16 %v808
        %v5132 = vunpack.c.h.b16 %v808
        %v5133 = vunpack.c.l.b16 %v809
        %v5134 = vunpack.c.h.b16 %v809
        %v5135 = vunpack.c.l.b16 %v810
        %v5136 = vunpack.c.h.b16 %v810
        %v5137 = vunpack.c.l.b16 %v811
        %v5138 = vunpack.c.h.b16 %v811
        %v5139 = vunpack.c.l.b16 %v812
        %v5140 = vunpack.c.h.b16 %v812
        %v5141 = vunpack.c.l.b16 %v813
        %v5142 = vunpack.c.h.b16 %v813
        %v5143 = vunpack.c.l.b16 %v814
        %v5144 = vunpack.c.h.b16 %v814
        %v5145 = vunpack.c.l.b16 %v815
        %v5146 = vunpack.c.h.b16 %v815
        %v5147 = vunpack.c.l.b16 %v816
        %v5148 = vunpack.c.h.b16 %v816
        %v5149 = vunpack.c.l.b16 %v817
        %v5150 = vunpack.c.h.b16 %v817
        %v5151 = vunpack.c.l.b16 %v818
        %v5152 = vunpack.c.h.b16 %v818
        %v5153 = vunpack.c.l.b16 %v819
        %v5154 = vunpack.c.h.b16 %v819
        %v5155 = vunpack.c.l.b16 %v820
        %v5156 = vunpack.c.h.b16 %v820
        %v5157 = vunpack.c.l.b16 %v821
        %v5158 = vunpack.c.h.b16 %v821
        %v5159 = vunpack.c.l.b16 %v822
        %v5160 = vunpack.c.h.b16 %v822
        %v5161 = vunpack.c.l.b16 %v823
        %v5162 = vunpack.c.h.b16 %v823
        %v5163 = vunpack.c.l.b16 %v824
        %v5164 = vunpack.c.h.b16 %v824
        %v5165 = vunpack.c.l.b16 %v825
        %v5166 = vunpack.c.h.b16 %v825
        %v5167 = vunpack.c.l.b16 %v826
        %v5168 = vunpack.c.h.b16 %v826
        %v5169 = vunpack.c.l.b16 %v827
        %v5170 = vunpack.c.h.b16 %v827
        %v5171 = vunpack.c.l.b16 %v828
        %v5172 = vunpack.c.h.b16 %v828
        %v5173 = vunpack.c.l.b16 %v829
        %v5174 = vunpack.c.h.b16 %v829
        %v5175 = vunpack.c.l.b16 %v830
        %v5176 = vunpack.c.h.b16 %v830
        %v5177 = vunpack.c.l.b16 %v831
        %v5178 = vunpack.c.h.b16 %v831
        %v5179 = vunpack.c.l.b16 %v832
        %v5180 = vunpack.c.h.b16 %v832
        %v5181 = vunpack.c.l.b16 %v833
        %v5182 = vunpack.c.h.b16 %v833
        %v5183 = vunpack.c.l.b16 %v834
        %v5184 = vunpack.c.h.b16 %v834
        %v5185 = vunpack.c.l.b16 %v835
        %v5186 = vunpack.c.h.b16 %v835
        %v5187 = vunpack.c.l.b16 %v836
        %v5188 = vunpack.c.h.b16 %v836
        %v5189 = vunpack.c.l.b16 %v837
        %v5190 = vunpack.c.h.b16 %v837
        %v5191 = vunpack.c.l.b16 %v838
        %v5192 = vunpack.c.h.b16 %v838
        %v5193 = vunpack.c.l.b16 %v839
        %v5194 = vunpack.c.h.b16 %v839
        %v5195 = vunpack.c.l.b16 %v840
        %v5196 = vunpack.c.h.b16 %v840
        %v5197 = vunpack.c.l.b16 %v841
        %v5198 = vunpack.c.h.b16 %v841
        %v5199 = vunpack.c.l.b16 %v842
        %v5200 = vunpack.c.h.b16 %v842
        %v5201 = vunpack.c.l.b16 %v843
        %v5202 = vunpack.c.h.b16 %v843
        %v5203 = vunpack.c.l.b16 %v844
        %v5204 = vunpack.c.h.b16 %v844
        %v5205 = vunpack.c.l.b16 %v845
        %v5206 = vunpack.c.h.b16 %v845
        %v5207 = vunpack.c.l.b16 %v846
        %v5208 = vunpack.c.h.b16 %v846
        %v5209 = vunpack.c.l.b16 %v847
        %v5210 = vunpack.c.h.b16 %v847
        %v5211 = vunpack.c.l.b16 %v848
        %v5212 = vunpack.c.h.b16 %v848
        %v5213 = vunpack.c.l.b16 %v849
        %v5214 = vunpack.c.h.b16 %v849
        %v5215 = vunpack.c.l.b16 %v850
        %v5216 = vunpack.c.h.b16 %v850
        %v5217 = vunpack.c.l.b16 %v851
        %v5218 = vunpack.c.h.b16 %v851
        %v5219 = vunpack.c.l.b16 %v852
        %v5220 = vunpack.c.h.b16 %v852
        %v5221 = vunpack.c.l.b16 %v853
        %v5222 = vunpack.c.h.b16 %v853
        %v5223 = vunpack.c.l.b16 %v854
        %v5224 = vunpack.c.h.b16 %v854
        %v5225 = vunpack.c.l.b16 %v855
        %v5226 = vunpack.c.h.b16 %v855
        %v5227 = vunpack.c.l.b16 %v856
        %v5228 = vunpack.c.h.b16 %v856
        %v5229 = vunpack.c.l.b16 %v857
        %v5230 = vunpack.c.h.b16 %v857
        %v5231 = vunpack.c.l.b16 %v858
        %v5232 = vunpack.c.h.b16 %v858
        %v5233 = vunpack.c.l.b16 %v859
        %v5234 = vunpack.c.h.b16 %v859
        %v5235 = vunpack.c.l.b16 %v860
        %v5236 = vunpack.c.h.b16 %v860
        %v5237 = vunpack.c.l.b16 %v861
        %v5238 = vunpack.c.h.b16 %v861
        %v5239 = vunpack.c.l.b16 %v862
        %v5240 = vunpack.c.h.b16 %v862
        %v5241 = vunpack.c.l.b16 %v863
        %v5242 = vunpack.c.h.b16 %v863
        %v5243 = vunpack.c.l.b16 %v864
        %v5244 = vunpack.c.h.b16 %v864
        %v5245 = vunpack.c.l.b16 %v865
        %v5246 = vunpack.c.h.b16 %v865
        %v5247 = vunpack.c.l.b16 %v866
        %v5248 = vunpack.c.h.b16 %v866
        %v5249 = vunpack.c.l.b16 %v867
        %v5250 = vunpack.c.h.b16 %v867
        %v5251 = vunpack.c.l.b16 %v868
        %v5252 = vunpack.c.h.b16 %v868
        %v5253 = vunpack.c.l.b16 %v869
        %v5254 = vunpack.c.h.b16 %v869
        %v5255 = vunpack.c.l.b16 %v870
        %v5256 = vunpack.c.h.b16 %v870
        %v5257 = vunpack.c.l.b16 %v871
        %v5258 = vunpack.c.h.b16 %v871
        %v5259 = vunpack.c.l.b16 %v872
        %v5260 = vunpack.c.h.b16 %v872
        %v5261 = vunpack.c.l.b16 %v873
        %v5262 = vunpack.c.h.b16 %v873
        %v5263 = vunpack.c.l.b16 %v874
        %v5264 = vunpack.c.h.b16 %v874
        %v5265 = vunpack.c.l.b16 %v875
        %v5266 = vunpack.c.h.b16 %v875
        %v5267 = vunpack.c.l.b16 %v876
        %v5268 = vunpack.c.h.b16 %v876
        %v5269 = vunpack.c.l.b16 %v877
        %v5270 = vunpack.c.h.b16 %v877
        %v5271 = vunpack.c.l.b16 %v878
        %v5272 = vunpack.c.h.b16 %v878
        %v5273 = vunpack.c.l.b16 %v879
        %v5274 = vunpack.c.h.b16 %v879
        %v5275 = vunpack.c.l.b16 %v880
        %v5276 = vunpack.c.h.b16 %v880
        %v5277 = vunpack.c.l.b16 %v881
        %v5278 = vunpack.c.h.b16 %v881
        %v5279 = vunpack.c.l.b16 %v882
        %v5280 = vunpack.c.h.b16 %v882
        %v5281 = vunpack.c.l.b16 %v883
        %v5282 = vunpack.c.h.b16 %v883
        %v5283 = vunpack.c.l.b16 %v884
        %v5284 = vunpack.c.h.b16 %v884
        %v5285 = vunpack.c.l.b16 %v885
        %v5286 = vunpack.c.h.b16 %v885
        %v5287 = vunpack.c.l.b16 %v886
        %v5288 = vunpack.c.h.b16 %v886
        %v5289 = vunpack.c.l.b16 %v887
        %v5290 = vunpack.c.h.b16 %v887
        %v5291 = vunpack.c.l.b16 %v888
        %v5292 = vunpack.c.h.b16 %v888
        %v5293 = vunpack.c.l.b16 %v889
        %v5294 = vunpack.c.h.b16 %v889
        %v5295 = vunpack.c.l.b16 %v890
        %v5296 = vunpack.c.h.b16 %v890
        %v5297 = vunpack.c.l.b16 %v891
        %v5298 = vunpack.c.h.b16 %v891
        %v5299 = vunpack.c.l.b16 %v892
        %v5300 = vunpack.c.h.b16 %v892
        %v5301 = vunpack.c.l.b16 %v893
        %v5302 = vunpack.c.h.b16 %v893
        %v5303 = vunpack.c.l.b16 %v894
        %v5304 = vunpack.c.h.b16 %v894
        %v5305 = vunpack.c.l.b16 %v895
        %v5306 = vunpack.c.h.b16 %v895
        %v5307 = vunpack.c.l.b16 %v896
        %v5308 = vunpack.c.h.b16 %v896
        %v5309 = vunpack.c.l.b16 %v897
        %v5310 = vunpack.c.h.b16 %v897
        %v5311 = vunpack.c.l.b16 %v898
        %v5312 = vunpack.c.h.b16 %v898
        %v5313 = vunpack.c.l.b16 %v899
        %v5314 = vunpack.c.h.b16 %v899
        %v5315 = vunpack.c.l.b16 %v900
        %v5316 = vunpack.c.h.b16 %v900
        %v5317 = vunpack.c.l.b16 %v901
        %v5318 = vunpack.c.h.b16 %v901
        %v5319 = vunpack.c.l.b16 %v902
        %v5320 = vunpack.c.h.b16 %v902
        %v5321 = vunpack.c.l.b16 %v903
        %v5322 = vunpack.c.h.b16 %v903
        %v5323 = vunpack.c.l.b16 %v904
        %v5324 = vunpack.c.h.b16 %v904
        %v5325 = vunpack.c.l.b16 %v905
        %v5326 = vunpack.c.h.b16 %v905
        %v5327 = vunpack.c.l.b16 %v906
        %v5328 = vunpack.c.h.b16 %v906
        %v5329 = vunpack.c.l.b16 %v907
        %v5330 = vunpack.c.h.b16 %v907
        %v5331 = vunpack.c.l.b16 %v908
        %v5332 = vunpack.c.h.b16 %v908
        %v5333 = vunpack.c.l.b16 %v909
        %v5334 = vunpack.c.h.b16 %v909
        %v5335 = vunpack.c.l.b16 %v910
        %v5336 = vunpack.c.h.b16 %v910
        %v5337 = vunpack.c.l.b16 %v911
        %v5338 = vunpack.c.h.b16 %v911
        %v5339 = vunpack.c.l.b16 %v912
        %v5340 = vunpack.c.h.b16 %v912
        %v5341 = vunpack.c.l.b16 %v913
        %v5342 = vunpack.c.h.b16 %v913
        %v5343 = vunpack.c.l.b16 %v914
        %v5344 = vunpack.c.h.b16 %v914
        %v5345 = vunpack.c.l.b16 %v915
        %v5346 = vunpack.c.h.b16 %v915
        %v5347 = vunpack.c.l.b16 %v916
        %v5348 = vunpack.c.h.b16 %v916
        %v5349 = vunpack.c.l.b16 %v917
        %v5350 = vunpack.c.h.b16 %v917
        %v5351 = vunpack.c.l.b16 %v918
        %v5352 = vunpack.c.h.b16 %v918
        %v5353 = vunpack.c.l.b16 %v919
        %v5354 = vunpack.c.h.b16 %v919
        %v5355 = vunpack.c.l.b16 %v920
        %v5356 = vunpack.c.h.b16 %v920
        %v5357 = vunpack.c.l.b16 %v921
        %v5358 = vunpack.c.h.b16 %v921
        %v5359 = vunpack.c.l.b16 %v922
        %v5360 = vunpack.c.h.b16 %v922
        %v5361 = vunpack.c.l.b16 %v923
        %v5362 = vunpack.c.h.b16 %v923
        %v5363 = vunpack.c.l.b16 %v924
        %v5364 = vunpack.c.h.b16 %v924
        %v5365 = vunpack.c.l.b16 %v925
        %v5366 = vunpack.c.h.b16 %v925
        %v5367 = vunpack.c.l.b16 %v926
        %v5368 = vunpack.c.h.b16 %v926
        %v5369 = vunpack.c.l.b16 %v927
        %v5370 = vunpack.c.h.b16 %v927
        %v5371 = vunpack.c.l.b16 %v928
        %v5372 = vunpack.c.h.b16 %v928
        %v5373 = vunpack.c.l.b16 %v929
        %v5374 = vunpack.c.h.b16 %v929
        %v5375 = vunpack.c.l.b16 %v930
        %v5376 = vunpack.c.h.b16 %v930
        %v5377 = vunpack.c.l.b16 %v931
        %v5378 = vunpack.c.h.b16 %v931
        %v5379 = vunpack.c.l.b16 %v932
        %v5380 = vunpack.c.h.b16 %v932
        %v5381 = vunpack.c.l.b16 %v933
        %v5382 = vunpack.c.h.b16 %v933
        %v5383 = vunpack.c.l.b16 %v934
        %v5384 = vunpack.c.h.b16 %v934
        %v5385 = vunpack.c.l.b16 %v935
        %v5386 = vunpack.c.h.b16 %v935
        %v5387 = vunpack.c.l.b16 %v936
        %v5388 = vunpack.c.h.b16 %v936
        %v5389 = vunpack.c.l.b16 %v937
        %v5390 = vunpack.c.h.b16 %v937
        %v5391 = vunpack.c.l.b16 %v938
        %v5392 = vunpack.c.h.b16 %v938
        %v5393 = vunpack.c.l.b16 %v939
        %v5394 = vunpack.c.h.b16 %v939
        %v5395 = vunpack.c.l.b16 %v940
        %v5396 = vunpack.c.h.b16 %v940
        %v5397 = vunpack.c.l.b16 %v941
        %v5398 = vunpack.c.h.b16 %v941
        %v5399 = vunpack.c.l.b16 %v942
        %v5400 = vunpack.c.h.b16 %v942
        %v5401 = vunpack.c.l.b16 %v943
        %v5402 = vunpack.c.h.b16 %v943
        %v5403 = vunpack.c.l.b16 %v944
        %v5404 = vunpack.c.h.b16 %v944
        %v5405 = vunpack.c.l.b16 %v945
        %v5406 = vunpack.c.h.b16 %v945
        %v5407 = vunpack.c.l.b16 %v946
        %v5408 = vunpack.c.h.b16 %v946
        %v5409 = vunpack.c.l.b16 %v947
        %v5410 = vunpack.c.h.b16 %v947
        %v5411 = vunpack.c.l.b16 %v948
        %v5412 = vunpack.c.h.b16 %v948
        %v5413 = vunpack.c.l.b16 %v949
        %v5414 = vunpack.c.h.b16 %v949
        %v5415 = vunpack.c.l.b16 %v950
        %v5416 = vunpack.c.h.b16 %v950
        %v5417 = vunpack.c.l.b16 %v951
        %v5418 = vunpack.c.h.b16 %v951
        %v5419 = vunpack.c.l.b16 %v952
        %v5420 = vunpack.c.h.b16 %v952
        %v5421 = vunpack.c.l.b16 %v953
        %v5422 = vunpack.c.h.b16 %v953
        %v5423 = vunpack.c.l.b16 %v954
        %v5424 = vunpack.c.h.b16 %v954
        %v5425 = vunpack.c.l.b16 %v955
        %v5426 = vunpack.c.h.b16 %v955
        %v5427 = vunpack.c.l.b16 %v956
        %v5428 = vunpack.c.h.b16 %v956
        %v5429 = vunpack.c.l.b16 %v957
        %v5430 = vunpack.c.h.b16 %v957
        %v5431 = vunpack.c.l.b16 %v958
        %v5432 = vunpack.c.h.b16 %v958
        %v5433 = vunpack.c.l.b16 %v959
        %v5434 = vunpack.c.h.b16 %v959
        %v5435 = vunpack.c.l.b16 %v960
        %v5436 = vunpack.c.h.b16 %v960
        %v5437 = vunpack.c.l.b16 %v961
        %v5438 = vunpack.c.h.b16 %v961
        %v5439 = vunpack.c.l.b16 %v962
        %v5440 = vunpack.c.h.b16 %v962
        %v5441 = vunpack.c.l.b16 %v963
        %v5442 = vunpack.c.h.b16 %v963
        %v5443 = vunpack.c.l.b16 %v964
        %v5444 = vunpack.c.h.b16 %v964
        %v5445 = vunpack.c.l.b16 %v965
        %v5446 = vunpack.c.h.b16 %v965
        %v5447 = vunpack.c.l.b16 %v966
        %v5448 = vunpack.c.h.b16 %v966
        %v5449 = vunpack.c.l.b16 %v967
        %v5450 = vunpack.c.h.b16 %v967
        %v5451 = vunpack.c.l.b16 %v968
        %v5452 = vunpack.c.h.b16 %v968
        %v5453 = vunpack.c.l.b16 %v969
        %v5454 = vunpack.c.h.b16 %v969
        %v5455 = vunpack.c.l.b16 %v970
        %v5456 = vunpack.c.h.b16 %v970
        %v5457 = vunpack.c.l.b16 %v971
        %v5458 = vunpack.c.h.b16 %v971
        %v5459 = vunpack.c.l.b16 %v972
        %v5460 = vunpack.c.h.b16 %v972
        %v5461 = vunpack.c.l.b16 %v973
        %v5462 = vunpack.c.h.b16 %v973
        %v5463 = vunpack.c.l.b16 %v974
        %v5464 = vunpack.c.h.b16 %v974
        %v5465 = vunpack.c.l.b16 %v975
        %v5466 = vunpack.c.h.b16 %v975
        %v5467 = vunpack.c.l.b16 %v976
        %v5468 = vunpack.c.h.b16 %v976
        %v5469 = vunpack.c.l.b16 %v977
        %v5470 = vunpack.c.h.b16 %v977
        %v5471 = vunpack.c.l.b16 %v978
        %v5472 = vunpack.c.h.b16 %v978
        %v5473 = vunpack.c.l.b16 %v979
        %v5474 = vunpack.c.h.b16 %v979
        %v5475 = vunpack.c.l.b16 %v980
        %v5476 = vunpack.c.h.b16 %v980
        %v5477 = vunpack.c.l.b16 %v981
        %v5478 = vunpack.c.h.b16 %v981
        %v5479 = vunpack.c.l.b16 %v982
        %v5480 = vunpack.c.h.b16 %v982
        %v5481 = vunpack.c.l.b16 %v983
        %v5482 = vunpack.c.h.b16 %v983
        %v5483 = vunpack.c.l.b16 %v984
        %v5484 = vunpack.c.h.b16 %v984
        %v5485 = vunpack.c.l.b16 %v985
        %v5486 = vunpack.c.h.b16 %v985
        %v5487 = vunpack.c.l.b16 %v986
        %v5488 = vunpack.c.h.b16 %v986
        %v5489 = vunpack.c.l.b16 %v987
        %v5490 = vunpack.c.h.b16 %v987
        %v5491 = vunpack.c.l.b16 %v988
        %v5492 = vunpack.c.h.b16 %v988
        %v5493 = vunpack.c.l.b16 %v989
        %v5494 = vunpack.c.h.b16 %v989
        %v5495 = vunpack.c.l.b16 %v990
        %v5496 = vunpack.c.h.b16 %v990
        %v5497 = vunpack.c.l.b16 %v991
        %v5498 = vunpack.c.h.b16 %v991
        %v5499 = vunpack.c.l.b16 %v992
        %v5500 = vunpack.c.h.b16 %v992
        %v5501 = vunpack.c.l.b16 %v993
        %v5502 = vunpack.c.h.b16 %v993
        %v5503 = vunpack.c.l.b16 %v994
        %v5504 = vunpack.c.h.b16 %v994
        %v5505 = vunpack.c.l.b16 %v995
        %v5506 = vunpack.c.h.b16 %v995
        %v5507 = vunpack.c.l.b16 %v996
        %v5508 = vunpack.c.h.b16 %v996
        %v5509 = vunpack.c.l.b16 %v997
        %v5510 = vunpack.c.h.b16 %v997
        %v5511 = vunpack.c.l.b16 %v998
        %v5512 = vunpack.c.h.b16 %v998
        %v5513 = vunpack.c.l.b16 %v999
        %v5514 = vunpack.c.h.b16 %v999
        %v5515 = vunpack.c.l.b16 %v1000
        %v5516 = vunpack.c.h.b16 %v1000
        %v5517 = vunpack.c.l.b16 %v1001
        %v5518 = vunpack.c.h.b16 %v1001
        %v5519 = vunpack.c.l.b16 %v1002
        %v5520 = vunpack.c.h.b16 %v1002
        %v5521 = vunpack.c.l.b16 %v1003
        %v5522 = vunpack.c.h.b16 %v1003
        %v5523 = vunpack.c.l.b16 %v1004
        %v5524 = vunpack.c.h.b16 %v1004
        %v5525 = vunpack.c.l.b16 %v1005
        %v5526 = vunpack.c.h.b16 %v1005
        %v5527 = vunpack.c.l.b16 %v1006
        %v5528 = vunpack.c.h.b16 %v1006
        %v5529 = vunpack.c.l.b16 %v1007
        %v5530 = vunpack.c.h.b16 %v1007
        %v5531 = vunpack.c.l.b16 %v1008
        %v5532 = vunpack.c.h.b16 %v1008
        %v5533 = vunpack.c.l.b16 %v1009
        %v5534 = vunpack.c.h.b16 %v1009
        %v5535 = vunpack.c.l.b16 %v1010
        %v5536 = vunpack.c.h.b16 %v1010
        %v5537 = vunpack.c.l.b16 %v1011
        %v5538 = vunpack.c.h.b16 %v1011
        %v5539 = vunpack.c.l.b16 %v1012
        %v5540 = vunpack.c.h.b16 %v1012
        %v5541 = vunpack.c.l.b16 %v1013
        %v5542 = vunpack.c.h.b16 %v1013
        %v5543 = vunpack.c.l.b16 %v1014
        %v5544 = vunpack.c.h.b16 %v1014
        %v5545 = vunpack.c.l.b16 %v1015
        %v5546 = vunpack.c.h.b16 %v1015
        %v5547 = vunpack.c.l.b16 %v1016
        %v5548 = vunpack.c.h.b16 %v1016
        %v5549 = vunpack.c.l.b16 %v1017
        %v5550 = vunpack.c.h.b16 %v1017
        %v5551 = vunpack.c.l.b16 %v1018
        %v5552 = vunpack.c.h.b16 %v1018
        %v5553 = vunpack.c.l.b16 %v1019
        %v5554 = vunpack.c.h.b16 %v1019
        %v5555 = vunpack.c.l.b16 %v1020
        %v5556 = vunpack.c.h.b16 %v1020
        %v5557 = vunpack.c.l.b16 %v1021
        %v5558 = vunpack.c.h.b16 %v1021
        %v5559 = vunpack.c.l.b16 %v1022
        %v5560 = vunpack.c.h.b16 %v1022
        %v5561 = vunpack.c.l.b16 %v1023
        %v5562 = vunpack.c.h.b16 %v1023
        %v5563 = vunpack.c.l.b16 %v1024
        %v5564 = vunpack.c.h.b16 %v1024
        %v5565 = vunpack.c.l.b16 %v1025
        %v5566 = vunpack.c.h.b16 %v1025
        %v5567 = vunpack.c.l.b16 %v1026
        %v5568 = vunpack.c.h.b16 %v1026
        %v5569 = vunpack.c.l.b16 %v1027
        %v5570 = vunpack.c.h.b16 %v1027
        %v5571 = vunpack.c.l.b16 %v1028
        %v5572 = vunpack.c.h.b16 %v1028
        %v5573 = vunpack.c.l.b16 %v1029
        %v5574 = vunpack.c.h.b16 %v1029
        %v5575 = vunpack.c.l.b16 %v1030
        %v5576 = vunpack.c.h.b16 %v1030
        %v5577 = vunpack.c.l.b16 %v1031
        %v5578 = vunpack.c.h.b16 %v1031
        %v5579 = vunpack.c.l.b16 %v1032
        %v5580 = vunpack.c.h.b16 %v1032
        %v5581 = vunpack.c.l.b16 %v1033
        %v5582 = vunpack.c.h.b16 %v1033
        %v5583 = vunpack.c.l.b16 %v1034
        %v5584 = vunpack.c.h.b16 %v1034
        %v5585 = vunpack.c.l.b16 %v1035
        %v5586 = vunpack.c.h.b16 %v1035
        %v5587 = vunpack.c.l.b16 %v1036
        %v5588 = vunpack.c.h.b16 %v1036
        %v5589 = vunpack.c.l.b16 %v1037
        %v5590 = vunpack.c.h.b16 %v1037
        %v5591 = vunpack.c.l.b16 %v1038
        %v5592 = vunpack.c.h.b16 %v1038
        %v5593 = vunpack.c.l.b16 %v1039
        %v5594 = vunpack.c.h.b16 %v1039
        %v5595 = vunpack.c.l.b16 %v1040
        %v5596 = vunpack.c.h.b16 %v1040
        %v5597 = vunpack.c.l.b16 %v1041
        %v5598 = vunpack.c.h.b16 %v1041
        %v5599 = vunpack.c.l.b16 %v1042
        %v5600 = vunpack.c.h.b16 %v1042
        %v5601 = vunpack.c.l.b16 %v1043
        %v5602 = vunpack.c.h.b16 %v1043
        %v5603 = vunpack.c.l.b16 %v1044
        %v5604 = vunpack.c.h.b16 %v1044
        %v5605 = vunpack.c.l.b16 %v1045
        %v5606 = vunpack.c.h.b16 %v1045
        %v5607 = vunpack.c.l.b16 %v1046
        %v5608 = vunpack.c.h.b16 %v1046
        %v5609 = vunpack.c.l.b16 %v1047
        %v5610 = vunpack.c.h.b16 %v1047
        %v5611 = vunpack.c.l.b16 %v1048
        %v5612 = vunpack.c.h.b16 %v1048
        %v5613 = vunpack.c.l.b16 %v1049
        %v5614 = vunpack.c.h.b16 %v1049
        %v5615 = vunpack.c.l.b16 %v1050
        %v5616 = vunpack.c.h.b16 %v1050
        %v5617 = vunpack.c.l.b16 %v1051
        %v5618 = vunpack.c.h.b16 %v1051
        %v5619 = vunpack.c.l.b16 %v1052
        %v5620 = vunpack.c.h.b16 %v1052
        %v5621 = vunpack.c.l.b16 %v1053
        %v5622 = vunpack.c.h.b16 %v1053
        %v5623 = vunpack.c.l.b16 %v1054
        %v5624 = vunpack.c.h.b16 %v1054
        %v5625 = vunpack.c.l.b16 %v1055
        %v5626 = vunpack.c.h.b16 %v1055
        %v5627 = vunpack.c.l.b16 %v1056
        %v5628 = vunpack.c.h.b16 %v1056
        %v5629 = vunpack.c.l.b16 %v1057
        %v5630 = vunpack.c.h.b16 %v1057
        %v5631 = vunpack.c.l.b16 %v1058
        %v5632 = vunpack.c.h.b16 %v1058
        %v5633 = vunpack.c.l.b16 %v1059
        %v5634 = vunpack.c.h.b16 %v1059
        %v5635 = vunpack.c.l.b16 %v1060
        %v5636 = vunpack.c.h.b16 %v1060
        %v5637 = vunpack.c.l.b16 %v1061
        %v5638 = vunpack.c.h.b16 %v1061
        %v5639 = vunpack.c.l.b16 %v1062
        %v5640 = vunpack.c.h.b16 %v1062
        %v5641 = vunpack.c.l.b16 %v1063
        %v5642 = vunpack.c.h.b16 %v1063
        %v5643 = vunpack.c.l.b16 %v1064
        %v5644 = vunpack.c.h.b16 %v1064
        %v5645 = vunpack.c.l.b16 %v1065
        %v5646 = vunpack.c.h.b16 %v1065
        %v5647 = vunpack.c.l.b16 %v1066
        %v5648 = vunpack.c.h.b16 %v1066
        %v5649 = vunpack.c.l.b16 %v1067
        %v5650 = vunpack.c.h.b16 %v1067
        %v5651 = vunpack.c.l.b16 %v1068
        %v5652 = vunpack.c.h.b16 %v1068
        %v5653 = vunpack.c.l.b16 %v1069
        %v5654 = vunpack.c.h.b16 %v1069
        %v5655 = vunpack.c.l.b16 %v1070
        %v5656 = vunpack.c.h.b16 %v1070
        %v5657 = vunpack.c.l.b16 %v1071
        %v5658 = vunpack.c.h.b16 %v1071
        %v5659 = vunpack.c.l.b16 %v1072
        %v5660 = vunpack.c.h.b16 %v1072
        %v5661 = vunpack.c.l.b16 %v1073
        %v5662 = vunpack.c.h.b16 %v1073
        %v5663 = vunpack.c.l.b16 %v1074
        %v5664 = vunpack.c.h.b16 %v1074
        %v5665 = vunpack.c.l.b16 %v1075
        %v5666 = vunpack.c.h.b16 %v1075
        %v5667 = vunpack.c.l.b16 %v1076
        %v5668 = vunpack.c.h.b16 %v1076
        %v5669 = vunpack.c.l.b16 %v1077
        %v5670 = vunpack.c.h.b16 %v1077
        %v5671 = vunpack.c.l.b16 %v1078
        %v5672 = vunpack.c.h.b16 %v1078
        %v5673 = vunpack.c.l.b16 %v1079
        %v5674 = vunpack.c.h.b16 %v1079
        %v5675 = vunpack.c.l.b16 %v1080
        %v5676 = vunpack.c.h.b16 %v1080
        %v5677 = vunpack.c.l.b16 %v1081
        %v5678 = vunpack.c.h.b16 %v1081
        %v5679 = vunpack.c.l.b16 %v1082
        %v5680 = vunpack.c.h.b16 %v1082
        %v5681 = vunpack.c.l.b16 %v1083
        %v5682 = vunpack.c.h.b16 %v1083
        %v5683 = vunpack.c.l.b16 %v1084
        %v5684 = vunpack.c.h.b16 %v1084
        %v5685 = vunpack.c.l.b16 %v1085
        %v5686 = vunpack.c.h.b16 %v1085
        %v5687 = vunpack.c.l.b16 %v1086
        %v5688 = vunpack.c.h.b16 %v1086
        %v5689 = vunpack.c.l.b16 %v1087
        %v5690 = vunpack.c.h.b16 %v1087
        %v5691 = vunpack.c.l.b16 %v1088
        %v5692 = vunpack.c.h.b16 %v1088
        %v5693 = vunpack.c.l.b16 %v1089
        %v5694 = vunpack.c.h.b16 %v1089
        %v5695 = vunpack.c.l.b16 %v1090
        %v5696 = vunpack.c.h.b16 %v1090
        %v5697 = vunpack.c.l.b16 %v1091
        %v5698 = vunpack.c.h.b16 %v1091
        %v5699 = vunpack.c.l.b16 %v1092
        %v5700 = vunpack.c.h.b16 %v1092
        %v5701 = vunpack.c.l.b16 %v1093
        %v5702 = vunpack.c.h.b16 %v1093
        %v5703 = vunpack.c.l.b16 %v1094
        %v5704 = vunpack.c.h.b16 %v1094
        %v5705 = vunpack.c.l.b16 %v1095
        %v5706 = vunpack.c.h.b16 %v1095
        %v5707 = vunpack.c.l.b16 %v1096
        %v5708 = vunpack.c.h.b16 %v1096
        %v5709 = vunpack.c.l.b16 %v1097
        %v5710 = vunpack.c.h.b16 %v1097
        %v5711 = vunpack.c.l.b16 %v1098
        %v5712 = vunpack.c.h.b16 %v1098
        %v5713 = vunpack.c.l.b16 %v1099
        %v5714 = vunpack.c.h.b16 %v1099
        %v5715 = vunpack.c.l.b16 %v1100
        %v5716 = vunpack.c.h.b16 %v1100
        %v5717 = vunpack.c.l.b16 %v1101
        %v5718 = vunpack.c.h.b16 %v1101
        %v5719 = vunpack.c.l.b16 %v1102
        %v5720 = vunpack.c.h.b16 %v1102
        %v5721 = vunpack.c.l.b16 %v1103
        %v5722 = vunpack.c.h.b16 %v1103
        %v5723 = vunpack.c.l.b16 %v1104
        %v5724 = vunpack.c.h.b16 %v1104
        %v5725 = vunpack.c.l.b16 %v1105
        %v5726 = vunpack.c.h.b16 %v1105
        %v5727 = vunpack.c.l.b16 %v1106
        %v5728 = vunpack.c.h.b16 %v1106
        %v5729 = vunpack.c.l.b16 %v1107
        %v5730 = vunpack.c.h.b16 %v1107
        %v5731 = vunpack.c.l.b16 %v1108
        %v5732 = vunpack.c.h.b16 %v1108
        %v5733 = vunpack.c.l.b16 %v1109
        %v5734 = vunpack.c.h.b16 %v1109
        %v5735 = vunpack.c.l.b16 %v1110
        %v5736 = vunpack.c.h.b16 %v1110
        %v5737 = vunpack.c.l.b16 %v1111
        %v5738 = vunpack.c.h.b16 %v1111
        %v5739 = vunpack.c.l.b16 %v1112
        %v5740 = vunpack.c.h.b16 %v1112
        %v5741 = vunpack.c.l.b16 %v1113
        %v5742 = vunpack.c.h.b16 %v1113
        %v5743 = vunpack.c.l.b16 %v1114
        %v5744 = vunpack.c.h.b16 %v1114
        %v5745 = vunpack.c.l.b16 %v1115
        %v5746 = vunpack.c.h.b16 %v1115
        %v5747 = vunpack.c.l.b16 %v1116
        %v5748 = vunpack.c.h.b16 %v1116
        %v5749 = vunpack.c.l.b16 %v1117
        %v5750 = vunpack.c.h.b16 %v1117
        %v5751 = vunpack.c.l.b16 %v1118
        %v5752 = vunpack.c.h.b16 %v1118
        %v5753 = vunpack.c.l.b16 %v1119
        %v5754 = vunpack.c.h.b16 %v1119
        %v5755 = vunpack.c.l.b16 %v1120
        %v5756 = vunpack.c.h.b16 %v1120
        %v5757 = vunpack.c.l.b16 %v1121
        %v5758 = vunpack.c.h.b16 %v1121
        %v5759 = vunpack.c.l.b16 %v1122
        %v5760 = vunpack.c.h.b16 %v1122
        %v5761 = vunpack.c.l.b16 %v1123
        %v5762 = vunpack.c.h.b16 %v1123
        %v5763 = vunpack.c.l.b16 %v1124
        %v5764 = vunpack.c.h.b16 %v1124
        %v5765 = vunpack.c.l.b16 %v1125
        %v5766 = vunpack.c.h.b16 %v1125
        %v5767 = vunpack.c.l.b16 %v1126
        %v5768 = vunpack.c.h.b16 %v1126
        %v5769 = vunpack.c.l.b16 %v1127
        %v5770 = vunpack.c.h.b16 %v1127
        %v5771 = vunpack.c.l.b16 %v1128
        %v5772 = vunpack.c.h.b16 %v1128
        %v5773 = vunpack.c.l.b16 %v1129
        %v5774 = vunpack.c.h.b16 %v1129
        %v5775 = vunpack.c.l.b16 %v1130
        %v5776 = vunpack.c.h.b16 %v1130
        %v5777 = vunpack.c.l.b16 %v1131
        %v5778 = vunpack.c.h.b16 %v1131
        %v5779 = vunpack.c.l.b16 %v1132
        %v5780 = vunpack.c.h.b16 %v1132
        %v5781 = vunpack.c.l.b16 %v1133
        %v5782 = vunpack.c.h.b16 %v1133
        %v5783 = vunpack.c.l.b16 %v1134
        %v5784 = vunpack.c.h.b16 %v1134
        %v5785 = vunpack.c.l.b16 %v1135
        %v5786 = vunpack.c.h.b16 %v1135
        %v5787 = vunpack.c.l.b16 %v1136
        %v5788 = vunpack.c.h.b16 %v1136
        %v5789 = vunpack.c.l.b16 %v1137
        %v5790 = vunpack.c.h.b16 %v1137
        %v5791 = vunpack.c.l.b16 %v1138
        %v5792 = vunpack.c.h.b16 %v1138
        %v5793 = vunpack.c.l.b16 %v1139
        %v5794 = vunpack.c.h.b16 %v1139
        %v5795 = vunpack.c.l.b16 %v1140
        %v5796 = vunpack.c.h.b16 %v1140
        %v5797 = vunpack.c.l.b16 %v1141
        %v5798 = vunpack.c.h.b16 %v1141
        %v5799 = vunpack.c.l.b16 %v1142
        %v5800 = vunpack.c.h.b16 %v1142
        %v5801 = vunpack.c.l.b16 %v1143
        %v5802 = vunpack.c.h.b16 %v1143
        %v5803 = vunpack.c.l.b16 %v1144
        %v5804 = vunpack.c.h.b16 %v1144
        %v5805 = vunpack.c.l.b16 %v1145
        %v5806 = vunpack.c.h.b16 %v1145
        %v5807 = vunpack.c.l.b16 %v1146
        %v5808 = vunpack.c.h.b16 %v1146
        %v5809 = vunpack.c.l.b16 %v1147
        %v5810 = vunpack.c.h.b16 %v1147
        %v5811 = vunpack.c.l.b16 %v1148
        %v5812 = vunpack.c.h.b16 %v1148
        %v5813 = vunpack.c.l.b16 %v1149
        %v5814 = vunpack.c.h.b16 %v1149
        %v5815 = vunpack.c.l.b16 %v1150
        %v5816 = vunpack.c.h.b16 %v1150
        %v5817 = vunpack.c.l.b16 %v1151
        %v5818 = vunpack.c.h.b16 %v1151
        %v5819 = vunpack.c.l.b16 %v1152
        %v5820 = vunpack.c.h.b16 %v1152
        %v5821 = vunpack.c.l.b16 %v1153
        %v5822 = vunpack.c.h.b16 %v1153
        %v5823 = vunpack.c.l.b16 %v1154
        %v5824 = vunpack.c.h.b16 %v1154
        %v5825 = vunpack.c.l.b16 %v1155
        %v5826 = vunpack.c.h.b16 %v1155
        %v5827 = vunpack.c.l.b16 %v1156
        %v5828 = vunpack.c.h.b16 %v1156
        %v5829 = vunpack.c.l.b16 %v1157
        %v5830 = vunpack.c.h.b16 %v1157
        %v5831 = vunpack.c.l.b16 %v1158
        %v5832 = vunpack.c.h.b16 %v1158
        %v5833 = vunpack.c.l.b16 %v1159
        %v5834 = vunpack.c.h.b16 %v1159
        %v5835 = vunpack.c.l.b16 %v1160
        %v5836 = vunpack.c.h.b16 %v1160
        %v5837 = vunpack.c.l.b16 %v1161
        %v5838 = vunpack.c.h.b16 %v1161
        %v5839 = vunpack.c.l.b16 %v1162
        %v5840 = vunpack.c.h.b16 %v1162
        %v5841 = vunpack.c.l.b16 %v1163
        %v5842 = vunpack.c.h.b16 %v1163
        %v5843 = vunpack.c.l.b16 %v1164
        %v5844 = vunpack.c.h.b16 %v1164
        %v5845 = vunpack.c.l.b16 %v1165
        %v5846 = vunpack.c.h.b16 %v1165
        %v5847 = vunpack.c.l.b16 %v1166
        %v5848 = vunpack.c.h.b16 %v1166
        %v5849 = vunpack.c.l.b16 %v1167
        %v5850 = vunpack.c.h.b16 %v1167
        %v5851 = vunpack.c.l.b16 %v1168
        %v5852 = vunpack.c.h.b16 %v1168
        %v5853 = vunpack.c.l.b16 %v1169
        %v5854 = vunpack.c.h.b16 %v1169
        %v5855 = vunpack.c.l.b16 %v1170
        %v5856 = vunpack.c.h.b16 %v1170
        %v5857 = vunpack.c.l.b16 %v1171
        %v5858 = vunpack.c.h.b16 %v1171
        %v5859 = vunpack.c.l.b16 %v1172
        %v5860 = vunpack.c.h.b16 %v1172
        %v5861 = vunpack.c.l.b16 %v1173
        %v5862 = vunpack.c.h.b16 %v1173
        %v5863 = vunpack.c.l.b16 %v1174
        %v5864 = vunpack.c.h.b16 %v1174
        %v5865 = vunpack.c.l.b16 %v1175
        %v5866 = vunpack.c.h.b16 %v1175
        %v5867 = vunpack.c.l.b16 %v1176
        %v5868 = vunpack.c.h.b16 %v1176
        %v5869 = vunpack.c.l.b16 %v1177
        %v5870 = vunpack.c.h.b16 %v1177
        %v5871 = vunpack.c.l.b16 %v1178
        %v5872 = vunpack.c.h.b16 %v1178
        %v5873 = vunpack.c.l.b16 %v1179
        %v5874 = vunpack.c.h.b16 %v1179
        %v5875 = vunpack.c.l.b16 %v1180
        %v5876 = vunpack.c.h.b16 %v1180
        %v5877 = vunpack.c.l.b16 %v1181
        %v5878 = vunpack.c.h.b16 %v1181
        %v5879 = vunpack.c.l.b16 %v1182
        %v5880 = vunpack.c.h.b16 %v1182
        %v5881 = vunpack.c.l.b16 %v1183
        %v5882 = vunpack.c.h.b16 %v1183
        %v5883 = vunpack.c.l.b16 %v1184
        %v5884 = vunpack.c.h.b16 %v1184
        %v5885 = vunpack.c.l.b16 %v1185
        %v5886 = vunpack.c.h.b16 %v1185
        %v5887 = vunpack.c.l.b16 %v1186
        %v5888 = vunpack.c.h.b16 %v1186
        %v5889 = vunpack.c.l.b16 %v1187
        %v5890 = vunpack.c.h.b16 %v1187
        %v5891 = vunpack.c.l.b16 %v1188
        %v5892 = vunpack.c.h.b16 %v1188
        %v5893 = vunpack.c.l.b16 %v1189
        %v5894 = vunpack.c.h.b16 %v1189
        %v5895 = vunpack.c.l.b16 %v1190
        %v5896 = vunpack.c.h.b16 %v1190
        %v5897 = vunpack.c.l.b16 %v1191
        %v5898 = vunpack.c.h.b16 %v1191
        %v5899 = vunpack.c.l.b16 %v1192
        %v5900 = vunpack.c.h.b16 %v1192
        %v5901 = vunpack.c.l.b16 %v1193
        %v5902 = vunpack.c.h.b16 %v1193
        %v5903 = vunpack.c.l.b16 %v1194
        %v5904 = vunpack.c.h.b16 %v1194
        %v5905 = vunpack.c.l.b16 %v1195
        %v5906 = vunpack.c.h.b16 %v1195
        %v5907 = vunpack.c.l.b16 %v1196
        %v5908 = vunpack.c.h.b16 %v1196
        %v5909 = vunpack.c.l.b16 %v1197
        %v5910 = vunpack.c.h.b16 %v1197
        %v5911 = vunpack.c.l.b16 %v1198
        %v5912 = vunpack.c.h.b16 %v1198
        %v5913 = vunpack.c.l.b16 %v1199
        %v5914 = vunpack.c.h.b16 %v1199
        %v5915 = vunpack.c.l.b16 %v1200
        %v5916 = vunpack.c.h.b16 %v1200
        %v5917 = vunpack.c.l.b16 %v1201
        %v5918 = vunpack.c.h.b16 %v1201
        %v5919 = vunpack.c.l.b16 %v1202
        %v5920 = vunpack.c.h.b16 %v1202
        %v5921 = vunpack.c.l.b16 %v1203
        %v5922 = vunpack.c.h.b16 %v1203
        %v5923 = vunpack.c.l.b16 %v1204
        %v5924 = vunpack.c.h.b16 %v1204
        %v5925 = vunpack.c.l.b16 %v1205
        %v5926 = vunpack.c.h.b16 %v1205
        %v5927 = vunpack.c.l.b16 %v1206
        %v5928 = vunpack.c.h.b16 %v1206
        %v5929 = vunpack.c.l.b16 %v1207
        %v5930 = vunpack.c.h.b16 %v1207
        %v5931 = vunpack.c.l.b16 %v1208
        %v5932 = vunpack.c.h.b16 %v1208
        %v5933 = vunpack.c.l.b16 %v1209
        %v5934 = vunpack.c.h.b16 %v1209
        %v5935 = vunpack.c.l.b16 %v1210
        %v5936 = vunpack.c.h.b16 %v1210
        %v5937 = vunpack.c.l.b16 %v1211
        %v5938 = vunpack.c.h.b16 %v1211
        %v5939 = vunpack.c.l.b16 %v1212
        %v5940 = vunpack.c.h.b16 %v1212
        %v5941 = vunpack.c.l.b16 %v1213
        %v5942 = vunpack.c.h.b16 %v1213
        %v5943 = vunpack.c.l.b16 %v1214
        %v5944 = vunpack.c.h.b16 %v1214
        %v5945 = vunpack.c.l.b16 %v1215
        %v5946 = vunpack.c.h.b16 %v1215
        %v5947 = vunpack.c.l.b16 %v1216
        %v5948 = vunpack.c.h.b16 %v1216
        %v5949 = vunpack.c.l.b16 %v1217
        %v5950 = vunpack.c.h.b16 %v1217
        %v5951 = vunpack.c.l.b16 %v1218
        %v5952 = vunpack.c.h.b16 %v1218
        %v5953 = vunpack.c.l.b16 %v1219
        %v5954 = vunpack.c.h.b16 %v1219
        %v5955 = vunpack.c.l.b16 %v1220
        %v5956 = vunpack.c.h.b16 %v1220
        %v5957 = vunpack.c.l.b16 %v1221
        %v5958 = vunpack.c.h.b16 %v1221
        %v5959 = vunpack.c.l.b16 %v1222
        %v5960 = vunpack.c.h.b16 %v1222
        %v5961 = vunpack.c.l.b16 %v1223
        %v5962 = vunpack.c.h.b16 %v1223
        %v5963 = vunpack.c.l.b16 %v1224
        %v5964 = vunpack.c.h.b16 %v1224
        %v5965 = vunpack.c.l.b16 %v1225
        %v5966 = vunpack.c.h.b16 %v1225
        %v5967 = vunpack.c.l.b16 %v1226
        %v5968 = vunpack.c.h.b16 %v1226
        %v5969 = vunpack.c.l.b16 %v1227
        %v5970 = vunpack.c.h.b16 %v1227
        %v5971 = vunpack.c.l.b16 %v1228
        %v5972 = vunpack.c.h.b16 %v1228
        %v5973 = vunpack.c.l.b16 %v1229
        %v5974 = vunpack.c.h.b16 %v1229
        %v5975 = vunpack.c.l.b16 %v1230
        %v5976 = vunpack.c.h.b16 %v1230
        %v5977 = vunpack.c.l.b16 %v1231
        %v5978 = vunpack.c.h.b16 %v1231
        %v5979 = vunpack.c.l.b16 %v1232
        %v5980 = vunpack.c.h.b16 %v1232
        %v5981 = vunpack.c.l.b16 %v1233
        %v5982 = vunpack.c.h.b16 %v1233
        %v5983 = vunpack.c.l.b16 %v1234
        %v5984 = vunpack.c.h.b16 %v1234
        %v5985 = vunpack.c.l.b16 %v1235
        %v5986 = vunpack.c.h.b16 %v1235
        %v5987 = vunpack.c.l.b16 %v1236
        %v5988 = vunpack.c.h.b16 %v1236
        %v5989 = vunpack.c.l.b16 %v1237
        %v5990 = vunpack.c.h.b16 %v1237
        %v5991 = vunpack.c.l.b16 %v1238
        %v5992 = vunpack.c.h.b16 %v1238
        %v5993 = vunpack.c.l.b16 %v1239
        %v5994 = vunpack.c.h.b16 %v1239
        %v5995 = vunpack.c.l.b16 %v1240
        %v5996 = vunpack.c.h.b16 %v1240
        %v5997 = vunpack.c.l.b16 %v1241
        %v5998 = vunpack.c.h.b16 %v1241
        %v5999 = vunpack.c.l.b16 %v1242
        %v6000 = vunpack.c.h.b16 %v1242
        %v6001 = vunpack.c.l.b16 %v1243
        %v6002 = vunpack.c.h.b16 %v1243
        %v6003 = vunpack.c.l.b16 %v1244
        %v6004 = vunpack.c.h.b16 %v1244
        %v6005 = vunpack.c.l.b16 %v1245
        %v6006 = vunpack.c.h.b16 %v1245
        %v6007 = vunpack.c.l.b16 %v1246
        %v6008 = vunpack.c.h.b16 %v1246
        %v6009 = vunpack.c.l.b16 %v1247
        %v6010 = vunpack.c.h.b16 %v1247
        %v6011 = vunpack.c.l.b16 %v1248
        %v6012 = vunpack.c.h.b16 %v1248
        %v6013 = vunpack.c.l.b16 %v1249
        %v6014 = vunpack.c.h.b16 %v1249
        %v6015 = vunpack.c.l.b16 %v1250
        %v6016 = vunpack.c.h.b16 %v1250
        %v6017 = vunpack.c.l.b16 %v1251
        %v6018 = vunpack.c.h.b16 %v1251
        %v6019 = vunpack.c.l.b16 %v1252
        %v6020 = vunpack.c.h.b16 %v1252
        %v6021 = vunpack.c.l.b16 %v1253
        %v6022 = vunpack.c.h.b16 %v1253
        %v6023 = vunpack.c.l.b16 %v1254
        %v6024 = vunpack.c.h.b16 %v1254
        %v6025 = vunpack.c.l.b16 %v1255
        %v6026 = vunpack.c.h.b16 %v1255
        %v6027 = vunpack.c.l.b16 %v1256
        %v6028 = vunpack.c.h.b16 %v1256
        %v6029 = vunpack.c.l.b16 %v1257
        %v6030 = vunpack.c.h.b16 %v1257
        %v6031 = vunpack.c.l.b16 %v1258
        %v6032 = vunpack.c.h.b16 %v1258
        %v6033 = vunpack.c.l.b16 %v1259
        %v6034 = vunpack.c.h.b16 %v1259
        %v6035 = vunpack.c.l.b16 %v1260
        %v6036 = vunpack.c.h.b16 %v1260
        %v6037 = vunpack.c.l.b16 %v1261
        %v6038 = vunpack.c.h.b16 %v1261
        %v6039 = vunpack.c.l.b16 %v1262
        %v6040 = vunpack.c.h.b16 %v1262
        %v6041 = vunpack.c.l.b16 %v1263
        %v6042 = vunpack.c.h.b16 %v1263
        %v6043 = vunpack.c.l.b16 %v1264
        %v6044 = vunpack.c.h.b16 %v1264
        %v6045 = vunpack.c.l.b16 %v1265
        %v6046 = vunpack.c.h.b16 %v1265
        %v6047 = vunpack.c.l.b16 %v1266
        %v6048 = vunpack.c.h.b16 %v1266
        %v6049 = vunpack.c.l.b16 %v1267
        %v6050 = vunpack.c.h.b16 %v1267
        %v6051 = vunpack.c.l.b16 %v1268
        %v6052 = vunpack.c.h.b16 %v1268
        %v6053 = vunpack.c.l.b16 %v1269
        %v6054 = vunpack.c.h.b16 %v1269
        %v6055 = vunpack.c.l.b16 %v1270
        %v6056 = vunpack.c.h.b16 %v1270
        %v6057 = vunpack.c.l.b16 %v1271
        %v6058 = vunpack.c.h.b16 %v1271
        %v6059 = vunpack.c.l.b16 %v1272
        %v6060 = vunpack.c.h.b16 %v1272
        %v6061 = vunpack.c.l.b16 %v1273
        %v6062 = vunpack.c.h.b16 %v1273
        %v6063 = vunpack.c.l.b16 %v1274
        %v6064 = vunpack.c.h.b16 %v1274
        %v6065 = vunpack.c.l.b16 %v1275
        %v6066 = vunpack.c.h.b16 %v1275
        %v6067 = vunpack.c.l.b16 %v1276
        %v6068 = vunpack.c.h.b16 %v1276
        %v6069 = vunpack.c.l.b16 %v1277
        %v6070 = vunpack.c.h.b16 %v1277
        %v6071 = vunpack.c.l.b16 %v1278
        %v6072 = vunpack.c.h.b16 %v1278
        %v6073 = vunpack.c.l.b16 %v1279
        %v6074 = vunpack.c.h.b16 %v1279
        %v6075 = vunpack.c.l.b16 %v1280
        %v6076 = vunpack.c.h.b16 %v1280
        %v6077 = vunpack.c.l.b16 %v1281
        %v6078 = vunpack.c.h.b16 %v1281
        %v6079 = vunpack.c.l.b16 %v1282
        %v6080 = vunpack.c.h.b16 %v1282
        %v6081 = vunpack.c.l.b16 %v1283
        %v6082 = vunpack.c.h.b16 %v1283
        %v6083 = vunpack.c.l.b16 %v1284
        %v6084 = vunpack.c.h.b16 %v1284
        %v6085 = vunpack.c.l.b16 %v1285
        %v6086 = vunpack.c.h.b16 %v1285
        %v6087 = vunpack.c.l.b16 %v1286
        %v6088 = vunpack.c.h.b16 %v1286
        %v6089 = vunpack.c.l.b16 %v1287
        %v6090 = vunpack.c.h.b16 %v1287
        %v6091 = vunpack.c.l.b16 %v1288
        %v6092 = vunpack.c.h.b16 %v1288
        %v6093 = vunpack.c.l.b16 %v1289
        %v6094 = vunpack.c.h.b16 %v1289
        %v6095 = vunpack.c.l.b16 %v1290
        %v6096 = vunpack.c.h.b16 %v1290
        %v6097 = vunpack.c.l.b16 %v1291
        %v6098 = vunpack.c.h.b16 %v1291
        %v6099 = vunpack.c.l.b16 %v1292
        %v6100 = vunpack.c.h.b16 %v1292
        %v6101 = vunpack.c.l.b16 %v1293
        %v6102 = vunpack.c.h.b16 %v1293
        %v6103 = vunpack.c.l.b16 %v1294
        %v6104 = vunpack.c.h.b16 %v1294
        %v6105 = vunpack.c.l.b16 %v1295
        %v6106 = vunpack.c.h.b16 %v1295
        %v6107 = vunpack.c.l.b16 %v1296
        %v6108 = vunpack.c.h.b16 %v1296
        %v6109 = vunpack.c.l.b16 %v1297
        %v6110 = vunpack.c.h.b16 %v1297
        %v6111 = vunpack.c.l.b16 %v1298
        %v6112 = vunpack.c.h.b16 %v1298
        %v6113 = vunpack.c.l.b16 %v1299
        %v6114 = vunpack.c.h.b16 %v1299
        %v6115 = vunpack.c.l.b16 %v1300
        %v6116 = vunpack.c.h.b16 %v1300
        %v6117 = vunpack.c.l.b16 %v1301
        %v6118 = vunpack.c.h.b16 %v1301
        %v6119 = vunpack.c.l.b16 %v1302
        %v6120 = vunpack.c.h.b16 %v1302
        %v6121 = vunpack.c.l.b16 %v1303
        %v6122 = vunpack.c.h.b16 %v1303
        %v6123 = vunpack.c.l.b16 %v1304
        %v6124 = vunpack.c.h.b16 %v1304
        %v6125 = vunpack.c.l.b16 %v1305
        %v6126 = vunpack.c.h.b16 %v1305
        %v6127 = vunpack.c.l.b16 %v1306
        %v6128 = vunpack.c.h.b16 %v1306
        %v6129 = vunpack.c.l.b16 %v1307
        %v6130 = vunpack.c.h.b16 %v1307
        %v6131 = vunpack.c.l.b16 %v1308
        %v6132 = vunpack.c.h.b16 %v1308
        %v6133 = vunpack.c.l.b16 %v1309
        %v6134 = vunpack.c.h.b16 %v1309
        %v6135 = vunpack.c.l.b16 %v1310
        %v6136 = vunpack.c.h.b16 %v1310
        %v6137 = vunpack.c.l.b16 %v1311
        %v6138 = vunpack.c.h.b16 %v1311
        %v6139 = vunpack.c.l.b16 %v1312
        %v6140 = vunpack.c.h.b16 %v1312
        %v6141 = vunpack.c.l.b16 %v1313
        %v6142 = vunpack.c.h.b16 %v1313
        %v6143 = vunpack.c.l.b16 %v1314
        %v6144 = vunpack.c.h.b16 %v1314
        %v6145 = vunpack.c.l.b16 %v1315
        %v6146 = vunpack.c.h.b16 %v1315
        %v6147 = vunpack.c.l.b16 %v1316
        %v6148 = vunpack.c.h.b16 %v1316
        %v6149 = vunpack.c.l.b16 %v1317
        %v6150 = vunpack.c.h.b16 %v1317
        %v6151 = vunpack.c.l.b16 %v1318
        %v6152 = vunpack.c.h.b16 %v1318
        %v6153 = vunpack.c.l.b16 %v1319
        %v6154 = vunpack.c.h.b16 %v1319
        %v6155 = vunpack.c.l.b16 %v1320
        %v6156 = vunpack.c.h.b16 %v1320
        %v6157 = vunpack.c.l.b16 %v1321
        %v6158 = vunpack.c.h.b16 %v1321
        %v6159 = vunpack.c.l.b16 %v1322
        %v6160 = vunpack.c.h.b16 %v1322
        %v6161 = vunpack.c.l.b16 %v1323
        %v6162 = vunpack.c.h.b16 %v1323
        %v6163 = vunpack.c.l.b16 %v1324
        %v6164 = vunpack.c.h.b16 %v1324
        %v6165 = vunpack.c.l.b16 %v1325
        %v6166 = vunpack.c.h.b16 %v1325
        %v6167 = vunpack.c.l.b16 %v1326
        %v6168 = vunpack.c.h.b16 %v1326
        %v6169 = vunpack.c.l.b16 %v1327
        %v6170 = vunpack.c.h.b16 %v1327
        %v6171 = vunpack.c.l.b16 %v1328
        %v6172 = vunpack.c.h.b16 %v1328
        %v6173 = vunpack.c.l.b16 %v1329
        %v6174 = vunpack.c.h.b16 %v1329
        %v6175 = vunpack.c.l.b16 %v1330
        %v6176 = vunpack.c.h.b16 %v1330
        %v6177 = vunpack.c.l.b16 %v1331
        %v6178 = vunpack.c.h.b16 %v1331
        %v6179 = vunpack.c.l.b16 %v1332
        %v6180 = vunpack.c.h.b16 %v1332
        %v6181 = vunpack.c.l.b16 %v1333
        %v6182 = vunpack.c.h.b16 %v1333
        %v6183 = vunpack.c.l.b16 %v1334
        %v6184 = vunpack.c.h.b16 %v1334
        %v6185 = vunpack.c.l.b16 %v1335
        %v6186 = vunpack.c.h.b16 %v1335
        %v6187 = vunpack.c.l.b16 %v1336
        %v6188 = vunpack.c.h.b16 %v1336
        %v6189 = vunpack.c.l.b16 %v1337
        %v6190 = vunpack.c.h.b16 %v1337
        %v6191 = vunpack.c.l.b16 %v1338
        %v6192 = vunpack.c.h.b16 %v1338
        %v6193 = vunpack.c.l.b16 %v1339
        %v6194 = vunpack.c.h.b16 %v1339
        %v6195 = vunpack.c.l.b16 %v1340
        %v6196 = vunpack.c.h.b16 %v1340
        %v6197 = vunpack.c.l.b16 %v1341
        %v6198 = vunpack.c.h.b16 %v1341
        %v6199 = vunpack.c.l.b16 %v1342
        %v6200 = vunpack.c.h.b16 %v1342
        %v6201 = vunpack.c.l.b16 %v1343
        %v6202 = vunpack.c.h.b16 %v1343
        %v6203 = vunpack.c.l.b16 %v1344
        %v6204 = vunpack.c.h.b16 %v1344
        %v6205 = vunpack.c.l.b16 %v1345
        %v6206 = vunpack.c.h.b16 %v1345
        %v6207 = vunpack.c.l.b16 %v1346
        %v6208 = vunpack.c.h.b16 %v1346
        %v6209 = vunpack.c.l.b16 %v1347
        %v6210 = vunpack.c.h.b16 %v1347
        %v6211 = vunpack.c.l.b16 %v1348
        %v6212 = vunpack.c.h.b16 %v1348
        %v6213 = vunpack.c.l.b16 %v1349
        %v6214 = vunpack.c.h.b16 %v1349
        %v6215 = vunpack.c.l.b16 %v1350
        %v6216 = vunpack.c.h.b16 %v1350
        %v6217 = vunpack.c.l.b16 %v1351
        %v6218 = vunpack.c.h.b16 %v1351
        %v6219 = vunpack.c.l.b16 %v1352
        %v6220 = vunpack.c.h.b16 %v1352
        %v6221 = vunpack.c.l.b16 %v1353
        %v6222 = vunpack.c.h.b16 %v1353
        %v6223 = vunpack.c.l.b16 %v1354
        %v6224 = vunpack.c.h.b16 %v1354
        %v6225 = vunpack.c.l.b16 %v1355
        %v6226 = vunpack.c.h.b16 %v1355
        %v6227 = vunpack.c.l.b16 %v1356
        %v6228 = vunpack.c.h.b16 %v1356
        %v6229 = vunpack.c.l.b16 %v1357
        %v6230 = vunpack.c.h.b16 %v1357
        %v6231 = vunpack.c.l.b16 %v1358
        %v6232 = vunpack.c.h.b16 %v1358
        %v6233 = vunpack.c.l.b16 %v1359
        %v6234 = vunpack.c.h.b16 %v1359
        %v6235 = vunpack.c.l.b16 %v1360
        %v6236 = vunpack.c.h.b16 %v1360
        %v6237 = vunpack.c.l.b16 %v1361
        %v6238 = vunpack.c.h.b16 %v1361
        %v6239 = vunpack.c.l.b16 %v1362
        %v6240 = vunpack.c.h.b16 %v1362
        %v6241 = vunpack.c.l.b16 %v1363
        %v6242 = vunpack.c.h.b16 %v1363
        %v6243 = vunpack.c.l.b16 %v1364
        %v6244 = vunpack.c.h.b16 %v1364
        %v6245 = vunpack.c.l.b16 %v1365
        %v6246 = vunpack.c.h.b16 %v1365
        %v6247 = vunpack.c.l.b16 %v1366
        %v6248 = vunpack.c.h.b16 %v1366
        %v6249 = vunpack.c.l.b16 %v1367
        %v6250 = vunpack.c.h.b16 %v1367
        %v6251 = vunpack.c.l.b16 %v1368
        %v6252 = vunpack.c.h.b16 %v1368
        %v6253 = vunpack.c.l.b16 %v1369
        %v6254 = vunpack.c.h.b16 %v1369
        %v6255 = vunpack.c.l.b16 %v1370
        %v6256 = vunpack.c.h.b16 %v1370
        %v6257 = vunpack.c.l.b16 %v1371
        %v6258 = vunpack.c.h.b16 %v1371
        %v6259 = vunpack.c.l.b16 %v1372
        %v6260 = vunpack.c.h.b16 %v1372
        %v6261 = vunpack.c.l.b16 %v1373
        %v6262 = vunpack.c.h.b16 %v1373
        %v6263 = vunpack.c.l.b16 %v1374
        %v6264 = vunpack.c.h.b16 %v1374
        %v6265 = vunpack.c.l.b16 %v1375
        %v6266 = vunpack.c.h.b16 %v1375
        %v6267 = vunpack.c.l.b16 %v1376
        %v6268 = vunpack.c.h.b16 %v1376
        %v6269 = vunpack.c.l.b16 %v1377
        %v6270 = vunpack.c.h.b16 %v1377
        %v6271 = vunpack.c.l.b16 %v1378
        %v6272 = vunpack.c.h.b16 %v1378
        %v6273 = vunpack.c.l.b16 %v1379
        %v6274 = vunpack.c.h.b16 %v1379
        %v6275 = vunpack.c.l.b16 %v1380
        %v6276 = vunpack.c.h.b16 %v1380
        %v6277 = vunpack.c.l.b16 %v1381
        %v6278 = vunpack.c.h.b16 %v1381
        %v6279 = vunpack.c.l.b16 %v1382
        %v6280 = vunpack.c.h.b16 %v1382
        %v6281 = vunpack.c.l.b16 %v1383
        %v6282 = vunpack.c.h.b16 %v1383
        %v6283 = vunpack.c.l.b16 %v1384
        %v6284 = vunpack.c.h.b16 %v1384
        %v6285 = vunpack.c.l.b16 %v1385
        %v6286 = vunpack.c.h.b16 %v1385
        %v6287 = vunpack.c.l.b16 %v1386
        %v6288 = vunpack.c.h.b16 %v1386
        %v6289 = vunpack.c.l.b16 %v1387
        %v6290 = vunpack.c.h.b16 %v1387
        %v6291 = vunpack.c.l.b16 %v1388
        %v6292 = vunpack.c.h.b16 %v1388
        %v6293 = vunpack.c.l.b16 %v1389
        %v6294 = vunpack.c.h.b16 %v1389
        %v6295 = vunpack.c.l.b16 %v1390
        %v6296 = vunpack.c.h.b16 %v1390
        %v6297 = vunpack.c.l.b16 %v1391
        %v6298 = vunpack.c.h.b16 %v1391
        %v6299 = vunpack.c.l.b16 %v1392
        %v6300 = vunpack.c.h.b16 %v1392
        %v6301 = vunpack.c.l.b16 %v1393
        %v6302 = vunpack.c.h.b16 %v1393
        %v6303 = vunpack.c.l.b16 %v1394
        %v6304 = vunpack.c.h.b16 %v1394
        %v6305 = vunpack.c.l.b16 %v1395
        %v6306 = vunpack.c.h.b16 %v1395
        %v6307 = vunpack.c.l.b16 %v1396
        %v6308 = vunpack.c.h.b16 %v1396
        %v6309 = vunpack.c.l.b16 %v1397
        %v6310 = vunpack.c.h.b16 %v1397
        %v6311 = vunpack.c.l.b16 %v1398
        %v6312 = vunpack.c.h.b16 %v1398
        %v6313 = vunpack.c.l.b16 %v1399
        %v6314 = vunpack.c.h.b16 %v1399
        %v6315 = vunpack.c.l.b16 %v1400
        %v6316 = vunpack.c.h.b16 %v1400
        %v6317 = vunpack.c.l.b16 %v1401
        %v6318 = vunpack.c.h.b16 %v1401
        %v6319 = vunpack.c.l.b16 %v1402
        %v6320 = vunpack.c.h.b16 %v1402
        %v6321 = vunpack.c.l.b16 %v1403
        %v6322 = vunpack.c.h.b16 %v1403
        %v6323 = vunpack.c.l.b16 %v1404
        %v6324 = vunpack.c.h.b16 %v1404
        %v6325 = vunpack.c.l.b16 %v1405
        %v6326 = vunpack.c.h.b16 %v1405
        %v6327 = vunpack.c.l.b16 %v1406
        %v6328 = vunpack.c.h.b16 %v1406
        %v6329 = vunpack.c.l.b16 %v1407
        %v6330 = vunpack.c.h.b16 %v1407
        %v6331 = vunpack.c.l.b16 %v1408
        %v6332 = vunpack.c.h.b16 %v1408
        %v6333 = vunpack.c.l.b16 %v1409
        %v6334 = vunpack.c.h.b16 %v1409
        %v6335 = vunpack.c.l.b16 %v1410
        %v6336 = vunpack.c.h.b16 %v1410
        %v6337 = vunpack.c.l.b16 %v1411
        %v6338 = vunpack.c.h.b16 %v1411
        %v6339 = vunpack.c.l.b16 %v1412
        %v6340 = vunpack.c.h.b16 %v1412
        %v6341 = vunpack.c.l.b16 %v1413
        %v6342 = vunpack.c.h.b16 %v1413
        %v6343 = vunpack.c.l.b16 %v1414
        %v6344 = vunpack.c.h.b16 %v1414
        %v6345 = vunpack.c.l.b16 %v1415
        %v6346 = vunpack.c.h.b16 %v1415
        %v6347 = vunpack.c.l.b16 %v1416
        %v6348 = vunpack.c.h.b16 %v1416
        %v6349 = vunpack.c.l.b16 %v1417
        %v6350 = vunpack.c.h.b16 %v1417
        %v6351 = vunpack.c.l.b16 %v1418
        %v6352 = vunpack.c.h.b16 %v1418
        %v6353 = vunpack.c.l.b16 %v1419
        %v6354 = vunpack.c.h.b16 %v1419
        %v6355 = vunpack.c.l.b16 %v1420
        %v6356 = vunpack.c.h.b16 %v1420
        %v6357 = vunpack.c.l.b16 %v1421
        %v6358 = vunpack.c.h.b16 %v1421
        %v6359 = vunpack.c.l.b16 %v1422
        %v6360 = vunpack.c.h.b16 %v1422
        %v6361 = vunpack.c.l.b16 %v1423
        %v6362 = vunpack.c.h.b16 %v1423
        %v6363 = vunpack.c.l.b16 %v1424
        %v6364 = vunpack.c.h.b16 %v1424
        %v6365 = vunpack.c.l.b16 %v1425
        %v6366 = vunpack.c.h.b16 %v1425
        %v6367 = vunpack.c.l.b16 %v1426
        %v6368 = vunpack.c.h.b16 %v1426
        %v6369 = vunpack.c.l.b16 %v1427
        %v6370 = vunpack.c.h.b16 %v1427
        %v6371 = vunpack.c.l.b16 %v1428
        %v6372 = vunpack.c.h.b16 %v1428
        %v6373 = vunpack.c.l.b16 %v1429
        %v6374 = vunpack.c.h.b16 %v1429
        %v6375 = vunpack.c.l.b16 %v1430
        %v6376 = vunpack.c.h.b16 %v1430
        %v6377 = vunpack.c.l.b16 %v1431
        %v6378 = vunpack.c.h.b16 %v1431
        %v6379 = vunpack.c.l.b16 %v1432
        %v6380 = vunpack.c.h.b16 %v1432
        %v6381 = vunpack.c.l.b16 %v1433
        %v6382 = vunpack.c.h.b16 %v1433
        %v6383 = vunpack.c.l.b16 %v1434
        %v6384 = vunpack.c.h.b16 %v1434
        %v6385 = vunpack.c.l.b16 %v1435
        %v6386 = vunpack.c.h.b16 %v1435
        %v6387 = vunpack.c.l.b16 %v1436
        %v6388 = vunpack.c.h.b16 %v1436
        %v6389 = vunpack.c.l.b16 %v1437
        %v6390 = vunpack.c.h.b16 %v1437
        %v6391 = vunpack.c.l.b16 %v1438
        %v6392 = vunpack.c.h.b16 %v1438
        %v6393 = vunpack.c.l.b16 %v1439
        %v6394 = vunpack.c.h.b16 %v1439
        %v6395 = vunpack.c.l.b16 %v1440
        %v6396 = vunpack.c.h.b16 %v1440
        %v6397 = vunpack.c.l.b16 %v1441
        %v6398 = vunpack.c.h.b16 %v1441
        %v6399 = vunpack.c.l.b16 %v1442
        %v6400 = vunpack.c.h.b16 %v1442
        %v6401 = vunpack.c.l.b16 %v1443
        %v6402 = vunpack.c.h.b16 %v1443
        %v6403 = vunpack.c.l.b16 %v1444
        %v6404 = vunpack.c.h.b16 %v1444
        %v6405 = vunpack.c.l.b16 %v1445
        %v6406 = vunpack.c.h.b16 %v1445
        %v6407 = vunpack.c.l.b16 %v1446
        %v6408 = vunpack.c.h.b16 %v1446
        %v6409 = vunpack.c.l.b16 %v1447
        %v6410 = vunpack.c.h.b16 %v1447
        %v6411 = vunpack.c.l.b16 %v1448
        %v6412 = vunpack.c.h.b16 %v1448
        %v6413 = vunpack.c.l.b16 %v1449
        %v6414 = vunpack.c.h.b16 %v1449
        %v6415 = vunpack.c.l.b16 %v1450
        %v6416 = vunpack.c.h.b16 %v1450
        %v6417 = vunpack.c.l.b16 %v1451
        %v6418 = vunpack.c.h.b16 %v1451
        %v6419 = vunpack.c.l.b16 %v1452
        %v6420 = vunpack.c.h.b16 %v1452
        %v6421 = vunpack.c.l.b16 %v1453
        %v6422 = vunpack.c.h.b16 %v1453
        %v6423 = vunpack.c.l.b16 %v1454
        %v6424 = vunpack.c.h.b16 %v1454
        %v6425 = vunpack.c.l.b16 %v1455
        %v6426 = vunpack.c.h.b16 %v1455
        %v6427 = vunpack.c.l.b16 %v1456
        %v6428 = vunpack.c.h.b16 %v1456
        %v6429 = vunpack.c.l.b16 %v1457
        %v6430 = vunpack.c.h.b16 %v1457
        %v6431 = vunpack.c.l.b16 %v1458
        %v6432 = vunpack.c.h.b16 %v1458
        %v6433 = vunpack.c.l.b16 %v1459
        %v6434 = vunpack.c.h.b16 %v1459
        %v6435 = vunpack.c.l.b16 %v1460
        %v6436 = vunpack.c.h.b16 %v1460
        %v6437 = vunpack.c.l.b16 %v1461
        %v6438 = vunpack.c.h.b16 %v1461
        %v6439 = vunpack.c.l.b16 %v1462
        %v6440 = vunpack.c.h.b16 %v1462
        %v6441 = vunpack.c.l.b16 %v1463
        %v6442 = vunpack.c.h.b16 %v1463
        %v6443 = vunpack.c.l.b16 %v1464
        %v6444 = vunpack.c.h.b16 %v1464
        %v6445 = vunpack.c.l.b16 %v1465
        %v6446 = vunpack.c.h.b16 %v1465
        %v6447 = vunpack.c.l.b16 %v1466
        %v6448 = vunpack.c.h.b16 %v1466
        %v6449 = vunpack.c.l.b16 %v1467
        %v6450 = vunpack.c.h.b16 %v1467
        %v6451 = vunpack.c.l.b16 %v1468
        %v6452 = vunpack.c.h.b16 %v1468
        %v6453 = vunpack.c.l.b16 %v1469
        %v6454 = vunpack.c.h.b16 %v1469
        %v6455 = vunpack.c.l.b16 %v1470
        %v6456 = vunpack.c.h.b16 %v1470
        %v6457 = vunpack.c.l.b16 %v1471
        %v6458 = vunpack.c.h.b16 %v1471
        %v6459 = vunpack.c.l.b16 %v1472
        %v6460 = vunpack.c.h.b16 %v1472
        %v6461 = vunpack.c.l.b16 %v1473
        %v6462 = vunpack.c.h.b16 %v1473
        %v6463 = vunpack.c.l.b16 %v1474
        %v6464 = vunpack.c.h.b16 %v1474
        %v6465 = vunpack.c.l.b16 %v1475
        %v6466 = vunpack.c.h.b16 %v1475
        %v6467 = vunpack.c.l.b16 %v1476
        %v6468 = vunpack.c.h.b16 %v1476
        %v6469 = vunpack.c.l.b16 %v1477
        %v6470 = vunpack.c.h.b16 %v1477
        %v6471 = vunpack.c.l.b16 %v1478
        %v6472 = vunpack.c.h.b16 %v1478
        %v6473 = vunpack.c.l.b16 %v1479
        %v6474 = vunpack.c.h.b16 %v1479
        %v6475 = vunpack.c.l.b16 %v1480
        %v6476 = vunpack.c.h.b16 %v1480
        %v6477 = vunpack.c.l.b16 %v1481
        %v6478 = vunpack.c.h.b16 %v1481
        %v6479 = vunpack.c.l.b16 %v1482
        %v6480 = vunpack.c.h.b16 %v1482
        %v6481 = vunpack.c.l.b16 %v1483
        %v6482 = vunpack.c.h.b16 %v1483
        %v6483 = vunpack.c.l.b16 %v1484
        %v6484 = vunpack.c.h.b16 %v1484
        %v6485 = vunpack.c.l.b16 %v1485
        %v6486 = vunpack.c.h.b16 %v1485
        %v6487 = vunpack.c.l.b16 %v1486
        %v6488 = vunpack.c.h.b16 %v1486
        %v6489 = vunpack.c.l.b16 %v1487
        %v6490 = vunpack.c.h.b16 %v1487
        %v6491 = vunpack.c.l.b16 %v1488
        %v6492 = vunpack.c.h.b16 %v1488
        %v6493 = vunpack.c.l.b16 %v1489
        %v6494 = vunpack.c.h.b16 %v1489
        %v6495 = vunpack.c.l.b16 %v1490
        %v6496 = vunpack.c.h.b16 %v1490
        %v6497 = vunpack.c.l.b16 %v1491
        %v6498 = vunpack.c.h.b16 %v1491
        %v6499 = vunpack.c.l.b16 %v1492
        %v6500 = vunpack.c.h.b16 %v1492
        %v6501 = vunpack.c.l.b16 %v1493
        %v6502 = vunpack.c.h.b16 %v1493
        %v6503 = vunpack.c.l.b16 %v1494
        %v6504 = vunpack.c.h.b16 %v1494
        %v6505 = vunpack.c.l.b16 %v1495
        %v6506 = vunpack.c.h.b16 %v1495
        %v6507 = vunpack.c.l.b16 %v1496
        %v6508 = vunpack.c.h.b16 %v1496
        %v6509 = vunpack.c.l.b16 %v1497
        %v6510 = vunpack.c.h.b16 %v1497
        %v6511 = vunpack.c.l.b16 %v1498
        %v6512 = vunpack.c.h.b16 %v1498
        %v6513 = vunpack.c.l.b16 %v1499
        %v6514 = vunpack.c.h.b16 %v1499
        %v6515 = vunpack.c.l.b16 %v1500
        %v6516 = vunpack.c.h.b16 %v1500
        %v6517 = vunpack.c.l.b16 %v1501
        %v6518 = vunpack.c.h.b16 %v1501
        %v6519 = vunpack.c.l.b16 %v1502
        %v6520 = vunpack.c.h.b16 %v1502
        %v6521 = vunpack.c.l.b16 %v1503
        %v6522 = vunpack.c.h.b16 %v1503
        %v6523 = vunpack.c.l.b16 %v1504
        %v6524 = vunpack.c.h.b16 %v1504
        %v6525 = vunpack.c.l.b16 %v1505
        %v6526 = vunpack.c.h.b16 %v1505
        %v6527 = vunpack.c.l.b16 %v1506
        %v6528 = vunpack.c.h.b16 %v1506
        %v6529 = vunpack.c.l.b16 %v1507
        %v6530 = vunpack.c.h.b16 %v1507
        %v6531 = vunpack.c.l.b16 %v1508
        %v6532 = vunpack.c.h.b16 %v1508
        %v6533 = vunpack.c.l.b16 %v1509
        %v6534 = vunpack.c.h.b16 %v1509
        %v6535 = vunpack.c.l.b16 %v1510
        %v6536 = vunpack.c.h.b16 %v1510
        %v6537 = vunpack.c.l.b16 %v1511
        %v6538 = vunpack.c.h.b16 %v1511
        %v6539 = vunpack.c.l.b16 %v1512
        %v6540 = vunpack.c.h.b16 %v1512
        %v6541 = vunpack.c.l.b16 %v1513
        %v6542 = vunpack.c.h.b16 %v1513
        %v6543 = vunpack.c.l.b16 %v1514
        %v6544 = vunpack.c.h.b16 %v1514
        %v6545 = vunpack.c.l.b16 %v1515
        %v6546 = vunpack.c.h.b16 %v1515
        %v6547 = vunpack.c.l.b16 %v1516
        %v6548 = vunpack.c.h.b16 %v1516
        %v6549 = vunpack.c.l.b16 %v1517
        %v6550 = vunpack.c.h.b16 %v1517
        %v6551 = vunpack.c.l.b16 %v1518
        %v6552 = vunpack.c.h.b16 %v1518
        %v6553 = vunpack.c.l.b16 %v1519
        %v6554 = vunpack.c.h.b16 %v1519
        %v6555 = vunpack.c.l.b16 %v1520
        %v6556 = vunpack.c.h.b16 %v1520
        %v6557 = vunpack.c.l.b16 %v1521
        %v6558 = vunpack.c.h.b16 %v1521
        %v6559 = vunpack.c.l.b16 %v1522
        %v6560 = vunpack.c.h.b16 %v1522
        %v6561 = vunpack.c.l.b16 %v1523
        %v6562 = vunpack.c.h.b16 %v1523
        %v6563 = vunpack.c.l.b16 %v1524
        %v6564 = vunpack.c.h.b16 %v1524
        %v6565 = vunpack.c.l.b16 %v1525
        %v6566 = vunpack.c.h.b16 %v1525
        %v6567 = vunpack.c.l.b16 %v1526
        %v6568 = vunpack.c.h.b16 %v1526
        %v6569 = vunpack.c.l.b16 %v1527
        %v6570 = vunpack.c.h.b16 %v1527
        %v6571 = vunpack.c.l.b16 %v1528
        %v6572 = vunpack.c.h.b16 %v1528
        %v6573 = vunpack.c.l.b16 %v1529
        %v6574 = vunpack.c.h.b16 %v1529
        %v6575 = vunpack.c.l.b16 %v1530
        %v6576 = vunpack.c.h.b16 %v1530
        %v6577 = vunpack.c.l.b16 %v1531
        %v6578 = vunpack.c.h.b16 %v1531
        %v6579 = vunpack.c.l.b16 %v1532
        %v6580 = vunpack.c.h.b16 %v1532
        %v6581 = vunpack.c.l.b16 %v1533
        %v6582 = vunpack.c.h.b16 %v1533
        %v6583 = vunpack.c.l.b16 %v1534
        %v6584 = vunpack.c.h.b16 %v1534
        %v6585 = vunpack.c.l.b16 %v1535
        %v6586 = vunpack.c.h.b16 %v1535
        %v6587 = vunpack.c.l.b16 %v1536
        %v6588 = vunpack.c.h.b16 %v1536
        %v6589 = vunpack.c.l.b16 %v1537
        %v6590 = vunpack.c.h.b16 %v1537
        %v6591 = vunpack.c.l.b16 %v1538
        %v6592 = vunpack.c.h.b16 %v1538
        %v6593 = vunpack.c.l.b16 %v1539
        %v6594 = vunpack.c.h.b16 %v1539
        %v6595 = vunpack.c.l.b16 %v1540
        %v6596 = vunpack.c.h.b16 %v1540
        %v6597 = vunpack.c.l.b16 %v1541
        %v6598 = vunpack.c.h.b16 %v1541
        %v6599 = vunpack.c.l.b16 %v1542
        %v6600 = vunpack.c.h.b16 %v1542
        %v6601 = vunpack.c.l.b16 %v1543
        %v6602 = vunpack.c.h.b16 %v1543
        %v6603 = vunpack.c.l.b16 %v1544
        %v6604 = vunpack.c.h.b16 %v1544
        %v6605 = vunpack.c.l.b16 %v1545
        %v6606 = vunpack.c.h.b16 %v1545
        %v6607 = vunpack.c.l.b16 %v1546
        %v6608 = vunpack.c.h.b16 %v1546
        %v6609 = vunpack.c.l.b16 %v1547
        %v6610 = vunpack.c.h.b16 %v1547
        %v6611 = vunpack.c.l.b16 %v1548
        %v6612 = vunpack.c.h.b16 %v1548
        %v6613 = vunpack.c.l.b16 %v1549
        %v6614 = vunpack.c.h.b16 %v1549
        %v6615 = vunpack.c.l.b16 %v1550
        %v6616 = vunpack.c.h.b16 %v1550
        %v6617 = vunpack.c.l.b16 %v1551
        %v6618 = vunpack.c.h.b16 %v1551
        %v6619 = vunpack.c.l.b16 %v1552
        %v6620 = vunpack.c.h.b16 %v1552
        %v6621 = vunpack.c.l.b16 %v1553
        %v6622 = vunpack.c.h.b16 %v1553
        %v6623 = vunpack.c.l.b16 %v1554
        %v6624 = vunpack.c.h.b16 %v1554
        %v6625 = vunpack.c.l.b16 %v1555
        %v6626 = vunpack.c.h.b16 %v1555
        %v6627 = vunpack.c.l.b16 %v1556
        %v6628 = vunpack.c.h.b16 %v1556
        %v6629 = vunpack.c.l.b16 %v1557
        %v6630 = vunpack.c.h.b16 %v1557
        %v6631 = vunpack.c.l.b16 %v1558
        %v6632 = vunpack.c.h.b16 %v1558
        %v6633 = vunpack.c.l.b16 %v1559
        %v6634 = vunpack.c.h.b16 %v1559
        %v6635 = vunpack.c.l.b16 %v1560
        %v6636 = vunpack.c.h.b16 %v1560
        %v6637 = vunpack.c.l.b16 %v1561
        %v6638 = vunpack.c.h.b16 %v1561
        %v6639 = vunpack.c.l.b16 %v1562
        %v6640 = vunpack.c.h.b16 %v1562
        %v6641 = vunpack.c.l.b16 %v1563
        %v6642 = vunpack.c.h.b16 %v1563
        %v6643 = vunpack.c.l.b16 %v1564
        %v6644 = vunpack.c.h.b16 %v1564
        %v6645 = vunpack.c.l.b16 %v1565
        %v6646 = vunpack.c.h.b16 %v1565
        %v6647 = vunpack.c.l.b16 %v1566
        %v6648 = vunpack.c.h.b16 %v1566
        %v6649 = vunpack.c.l.b16 %v1567
        %v6650 = vunpack.c.h.b16 %v1567
        %v6651 = vunpack.c.l.b16 %v1568
        %v6652 = vunpack.c.h.b16 %v1568
        %v6653 = vunpack.c.l.b16 %v1569
        %v6654 = vunpack.c.h.b16 %v1569
        %v6655 = vunpack.c.l.b16 %v1570
        %v6656 = vunpack.c.h.b16 %v1570
        %v6657 = vunpack.c.l.b16 %v1571
        %v6658 = vunpack.c.h.b16 %v1571
        %v6659 = vunpack.c.l.b16 %v1572
        %v6660 = vunpack.c.h.b16 %v1572
        %v6661 = vunpack.c.l.b16 %v1573
        %v6662 = vunpack.c.h.b16 %v1573
        %v6663 = vunpack.c.l.b16 %v1574
        %v6664 = vunpack.c.h.b16 %v1574
        %v6665 = vunpack.c.l.b16 %v1575
        %v6666 = vunpack.c.h.b16 %v1575
        %v6667 = vunpack.c.l.b16 %v1576
        %v6668 = vunpack.c.h.b16 %v1576
        %v6669 = vunpack.c.l.b16 %v1577
        %v6670 = vunpack.c.h.b16 %v1577
        %v6671 = vunpack.c.l.b16 %v1578
        %v6672 = vunpack.c.h.b16 %v1578
        %v6673 = vunpack.c.l.b16 %v1579
        %v6674 = vunpack.c.h.b16 %v1579
        %v6675 = vunpack.c.l.b16 %v1580
        %v6676 = vunpack.c.h.b16 %v1580
        %v6677 = vunpack.c.l.b16 %v1581
        %v6678 = vunpack.c.h.b16 %v1581
        %v6679 = vunpack.c.l.b16 %v1582
        %v6680 = vunpack.c.h.b16 %v1582
        %v6681 = vunpack.c.l.b16 %v1583
        %v6682 = vunpack.c.h.b16 %v1583
        %v6683 = vunpack.c.l.b16 %v1584
        %v6684 = vunpack.c.h.b16 %v1584
        %v6685 = vunpack.c.l.b16 %v1585
        %v6686 = vunpack.c.h.b16 %v1585
        %v6687 = vunpack.c.l.b16 %v1586
        %v6688 = vunpack.c.h.b16 %v1586
        %v6689 = vunpack.c.l.b16 %v1587
        %v6690 = vunpack.c.h.b16 %v1587
        %v6691 = vunpack.c.l.b16 %v1588
        %v6692 = vunpack.c.h.b16 %v1588
        %v6693 = vunpack.c.l.b16 %v1589
        %v6694 = vunpack.c.h.b16 %v1589
        %v6695 = vunpack.c.l.b16 %v1590
        %v6696 = vunpack.c.h.b16 %v1590
        %v6697 = vunpack.c.l.b16 %v1591
        %v6698 = vunpack.c.h.b16 %v1591
        %v6699 = vpack.c.b16 %v4149, %v4139
        %v6700 = vpack.c.b16 %v4150, %v4140
        %v6701 = vpack.c.b16 %v4151, %v4141
        %v6702 = vpack.c.b16 %v4152, %v4142
        %v6703 = vpack.c.b16 %v4153, %v4143
        %v6704 = vpack.c.b16 %v4154, %v4144
        %v6705 = vpack.c.b16 %v4155, %v4145
        %v6706 = vpack.c.b16 %v4156, %v4146
        %v6707 = vpack.c.b16 %v4157, %v4147
        %v6708 = vpack.c.b16 %v4158, %v4148
        %v6709 = vpack.c.b16 %v4169, %v4159
        %v6710 = vpack.c.b16 %v4170, %v4160
        %v6711 = vpack.c.b16 %v4171, %v4161
        %v6712 = vpack.c.b16 %v4172, %v4162
        %v6713 = vpack.c.b16 %v4173, %v4163
        %v6714 = vpack.c.b16 %v4174, %v4164
        %v6715 = vpack.c.b16 %v4175, %v4165
        %v6716 = vpack.c.b16 %v4176, %v4166
        %v6717 = vpack.c.b16 %v4177, %v4167
        %v6718 = vpack.c.b16 %v4178, %v4168
        %v6719 = vpack.c.b16 %v4189, %v4179
        %v6720 = vpack.c.b16 %v4190, %v4180
        %v6721 = vpack.c.b16 %v4191, %v4181
        %v6722 = vpack.c.b16 %v4192, %v4182
        %v6723 = vpack.c.b16 %v4193, %v4183
        %v6724 = vpack.c.b16 %v4194, %v4184
        %v6725 = vpack.c.b16 %v4195, %v4185
        %v6726 = vpack.c.b16 %v4196, %v4186
        %v6727 = vpack.c.b16 %v4197, %v4187
        %v6728 = vpack.c.b16 %v4198, %v4188
        %v6729 = vpack.c.b16 %v4209, %v4199
        %v6730 = vpack.c.b16 %v4210, %v4200
        %v6731 = vpack.c.b16 %v4211, %v4201
        %v6732 = vpack.c.b16 %v4212, %v4202
        %v6733 = vpack.c.b16 %v4213, %v4203
        %v6734 = vpack.c.b16 %v4214, %v4204
        %v6735 = vpack.c.b16 %v4215, %v4205
        %v6736 = vpack.c.b16 %v4216, %v4206
        %v6737 = vpack.c.b16 %v4217, %v4207
        %v6738 = vpack.c.b16 %v4218, %v4208
        %v6739 = vpack.c.b16 %v4229, %v4219
        %v6740 = vpack.c.b16 %v4230, %v4220
        %v6741 = vpack.c.b16 %v4231, %v4221
        %v6742 = vpack.c.b16 %v4232, %v4222
        %v6743 = vpack.c.b16 %v4233, %v4223
        %v6744 = vpack.c.b16 %v4234, %v4224
        %v6745 = vpack.c.b16 %v4235, %v4225
        %v6746 = vpack.c.b16 %v4236, %v4226
        %v6747 = vpack.c.b16 %v4237, %v4227
        %v6748 = vpack.c.b16 %v4238, %v4228
        %v6749 = vpack.c.b16 %v4249, %v4239
        %v6750 = vpack.c.b16 %v4250, %v4240
        %v6751 = vpack.c.b16 %v4251, %v4241
        %v6752 = vpack.c.b16 %v4252, %v4242
        %v6753 = vpack.c.b16 %v4253, %v4243
        %v6754 = vpack.c.b16 %v4254, %v4244
        %v6755 = vpack.c.b16 %v4255, %v4245
        %v6756 = vpack.c.b16 %v4256, %v4246
        %v6757 = vpack.c.b16 %v4257, %v4247
        %v6758 = vpack.c.b16 %v4258, %v4248
        %v6759 = vpack.c.b16 %v4269, %v4259
        %v6760 = vpack.c.b16 %v4270, %v4260
        %v6761 = vpack.c.b16 %v4271, %v4261
        %v6762 = vpack.c.b16 %v4272, %v4262
        %v6763 = vpack.c.b16 %v4273, %v4263
        %v6764 = vpack.c.b16 %v4274, %v4264
        %v6765 = vpack.c.b16 %v4275, %v4265
        %v6766 = vpack.c.b16 %v4276, %v4266
        %v6767 = vpack.c.b16 %v4277, %v4267
        %v6768 = vpack.c.b16 %v4278, %v4268
        %v6769 = vpack.c.b16 %v4289, %v4279
        %v6770 = vpack.c.b16 %v4290, %v4280
        %v6771 = vpack.c.b16 %v4291, %v4281
        %v6772 = vpack.c.b16 %v4292, %v4282
        %v6773 = vpack.c.b16 %v4293, %v4283
        %v6774 = vpack.c.b16 %v4294, %v4284
        %v6775 = vpack.c.b16 %v4295, %v4285
        %v6776 = vpack.c.b16 %v4296, %v4286
        %v6777 = vpack.c.b16 %v4297, %v4287
        %v6778 = vpack.c.b16 %v4298, %v4288
        %v6779 = vpack.c.b16 %v4309, %v4299
        %v6780 = vpack.c.b16 %v4310, %v4300
        %v6781 = vpack.c.b16 %v4311, %v4301
        %v6782 = vpack.c.b16 %v4312, %v4302
        %v6783 = vpack.c.b16 %v4313, %v4303
        %v6784 = vpack.c.b16 %v4314, %v4304
        %v6785 = vpack.c.b16 %v4315, %v4305
        %v6786 = vpack.c.b16 %v4316, %v4306
        %v6787 = vpack.c.b16 %v4317, %v4307
        %v6788 = vpack.c.b16 %v4318, %v4308
        %v6789 = vpack.c.b16 %v4329, %v4319
        %v6790 = vpack.c.b16 %v4330, %v4320
        %v6791 = vpack.c.b16 %v4331, %v4321
        %v6792 = vpack.c.b16 %v4332, %v4322
        %v6793 = vpack.c.b16 %v4333, %v4323
        %v6794 = vpack.c.b16 %v4334, %v4324
        %v6795 = vpack.c.b16 %v4335, %v4325
        %v6796 = vpack.c.b16 %v4336, %v4326
        %v6797 = vpack.c.b16 %v4337, %v4327
        %v6798 = vpack.c.b16 %v4338, %v4328
        %v6799 = vpack.c.b16 %v4349, %v4339
        %v6800 = vpack.c.b16 %v4350, %v4340
        %v6801 = vpack.c.b16 %v4351, %v4341
        %v6802 = vpack.c.b16 %v4352, %v4342
        %v6803 = vpack.c.b16 %v4353, %v4343
        %v6804 = vpack.c.b16 %v4354, %v4344
        %v6805 = vpack.c.b16 %v4355, %v4345
        %v6806 = vpack.c.b16 %v4356, %v4346
        %v6807 = vpack.c.b16 %v4357, %v4347
        %v6808 = vpack.c.b16 %v4358, %v4348
        %v6809 = vpack.c.b16 %v4369, %v4359
        %v6810 = vpack.c.b16 %v4370, %v4360
        %v6811 = vpack.c.b16 %v4371, %v4361
        %v6812 = vpack.c.b16 %v4372, %v4362
        %v6813 = vpack.c.b16 %v4373, %v4363
        %v6814 = vpack.c.b16 %v4374, %v4364
        %v6815 = vpack.c.b16 %v4375, %v4365
        %v6816 = vpack.c.b16 %v4376, %v4366
        %v6817 = vpack.c.b16 %v4377, %v4367
        %v6818 = vpack.c.b16 %v4378, %v4368
        %v6819 = vpack.c.b16 %v4389, %v4379
        %v6820 = vpack.c.b16 %v4390, %v4380
        %v6821 = vpack.c.b16 %v4391, %v4381
        %v6822 = vpack.c.b16 %v4392, %v4382
        %v6823 = vpack.c.b16 %v4393, %v4383
        %v6824 = vpack.c.b16 %v4394, %v4384
        %v6825 = vpack.c.b16 %v4395, %v4385
        %v6826 = vpack.c.b16 %v4396, %v4386
        %v6827 = vpack.c.b16 %v4397, %v4387
        %v6828 = vpack.c.b16 %v4398, %v4388
        %v6829 = vpack.c.b16 %v4409, %v4399
        %v6830 = vpack.c.b16 %v4410, %v4400
        %v6831 = vpack.c.b16 %v4411, %v4401
        %v6832 = vpack.c.b16 %v4412, %v4402
        %v6833 = vpack.c.b16 %v4413, %v4403
        %v6834 = vpack.c.b16 %v4414, %v4404
        %v6835 = vpack.c.b16 %v4415, %v4405
        %v6836 = vpack.c.b16 %v4416, %v4406
        %v6837 = vpack.c.b16 %v4417, %v4407
        %v6838 = vpack.c.b16 %v4418, %v4408
        %v6839 = vpack.c.b16 %v4429, %v4419
        %v6840 = vpack.c.b16 %v4430, %v4420
        %v6841 = vpack.c.b16 %v4431, %v4421
        %v6842 = vpack.c.b16 %v4432, %v4422
        %v6843 = vpack.c.b16 %v4433, %v4423
        %v6844 = vpack.c.b16 %v4434, %v4424
        %v6845 = vpack.c.b16 %v4435, %v4425
        %v6846 = vpack.c.b16 %v4436, %v4426
        %v6847 = vpack.c.b16 %v4437, %v4427
        %v6848 = vpack.c.b16 %v4438, %v4428
        %v6849 = vpack.c.b16 %v4449, %v4439
        %v6850 = vpack.c.b16 %v4450, %v4440
        %v6851 = vpack.c.b16 %v4451, %v4441
        %v6852 = vpack.c.b16 %v4452, %v4442
        %v6853 = vpack.c.b16 %v4453, %v4443
        %v6854 = vpack.c.b16 %v4454, %v4444
        %v6855 = vpack.c.b16 %v4455, %v4445
        %v6856 = vpack.c.b16 %v4456, %v4446
        %v6857 = vpack.c.b16 %v4457, %v4447
        %v6858 = vpack.c.b16 %v4458, %v4448
        %v6859 = vpack.c.b16 %v4469, %v4459
        %v6860 = vpack.c.b16 %v4470, %v4460
        %v6861 = vpack.c.b16 %v4471, %v4461
        %v6862 = vpack.c.b16 %v4472, %v4462
        %v6863 = vpack.c.b16 %v4473, %v4463
        %v6864 = vpack.c.b16 %v4474, %v4464
        %v6865 = vpack.c.b16 %v4475, %v4465
        %v6866 = vpack.c.b16 %v4476, %v4466
        %v6867 = vpack.c.b16 %v4477, %v4467
        %v6868 = vpack.c.b16 %v4478, %v4468
        %v6869 = vpack.c.b16 %v4489, %v4479
        %v6870 = vpack.c.b16 %v4490, %v4480
        %v6871 = vpack.c.b16 %v4491, %v4481
        %v6872 = vpack.c.b16 %v4492, %v4482
        %v6873 = vpack.c.b16 %v4493, %v4483
        %v6874 = vpack.c.b16 %v4494, %v4484
        %v6875 = vpack.c.b16 %v4495, %v4485
        %v6876 = vpack.c.b16 %v4496, %v4486
        %v6877 = vpack.c.b16 %v4497, %v4487
        %v6878 = vpack.c.b16 %v4498, %v4488
        %v6879 = vpack.c.b16 %v4509, %v4499
        %v6880 = vpack.c.b16 %v4510, %v4500
        %v6881 = vpack.c.b16 %v4511, %v4501
        %v6882 = vpack.c.b16 %v4512, %v4502
        %v6883 = vpack.c.b16 %v4513, %v4503
        %v6884 = vpack.c.b16 %v4514, %v4504
        %v6885 = vpack.c.b16 %v4515, %v4505
        %v6886 = vpack.c.b16 %v4516, %v4506
        %v6887 = vpack.c.b16 %v4517, %v4507
        %v6888 = vpack.c.b16 %v4518, %v4508
        %v6889 = vpack.c.b16 %v4529, %v4519
        %v6890 = vpack.c.b16 %v4530, %v4520
        %v6891 = vpack.c.b16 %v4531, %v4521
        %v6892 = vpack.c.b16 %v4532, %v4522
        %v6893 = vpack.c.b16 %v4533, %v4523
        %v6894 = vpack.c.b16 %v4534, %v4524
        %v6895 = vpack.c.b16 %v4535, %v4525
        %v6896 = vpack.c.b16 %v4536, %v4526
        %v6897 = vpack.c.b16 %v4537, %v4527
        %v6898 = vpack.c.b16 %v4538, %v4528
        %v6899 = vpack.c.b16 %v4549, %v4539
        %v6900 = vpack.c.b16 %v4550, %v4540
        %v6901 = vpack.c.b16 %v4551, %v4541
        %v6902 = vpack.c.b16 %v4552, %v4542
        %v6903 = vpack.c.b16 %v4553, %v4543
        %v6904 = vpack.c.b16 %v4554, %v4544
        %v6905 = vpack.c.b16 %v4555, %v4545
        %v6906 = vpack.c.b16 %v4556, %v4546
        %v6907 = vpack.c.b16 %v4557, %v4547
        %v6908 = vpack.c.b16 %v4558, %v4548
        %v6909 = vpack.c.b16 %v4569, %v4559
        %v6910 = vpack.c.b16 %v4570, %v4560
        %v6911 = vpack.c.b16 %v4571, %v4561
        %v6912 = vpack.c.b16 %v4572, %v4562
        %v6913 = vpack.c.b16 %v4573, %v4563
        %v6914 = vpack.c.b16 %v4574, %v4564
        %v6915 = vpack.c.b16 %v4575, %v4565
        %v6916 = vpack.c.b16 %v4576, %v4566
        %v6917 = vpack.c.b16 %v4577, %v4567
        %v6918 = vpack.c.b16 %v4578, %v4568
        %v6919 = vpack.c.b16 %v4589, %v4579
        %v6920 = vpack.c.b16 %v4590, %v4580
        %v6921 = vpack.c.b16 %v4591, %v4581
        %v6922 = vpack.c.b16 %v4592, %v4582
        %v6923 = vpack.c.b16 %v4593, %v4583
        %v6924 = vpack.c.b16 %v4594, %v4584
        %v6925 = vpack.c.b16 %v4595, %v4585
        %v6926 = vpack.c.b16 %v4596, %v4586
        %v6927 = vpack.c.b16 %v4597, %v4587
        %v6928 = vpack.c.b16 %v4598, %v4588
        %v6929 = vpack.c.b16 %v4609, %v4599
        %v6930 = vpack.c.b16 %v4610, %v4600
        %v6931 = vpack.c.b16 %v4611, %v4601
        %v6932 = vpack.c.b16 %v4612, %v4602
        %v6933 = vpack.c.b16 %v4613, %v4603
        %v6934 = vpack.c.b16 %v4614, %v4604
        %v6935 = vpack.c.b16 %v4615, %v4605
        %v6936 = vpack.c.b16 %v4616, %v4606
        %v6937 = vpack.c.b16 %v4617, %v4607
        %v6938 = vpack.c.b16 %v4618, %v4608
        %v6939 = vpack.c.b16 %v4629, %v4619
        %v6940 = vpack.c.b16 %v4630, %v4620
        %v6941 = vpack.c.b16 %v4631, %v4621
        %v6942 = vpack.c.b16 %v4632, %v4622
        %v6943 = vpack.c.b16 %v4633, %v4623
        %v6944 = vpack.c.b16 %v4634, %v4624
        %v6945 = vpack.c.b16 %v4635, %v4625
        %v6946 = vpack.c.b16 %v4636, %v4626
        %v6947 = vpack.c.b16 %v4637, %v4627
        %v6948 = vpack.c.b16 %v4638, %v4628
        %v6949 = vpack.c.b16 %v4649, %v4639
        %v6950 = vpack.c.b16 %v4650, %v4640
        %v6951 = vpack.c.b16 %v4651, %v4641
        %v6952 = vpack.c.b16 %v4652, %v4642
        %v6953 = vpack.c.b16 %v4653, %v4643
        %v6954 = vpack.c.b16 %v4654, %v4644
        %v6955 = vpack.c.b16 %v4655, %v4645
        %v6956 = vpack.c.b16 %v4656, %v4646
        %v6957 = vpack.c.b16 %v4657, %v4647
        %v6958 = vpack.c.b16 %v4658, %v4648
        %v6959 = vpack.c.b16 %v4669, %v4659
        %v6960 = vpack.c.b16 %v4670, %v4660
        %v6961 = vpack.c.b16 %v4671, %v4661
        %v6962 = vpack.c.b16 %v4672, %v4662
        %v6963 = vpack.c.b16 %v4673, %v4663
        %v6964 = vpack.c.b16 %v4674, %v4664
        %v6965 = vpack.c.b16 %v4675, %v4665
        %v6966 = vpack.c.b16 %v4676, %v4666
        %v6967 = vpack.c.b16 %v4677, %v4667
        %v6968 = vpack.c.b16 %v4678, %v4668
        %v6969 = vpack.c.b16 %v4689, %v4679
        %v6970 = vpack.c.b16 %v4690, %v4680
        %v6971 = vpack.c.b16 %v4691, %v4681
        %v6972 = vpack.c.b16 %v4692, %v4682
        %v6973 = vpack.c.b16 %v4693, %v4683
        %v6974 = vpack.c.b16 %v4694, %v4684
        %v6975 = vpack.c.b16 %v4695, %v4685
        %v6976 = vpack.c.b16 %v4696, %v4686
        %v6977 = vpack.c.b16 %v4697, %v4687
        %v6978 = vpack.c.b16 %v4698, %v4688
        %v6979 = vpack.c.b16 %v4709, %v4699
        %v6980 = vpack.c.b16 %v4710, %v4700
        %v6981 = vpack.c.b16 %v4711, %v4701
        %v6982 = vpack.c.b16 %v4712, %v4702
        %v6983 = vpack.c.b16 %v4713, %v4703
        %v6984 = vpack.c.b16 %v4714, %v4704
        %v6985 = vpack.c.b16 %v4715, %v4705
        %v6986 = vpack.c.b16 %v4716, %v4706
        %v6987 = vpack.c.b16 %v4717, %v4707
        %v6988 = vpack.c.b16 %v4718, %v4708
        %v6989 = vpack.c.b16 %v4729, %v4719
        %v6990 = vpack.c.b16 %v4730, %v4720
        %v6991 = vpack.c.b16 %v4731, %v4721
        %v6992 = vpack.c.b16 %v4732, %v4722
        %v6993 = vpack.c.b16 %v4733, %v4723
        %v6994 = vpack.c.b16 %v4734, %v4724
        %v6995 = vpack.c.b16 %v4735, %v4725
        %v6996 = vpack.c.b16 %v4736, %v4726
        %v6997 = vpack.c.b16 %v4737, %v4727
        %v6998 = vpack.c.b16 %v4738, %v4728
        %v6999 = vpack.c.b16 %v4749, %v4739
        %v7000 = vpack.c.b16 %v4750, %v4740
        %v7001 = vpack.c.b16 %v4751, %v4741
        %v7002 = vpack.c.b16 %v4752, %v4742
        %v7003 = vpack.c.b16 %v4753, %v4743
        %v7004 = vpack.c.b16 %v4754, %v4744
        %v7005 = vpack.c.b16 %v4755, %v4745
        %v7006 = vpack.c.b16 %v4756, %v4746
        %v7007 = vpack.c.b16 %v4757, %v4747
        %v7008 = vpack.c.b16 %v4758, %v4748
        %v7009 = vpack.c.b16 %v4769, %v4759
        %v7010 = vpack.c.b16 %v4770, %v4760
        %v7011 = vpack.c.b16 %v4771, %v4761
        %v7012 = vpack.c.b16 %v4772, %v4762
        %v7013 = vpack.c.b16 %v4773, %v4763
        %v7014 = vpack.c.b16 %v4774, %v4764
        %v7015 = vpack.c.b16 %v4775, %v4765
        %v7016 = vpack.c.b16 %v4776, %v4766
        %v7017 = vpack.c.b16 %v4777, %v4767
        %v7018 = vpack.c.b16 %v4778, %v4768
        %v7019 = vpack.c.b16 %v4789, %v4779
        %v7020 = vpack.c.b16 %v4790, %v4780
        %v7021 = vpack.c.b16 %v4791, %v4781
        %v7022 = vpack.c.b16 %v4792, %v4782
        %v7023 = vpack.c.b16 %v4793, %v4783
        %v7024 = vpack.c.b16 %v4794, %v4784
        %v7025 = vpack.c.b16 %v4795, %v4785
        %v7026 = vpack.c.b16 %v4796, %v4786
        %v7027 = vpack.c.b16 %v4797, %v4787
        %v7028 = vpack.c.b16 %v4798, %v4788
        %v7029 = vpack.c.b16 %v4809, %v4799
        %v7030 = vpack.c.b16 %v4810, %v4800
        %v7031 = vpack.c.b16 %v4811, %v4801
        %v7032 = vpack.c.b16 %v4812, %v4802
        %v7033 = vpack.c.b16 %v4813, %v4803
        %v7034 = vpack.c.b16 %v4814, %v4804
        %v7035 = vpack.c.b16 %v4815, %v4805
        %v7036 = vpack.c.b16 %v4816, %v4806
        %v7037 = vpack.c.b16 %v4817, %v4807
        %v7038 = vpack.c.b16 %v4818, %v4808
        %v7039 = vpack.c.b16 %v4829, %v4819
        %v7040 = vpack.c.b16 %v4830, %v4820
        %v7041 = vpack.c.b16 %v4831, %v4821
        %v7042 = vpack.c.b16 %v4832, %v4822
        %v7043 = vpack.c.b16 %v4833, %v4823
        %v7044 = vpack.c.b16 %v4834, %v4824
        %v7045 = vpack.c.b16 %v4835, %v4825
        %v7046 = vpack.c.b16 %v4836, %v4826
        %v7047 = vpack.c.b16 %v4837, %v4827
        %v7048 = vpack.c.b16 %v4838, %v4828
        %v7049 = vpack.c.b16 %v4849, %v4839
        %v7050 = vpack.c.b16 %v4850, %v4840
        %v7051 = vpack.c.b16 %v4851, %v4841
        %v7052 = vpack.c.b16 %v4852, %v4842
        %v7053 = vpack.c.b16 %v4853, %v4843
        %v7054 = vpack.c.b16 %v4854, %v4844
        %v7055 = vpack.c.b16 %v4855, %v4845
        %v7056 = vpack.c.b16 %v4856, %v4846
        %v7057 = vpack.c.b16 %v4857, %v4847
        %v7058 = vpack.c.b16 %v4858, %v4848
        %v7059 = vpack.c.b16 %v4869, %v4859
        %v7060 = vpack.c.b16 %v4870, %v4860
        %v7061 = vpack.c.b16 %v4871, %v4861
        %v7062 = vpack.c.b16 %v4872, %v4862
        %v7063 = vpack.c.b16 %v4873, %v4863
        %v7064 = vpack.c.b16 %v4874, %v4864
        %v7065 = vpack.c.b16 %v4875, %v4865
        %v7066 = vpack.c.b16 %v4876, %v4866
        %v7067 = vpack.c.b16 %v4877, %v4867
        %v7068 = vpack.c.b16 %v4878, %v4868
        %v7069 = vpack.c.b16 %v4889, %v4879
        %v7070 = vpack.c.b16 %v4890, %v4880
        %v7071 = vpack.c.b16 %v4891, %v4881
        %v7072 = vpack.c.b16 %v4892, %v4882
        %v7073 = vpack.c.b16 %v4893, %v4883
        %v7074 = vpack.c.b16 %v4894, %v4884
        %v7075 = vpack.c.b16 %v4895, %v4885
        %v7076 = vpack.c.b16 %v4896, %v4886
        %v7077 = vpack.c.b16 %v4897, %v4887
        %v7078 = vpack.c.b16 %v4898, %v4888
        %v7079 = vpack.c.b16 %v4909, %v4899
        %v7080 = vpack.c.b16 %v4910, %v4900
        %v7081 = vpack.c.b16 %v4911, %v4901
        %v7082 = vpack.c.b16 %v4912, %v4902
        %v7083 = vpack.c.b16 %v4913, %v4903
        %v7084 = vpack.c.b16 %v4914, %v4904
        %v7085 = vpack.c.b16 %v4915, %v4905
        %v7086 = vpack.c.b16 %v4916, %v4906
        %v7087 = vpack.c.b16 %v4917, %v4907
        %v7088 = vpack.c.b16 %v4918, %v4908
        %v7089 = vpack.c.b16 %v4929, %v4919
        %v7090 = vpack.c.b16 %v4930, %v4920
        %v7091 = vpack.c.b16 %v4931, %v4921
        %v7092 = vpack.c.b16 %v4932, %v4922
        %v7093 = vpack.c.b16 %v4933, %v4923
        %v7094 = vpack.c.b16 %v4934, %v4924
        %v7095 = vpack.c.b16 %v4935, %v4925
        %v7096 = vpack.c.b16 %v4936, %v4926
        %v7097 = vpack.c.b16 %v4937, %v4927
        %v7098 = vpack.c.b16 %v4938, %v4928
        %v7099 = vpack.c.b16 %v4949, %v4939
        %v7100 = vpack.c.b16 %v4950, %v4940
        %v7101 = vpack.c.b16 %v4951, %v4941
        %v7102 = vpack.c.b16 %v4952, %v4942
        %v7103 = vpack.c.b16 %v4953, %v4943
        %v7104 = vpack.c.b16 %v4954, %v4944
        %v7105 = vpack.c.b16 %v4955, %v4945
        %v7106 = vpack.c.b16 %v4956, %v4946
        %v7107 = vpack.c.b16 %v4957, %v4947
        %v7108 = vpack.c.b16 %v4958, %v4948
        %v7109 = vpack.c.b16 %v4969, %v4959
        %v7110 = vpack.c.b16 %v4970, %v4960
        %v7111 = vpack.c.b16 %v4971, %v4961
        %v7112 = vpack.c.b16 %v4972, %v4962
        %v7113 = vpack.c.b16 %v4973, %v4963
        %v7114 = vpack.c.b16 %v4974, %v4964
        %v7115 = vpack.c.b16 %v4975, %v4965
        %v7116 = vpack.c.b16 %v4976, %v4966
        %v7117 = vpack.c.b16 %v4977, %v4967
        %v7118 = vpack.c.b16 %v4978, %v4968
        %v7119 = vpack.c.b16 %v4989, %v4979
        %v7120 = vpack.c.b16 %v4990, %v4980
        %v7121 = vpack.c.b16 %v4991, %v4981
        %v7122 = vpack.c.b16 %v4992, %v4982
        %v7123 = vpack.c.b16 %v4993, %v4983
        %v7124 = vpack.c.b16 %v4994, %v4984
        %v7125 = vpack.c.b16 %v4995, %v4985
        %v7126 = vpack.c.b16 %v4996, %v4986
        %v7127 = vpack.c.b16 %v4997, %v4987
        %v7128 = vpack.c.b16 %v4998, %v4988
        %v7129 = vpack.c.b16 %v5009, %v4999
        %v7130 = vpack.c.b16 %v5010, %v5000
        %v7131 = vpack.c.b16 %v5011, %v5001
        %v7132 = vpack.c.b16 %v5012, %v5002
        %v7133 = vpack.c.b16 %v5013, %v5003
        %v7134 = vpack.c.b16 %v5014, %v5004
        %v7135 = vpack.c.b16 %v5015, %v5005
        %v7136 = vpack.c.b16 %v5016, %v5006
        %v7137 = vpack.c.b16 %v5017, %v5007
        %v7138 = vpack.c.b16 %v5018, %v5008
        %v7139 = vpack.c.b16 %v5029, %v5019
        %v7140 = vpack.c.b16 %v5030, %v5020
        %v7141 = vpack.c.b16 %v5031, %v5021
        %v7142 = vpack.c.b16 %v5032, %v5022
        %v7143 = vpack.c.b16 %v5033, %v5023
        %v7144 = vpack.c.b16 %v5034, %v5024
        %v7145 = vpack.c.b16 %v5035, %v5025
        %v7146 = vpack.c.b16 %v5036, %v5026
        %v7147 = vpack.c.b16 %v5037, %v5027
        %v7148 = vpack.c.b16 %v5038, %v5028
        %v7149 = vpack.c.b16 %v5049, %v5039
        %v7150 = vpack.c.b16 %v5050, %v5040
        %v7151 = vpack.c.b16 %v5051, %v5041
        %v7152 = vpack.c.b16 %v5052, %v5042
        %v7153 = vpack.c.b16 %v5053, %v5043
        %v7154 = vpack.c.b16 %v5054, %v5044
        %v7155 = vpack.c.b16 %v5055, %v5045
        %v7156 = vpack.c.b16 %v5056, %v5046
        %v7157 = vpack.c.b16 %v5057, %v5047
        %v7158 = vpack.c.b16 %v5058, %v5048
        %v7159 = vpack.c.b16 %v5069, %v5059
        %v7160 = vpack.c.b16 %v5070, %v5060
        %v7161 = vpack.c.b16 %v5071, %v5061
        %v7162 = vpack.c.b16 %v5072, %v5062
        %v7163 = vpack.c.b16 %v5073, %v5063
        %v7164 = vpack.c.b16 %v5074, %v5064
        %v7165 = vpack.c.b16 %v5075, %v5065
        %v7166 = vpack.c.b16 %v5076, %v5066
        %v7167 = vpack.c.b16 %v5077, %v5067
        %v7168 = vpack.c.b16 %v5078, %v5068
        %v7169 = vpack.c.b16 %v5089, %v5079
        %v7170 = vpack.c.b16 %v5090, %v5080
        %v7171 = vpack.c.b16 %v5091, %v5081
        %v7172 = vpack.c.b16 %v5092, %v5082
        %v7173 = vpack.c.b16 %v5093, %v5083
        %v7174 = vpack.c.b16 %v5094, %v5084
        %v7175 = vpack.c.b16 %v5095, %v5085
        %v7176 = vpack.c.b16 %v5096, %v5086
        %v7177 = vpack.c.b16 %v5097, %v5087
        %v7178 = vpack.c.b16 %v5098, %v5088
        %v7179 = vpack.c.b16 %v5109, %v5099
        %v7180 = vpack.c.b16 %v5110, %v5100
        %v7181 = vpack.c.b16 %v5111, %v5101
        %v7182 = vpack.c.b16 %v5112, %v5102
        %v7183 = vpack.c.b16 %v5113, %v5103
        %v7184 = vpack.c.b16 %v5114, %v5104
        %v7185 = vpack.c.b16 %v5115, %v5105
        %v7186 = vpack.c.b16 %v5116, %v5106
        %v7187 = vpack.c.b16 %v5117, %v5107
        %v7188 = vpack.c.b16 %v5118, %v5108
        %v7189 = vpack.c.b16 %v5129, %v5119
        %v7190 = vpack.c.b16 %v5130, %v5120
        %v7191 = vpack.c.b16 %v5131, %v5121
        %v7192 = vpack.c.b16 %v5132, %v5122
        %v7193 = vpack.c.b16 %v5133, %v5123
        %v7194 = vpack.c.b16 %v5134, %v5124
        %v7195 = vpack.c.b16 %v5135, %v5125
        %v7196 = vpack.c.b16 %v5136, %v5126
        %v7197 = vpack.c.b16 %v5137, %v5127
        %v7198 = vpack.c.b16 %v5138, %v5128
        %v7199 = vpack.c.b16 %v5149, %v5139
        %v7200 = vpack.c.b16 %v5150, %v5140
        %v7201 = vpack.c.b16 %v5151, %v5141
        %v7202 = vpack.c.b16 %v5152, %v5142
        %v7203 = vpack.c.b16 %v5153, %v5143
        %v7204 = vpack.c.b16 %v5154, %v5144
        %v7205 = vpack.c.b16 %v5155, %v5145
        %v7206 = vpack.c.b16 %v5156, %v5146
        %v7207 = vpack.c.b16 %v5157, %v5147
        %v7208 = vpack.c.b16 %v5158, %v5148
        %v7209 = vpack.c.b16 %v5169, %v5159
        %v7210 = vpack.c.b16 %v5170, %v5160
        %v7211 = vpack.c.b16 %v5171, %v5161
        %v7212 = vpack.c.b16 %v5172, %v5162
        %v7213 = vpack.c.b16 %v5173, %v5163
        %v7214 = vpack.c.b16 %v5174, %v5164
        %v7215 = vpack.c.b16 %v5175, %v5165
        %v7216 = vpack.c.b16 %v5176, %v5166
        %v7217 = vpack.c.b16 %v5177, %v5167
        %v7218 = vpack.c.b16 %v5178, %v5168
        %v7219 = vpack.c.b16 %v5189, %v5179
        %v7220 = vpack.c.b16 %v5190, %v5180
        %v7221 = vpack.c.b16 %v5191, %v5181
        %v7222 = vpack.c.b16 %v5192, %v5182
        %v7223 = vpack.c.b16 %v5193, %v5183
        %v7224 = vpack.c.b16 %v5194, %v5184
        %v7225 = vpack.c.b16 %v5195, %v5185
        %v7226 = vpack.c.b16 %v5196, %v5186
        %v7227 = vpack.c.b16 %v5197, %v5187
        %v7228 = vpack.c.b16 %v5198, %v5188
        %v7229 = vpack.c.b16 %v5209, %v5199
        %v7230 = vpack.c.b16 %v5210, %v5200
        %v7231 = vpack.c.b16 %v5211, %v5201
        %v7232 = vpack.c.b16 %v5212, %v5202
        %v7233 = vpack.c.b16 %v5213, %v5203
        %v7234 = vpack.c.b16 %v5214, %v5204
        %v7235 = vpack.c.b16 %v5215, %v5205
        %v7236 = vpack.c.b16 %v5216, %v5206
        %v7237 = vpack.c.b16 %v5217, %v5207
        %v7238 = vpack.c.b16 %v5218, %v5208
        %v7239 = vpack.c.b16 %v5229, %v5219
        %v7240 = vpack.c.b16 %v5230, %v5220
        %v7241 = vpack.c.b16 %v5231, %v5221
        %v7242 = vpack.c.b16 %v5232, %v5222
        %v7243 = vpack.c.b16 %v5233, %v5223
        %v7244 = vpack.c.b16 %v5234, %v5224
        %v7245 = vpack.c.b16 %v5235, %v5225
        %v7246 = vpack.c.b16 %v5236, %v5226
        %v7247 = vpack.c.b16 %v5237, %v5227
        %v7248 = vpack.c.b16 %v5238, %v5228
        %v7249 = vpack.c.b16 %v5249, %v5239
        %v7250 = vpack.c.b16 %v5250, %v5240
        %v7251 = vpack.c.b16 %v5251, %v5241
        %v7252 = vpack.c.b16 %v5252, %v5242
        %v7253 = vpack.c.b16 %v5253, %v5243
        %v7254 = vpack.c.b16 %v5254, %v5244
        %v7255 = vpack.c.b16 %v5255, %v5245
        %v7256 = vpack.c.b16 %v5256, %v5246
        %v7257 = vpack.c.b16 %v5257, %v5247
        %v7258 = vpack.c.b16 %v5258, %v5248
        %v7259 = vpack.c.b16 %v5269, %v5259
        %v7260 = vpack.c.b16 %v5270, %v5260
        %v7261 = vpack.c.b16 %v5271, %v5261
        %v7262 = vpack.c.b16 %v5272, %v5262
        %v7263 = vpack.c.b16 %v5273, %v5263
        %v7264 = vpack.c.b16 %v5274, %v5264
        %v7265 = vpack.c.b16 %v5275, %v5265
        %v7266 = vpack.c.b16 %v5276, %v5266
        %v7267 = vpack.c.b16 %v5277, %v5267
        %v7268 = vpack.c.b16 %v5278, %v5268
        %v7269 = vpack.c.b16 %v5289, %v5279
        %v7270 = vpack.c.b16 %v5290, %v5280
        %v7271 = vpack.c.b16 %v5291, %v5281
        %v7272 = vpack.c.b16 %v5292, %v5282
        %v7273 = vpack.c.b16 %v5293, %v5283
        %v7274 = vpack.c.b16 %v5294, %v5284
        %v7275 = vpack.c.b16 %v5295, %v5285
        %v7276 = vpack.c.b16 %v5296, %v5286
        %v7277 = vpack.c.b16 %v5297, %v5287
        %v7278 = vpack.c.b16 %v5298, %v5288
        %v7279 = vpack.c.b16 %v5309, %v5299
        %v7280 = vpack.c.b16 %v5310, %v5300
        %v7281 = vpack.c.b16 %v5311, %v5301
        %v7282 = vpack.c.b16 %v5312, %v5302
        %v7283 = vpack.c.b16 %v5313, %v5303
        %v7284 = vpack.c.b16 %v5314, %v5304
        %v7285 = vpack.c.b16 %v5315, %v5305
        %v7286 = vpack.c.b16 %v5316, %v5306
        %v7287 = vpack.c.b16 %v5317, %v5307
        %v7288 = vpack.c.b16 %v5318, %v5308
        %v7289 = vpack.c.b16 %v5329, %v5319
        %v7290 = vpack.c.b16 %v5330, %v5320
        %v7291 = vpack.c.b16 %v5331, %v5321
        %v7292 = vpack.c.b16 %v5332, %v5322
        %v7293 = vpack.c.b16 %v5333, %v5323
        %v7294 = vpack.c.b16 %v5334, %v5324
        %v7295 = vpack.c.b16 %v5335, %v5325
        %v7296 = vpack.c.b16 %v5336, %v5326
        %v7297 = vpack.c.b16 %v5337, %v5327
        %v7298 = vpack.c.b16 %v5338, %v5328
        %v7299 = vpack.c.b16 %v5349, %v5339
        %v7300 = vpack.c.b16 %v5350, %v5340
        %v7301 = vpack.c.b16 %v5351, %v5341
        %v7302 = vpack.c.b16 %v5352, %v5342
        %v7303 = vpack.c.b16 %v5353, %v5343
        %v7304 = vpack.c.b16 %v5354, %v5344
        %v7305 = vpack.c.b16 %v5355, %v5345
        %v7306 = vpack.c.b16 %v5356, %v5346
        %v7307 = vpack.c.b16 %v5357, %v5347
        %v7308 = vpack.c.b16 %v5358, %v5348
        %v7309 = vpack.c.b16 %v5369, %v5359
        %v7310 = vpack.c.b16 %v5370, %v5360
        %v7311 = vpack.c.b16 %v5371, %v5361
        %v7312 = vpack.c.b16 %v5372, %v5362
        %v7313 = vpack.c.b16 %v5373, %v5363
        %v7314 = vpack.c.b16 %v5374, %v5364
        %v7315 = vpack.c.b16 %v5375, %v5365
        %v7316 = vpack.c.b16 %v5376, %v5366
        %v7317 = vpack.c.b16 %v5377, %v5367
        %v7318 = vpack.c.b16 %v5378, %v5368
        %v7319 = vpack.c.b16 %v5389, %v5379
        %v7320 = vpack.c.b16 %v5390, %v5380
        %v7321 = vpack.c.b16 %v5391, %v5381
        %v7322 = vpack.c.b16 %v5392, %v5382
        %v7323 = vpack.c.b16 %v5393, %v5383
        %v7324 = vpack.c.b16 %v5394, %v5384
        %v7325 = vpack.c.b16 %v5395, %v5385
        %v7326 = vpack.c.b16 %v5396, %v5386
        %v7327 = vpack.c.b16 %v5397, %v5387
        %v7328 = vpack.c.b16 %v5398, %v5388
        %v7329 = vpack.c.b16 %v5409, %v5399
        %v7330 = vpack.c.b16 %v5410, %v5400
        %v7331 = vpack.c.b16 %v5411, %v5401
        %v7332 = vpack.c.b16 %v5412, %v5402
        %v7333 = vpack.c.b16 %v5413, %v5403
        %v7334 = vpack.c.b16 %v5414, %v5404
        %v7335 = vpack.c.b16 %v5415, %v5405
        %v7336 = vpack.c.b16 %v5416, %v5406
        %v7337 = vpack.c.b16 %v5417, %v5407
        %v7338 = vpack.c.b16 %v5418, %v5408
        %v7339 = vpack.c.b16 %v5429, %v5419
        %v7340 = vpack.c.b16 %v5430, %v5420
        %v7341 = vpack.c.b16 %v5431, %v5421
        %v7342 = vpack.c.b16 %v5432, %v5422
        %v7343 = vpack.c.b16 %v5433, %v5423
        %v7344 = vpack.c.b16 %v5434, %v5424
        %v7345 = vpack.c.b16 %v5435, %v5425
        %v7346 = vpack.c.b16 %v5436, %v5426
        %v7347 = vpack.c.b16 %v5437, %v5427
        %v7348 = vpack.c.b16 %v5438, %v5428
        %v7349 = vpack.c.b16 %v5449, %v5439
        %v7350 = vpack.c.b16 %v5450, %v5440
        %v7351 = vpack.c.b16 %v5451, %v5441
        %v7352 = vpack.c.b16 %v5452, %v5442
        %v7353 = vpack.c.b16 %v5453, %v5443
        %v7354 = vpack.c.b16 %v5454, %v5444
        %v7355 = vpack.c.b16 %v5455, %v5445
        %v7356 = vpack.c.b16 %v5456, %v5446
        %v7357 = vpack.c.b16 %v5457, %v5447
        %v7358 = vpack.c.b16 %v5458, %v5448
        %v7359 = vpack.c.b16 %v5469, %v5459
        %v7360 = vpack.c.b16 %v5470, %v5460
        %v7361 = vpack.c.b16 %v5471, %v5461
        %v7362 = vpack.c.b16 %v5472, %v5462
        %v7363 = vpack.c.b16 %v5473, %v5463
        %v7364 = vpack.c.b16 %v5474, %v5464
        %v7365 = vpack.c.b16 %v5475, %v5465
        %v7366 = vpack.c.b16 %v5476, %v5466
        %v7367 = vpack.c.b16 %v5477, %v5467
        %v7368 = vpack.c.b16 %v5478, %v5468
        %v7369 = vpack.c.b16 %v5489, %v5479
        %v7370 = vpack.c.b16 %v5490, %v5480
        %v7371 = vpack.c.b16 %v5491, %v5481
        %v7372 = vpack.c.b16 %v5492, %v5482
        %v7373 = vpack.c.b16 %v5493, %v5483
        %v7374 = vpack.c.b16 %v5494, %v5484
        %v7375 = vpack.c.b16 %v5495, %v5485
        %v7376 = vpack.c.b16 %v5496, %v5486
        %v7377 = vpack.c.b16 %v5497, %v5487
        %v7378 = vpack.c.b16 %v5498, %v5488
        %v7379 = vpack.c.b16 %v5509, %v5499
        %v7380 = vpack.c.b16 %v5510, %v5500
        %v7381 = vpack.c.b16 %v5511, %v5501
        %v7382 = vpack.c.b16 %v5512, %v5502
        %v7383 = vpack.c.b16 %v5513, %v5503
        %v7384 = vpack.c.b16 %v5514, %v5504
        %v7385 = vpack.c.b16 %v5515, %v5505
        %v7386 = vpack.c.b16 %v5516, %v5506
        %v7387 = vpack.c.b16 %v5517, %v5507
        %v7388 = vpack.c.b16 %v5518, %v5508
        %v7389 = vpack.c.b16 %v5529, %v5519
        %v7390 = vpack.c.b16 %v5530, %v5520
        %v7391 = vpack.c.b16 %v5531, %v5521
        %v7392 = vpack.c.b16 %v5532, %v5522
        %v7393 = vpack.c.b16 %v5533, %v5523
        %v7394 = vpack.c.b16 %v5534, %v5524
        %v7395 = vpack.c.b16 %v5535, %v5525
        %v7396 = vpack.c.b16 %v5536, %v5526
        %v7397 = vpack.c.b16 %v5537, %v5527
        %v7398 = vpack.c.b16 %v5538, %v5528
        %v7399 = vpack.c.b16 %v5549, %v5539
        %v7400 = vpack.c.b16 %v5550, %v5540
        %v7401 = vpack.c.b16 %v5551, %v5541
        %v7402 = vpack.c.b16 %v5552, %v5542
        %v7403 = vpack.c.b16 %v5553, %v5543
        %v7404 = vpack.c.b16 %v5554, %v5544
        %v7405 = vpack.c.b16 %v5555, %v5545
        %v7406 = vpack.c.b16 %v5556, %v5546
        %v7407 = vpack.c.b16 %v5557, %v5547
        %v7408 = vpack.c.b16 %v5558, %v5548
        %v7409 = vpack.c.b16 %v5569, %v5559
        %v7410 = vpack.c.b16 %v5570, %v5560
        %v7411 = vpack.c.b16 %v5571, %v5561
        %v7412 = vpack.c.b16 %v5572, %v5562
        %v7413 = vpack.c.b16 %v5573, %v5563
        %v7414 = vpack.c.b16 %v5574, %v5564
        %v7415 = vpack.c.b16 %v5575, %v5565
        %v7416 = vpack.c.b16 %v5576, %v5566
        %v7417 = vpack.c.b16 %v5577, %v5567
        %v7418 = vpack.c.b16 %v5578, %v5568
        %v7419 = vpack.c.b16 %v5589, %v5579
        %v7420 = vpack.c.b16 %v5590, %v5580
        %v7421 = vpack.c.b16 %v5591, %v5581
        %v7422 = vpack.c.b16 %v5592, %v5582
        %v7423 = vpack.c.b16 %v5593, %v5583
        %v7424 = vpack.c.b16 %v5594, %v5584
        %v7425 = vpack.c.b16 %v5595, %v5585
        %v7426 = vpack.c.b16 %v5596, %v5586
        %v7427 = vpack.c.b16 %v5597, %v5587
        %v7428 = vpack.c.b16 %v5598, %v5588
        %v7429 = vpack.c.b16 %v5609, %v5599
        %v7430 = vpack.c.b16 %v5610, %v5600
        %v7431 = vpack.c.b16 %v5611, %v5601
        %v7432 = vpack.c.b16 %v5612, %v5602
        %v7433 = vpack.c.b16 %v5613, %v5603
        %v7434 = vpack.c.b16 %v5614, %v5604
        %v7435 = vpack.c.b16 %v5615, %v5605
        %v7436 = vpack.c.b16 %v5616, %v5606
        %v7437 = vpack.c.b16 %v5617, %v5607
        %v7438 = vpack.c.b16 %v5618, %v5608
        %v7439 = vpack.c.b16 %v5629, %v5619
        %v7440 = vpack.c.b16 %v5630, %v5620
        %v7441 = vpack.c.b16 %v5631, %v5621
        %v7442 = vpack.c.b16 %v5632, %v5622
        %v7443 = vpack.c.b16 %v5633, %v5623
        %v7444 = vpack.c.b16 %v5634, %v5624
        %v7445 = vpack.c.b16 %v5635, %v5625
        %v7446 = vpack.c.b16 %v5636, %v5626
        %v7447 = vpack.c.b16 %v5637, %v5627
        %v7448 = vpack.c.b16 %v5638, %v5628
        %v7449 = vpack.c.b16 %v5649, %v5639
        %v7450 = vpack.c.b16 %v5650, %v5640
        %v7451 = vpack.c.b16 %v5651, %v5641
        %v7452 = vpack.c.b16 %v5652, %v5642
        %v7453 = vpack.c.b16 %v5653, %v5643
        %v7454 = vpack.c.b16 %v5654, %v5644
        %v7455 = vpack.c.b16 %v5655, %v5645
        %v7456 = vpack.c.b16 %v5656, %v5646
        %v7457 = vpack.c.b16 %v5657, %v5647
        %v7458 = vpack.c.b16 %v5658, %v5648
        %v7459 = vpack.c.b16 %v5669, %v5659
        %v7460 = vpack.c.b16 %v5670, %v5660
        %v7461 = vpack.c.b16 %v5671, %v5661
        %v7462 = vpack.c.b16 %v5672, %v5662
        %v7463 = vpack.c.b16 %v5673, %v5663
        %v7464 = vpack.c.b16 %v5674, %v5664
        %v7465 = vpack.c.b16 %v5675, %v5665
        %v7466 = vpack.c.b16 %v5676, %v5666
        %v7467 = vpack.c.b16 %v5677, %v5667
        %v7468 = vpack.c.b16 %v5678, %v5668
        %v7469 = vpack.c.b16 %v5689, %v5679
        %v7470 = vpack.c.b16 %v5690, %v5680
        %v7471 = vpack.c.b16 %v5691, %v5681
        %v7472 = vpack.c.b16 %v5692, %v5682
        %v7473 = vpack.c.b16 %v5693, %v5683
        %v7474 = vpack.c.b16 %v5694, %v5684
        %v7475 = vpack.c.b16 %v5695, %v5685
        %v7476 = vpack.c.b16 %v5696, %v5686
        %v7477 = vpack.c.b16 %v5697, %v5687
        %v7478 = vpack.c.b16 %v5698, %v5688
        %v7479 = vpack.c.b16 %v5709, %v5699
        %v7480 = vpack.c.b16 %v5710, %v5700
        %v7481 = vpack.c.b16 %v5711, %v5701
        %v7482 = vpack.c.b16 %v5712, %v5702
        %v7483 = vpack.c.b16 %v5713, %v5703
        %v7484 = vpack.c.b16 %v5714, %v5704
        %v7485 = vpack.c.b16 %v5715, %v5705
        %v7486 = vpack.c.b16 %v5716, %v5706
        %v7487 = vpack.c.b16 %v5717, %v5707
        %v7488 = vpack.c.b16 %v5718, %v5708
        %v7489 = vpack.c.b16 %v5729, %v5719
        %v7490 = vpack.c.b16 %v5730, %v5720
        %v7491 = vpack.c.b16 %v5731, %v5721
        %v7492 = vpack.c.b16 %v5732, %v5722
        %v7493 = vpack.c.b16 %v5733, %v5723
        %v7494 = vpack.c.b16 %v5734, %v5724
        %v7495 = vpack.c.b16 %v5735, %v5725
        %v7496 = vpack.c.b16 %v5736, %v5726
        %v7497 = vpack.c.b16 %v5737, %v5727
        %v7498 = vpack.c.b16 %v5738, %v5728
        %v7499 = vpack.c.b16 %v5749, %v5739
        %v7500 = vpack.c.b16 %v5750, %v5740
        %v7501 = vpack.c.b16 %v5751, %v5741
        %v7502 = vpack.c.b16 %v5752, %v5742
        %v7503 = vpack.c.b16 %v5753, %v5743
        %v7504 = vpack.c.b16 %v5754, %v5744
        %v7505 = vpack.c.b16 %v5755, %v5745
        %v7506 = vpack.c.b16 %v5756, %v5746
        %v7507 = vpack.c.b16 %v5757, %v5747
        %v7508 = vpack.c.b16 %v5758, %v5748
        %v7509 = vpack.c.b16 %v5769, %v5759
        %v7510 = vpack.c.b16 %v5770, %v5760
        %v7511 = vpack.c.b16 %v5771, %v5761
        %v7512 = vpack.c.b16 %v5772, %v5762
        %v7513 = vpack.c.b16 %v5773, %v5763
        %v7514 = vpack.c.b16 %v5774, %v5764
        %v7515 = vpack.c.b16 %v5775, %v5765
        %v7516 = vpack.c.b16 %v5776, %v5766
        %v7517 = vpack.c.b16 %v5777, %v5767
        %v7518 = vpack.c.b16 %v5778, %v5768
        %v7519 = vpack.c.b16 %v5789, %v5779
        %v7520 = vpack.c.b16 %v5790, %v5780
        %v7521 = vpack.c.b16 %v5791, %v5781
        %v7522 = vpack.c.b16 %v5792, %v5782
        %v7523 = vpack.c.b16 %v5793, %v5783
        %v7524 = vpack.c.b16 %v5794, %v5784
        %v7525 = vpack.c.b16 %v5795, %v5785
        %v7526 = vpack.c.b16 %v5796, %v5786
        %v7527 = vpack.c.b16 %v5797, %v5787
        %v7528 = vpack.c.b16 %v5798, %v5788
        %v7529 = vpack.c.b16 %v5809, %v5799
        %v7530 = vpack.c.b16 %v5810, %v5800
        %v7531 = vpack.c.b16 %v5811, %v5801
        %v7532 = vpack.c.b16 %v5812, %v5802
        %v7533 = vpack.c.b16 %v5813, %v5803
        %v7534 = vpack.c.b16 %v5814, %v5804
        %v7535 = vpack.c.b16 %v5815, %v5805
        %v7536 = vpack.c.b16 %v5816, %v5806
        %v7537 = vpack.c.b16 %v5817, %v5807
        %v7538 = vpack.c.b16 %v5818, %v5808
        %v7539 = vpack.c.b16 %v5829, %v5819
        %v7540 = vpack.c.b16 %v5830, %v5820
        %v7541 = vpack.c.b16 %v5831, %v5821
        %v7542 = vpack.c.b16 %v5832, %v5822
        %v7543 = vpack.c.b16 %v5833, %v5823
        %v7544 = vpack.c.b16 %v5834, %v5824
        %v7545 = vpack.c.b16 %v5835, %v5825
        %v7546 = vpack.c.b16 %v5836, %v5826
        %v7547 = vpack.c.b16 %v5837, %v5827
        %v7548 = vpack.c.b16 %v5838, %v5828
        %v7549 = vpack.c.b16 %v5849, %v5839
        %v7550 = vpack.c.b16 %v5850, %v5840
        %v7551 = vpack.c.b16 %v5851, %v5841
        %v7552 = vpack.c.b16 %v5852, %v5842
        %v7553 = vpack.c.b16 %v5853, %v5843
        %v7554 = vpack.c.b16 %v5854, %v5844
        %v7555 = vpack.c.b16 %v5855, %v5845
        %v7556 = vpack.c.b16 %v5856, %v5846
        %v7557 = vpack.c.b16 %v5857, %v5847
        %v7558 = vpack.c.b16 %v5858, %v5848
        %v7559 = vpack.c.b16 %v5869, %v5859
        %v7560 = vpack.c.b16 %v5870, %v5860
        %v7561 = vpack.c.b16 %v5871, %v5861
        %v7562 = vpack.c.b16 %v5872, %v5862
        %v7563 = vpack.c.b16 %v5873, %v5863
        %v7564 = vpack.c.b16 %v5874, %v5864
        %v7565 = vpack.c.b16 %v5875, %v5865
        %v7566 = vpack.c.b16 %v5876, %v5866
        %v7567 = vpack.c.b16 %v5877, %v5867
        %v7568 = vpack.c.b16 %v5878, %v5868
        %v7569 = vpack.c.b16 %v5889, %v5879
        %v7570 = vpack.c.b16 %v5890, %v5880
        %v7571 = vpack.c.b16 %v5891, %v5881
        %v7572 = vpack.c.b16 %v5892, %v5882
        %v7573 = vpack.c.b16 %v5893, %v5883
        %v7574 = vpack.c.b16 %v5894, %v5884
        %v7575 = vpack.c.b16 %v5895, %v5885
        %v7576 = vpack.c.b16 %v5896, %v5886
        %v7577 = vpack.c.b16 %v5897, %v5887
        %v7578 = vpack.c.b16 %v5898, %v5888
        %v7579 = vpack.c.b16 %v5909, %v5899
        %v7580 = vpack.c.b16 %v5910, %v5900
        %v7581 = vpack.c.b16 %v5911, %v5901
        %v7582 = vpack.c.b16 %v5912, %v5902
        %v7583 = vpack.c.b16 %v5913, %v5903
        %v7584 = vpack.c.b16 %v5914, %v5904
        %v7585 = vpack.c.b16 %v5915, %v5905
        %v7586 = vpack.c.b16 %v5916, %v5906
        %v7587 = vpack.c.b16 %v5917, %v5907
        %v7588 = vpack.c.b16 %v5918, %v5908
        %v7589 = vpack.c.b16 %v5929, %v5919
        %v7590 = vpack.c.b16 %v5930, %v5920
        %v7591 = vpack.c.b16 %v5931, %v5921
        %v7592 = vpack.c.b16 %v5932, %v5922
        %v7593 = vpack.c.b16 %v5933, %v5923
        %v7594 = vpack.c.b16 %v5934, %v5924
        %v7595 = vpack.c.b16 %v5935, %v5925
        %v7596 = vpack.c.b16 %v5936, %v5926
        %v7597 = vpack.c.b16 %v5937, %v5927
        %v7598 = vpack.c.b16 %v5938, %v5928
        %v7599 = vpack.c.b16 %v5949, %v5939
        %v7600 = vpack.c.b16 %v5950, %v5940
        %v7601 = vpack.c.b16 %v5951, %v5941
        %v7602 = vpack.c.b16 %v5952, %v5942
        %v7603 = vpack.c.b16 %v5953, %v5943
        %v7604 = vpack.c.b16 %v5954, %v5944
        %v7605 = vpack.c.b16 %v5955, %v5945
        %v7606 = vpack.c.b16 %v5956, %v5946
        %v7607 = vpack.c.b16 %v5957, %v5947
        %v7608 = vpack.c.b16 %v5958, %v5948
        %v7609 = vpack.c.b16 %v5969, %v5959
        %v7610 = vpack.c.b16 %v5970, %v5960
        %v7611 = vpack.c.b16 %v5971, %v5961
        %v7612 = vpack.c.b16 %v5972, %v5962
        %v7613 = vpack.c.b16 %v5973, %v5963
        %v7614 = vpack.c.b16 %v5974, %v5964
        %v7615 = vpack.c.b16 %v5975, %v5965
        %v7616 = vpack.c.b16 %v5976, %v5966
        %v7617 = vpack.c.b16 %v5977, %v5967
        %v7618 = vpack.c.b16 %v5978, %v5968
        %v7619 = vpack.c.b16 %v5989, %v5979
        %v7620 = vpack.c.b16 %v5990, %v5980
        %v7621 = vpack.c.b16 %v5991, %v5981
        %v7622 = vpack.c.b16 %v5992, %v5982
        %v7623 = vpack.c.b16 %v5993, %v5983
        %v7624 = vpack.c.b16 %v5994, %v5984
        %v7625 = vpack.c.b16 %v5995, %v5985
        %v7626 = vpack.c.b16 %v5996, %v5986
        %v7627 = vpack.c.b16 %v5997, %v5987
        %v7628 = vpack.c.b16 %v5998, %v5988
        %v7629 = vpack.c.b16 %v6009, %v5999
        %v7630 = vpack.c.b16 %v6010, %v6000
        %v7631 = vpack.c.b16 %v6011, %v6001
        %v7632 = vpack.c.b16 %v6012, %v6002
        %v7633 = vpack.c.b16 %v6013, %v6003
        %v7634 = vpack.c.b16 %v6014, %v6004
        %v7635 = vpack.c.b16 %v6015, %v6005
        %v7636 = vpack.c.b16 %v6016, %v6006
        %v7637 = vpack.c.b16 %v6017, %v6007
        %v7638 = vpack.c.b16 %v6018, %v6008
        %v7639 = vpack.c.b16 %v6029, %v6019
        %v7640 = vpack.c.b16 %v6030, %v6020
        %v7641 = vpack.c.b16 %v6031, %v6021
        %v7642 = vpack.c.b16 %v6032, %v6022
        %v7643 = vpack.c.b16 %v6033, %v6023
        %v7644 = vpack.c.b16 %v6034, %v6024
        %v7645 = vpack.c.b16 %v6035, %v6025
        %v7646 = vpack.c.b16 %v6036, %v6026
        %v7647 = vpack.c.b16 %v6037, %v6027
        %v7648 = vpack.c.b16 %v6038, %v6028
        %v7649 = vpack.c.b16 %v6049, %v6039
        %v7650 = vpack.c.b16 %v6050, %v6040
        %v7651 = vpack.c.b16 %v6051, %v6041
        %v7652 = vpack.c.b16 %v6052, %v6042
        %v7653 = vpack.c.b16 %v6053, %v6043
        %v7654 = vpack.c.b16 %v6054, %v6044
        %v7655 = vpack.c.b16 %v6055, %v6045
        %v7656 = vpack.c.b16 %v6056, %v6046
        %v7657 = vpack.c.b16 %v6057, %v6047
        %v7658 = vpack.c.b16 %v6058, %v6048
        %v7659 = vpack.c.b16 %v6069, %v6059
        %v7660 = vpack.c.b16 %v6070, %v6060
        %v7661 = vpack.c.b16 %v6071, %v6061
        %v7662 = vpack.c.b16 %v6072, %v6062
        %v7663 = vpack.c.b16 %v6073, %v6063
        %v7664 = vpack.c.b16 %v6074, %v6064
        %v7665 = vpack.c.b16 %v6075, %v6065
        %v7666 = vpack.c.b16 %v6076, %v6066
        %v7667 = vpack.c.b16 %v6077, %v6067
        %v7668 = vpack.c.b16 %v6078, %v6068
        %v7669 = vpack.c.b16 %v6089, %v6079
        %v7670 = vpack.c.b16 %v6090, %v6080
        %v7671 = vpack.c.b16 %v6091, %v6081
        %v7672 = vpack.c.b16 %v6092, %v6082
        %v7673 = vpack.c.b16 %v6093, %v6083
        %v7674 = vpack.c.b16 %v6094, %v6084
        %v7675 = vpack.c.b16 %v6095, %v6085
        %v7676 = vpack.c.b16 %v6096, %v6086
        %v7677 = vpack.c.b16 %v6097, %v6087
        %v7678 = vpack.c.b16 %v6098, %v6088
        %v7679 = vpack.c.b16 %v6109, %v6099
        %v7680 = vpack.c.b16 %v6110, %v6100
        %v7681 = vpack.c.b16 %v6111, %v6101
        %v7682 = vpack.c.b16 %v6112, %v6102
        %v7683 = vpack.c.b16 %v6113, %v6103
        %v7684 = vpack.c.b16 %v6114, %v6104
        %v7685 = vpack.c.b16 %v6115, %v6105
        %v7686 = vpack.c.b16 %v6116, %v6106
        %v7687 = vpack.c.b16 %v6117, %v6107
        %v7688 = vpack.c.b16 %v6118, %v6108
        %v7689 = vpack.c.b16 %v6129, %v6119
        %v7690 = vpack.c.b16 %v6130, %v6120
        %v7691 = vpack.c.b16 %v6131, %v6121
        %v7692 = vpack.c.b16 %v6132, %v6122
        %v7693 = vpack.c.b16 %v6133, %v6123
        %v7694 = vpack.c.b16 %v6134, %v6124
        %v7695 = vpack.c.b16 %v6135, %v6125
        %v7696 = vpack.c.b16 %v6136, %v6126
        %v7697 = vpack.c.b16 %v6137, %v6127
        %v7698 = vpack.c.b16 %v6138, %v6128
        %v7699 = vpack.c.b16 %v6149, %v6139
        %v7700 = vpack.c.b16 %v6150, %v6140
        %v7701 = vpack.c.b16 %v6151, %v6141
        %v7702 = vpack.c.b16 %v6152, %v6142
        %v7703 = vpack.c.b16 %v6153, %v6143
        %v7704 = vpack.c.b16 %v6154, %v6144
        %v7705 = vpack.c.b16 %v6155, %v6145
        %v7706 = vpack.c.b16 %v6156, %v6146
        %v7707 = vpack.c.b16 %v6157, %v6147
        %v7708 = vpack.c.b16 %v6158, %v6148
        %v7709 = vpack.c.b16 %v6169, %v6159
        %v7710 = vpack.c.b16 %v6170, %v6160
        %v7711 = vpack.c.b16 %v6171, %v6161
        %v7712 = vpack.c.b16 %v6172, %v6162
        %v7713 = vpack.c.b16 %v6173, %v6163
        %v7714 = vpack.c.b16 %v6174, %v6164
        %v7715 = vpack.c.b16 %v6175, %v6165
        %v7716 = vpack.c.b16 %v6176, %v6166
        %v7717 = vpack.c.b16 %v6177, %v6167
        %v7718 = vpack.c.b16 %v6178, %v6168
        %v7719 = vpack.c.b16 %v6189, %v6179
        %v7720 = vpack.c.b16 %v6190, %v6180
        %v7721 = vpack.c.b16 %v6191, %v6181
        %v7722 = vpack.c.b16 %v6192, %v6182
        %v7723 = vpack.c.b16 %v6193, %v6183
        %v7724 = vpack.c.b16 %v6194, %v6184
        %v7725 = vpack.c.b16 %v6195, %v6185
        %v7726 = vpack.c.b16 %v6196, %v6186
        %v7727 = vpack.c.b16 %v6197, %v6187
        %v7728 = vpack.c.b16 %v6198, %v6188
        %v7729 = vpack.c.b16 %v6209, %v6199
        %v7730 = vpack.c.b16 %v6210, %v6200
        %v7731 = vpack.c.b16 %v6211, %v6201
        %v7732 = vpack.c.b16 %v6212, %v6202
        %v7733 = vpack.c.b16 %v6213, %v6203
        %v7734 = vpack.c.b16 %v6214, %v6204
        %v7735 = vpack.c.b16 %v6215, %v6205
        %v7736 = vpack.c.b16 %v6216, %v6206
        %v7737 = vpack.c.b16 %v6217, %v6207
        %v7738 = vpack.c.b16 %v6218, %v6208
        %v7739 = vpack.c.b16 %v6229, %v6219
        %v7740 = vpack.c.b16 %v6230, %v6220
        %v7741 = vpack.c.b16 %v6231, %v6221
        %v7742 = vpack.c.b16 %v6232, %v6222
        %v7743 = vpack.c.b16 %v6233, %v6223
        %v7744 = vpack.c.b16 %v6234, %v6224
        %v7745 = vpack.c.b16 %v6235, %v6225
        %v7746 = vpack.c.b16 %v6236, %v6226
        %v7747 = vpack.c.b16 %v6237, %v6227
        %v7748 = vpack.c.b16 %v6238, %v6228
        %v7749 = vpack.c.b16 %v6249, %v6239
        %v7750 = vpack.c.b16 %v6250, %v6240
        %v7751 = vpack.c.b16 %v6251, %v6241
        %v7752 = vpack.c.b16 %v6252, %v6242
        %v7753 = vpack.c.b16 %v6253, %v6243
        %v7754 = vpack.c.b16 %v6254, %v6244
        %v7755 = vpack.c.b16 %v6255, %v6245
        %v7756 = vpack.c.b16 %v6256, %v6246
        %v7757 = vpack.c.b16 %v6257, %v6247
        %v7758 = vpack.c.b16 %v6258, %v6248
        %v7759 = vpack.c.b16 %v6269, %v6259
        %v7760 = vpack.c.b16 %v6270, %v6260
        %v7761 = vpack.c.b16 %v6271, %v6261
        %v7762 = vpack.c.b16 %v6272, %v6262
        %v7763 = vpack.c.b16 %v6273, %v6263
        %v7764 = vpack.c.b16 %v6274, %v6264
        %v7765 = vpack.c.b16 %v6275, %v6265
        %v7766 = vpack.c.b16 %v6276, %v6266
        %v7767 = vpack.c.b16 %v6277, %v6267
        %v7768 = vpack.c.b16 %v6278, %v6268
        %v7769 = vpack.c.b16 %v6289, %v6279
        %v7770 = vpack.c.b16 %v6290, %v6280
        %v7771 = vpack.c.b16 %v6291, %v6281
        %v7772 = vpack.c.b16 %v6292, %v6282
        %v7773 = vpack.c.b16 %v6293, %v6283
        %v7774 = vpack.c.b16 %v6294, %v6284
        %v7775 = vpack.c.b16 %v6295, %v6285
        %v7776 = vpack.c.b16 %v6296, %v6286
        %v7777 = vpack.c.b16 %v6297, %v6287
        %v7778 = vpack.c.b16 %v6298, %v6288
        %v7779 = vpack.c.b16 %v6309, %v6299
        %v7780 = vpack.c.b16 %v6310, %v6300
        %v7781 = vpack.c.b16 %v6311, %v6301
        %v7782 = vpack.c.b16 %v6312, %v6302
        %v7783 = vpack.c.b16 %v6313, %v6303
        %v7784 = vpack.c.b16 %v6314, %v6304
        %v7785 = vpack.c.b16 %v6315, %v6305
        %v7786 = vpack.c.b16 %v6316, %v6306
        %v7787 = vpack.c.b16 %v6317, %v6307
        %v7788 = vpack.c.b16 %v6318, %v6308
        %v7789 = vpack.c.b16 %v6329, %v6319
        %v7790 = vpack.c.b16 %v6330, %v6320
        %v7791 = vpack.c.b16 %v6331, %v6321
        %v7792 = vpack.c.b16 %v6332, %v6322
        %v7793 = vpack.c.b16 %v6333, %v6323
        %v7794 = vpack.c.b16 %v6334, %v6324
        %v7795 = vpack.c.b16 %v6335, %v6325
        %v7796 = vpack.c.b16 %v6336, %v6326
        %v7797 = vpack.c.b16 %v6337, %v6327
        %v7798 = vpack.c.b16 %v6338, %v6328
        %v7799 = vpack.c.b16 %v6349, %v6339
        %v7800 = vpack.c.b16 %v6350, %v6340
        %v7801 = vpack.c.b16 %v6351, %v6341
        %v7802 = vpack.c.b16 %v6352, %v6342
        %v7803 = vpack.c.b16 %v6353, %v6343
        %v7804 = vpack.c.b16 %v6354, %v6344
        %v7805 = vpack.c.b16 %v6355, %v6345
        %v7806 = vpack.c.b16 %v6356, %v6346
        %v7807 = vpack.c.b16 %v6357, %v6347
        %v7808 = vpack.c.b16 %v6358, %v6348
        %v7809 = vpack.c.b16 %v6369, %v6359
        %v7810 = vpack.c.b16 %v6370, %v6360
        %v7811 = vpack.c.b16 %v6371, %v6361
        %v7812 = vpack.c.b16 %v6372, %v6362
        %v7813 = vpack.c.b16 %v6373, %v6363
        %v7814 = vpack.c.b16 %v6374, %v6364
        %v7815 = vpack.c.b16 %v6375, %v6365
        %v7816 = vpack.c.b16 %v6376, %v6366
        %v7817 = vpack.c.b16 %v6377, %v6367
        %v7818 = vpack.c.b16 %v6378, %v6368
        %v7819 = vpack.c.b16 %v6389, %v6379
        %v7820 = vpack.c.b16 %v6390, %v6380
        %v7821 = vpack.c.b16 %v6391, %v6381
        %v7822 = vpack.c.b16 %v6392, %v6382
        %v7823 = vpack.c.b16 %v6393, %v6383
        %v7824 = vpack.c.b16 %v6394, %v6384
        %v7825 = vpack.c.b16 %v6395, %v6385
        %v7826 = vpack.c.b16 %v6396, %v6386
        %v7827 = vpack.c.b16 %v6397, %v6387
        %v7828 = vpack.c.b16 %v6398, %v6388
        %v7829 = vpack.c.b16 %v6409, %v6399
        %v7830 = vpack.c.b16 %v6410, %v6400
        %v7831 = vpack.c.b16 %v6411, %v6401
        %v7832 = vpack.c.b16 %v6412, %v6402
        %v7833 = vpack.c.b16 %v6413, %v6403
        %v7834 = vpack.c.b16 %v6414, %v6404
        %v7835 = vpack.c.b16 %v6415, %v6405
        %v7836 = vpack.c.b16 %v6416, %v6406
        %v7837 = vpack.c.b16 %v6417, %v6407
        %v7838 = vpack.c.b16 %v6418, %v6408
        %v7839 = vpack.c.b16 %v6429, %v6419
        %v7840 = vpack.c.b16 %v6430, %v6420
        %v7841 = vpack.c.b16 %v6431, %v6421
        %v7842 = vpack.c.b16 %v6432, %v6422
        %v7843 = vpack.c.b16 %v6433, %v6423
        %v7844 = vpack.c.b16 %v6434, %v6424
        %v7845 = vpack.c.b16 %v6435, %v6425
        %v7846 = vpack.c.b16 %v6436, %v6426
        %v7847 = vpack.c.b16 %v6437, %v6427
        %v7848 = vpack.c.b16 %v6438, %v6428
        %v7849 = vpack.c.b16 %v6449, %v6439
        %v7850 = vpack.c.b16 %v6450, %v6440
        %v7851 = vpack.c.b16 %v6451, %v6441
        %v7852 = vpack.c.b16 %v6452, %v6442
        %v7853 = vpack.c.b16 %v6453, %v6443
        %v7854 = vpack.c.b16 %v6454, %v6444
        %v7855 = vpack.c.b16 %v6455, %v6445
        %v7856 = vpack.c.b16 %v6456, %v6446
        %v7857 = vpack.c.b16 %v6457, %v6447
        %v7858 = vpack.c.b16 %v6458, %v6448
        %v7859 = vpack.c.b16 %v6469, %v6459
        %v7860 = vpack.c.b16 %v6470, %v6460
        %v7861 = vpack.c.b16 %v6471, %v6461
        %v7862 = vpack.c.b16 %v6472, %v6462
        %v7863 = vpack.c.b16 %v6473, %v6463
        %v7864 = vpack.c.b16 %v6474, %v6464
        %v7865 = vpack.c.b16 %v6475, %v6465
        %v7866 = vpack.c.b16 %v6476, %v6466
        %v7867 = vpack.c.b16 %v6477, %v6467
        %v7868 = vpack.c.b16 %v6478, %v6468
        %v7869 = vpack.c.b16 %v6489, %v6479
        %v7870 = vpack.c.b16 %v6490, %v6480
        %v7871 = vpack.c.b16 %v6491, %v6481
        %v7872 = vpack.c.b16 %v6492, %v6482
        %v7873 = vpack.c.b16 %v6493, %v6483
        %v7874 = vpack.c.b16 %v6494, %v6484
        %v7875 = vpack.c.b16 %v6495, %v6485
        %v7876 = vpack.c.b16 %v6496, %v6486
        %v7877 = vpack.c.b16 %v6497, %v6487
        %v7878 = vpack.c.b16 %v6498, %v6488
        %v7879 = vpack.c.b16 %v6509, %v6499
        %v7880 = vpack.c.b16 %v6510, %v6500
        %v7881 = vpack.c.b16 %v6511, %v6501
        %v7882 = vpack.c.b16 %v6512, %v6502
        %v7883 = vpack.c.b16 %v6513, %v6503
        %v7884 = vpack.c.b16 %v6514, %v6504
        %v7885 = vpack.c.b16 %v6515, %v6505
        %v7886 = vpack.c.b16 %v6516, %v6506
        %v7887 = vpack.c.b16 %v6517, %v6507
        %v7888 = vpack.c.b16 %v6518, %v6508
        %v7889 = vpack.c.b16 %v6529, %v6519
        %v7890 = vpack.c.b16 %v6530, %v6520
        %v7891 = vpack.c.b16 %v6531, %v6521
        %v7892 = vpack.c.b16 %v6532, %v6522
        %v7893 = vpack.c.b16 %v6533, %v6523
        %v7894 = vpack.c.b16 %v6534, %v6524
        %v7895 = vpack.c.b16 %v6535, %v6525
        %v7896 = vpack.c.b16 %v6536, %v6526
        %v7897 = vpack.c.b16 %v6537, %v6527
        %v7898 = vpack.c.b16 %v6538, %v6528
        %v7899 = vpack.c.b16 %v6549, %v6539
        %v7900 = vpack.c.b16 %v6550, %v6540
        %v7901 = vpack.c.b16 %v6551, %v6541
        %v7902 = vpack.c.b16 %v6552, %v6542
        %v7903 = vpack.c.b16 %v6553, %v6543
        %v7904 = vpack.c.b16 %v6554, %v6544
        %v7905 = vpack.c.b16 %v6555, %v6545
        %v7906 = vpack.c.b16 %v6556, %v6546
        %v7907 = vpack.c.b16 %v6557, %v6547
        %v7908 = vpack.c.b16 %v6558, %v6548
        %v7909 = vpack.c.b16 %v6569, %v6559
        %v7910 = vpack.c.b16 %v6570, %v6560
        %v7911 = vpack.c.b16 %v6571, %v6561
        %v7912 = vpack.c.b16 %v6572, %v6562
        %v7913 = vpack.c.b16 %v6573, %v6563
        %v7914 = vpack.c.b16 %v6574, %v6564
        %v7915 = vpack.c.b16 %v6575, %v6565
        %v7916 = vpack.c.b16 %v6576, %v6566
        %v7917 = vpack.c.b16 %v6577, %v6567
        %v7918 = vpack.c.b16 %v6578, %v6568
        %v7919 = vpack.c.b16 %v6589, %v6579
        %v7920 = vpack.c.b16 %v6590, %v6580
        %v7921 = vpack.c.b16 %v6591, %v6581
        %v7922 = vpack.c.b16 %v6592, %v6582
        %v7923 = vpack.c.b16 %v6593, %v6583
        %v7924 = vpack.c.b16 %v6594, %v6584
        %v7925 = vpack.c.b16 %v6595, %v6585
        %v7926 = vpack.c.b16 %v6596, %v6586
        %v7927 = vpack.c.b16 %v6597, %v6587
        %v7928 = vpack.c.b16 %v6598, %v6588
        %v7929 = vpack.c.b16 %v6609, %v6599
        %v7930 = vpack.c.b16 %v6610, %v6600
        %v7931 = vpack.c.b16 %v6611, %v6601
        %v7932 = vpack.c.b16 %v6612, %v6602
        %v7933 = vpack.c.b16 %v6613, %v6603
        %v7934 = vpack.c.b16 %v6614, %v6604
        %v7935 = vpack.c.b16 %v6615, %v6605
        %v7936 = vpack.c.b16 %v6616, %v6606
        %v7937 = vpack.c.b16 %v6617, %v6607
        %v7938 = vpack.c.b16 %v6618, %v6608
        %v7939 = vpack.c.b16 %v6629, %v6619
        %v7940 = vpack.c.b16 %v6630, %v6620
        %v7941 = vpack.c.b16 %v6631, %v6621
        %v7942 = vpack.c.b16 %v6632, %v6622
        %v7943 = vpack.c.b16 %v6633, %v6623
        %v7944 = vpack.c.b16 %v6634, %v6624
        %v7945 = vpack.c.b16 %v6635, %v6625
        %v7946 = vpack.c.b16 %v6636, %v6626
        %v7947 = vpack.c.b16 %v6637, %v6627
        %v7948 = vpack.c.b16 %v6638, %v6628
        %v7949 = vpack.c.b16 %v6649, %v6639
        %v7950 = vpack.c.b16 %v6650, %v6640
        %v7951 = vpack.c.b16 %v6651, %v6641
        %v7952 = vpack.c.b16 %v6652, %v6642
        %v7953 = vpack.c.b16 %v6653, %v6643
        %v7954 = vpack.c.b16 %v6654, %v6644
        %v7955 = vpack.c.b16 %v6655, %v6645
        %v7956 = vpack.c.b16 %v6656, %v6646
        %v7957 = vpack.c.b16 %v6657, %v6647
        %v7958 = vpack.c.b16 %v6658, %v6648
        %v7959 = vpack.c.b16 %v6669, %v6659
        %v7960 = vpack.c.b16 %v6670, %v6660
        %v7961 = vpack.c.b16 %v6671, %v6661
        %v7962 = vpack.c.b16 %v6672, %v6662
        %v7963 = vpack.c.b16 %v6673, %v6663
        %v7964 = vpack.c.b16 %v6674, %v6664
        %v7965 = vpack.c.b16 %v6675, %v6665
        %v7966 = vpack.c.b16 %v6676, %v6666
        %v7967 = vpack.c.b16 %v6677, %v6667
        %v7968 = vpack.c.b16 %v6678, %v6668
        %v7969 = vpack.c.b16 %v6689, %v6679
        %v7970 = vpack.c.b16 %v6690, %v6680
        %v7971 = vpack.c.b16 %v6691, %v6681
        %v7972 = vpack.c.b16 %v6692, %v6682
        %v7973 = vpack.c.b16 %v6693, %v6683
        %v7974 = vpack.c.b16 %v6694, %v6684
        %v7975 = vpack.c.b16 %v6695, %v6685
        %v7976 = vpack.c.b16 %v6696, %v6686
        %v7977 = vpack.c.b16 %v6697, %v6687
        %v7978 = vpack.c.b16 %v6698, %v6688
        %9259 = vmatprep.subr.bf16.mxu0 %v6700
        %9260 = vmatpush1.bf16.msra.mxu0 %v6699
        %9261 = vmatprep.subr.bf16.mxu0 %v6710
        %9262 = vmatpush1.bf16.msra.mxu0 %v6709
        %9263 = vmatprep.subr.bf16.mxu0 %v6720
        %9264 = vmatpush1.bf16.msra.mxu0 %v6719
        %9265 = vmatprep.subr.bf16.mxu0 %v6730
        %9266 = vmatpush1.bf16.msra.mxu0 %v6729
        %9267 = vmatprep.subr.bf16.mxu0 %v6740
        %9268 = vmatpush1.bf16.msra.mxu0 %v6739
        %9269 = vmatprep.subr.bf16.mxu0 %v6750
        %9270 = vmatpush1.bf16.msra.mxu0 %v6749
        %9271 = vmatprep.subr.bf16.mxu0 %v6760
        %9272 = vmatpush1.bf16.msra.mxu0 %v6759
        %9273 = vmatprep.subr.bf16.mxu0 %v6770
        %9274 = vmatpush1.bf16.msra.mxu0 %v6769
        %9275 = vmatprep.subr.bf16.mxu0 %v6780
        %9276 = vmatpush1.bf16.msra.mxu0 %v6779
        %9277 = vmatprep.subr.bf16.mxu0 %v6790
        %9278 = vmatpush1.bf16.msra.mxu0 %v6789
        %9279 = vmatprep.subr.bf16.mxu0 %v6800
        %9280 = vmatpush1.bf16.msra.mxu0 %v6799
        %9281 = vmatprep.subr.bf16.mxu0 %v6810
        %9282 = vmatpush1.bf16.msra.mxu0 %v6809
        %9283 = vmatprep.subr.bf16.mxu0 %v6820
        %9284 = vmatpush1.bf16.msra.mxu0 %v6819
        %9285 = vmatprep.subr.bf16.mxu0 %v6830
        %9286 = vmatpush1.bf16.msra.mxu0 %v6829
        %9287 = vmatprep.subr.bf16.mxu0 %v6840
        %9288 = vmatpush1.bf16.msra.mxu0 %v6839
        %9289 = vmatprep.subr.bf16.mxu0 %v6850
        %9290 = vmatpush1.bf16.msra.mxu0 %v6849
        %9291 = vmatprep.mubr.bf16.mxu0 %v2828
        %9292 = vmatmul.mubr.bf16.gmra.mrb[0].mxu0 %v2827
        %v9293 = vpop.f32.mrb[0].mxu0
        %v9294 = vadd.f32 %v2599, %v9293
        %v9295 = vpop.f32.mrb[0].mxu0
        %v9296 = vadd.f32 %v2601, %v9295
        %v9297 = vpop.f32.mrb[0].mxu0
        %v9298 = vadd.f32 %v2603, %v9297
        %v9299 = vpop.f32.mrb[0].mxu0
        %v9300 = vadd.f32 %v2605, %v9299
        %9301 = vdwg.mxu0
        %9302 = vmatprep.subr.bf16.mxu0 %v6860
        %9303 = vmatpush1.bf16.msra.mxu0 %v6859
        %9304 = vmatprep.subr.bf16.mxu0 %v6870
        %9305 = vmatpush1.bf16.msra.mxu0 %v6869
        %9306 = vmatprep.subr.bf16.mxu0 %v6880
        %9307 = vmatpush1.bf16.msra.mxu0 %v6879
        %9308 = vmatprep.subr.bf16.mxu0 %v6890
        %9309 = vmatpush1.bf16.msra.mxu0 %v6889
        %9310 = vmatprep.subr.bf16.mxu0 %v6900
        %9311 = vmatpush1.bf16.msra.mxu0 %v6899
        %9312 = vmatprep.subr.bf16.mxu0 %v6910
        %9313 = vmatpush1.bf16.msra.mxu0 %v6909
        %9314 = vmatprep.subr.bf16.mxu0 %v6920
        %9315 = vmatpush1.bf16.msra.mxu0 %v6919
        %9316 = vmatprep.subr.bf16.mxu0 %v6930
        %9317 = vmatpush1.bf16.msra.mxu0 %v6929
        %9318 = vmatprep.subr.bf16.mxu0 %v6940
        %9319 = vmatpush1.bf16.msra.mxu0 %v6939
        %9320 = vmatprep.subr.bf16.mxu0 %v6950
        %9321 = vmatpush1.bf16.msra.mxu0 %v6949
        %9322 = vmatprep.subr.bf16.mxu0 %v6960
        %9323 = vmatpush1.bf16.msra.mxu0 %v6959
        %9324 = vmatprep.subr.bf16.mxu0 %v6970
        %9325 = vmatpush1.bf16.msra.mxu0 %v6969
        %9326 = vmatprep.subr.bf16.mxu0 %v6980
        %9327 = vmatpush1.bf16.msra.mxu0 %v6979
        %9328 = vmatprep.subr.bf16.mxu0 %v6990
        %9329 = vmatpush1.bf16.msra.mxu0 %v6989
        %9330 = vmatprep.subr.bf16.mxu0 %v7000
        %9331 = vmatpush1.bf16.msra.mxu0 %v6999
        %9332 = vmatprep.subr.bf16.mxu0 %v7010
        %9333 = vmatpush1.bf16.msra.mxu0 %v7009
        %9334 = vmatprep.mubr.bf16.mxu0 %v2830
        %9335 = vmatmul.mubr.bf16.gmra.mrb[0].mxu0 %v2829
        %v9336 = vpop.f32.mrb[0].mxu0
        %v9337 = vadd.f32 %v9294, %v9336
        %v9338 = vpop.f32.mrb[0].mxu0
        %v9339 = vadd.f32 %v9296, %v9338
        %v9340 = vpop.f32.mrb[0].mxu0
        %v9341 = vadd.f32 %v9298, %v9340
        %v9342 = vpop.f32.mrb[0].mxu0
        %v9343 = vadd.f32 %v9300, %v9342
        %9344 = vdwg.mxu0
        %9345 = vmatprep.subr.bf16.mxu0 %v7020
        %9346 = vmatpush1.bf16.msra.mxu0 %v7019
        %9347 = vmatprep.subr.bf16.mxu0 %v7030
        %9348 = vmatpush1.bf16.msra.mxu0 %v7029
        %9349 = vmatprep.subr.bf16.mxu0 %v7040
        %9350 = vmatpush1.bf16.msra.mxu0 %v7039
        %9351 = vmatprep.subr.bf16.mxu0 %v7050
        %9352 = vmatpush1.bf16.msra.mxu0 %v7049
        %9353 = vmatprep.subr.bf16.mxu0 %v7060
        %9354 = vmatpush1.bf16.msra.mxu0 %v7059
        %9355 = vmatprep.subr.bf16.mxu0 %v7070
        %9356 = vmatpush1.bf16.msra.mxu0 %v7069
        %9357 = vmatprep.subr.bf16.mxu0 %v7080
        %9358 = vmatpush1.bf16.msra.mxu0 %v7079
        %9359 = vmatprep.subr.bf16.mxu0 %v7090
        %9360 = vmatpush1.bf16.msra.mxu0 %v7089
        %9361 = vmatprep.subr.bf16.mxu0 %v7100
        %9362 = vmatpush1.bf16.msra.mxu0 %v7099
        %9363 = vmatprep.subr.bf16.mxu0 %v7110
        %9364 = vmatpush1.bf16.msra.mxu0 %v7109
        %9365 = vmatprep.subr.bf16.mxu0 %v7120
        %9366 = vmatpush1.bf16.msra.mxu0 %v7119
        %9367 = vmatprep.subr.bf16.mxu0 %v7130
        %9368 = vmatpush1.bf16.msra.mxu0 %v7129
        %9369 = vmatprep.subr.bf16.mxu0 %v7140
        %9370 = vmatpush1.bf16.msra.mxu0 %v7139
        %9371 = vmatprep.subr.bf16.mxu0 %v7150
        %9372 = vmatpush1.bf16.msra.mxu0 %v7149
        %9373 = vmatprep.subr.bf16.mxu0 %v7160
        %9374 = vmatpush1.bf16.msra.mxu0 %v7159
        %9375 = vmatprep.subr.bf16.mxu0 %v7170
        %9376 = vmatpush1.bf16.msra.mxu0 %v7169
        %9377 = vmatprep.mubr.bf16.mxu0 %v2832
        %9378 = vmatmul.mubr.bf16.gmra.mrb[0].mxu0 %v2831
        %v9379 = vpop.f32.mrb[0].mxu0
        %v9380 = vadd.f32 %v9337, %v9379
        %v9381 = vpop.f32.mrb[0].mxu0
        %v9382 = vadd.f32 %v9339, %v9381
        %v9383 = vpop.f32.mrb[0].mxu0
        %v9384 = vadd.f32 %v9341, %v9383
        %v9385 = vpop.f32.mrb[0].mxu0
        %v9386 = vadd.f32 %v9343, %v9385
        %9387 = vdwg.mxu0
        %9388 = vmatprep.subr.bf16.mxu0 %v7180
        %9389 = vmatpush1.bf16.msra.mxu0 %v7179
        %9390 = vmatprep.subr.bf16.mxu0 %v7190
        %9391 = vmatpush1.bf16.msra.mxu0 %v7189
        %9392 = vmatprep.subr.bf16.mxu0 %v7200
        %9393 = vmatpush1.bf16.msra.mxu0 %v7199
        %9394 = vmatprep.subr.bf16.mxu0 %v7210
        %9395 = vmatpush1.bf16.msra.mxu0 %v7209
        %9396 = vmatprep.subr.bf16.mxu0 %v7220
        %9397 = vmatpush1.bf16.msra.mxu0 %v7219
        %9398 = vmatprep.subr.bf16.mxu0 %v7230
        %9399 = vmatpush1.bf16.msra.mxu0 %v7229
        %9400 = vmatprep.subr.bf16.mxu0 %v7240
        %9401 = vmatpush1.bf16.msra.mxu0 %v7239
        %9402 = vmatprep.subr.bf16.mxu0 %v7250
        %9403 = vmatpush1.bf16.msra.mxu0 %v7249
        %9404 = vmatprep.subr.bf16.mxu0 %v7260
        %9405 = vmatpush1.bf16.msra.mxu0 %v7259
        %9406 = vmatprep.subr.bf16.mxu0 %v7270
        %9407 = vmatpush1.bf16.msra.mxu0 %v7269
        %9408 = vmatprep.subr.bf16.mxu0 %v7280
        %9409 = vmatpush1.bf16.msra.mxu0 %v7279
        %9410 = vmatprep.subr.bf16.mxu0 %v7290
        %9411 = vmatpush1.bf16.msra.mxu0 %v7289
        %9412 = vmatprep.subr.bf16.mxu0 %v7300
        %9413 = vmatpush1.bf16.msra.mxu0 %v7299
        %9414 = vmatprep.subr.bf16.mxu0 %v7310
        %9415 = vmatpush1.bf16.msra.mxu0 %v7309
        %9416 = vmatprep.subr.bf16.mxu0 %v7320
        %9417 = vmatpush1.bf16.msra.mxu0 %v7319
        %9418 = vmatprep.subr.bf16.mxu0 %v7330
        %9419 = vmatpush1.bf16.msra.mxu0 %v7329
        %9420 = vmatprep.mubr.bf16.mxu0 %v2834
        %9421 = vmatmul.mubr.bf16.gmra.mrb[0].mxu0 %v2833
        %v9422 = vpop.f32.mrb[0].mxu0
        %v9423 = vadd.f32 %v9380, %v9422
        %v9424 = vpop.f32.mrb[0].mxu0
        %v9425 = vadd.f32 %v9382, %v9424
        %v9426 = vpop.f32.mrb[0].mxu0
        %v9427 = vadd.f32 %v9384, %v9426
        %v9428 = vpop.f32.mrb[0].mxu0
        %v9429 = vadd.f32 %v9386, %v9428
        %9430 = vdwg.mxu0
        %9431 = vmatprep.subr.bf16.mxu0 %v7340
        %9432 = vmatpush1.bf16.msra.mxu0 %v7339
        %9433 = vmatprep.subr.bf16.mxu0 %v7350
        %9434 = vmatpush1.bf16.msra.mxu0 %v7349
        %9435 = vmatprep.subr.bf16.mxu0 %v7360
        %9436 = vmatpush1.bf16.msra.mxu0 %v7359
        %9437 = vmatprep.subr.bf16.mxu0 %v7370
        %9438 = vmatpush1.bf16.msra.mxu0 %v7369
        %9439 = vmatprep.subr.bf16.mxu0 %v7380
        %9440 = vmatpush1.bf16.msra.mxu0 %v7379
        %9441 = vmatprep.subr.bf16.mxu0 %v7390
        %9442 = vmatpush1.bf16.msra.mxu0 %v7389
        %9443 = vmatprep.subr.bf16.mxu0 %v7400
        %9444 = vmatpush1.bf16.msra.mxu0 %v7399
        %9445 = vmatprep.subr.bf16.mxu0 %v7410
        %9446 = vmatpush1.bf16.msra.mxu0 %v7409
        %9447 = vmatprep.subr.bf16.mxu0 %v7420
        %9448 = vmatpush1.bf16.msra.mxu0 %v7419
        %9449 = vmatprep.subr.bf16.mxu0 %v7430
        %9450 = vmatpush1.bf16.msra.mxu0 %v7429
        %9451 = vmatprep.subr.bf16.mxu0 %v7440
        %9452 = vmatpush1.bf16.msra.mxu0 %v7439
        %9453 = vmatprep.subr.bf16.mxu0 %v7450
        %9454 = vmatpush1.bf16.msra.mxu0 %v7449
        %9455 = vmatprep.subr.bf16.mxu0 %v7460
        %9456 = vmatpush1.bf16.msra.mxu0 %v7459
        %9457 = vmatprep.subr.bf16.mxu0 %v7470
        %9458 = vmatpush1.bf16.msra.mxu0 %v7469
        %9459 = vmatprep.subr.bf16.mxu0 %v7480
        %9460 = vmatpush1.bf16.msra.mxu0 %v7479
        %9461 = vmatprep.subr.bf16.mxu0 %v7490
        %9462 = vmatpush1.bf16.msra.mxu0 %v7489
        %9463 = vmatprep.mubr.bf16.mxu0 %v2836
        %9464 = vmatmul.mubr.bf16.gmra.mrb[0].mxu0 %v2835
        %v9465 = vpop.f32.mrb[0].mxu0
        %v9466 = vadd.f32 %v9423, %v9465
        %v9467 = vpop.f32.mrb[0].mxu0
        %v9468 = vadd.f32 %v9425, %v9467
        %v9469 = vpop.f32.mrb[0].mxu0
        %v9470 = vadd.f32 %v9427, %v9469
        %v9471 = vpop.f32.mrb[0].mxu0
        %v9472 = vadd.f32 %v9429, %v9471
        %9473 = vdwg.mxu0
        %9474 = vmatprep.subr.bf16.mxu0 %v7500
        %9475 = vmatpush1.bf16.msra.mxu0 %v7499
        %9476 = vmatprep.subr.bf16.mxu0 %v7510
        %9477 = vmatpush1.bf16.msra.mxu0 %v7509
        %9478 = vmatprep.subr.bf16.mxu0 %v7520
        %9479 = vmatpush1.bf16.msra.mxu0 %v7519
        %9480 = vmatprep.subr.bf16.mxu0 %v7530
        %9481 = vmatpush1.bf16.msra.mxu0 %v7529
        %9482 = vmatprep.subr.bf16.mxu0 %v7540
        %9483 = vmatpush1.bf16.msra.mxu0 %v7539
        %9484 = vmatprep.subr.bf16.mxu0 %v7550
        %9485 = vmatpush1.bf16.msra.mxu0 %v7549
        %9486 = vmatprep.subr.bf16.mxu0 %v7560
        %9487 = vmatpush1.bf16.msra.mxu0 %v7559
        %9488 = vmatprep.subr.bf16.mxu0 %v7570
        %9489 = vmatpush1.bf16.msra.mxu0 %v7569
        %9490 = vmatprep.subr.bf16.mxu0 %v7580
        %9491 = vmatpush1.bf16.msra.mxu0 %v7579
        %9492 = vmatprep.subr.bf16.mxu0 %v7590
        %9493 = vmatpush1.bf16.msra.mxu0 %v7589
        %9494 = vmatprep.subr.bf16.mxu0 %v7600
        %9495 = vmatpush1.bf16.msra.mxu0 %v7599
        %9496 = vmatprep.subr.bf16.mxu0 %v7610
        %9497 = vmatpush1.bf16.msra.mxu0 %v7609
        %9498 = vmatprep.subr.bf16.mxu0 %v7620
        %9499 = vmatpush1.bf16.msra.mxu0 %v7619
        %9500 = vmatprep.subr.bf16.mxu0 %v7630
        %9501 = vmatpush1.bf16.msra.mxu0 %v7629
        %9502 = vmatprep.subr.bf16.mxu0 %v7640
        %9503 = vmatpush1.bf16.msra.mxu0 %v7639
        %9504 = vmatprep.subr.bf16.mxu0 %v7650
        %9505 = vmatpush1.bf16.msra.mxu0 %v7649
        %9506 = vmatprep.mubr.bf16.mxu0 %v2838
        %9507 = vmatmul.mubr.bf16.gmra.mrb[0].mxu0 %v2837
        %v9508 = vpop.f32.mrb[0].mxu0
        %v9509 = vadd.f32 %v9466, %v9508
        %v9510 = vpop.f32.mrb[0].mxu0
        %v9511 = vadd.f32 %v9468, %v9510
        %v9512 = vpop.f32.mrb[0].mxu0
        %v9513 = vadd.f32 %v9470, %v9512
        %v9514 = vpop.f32.mrb[0].mxu0
        %v9515 = vadd.f32 %v9472, %v9514
        %9516 = vdwg.mxu0
        %9517 = vmatprep.subr.bf16.mxu0 %v7660
        %9518 = vmatpush1.bf16.msra.mxu0 %v7659
        %9519 = vmatprep.subr.bf16.mxu0 %v7670
        %9520 = vmatpush1.bf16.msra.mxu0 %v7669
        %9521 = vmatprep.subr.bf16.mxu0 %v7680
        %9522 = vmatpush1.bf16.msra.mxu0 %v7679
        %9523 = vmatprep.subr.bf16.mxu0 %v7690
        %9524 = vmatpush1.bf16.msra.mxu0 %v7689
        %9525 = vmatprep.subr.bf16.mxu0 %v7700
        %9526 = vmatpush1.bf16.msra.mxu0 %v7699
        %9527 = vmatprep.subr.bf16.mxu0 %v7710
        %9528 = vmatpush1.bf16.msra.mxu0 %v7709
        %9529 = vmatprep.subr.bf16.mxu0 %v7720
        %9530 = vmatpush1.bf16.msra.mxu0 %v7719
        %9531 = vmatprep.subr.bf16.mxu0 %v7730
        %9532 = vmatpush1.bf16.msra.mxu0 %v7729
        %9533 = vmatprep.subr.bf16.mxu0 %v7740
        %9534 = vmatpush1.bf16.msra.mxu0 %v7739
        %9535 = vmatprep.subr.bf16.mxu0 %v7750
        %9536 = vmatpush1.bf16.msra.mxu0 %v7749
        %9537 = vmatprep.subr.bf16.mxu0 %v7760
        %9538 = vmatpush1.bf16.msra.mxu0 %v7759
        %9539 = vmatprep.subr.bf16.mxu0 %v7770
        %9540 = vmatpush1.bf16.msra.mxu0 %v7769
        %9541 = vmatprep.subr.bf16.mxu0 %v7780
        %9542 = vmatpush1.bf16.msra.mxu0 %v7779
        %9543 = vmatprep.subr.bf16.mxu0 %v7790
        %9544 = vmatpush1.bf16.msra.mxu0 %v7789
        %9545 = vmatprep.subr.bf16.mxu0 %v7800
        %9546 = vmatpush1.bf16.msra.mxu0 %v7799
        %9547 = vmatprep.subr.bf16.mxu0 %v7810
        %9548 = vmatpush1.bf16.msra.mxu0 %v7809
        %9549 = vmatprep.mubr.bf16.mxu0 %v2840
        %9550 = vmatmul.mubr.bf16.gmra.mrb[0].mxu0 %v2839
        %v9551 = vpop.f32.mrb[0].mxu0
        %v9552 = vadd.f32 %v9509, %v9551
        %v9553 = vpop.f32.mrb[0].mxu0
        %v9554 = vadd.f32 %v9511, %v9553
        %v9555 = vpop.f32.mrb[0].mxu0
        %v9556 = vadd.f32 %v9513, %v9555
        %v9557 = vpop.f32.mrb[0].mxu0
        %v9558 = vadd.f32 %v9515, %v9557
        %9559 = vdwg.mxu0
        %9560 = vmatprep.subr.bf16.mxu0 %v7820
        %9561 = vmatpush1.bf16.msra.mxu0 %v7819
        %9562 = vmatprep.subr.bf16.mxu0 %v7830
        %9563 = vmatpush1.bf16.msra.mxu0 %v7829
        %9564 = vmatprep.subr.bf16.mxu0 %v7840
        %9565 = vmatpush1.bf16.msra.mxu0 %v7839
        %9566 = vmatprep.subr.bf16.mxu0 %v7850
        %9567 = vmatpush1.bf16.msra.mxu0 %v7849
        %9568 = vmatprep.subr.bf16.mxu0 %v7860
        %9569 = vmatpush1.bf16.msra.mxu0 %v7859
        %9570 = vmatprep.subr.bf16.mxu0 %v7870
        %9571 = vmatpush1.bf16.msra.mxu0 %v7869
        %9572 = vmatprep.subr.bf16.mxu0 %v7880
        %9573 = vmatpush1.bf16.msra.mxu0 %v7879
        %9574 = vmatprep.subr.bf16.mxu0 %v7890
        %9575 = vmatpush1.bf16.msra.mxu0 %v7889
        %9576 = vmatprep.subr.bf16.mxu0 %v7900
        %9577 = vmatpush1.bf16.msra.mxu0 %v7899
        %9578 = vmatprep.subr.bf16.mxu0 %v7910
        %9579 = vmatpush1.bf16.msra.mxu0 %v7909
        %9580 = vmatprep.subr.bf16.mxu0 %v7920
        %9581 = vmatpush1.bf16.msra.mxu0 %v7919
        %9582 = vmatprep.subr.bf16.mxu0 %v7930
        %9583 = vmatpush1.bf16.msra.mxu0 %v7929
        %9584 = vmatprep.subr.bf16.mxu0 %v7940
        %9585 = vmatpush1.bf16.msra.mxu0 %v7939
        %9586 = vmatprep.subr.bf16.mxu0 %v7950
        %9587 = vmatpush1.bf16.msra.mxu0 %v7949
        %9588 = vmatprep.subr.bf16.mxu0 %v7960
        %9589 = vmatpush1.bf16.msra.mxu0 %v7959
        %9590 = vmatprep.subr.bf16.mxu0 %v7970
        %9591 = vmatpush1.bf16.msra.mxu0 %v7969
        %9592 = vmatprep.mubr.bf16.mxu0 %v2842
        %9593 = vmatmul.mubr.bf16.gmra.mrb[0].mxu0 %v2841
        %v9594 = vpop.f32.mrb[0].mxu0
        %v9595 = vadd.f32 %v9552, %v9594
        %v9596 = vpop.f32.mrb[0].mxu0
        %v9597 = vadd.f32 %v9554, %v9596
        %v9598 = vpop.f32.mrb[0].mxu0
        %v9599 = vadd.f32 %v9556, %v9598
        %v9600 = vpop.f32.mrb[0].mxu0
        %v9601 = vadd.f32 %v9558, %v9600
        %9602 = vdwg.mxu0
        %9603 = vmatprep.subr.bf16.mxu0 %v6702
        %9604 = vmatpush1.bf16.msra.mxu0 %v6701
        %9605 = vmatprep.subr.bf16.mxu0 %v6712
        %9606 = vmatpush1.bf16.msra.mxu0 %v6711
        %9607 = vmatprep.subr.bf16.mxu0 %v6722
        %9608 = vmatpush1.bf16.msra.mxu0 %v6721
        %9609 = vmatprep.subr.bf16.mxu0 %v6732
        %9610 = vmatpush1.bf16.msra.mxu0 %v6731
        %9611 = vmatprep.subr.bf16.mxu0 %v6742
        %9612 = vmatpush1.bf16.msra.mxu0 %v6741
        %9613 = vmatprep.subr.bf16.mxu0 %v6752
        %9614 = vmatpush1.bf16.msra.mxu0 %v6751
        %9615 = vmatprep.subr.bf16.mxu0 %v6762
        %9616 = vmatpush1.bf16.msra.mxu0 %v6761
        %9617 = vmatprep.subr.bf16.mxu0 %v6772
        %9618 = vmatpush1.bf16.msra.mxu0 %v6771
        %9619 = vmatprep.subr.bf16.mxu0 %v6782
        %9620 = vmatpush1.bf16.msra.mxu0 %v6781
        %9621 = vmatprep.subr.bf16.mxu0 %v6792
        %9622 = vmatpush1.bf16.msra.mxu0 %v6791
        %9623 = vmatprep.subr.bf16.mxu0 %v6802
        %9624 = vmatpush1.bf16.msra.mxu0 %v6801
        %9625 = vmatprep.subr.bf16.mxu0 %v6812
        %9626 = vmatpush1.bf16.msra.mxu0 %v6811
        %9627 = vmatprep.subr.bf16.mxu0 %v6822
        %9628 = vmatpush1.bf16.msra.mxu0 %v6821
        %9629 = vmatprep.subr.bf16.mxu0 %v6832
        %9630 = vmatpush1.bf16.msra.mxu0 %v6831
        %9631 = vmatprep.subr.bf16.mxu0 %v6842
        %9632 = vmatpush1.bf16.msra.mxu0 %v6841
        %9633 = vmatprep.subr.bf16.mxu0 %v6852
        %9634 = vmatpush1.bf16.msra.mxu0 %v6851
        %9635 = vmatprep.mubr.bf16.mxu0 %v2828
        %9636 = vmatmul.mubr.bf16.gmra.mrb[0].mxu0 %v2827
        %v9637 = vpop.f32.mrb[0].mxu0
        %v9638 = vadd.f32 %v2642, %v9637
        %v9639 = vpop.f32.mrb[0].mxu0
        %v9640 = vadd.f32 %v2644, %v9639
        %v9641 = vpop.f32.mrb[0].mxu0
        %v9642 = vadd.f32 %v2646, %v9641
        %v9643 = vpop.f32.mrb[0].mxu0
        %v9644 = vadd.f32 %v2648, %v9643
        %9645 = vdwg.mxu0
        %9646 = vmatprep.subr.bf16.mxu0 %v6862
        %9647 = vmatpush1.bf16.msra.mxu0 %v6861
        %9648 = vmatprep.subr.bf16.mxu0 %v6872
        %9649 = vmatpush1.bf16.msra.mxu0 %v6871
        %9650 = vmatprep.subr.bf16.mxu0 %v6882
        %9651 = vmatpush1.bf16.msra.mxu0 %v6881
        %9652 = vmatprep.subr.bf16.mxu0 %v6892
        %9653 = vmatpush1.bf16.msra.mxu0 %v6891
        %9654 = vmatprep.subr.bf16.mxu0 %v6902
        %9655 = vmatpush1.bf16.msra.mxu0 %v6901
        %9656 = vmatprep.subr.bf16.mxu0 %v6912
        %9657 = vmatpush1.bf16.msra.mxu0 %v6911
        %9658 = vmatprep.subr.bf16.mxu0 %v6922
        %9659 = vmatpush1.bf16.msra.mxu0 %v6921
        %9660 = vmatprep.subr.bf16.mxu0 %v6932
        %9661 = vmatpush1.bf16.msra.mxu0 %v6931
        %9662 = vmatprep.subr.bf16.mxu0 %v6942
        %9663 = vmatpush1.bf16.msra.mxu0 %v6941
        %9664 = vmatprep.subr.bf16.mxu0 %v6952
        %9665 = vmatpush1.bf16.msra.mxu0 %v6951
        %9666 = vmatprep.subr.bf16.mxu0 %v6962
        %9667 = vmatpush1.bf16.msra.mxu0 %v6961
        %9668 = vmatprep.subr.bf16.mxu0 %v6972
        %9669 = vmatpush1.bf16.msra.mxu0 %v6971
        %9670 = vmatprep.subr.bf16.mxu0 %v6982
        %9671 = vmatpush1.bf16.msra.mxu0 %v6981
        %9672 = vmatprep.subr.bf16.mxu0 %v6992
        %9673 = vmatpush1.bf16.msra.mxu0 %v6991
        %9674 = vmatprep.subr.bf16.mxu0 %v7002
        %9675 = vmatpush1.bf16.msra.mxu0 %v7001
        %9676 = vmatprep.subr.bf16.mxu0 %v7012
        %9677 = vmatpush1.bf16.msra.mxu0 %v7011
        %9678 = vmatprep.mubr.bf16.mxu0 %v2830
        %9679 = vmatmul.mubr.bf16.gmra.mrb[0].mxu0 %v2829
        %v9680 = vpop.f32.mrb[0].mxu0
        %v9681 = vadd.f32 %v9638, %v9680
        %v9682 = vpop.f32.mrb[0].mxu0
        %v9683 = vadd.f32 %v9640, %v9682
        %v9684 = vpop.f32.mrb[0].mxu0
        %v9685 = vadd.f32 %v9642, %v9684
        %v9686 = vpop.f32.mrb[0].mxu0
        %v9687 = vadd.f32 %v9644, %v9686
        %9688 = vdwg.mxu0
        %9689 = vmatprep.subr.bf16.mxu0 %v7022
        %9690 = vmatpush1.bf16.msra.mxu0 %v7021
        %9691 = vmatprep.subr.bf16.mxu0 %v7032
        %9692 = vmatpush1.bf16.msra.mxu0 %v7031
        %9693 = vmatprep.subr.bf16.mxu0 %v7042
        %9694 = vmatpush1.bf16.msra.mxu0 %v7041
        %9695 = vmatprep.subr.bf16.mxu0 %v7052
        %9696 = vmatpush1.bf16.msra.mxu0 %v7051
        %9697 = vmatprep.subr.bf16.mxu0 %v7062
        %9698 = vmatpush1.bf16.msra.mxu0 %v7061
        %9699 = vmatprep.subr.bf16.mxu0 %v7072
        %9700 = vmatpush1.bf16.msra.mxu0 %v7071
        %9701 = vmatprep.subr.bf16.mxu0 %v7082
        %9702 = vmatpush1.bf16.msra.mxu0 %v7081
        %9703 = vmatprep.subr.bf16.mxu0 %v7092
        %9704 = vmatpush1.bf16.msra.mxu0 %v7091
        %9705 = vmatprep.subr.bf16.mxu0 %v7102
        %9706 = vmatpush1.bf16.msra.mxu0 %v7101
        %9707 = vmatprep.subr.bf16.mxu0 %v7112
        %9708 = vmatpush1.bf16.msra.mxu0 %v7111
        %9709 = vmatprep.subr.bf16.mxu0 %v7122
        %9710 = vmatpush1.bf16.msra.mxu0 %v7121
        %9711 = vmatprep.subr.bf16.mxu0 %v7132
        %9712 = vmatpush1.bf16.msra.mxu0 %v7131
        %9713 = vmatprep.subr.bf16.mxu0 %v7142
        %9714 = vmatpush1.bf16.msra.mxu0 %v7141
        %9715 = vmatprep.subr.bf16.mxu0 %v7152
        %9716 = vmatpush1.bf16.msra.mxu0 %v7151
        %9717 = vmatprep.subr.bf16.mxu0 %v7162
        %9718 = vmatpush1.bf16.msra.mxu0 %v7161
        %9719 = vmatprep.subr.bf16.mxu0 %v7172
        %9720 = vmatpush1.bf16.msra.mxu0 %v7171
        %9721 = vmatprep.mubr.bf16.mxu0 %v2832
        %9722 = vmatmul.mubr.bf16.gmra.mrb[0].mxu0 %v2831
        %v9723 = vpop.f32.mrb[0].mxu0
        %v9724 = vadd.f32 %v9681, %v9723
        %v9725 = vpop.f32.mrb[0].mxu0
        %v9726 = vadd.f32 %v9683, %v9725
        %v9727 = vpop.f32.mrb[0].mxu0
        %v9728 = vadd.f32 %v9685, %v9727
        %v9729 = vpop.f32.mrb[0].mxu0
        %v9730 = vadd.f32 %v9687, %v9729
        %9731 = vdwg.mxu0
        %9732 = vmatprep.subr.bf16.mxu0 %v7182
        %9733 = vmatpush1.bf16.msra.mxu0 %v7181
        %9734 = vmatprep.subr.bf16.mxu0 %v7192
        %9735 = vmatpush1.bf16.msra.mxu0 %v7191
        %9736 = vmatprep.subr.bf16.mxu0 %v7202
        %9737 = vmatpush1.bf16.msra.mxu0 %v7201
        %9738 = vmatprep.subr.bf16.mxu0 %v7212
        %9739 = vmatpush1.bf16.msra.mxu0 %v7211
        %9740 = vmatprep.subr.bf16.mxu0 %v7222
        %9741 = vmatpush1.bf16.msra.mxu0 %v7221
        %9742 = vmatprep.subr.bf16.mxu0 %v7232
        %9743 = vmatpush1.bf16.msra.mxu0 %v7231
        %9744 = vmatprep.subr.bf16.mxu0 %v7242
        %9745 = vmatpush1.bf16.msra.mxu0 %v7241
        %9746 = vmatprep.subr.bf16.mxu0 %v7252
        %9747 = vmatpush1.bf16.msra.mxu0 %v7251
        %9748 = vmatprep.subr.bf16.mxu0 %v7262
        %9749 = vmatpush1.bf16.msra.mxu0 %v7261
        %9750 = vmatprep.subr.bf16.mxu0 %v7272
        %9751 = vmatpush1.bf16.msra.mxu0 %v7271
        %9752 = vmatprep.subr.bf16.mxu0 %v7282
        %9753 = vmatpush1.bf16.msra.mxu0 %v7281
        %9754 = vmatprep.subr.bf16.mxu0 %v7292
        %9755 = vmatpush1.bf16.msra.mxu0 %v7291
        %9756 = vmatprep.subr.bf16.mxu0 %v7302
        %9757 = vmatpush1.bf16.msra.mxu0 %v7301
        %9758 = vmatprep.subr.bf16.mxu0 %v7312
        %9759 = vmatpush1.bf16.msra.mxu0 %v7311
        %9760 = vmatprep.subr.bf16.mxu0 %v7322
        %9761 = vmatpush1.bf16.msra.mxu0 %v7321
        %9762 = vmatprep.subr.bf16.mxu0 %v7332
        %9763 = vmatpush1.bf16.msra.mxu0 %v7331
        %9764 = vmatprep.mubr.bf16.mxu0 %v2834
        %9765 = vmatmul.mubr.bf16.gmra.mrb[0].mxu0 %v2833
        %v9766 = vpop.f32.mrb[0].mxu0
        %v9767 = vadd.f32 %v9724, %v9766
        %v9768 = vpop.f32.mrb[0].mxu0
        %v9769 = vadd.f32 %v9726, %v9768
        %v9770 = vpop.f32.mrb[0].mxu0
        %v9771 = vadd.f32 %v9728, %v9770
        %v9772 = vpop.f32.mrb[0].mxu0
        %v9773 = vadd.f32 %v9730, %v9772
        %9774 = vdwg.mxu0
        %9775 = vmatprep.subr.bf16.mxu0 %v7342
        %9776 = vmatpush1.bf16.msra.mxu0 %v7341
        %9777 = vmatprep.subr.bf16.mxu0 %v7352
        %9778 = vmatpush1.bf16.msra.mxu0 %v7351
        %9779 = vmatprep.subr.bf16.mxu0 %v7362
        %9780 = vmatpush1.bf16.msra.mxu0 %v7361
        %9781 = vmatprep.subr.bf16.mxu0 %v7372
        %9782 = vmatpush1.bf16.msra.mxu0 %v7371
        %9783 = vmatprep.subr.bf16.mxu0 %v7382
        %9784 = vmatpush1.bf16.msra.mxu0 %v7381
        %9785 = vmatprep.subr.bf16.mxu0 %v7392
        %9786 = vmatpush1.bf16.msra.mxu0 %v7391
        %9787 = vmatprep.subr.bf16.mxu0 %v7402
        %9788 = vmatpush1.bf16.msra.mxu0 %v7401
        %9789 = vmatprep.subr.bf16.mxu0 %v7412
        %9790 = vmatpush1.bf16.msra.mxu0 %v7411
        %9791 = vmatprep.subr.bf16.mxu0 %v7422
        %9792 = vmatpush1.bf16.msra.mxu0 %v7421
        %9793 = vmatprep.subr.bf16.mxu0 %v7432
        %9794 = vmatpush1.bf16.msra.mxu0 %v7431
        %9795 = vmatprep.subr.bf16.mxu0 %v7442
        %9796 = vmatpush1.bf16.msra.mxu0 %v7441
        %9797 = vmatprep.subr.bf16.mxu0 %v7452
        %9798 = vmatpush1.bf16.msra.mxu0 %v7451
        %9799 = vmatprep.subr.bf16.mxu0 %v7462
        %9800 = vmatpush1.bf16.msra.mxu0 %v7461
        %9801 = vmatprep.subr.bf16.mxu0 %v7472
        %9802 = vmatpush1.bf16.msra.mxu0 %v7471
        %9803 = vmatprep.subr.bf16.mxu0 %v7482
        %9804 = vmatpush1.bf16.msra.mxu0 %v7481
        %9805 = vmatprep.subr.bf16.mxu0 %v7492
        %9806 = vmatpush1.bf16.msra.mxu0 %v7491
        %9807 = vmatprep.mubr.bf16.mxu0 %v2836
        %9808 = vmatmul.mubr.bf16.gmra.mrb[0].mxu0 %v2835
        %v9809 = vpop.f32.mrb[0].mxu0
        %v9810 = vadd.f32 %v9767, %v9809
        %v9811 = vpop.f32.mrb[0].mxu0
        %v9812 = vadd.f32 %v9769, %v9811
        %v9813 = vpop.f32.mrb[0].mxu0
        %v9814 = vadd.f32 %v9771, %v9813
        %v9815 = vpop.f32.mrb[0].mxu0
        %v9816 = vadd.f32 %v9773, %v9815
        %9817 = vdwg.mxu0
        %9818 = vmatprep.subr.bf16.mxu0 %v7502
        %9819 = vmatpush1.bf16.msra.mxu0 %v7501
        %9820 = vmatprep.subr.bf16.mxu0 %v7512
        %9821 = vmatpush1.bf16.msra.mxu0 %v7511
        %9822 = vmatprep.subr.bf16.mxu0 %v7522
        %9823 = vmatpush1.bf16.msra.mxu0 %v7521
        %9824 = vmatprep.subr.bf16.mxu0 %v7532
        %9825 = vmatpush1.bf16.msra.mxu0 %v7531
        %9826 = vmatprep.subr.bf16.mxu0 %v7542
        %9827 = vmatpush1.bf16.msra.mxu0 %v7541
        %9828 = vmatprep.subr.bf16.mxu0 %v7552
        %9829 = vmatpush1.bf16.msra.mxu0 %v7551
        %9830 = vmatprep.subr.bf16.mxu0 %v7562
        %9831 = vmatpush1.bf16.msra.mxu0 %v7561
        %9832 = vmatprep.subr.bf16.mxu0 %v7572
        %9833 = vmatpush1.bf16.msra.mxu0 %v7571
        %9834 = vmatprep.subr.bf16.mxu0 %v7582
        %9835 = vmatpush1.bf16.msra.mxu0 %v7581
        %9836 = vmatprep.subr.bf16.mxu0 %v7592
        %9837 = vmatpush1.bf16.msra.mxu0 %v7591
        %9838 = vmatprep.subr.bf16.mxu0 %v7602
        %9839 = vmatpush1.bf16.msra.mxu0 %v7601
        %9840 = vmatprep.subr.bf16.mxu0 %v7612
        %9841 = vmatpush1.bf16.msra.mxu0 %v7611
        %9842 = vmatprep.subr.bf16.mxu0 %v7622
        %9843 = vmatpush1.bf16.msra.mxu0 %v7621
        %9844 = vmatprep.subr.bf16.mxu0 %v7632
        %9845 = vmatpush1.bf16.msra.mxu0 %v7631
        %9846 = vmatprep.subr.bf16.mxu0 %v7642
        %9847 = vmatpush1.bf16.msra.mxu0 %v7641
        %9848 = vmatprep.subr.bf16.mxu0 %v7652
        %9849 = vmatpush1.bf16.msra.mxu0 %v7651
        %9850 = vmatprep.mubr.bf16.mxu0 %v2838
        %9851 = vmatmul.mubr.bf16.gmra.mrb[0].mxu0 %v2837
        %v9852 = vpop.f32.mrb[0].mxu0
        %v9853 = vadd.f32 %v9810, %v9852
        %v9854 = vpop.f32.mrb[0].mxu0
        %v9855 = vadd.f32 %v9812, %v9854
        %v9856 = vpop.f32.mrb[0].mxu0
        %v9857 = vadd.f32 %v9814, %v9856
        %v9858 = vpop.f32.mrb[0].mxu0
        %v9859 = vadd.f32 %v9816, %v9858
        %9860 = vdwg.mxu0
        %9861 = vmatprep.subr.bf16.mxu0 %v7662
        %9862 = vmatpush1.bf16.msra.mxu0 %v7661
        %9863 = vmatprep.subr.bf16.mxu0 %v7672
        %9864 = vmatpush1.bf16.msra.mxu0 %v7671
        %9865 = vmatprep.subr.bf16.mxu0 %v7682
        %9866 = vmatpush1.bf16.msra.mxu0 %v7681
        %9867 = vmatprep.subr.bf16.mxu0 %v7692
        %9868 = vmatpush1.bf16.msra.mxu0 %v7691
        %9869 = vmatprep.subr.bf16.mxu0 %v7702
        %9870 = vmatpush1.bf16.msra.mxu0 %v7701
        %9871 = vmatprep.subr.bf16.mxu0 %v7712
        %9872 = vmatpush1.bf16.msra.mxu0 %v7711
        %9873 = vmatprep.subr.bf16.mxu0 %v7722
        %9874 = vmatpush1.bf16.msra.mxu0 %v7721
        %9875 = vmatprep.subr.bf16.mxu0 %v7732
        %9876 = vmatpush1.bf16.msra.mxu0 %v7731
        %9877 = vmatprep.subr.bf16.mxu0 %v7742
        %9878 = vmatpush1.bf16.msra.mxu0 %v7741
        %9879 = vmatprep.subr.bf16.mxu0 %v7752
        %9880 = vmatpush1.bf16.msra.mxu0 %v7751
        %9881 = vmatprep.subr.bf16.mxu0 %v7762
        %9882 = vmatpush1.bf16.msra.mxu0 %v7761
        %9883 = vmatprep.subr.bf16.mxu0 %v7772
        %9884 = vmatpush1.bf16.msra.mxu0 %v7771
        %9885 = vmatprep.subr.bf16.mxu0 %v7782
        %9886 = vmatpush1.bf16.msra.mxu0 %v7781
        %9887 = vmatprep.subr.bf16.mxu0 %v7792
        %9888 = vmatpush1.bf16.msra.mxu0 %v7791
        %9889 = vmatprep.subr.bf16.mxu0 %v7802
        %9890 = vmatpush1.bf16.msra.mxu0 %v7801
        %9891 = vmatprep.subr.bf16.mxu0 %v7812
        %9892 = vmatpush1.bf16.msra.mxu0 %v7811
        %9893 = vmatprep.mubr.bf16.mxu0 %v2840
        %9894 = vmatmul.mubr.bf16.gmra.mrb[0].mxu0 %v2839
        %v9895 = vpop.f32.mrb[0].mxu0
        %v9896 = vadd.f32 %v9853, %v9895
        %v9897 = vpop.f32.mrb[0].mxu0
        %v9898 = vadd.f32 %v9855, %v9897
        %v9899 = vpop.f32.mrb[0].mxu0
        %v9900 = vadd.f32 %v9857, %v9899
        %v9901 = vpop.f32.mrb[0].mxu0
        %v9902 = vadd.f32 %v9859, %v9901
        %9903 = vdwg.mxu0
        %9904 = vmatprep.subr.bf16.mxu0 %v7822
        %9905 = vmatpush1.bf16.msra.mxu0 %v7821
        %9906 = vmatprep.subr.bf16.mxu0 %v7832
        %9907 = vmatpush1.bf16.msra.mxu0 %v7831
        %9908 = vmatprep.subr.bf16.mxu0 %v7842
        %9909 = vmatpush1.bf16.msra.mxu0 %v7841
        %9910 = vmatprep.subr.bf16.mxu0 %v7852
        %9911 = vmatpush1.bf16.msra.mxu0 %v7851
        %9912 = vmatprep.subr.bf16.mxu0 %v7862
        %9913 = vmatpush1.bf16.msra.mxu0 %v7861
        %9914 = vmatprep.subr.bf16.mxu0 %v7872
        %9915 = vmatpush1.bf16.msra.mxu0 %v7871
        %9916 = vmatprep.subr.bf16.mxu0 %v7882
        %9917 = vmatpush1.bf16.msra.mxu0 %v7881
        %9918 = vmatprep.subr.bf16.mxu0 %v7892
        %9919 = vmatpush1.bf16.msra.mxu0 %v7891
        %9920 = vmatprep.subr.bf16.mxu0 %v7902
        %9921 = vmatpush1.bf16.msra.mxu0 %v7901
        %9922 = vmatprep.subr.bf16.mxu0 %v7912
        %9923 = vmatpush1.bf16.msra.mxu0 %v7911
        %9924 = vmatprep.subr.bf16.mxu0 %v7922
        %9925 = vmatpush1.bf16.msra.mxu0 %v7921
        %9926 = vmatprep.subr.bf16.mxu0 %v7932
        %9927 = vmatpush1.bf16.msra.mxu0 %v7931
        %9928 = vmatprep.subr.bf16.mxu0 %v7942
        %9929 = vmatpush1.bf16.msra.mxu0 %v7941
        %9930 = vmatprep.subr.bf16.mxu0 %v7952
        %9931 = vmatpush1.bf16.msra.mxu0 %v7951
        %9932 = vmatprep.subr.bf16.mxu0 %v7962
        %9933 = vmatpush1.bf16.msra.mxu0 %v7961
        %9934 = vmatprep.subr.bf16.mxu0 %v7972
        %9935 = vmatpush1.bf16.msra.mxu0 %v7971
        %9936 = vmatprep.mubr.bf16.mxu0 %v2842
        %9937 = vmatmul.mubr.bf16.gmra.mrb[0].mxu0 %v2841
        %v9938 = vpop.f32.mrb[0].mxu0
        %v9939 = vadd.f32 %v9896, %v9938
        %v9940 = vpop.f32.mrb[0].mxu0
        %v9941 = vadd.f32 %v9898, %v9940
        %v9942 = vpop.f32.mrb[0].mxu0
        %v9943 = vadd.f32 %v9900, %v9942
        %v9944 = vpop.f32.mrb[0].mxu0
        %v9945 = vadd.f32 %v9902, %v9944
        %9946 = vdwg.mxu0
        %9947 = vmatprep.subr.bf16.mxu0 %v6704
        %9948 = vmatpush1.bf16.msra.mxu0 %v6703
        %9949 = vmatprep.subr.bf16.mxu0 %v6714
        %9950 = vmatpush1.bf16.msra.mxu0 %v6713
        %9951 = vmatprep.subr.bf16.mxu0 %v6724
        %9952 = vmatpush1.bf16.msra.mxu0 %v6723
        %9953 = vmatprep.subr.bf16.mxu0 %v6734
        %9954 = vmatpush1.bf16.msra.mxu0 %v6733
        %9955 = vmatprep.subr.bf16.mxu0 %v6744
        %9956 = vmatpush1.bf16.msra.mxu0 %v6743
        %9957 = vmatprep.subr.bf16.mxu0 %v6754
        %9958 = vmatpush1.bf16.msra.mxu0 %v6753
        %9959 = vmatprep.subr.bf16.mxu0 %v6764
        %9960 = vmatpush1.bf16.msra.mxu0 %v6763
        %9961 = vmatprep.subr.bf16.mxu0 %v6774
        %9962 = vmatpush1.bf16.msra.mxu0 %v6773
        %9963 = vmatprep.subr.bf16.mxu0 %v6784
        %9964 = vmatpush1.bf16.msra.mxu0 %v6783
        %9965 = vmatprep.subr.bf16.mxu0 %v6794
        %9966 = vmatpush1.bf16.msra.mxu0 %v6793
        %9967 = vmatprep.subr.bf16.mxu0 %v6804
        %9968 = vmatpush1.bf16.msra.mxu0 %v6803
        %9969 = vmatprep.subr.bf16.mxu0 %v6814
        %9970 = vmatpush1.bf16.msra.mxu0 %v6813
        %9971 = vmatprep.subr.bf16.mxu0 %v6824
        %9972 = vmatpush1.bf16.msra.mxu0 %v6823
        %9973 = vmatprep.subr.bf16.mxu0 %v6834
        %9974 = vmatpush1.bf16.msra.mxu0 %v6833
        %9975 = vmatprep.subr.bf16.mxu0 %v6844
        %9976 = vmatpush1.bf16.msra.mxu0 %v6843
        %9977 = vmatprep.subr.bf16.mxu0 %v6854
        %9978 = vmatpush1.bf16.msra.mxu0 %v6853
        %9979 = vmatprep.mubr.bf16.mxu0 %v2828
        %9980 = vmatmul.mubr.bf16.gmra.mrb[0].mxu0 %v2827
        %v9981 = vpop.f32.mrb[0].mxu0
        %v9982 = vadd.f32 %v2685, %v9981
        %v9983 = vpop.f32.mrb[0].mxu0
        %v9984 = vadd.f32 %v2687, %v9983
        %v9985 = vpop.f32.mrb[0].mxu0
        %v9986 = vadd.f32 %v2689, %v9985
        %v9987 = vpop.f32.mrb[0].mxu0
        %v9988 = vadd.f32 %v2691, %v9987
        %9989 = vdwg.mxu0
        %9990 = vmatprep.subr.bf16.mxu0 %v6864
        %9991 = vmatpush1.bf16.msra.mxu0 %v6863
        %9992 = vmatprep.subr.bf16.mxu0 %v6874
        %9993 = vmatpush1.bf16.msra.mxu0 %v6873
        %9994 = vmatprep.subr.bf16.mxu0 %v6884
        %9995 = vmatpush1.bf16.msra.mxu0 %v6883
        %9996 = vmatprep.subr.bf16.mxu0 %v6894
        %9997 = vmatpush1.bf16.msra.mxu0 %v6893
        %9998 = vmatprep.subr.bf16.mxu0 %v6904
        %9999 = vmatpush1.bf16.msra.mxu0 %v6903
        %10000 = vmatprep.subr.bf16.mxu0 %v6914
        %10001 = vmatpush1.bf16.msra.mxu0 %v6913
        %10002 = vmatprep.subr.bf16.mxu0 %v6924
        %10003 = vmatpush1.bf16.msra.mxu0 %v6923
        %10004 = vmatprep.subr.bf16.mxu0 %v6934
        %10005 = vmatpush1.bf16.msra.mxu0 %v6933
        %10006 = vmatprep.subr.bf16.mxu0 %v6944
        %10007 = vmatpush1.bf16.msra.mxu0 %v6943
        %10008 = vmatprep.subr.bf16.mxu0 %v6954
        %10009 = vmatpush1.bf16.msra.mxu0 %v6953
        %10010 = vmatprep.subr.bf16.mxu0 %v6964
        %10011 = vmatpush1.bf16.msra.mxu0 %v6963
        %10012 = vmatprep.subr.bf16.mxu0 %v6974
        %10013 = vmatpush1.bf16.msra.mxu0 %v6973
        %10014 = vmatprep.subr.bf16.mxu0 %v6984
        %10015 = vmatpush1.bf16.msra.mxu0 %v6983
        %10016 = vmatprep.subr.bf16.mxu0 %v6994
        %10017 = vmatpush1.bf16.msra.mxu0 %v6993
        %10018 = vmatprep.subr.bf16.mxu0 %v7004
        %10019 = vmatpush1.bf16.msra.mxu0 %v7003
        %10020 = vmatprep.subr.bf16.mxu0 %v7014
        %10021 = vmatpush1.bf16.msra.mxu0 %v7013
        %10022 = vmatprep.mubr.bf16.mxu0 %v2830
        %10023 = vmatmul.mubr.bf16.gmra.mrb[0].mxu0 %v2829
        %v10024 = vpop.f32.mrb[0].mxu0
        %v10025 = vadd.f32 %v9982, %v10024
        %v10026 = vpop.f32.mrb[0].mxu0
        %v10027 = vadd.f32 %v9984, %v10026
        %v10028 = vpop.f32.mrb[0].mxu0
        %v10029 = vadd.f32 %v9986, %v10028
        %v10030 = vpop.f32.mrb[0].mxu0
        %v10031 = vadd.f32 %v9988, %v10030
        %10032 = vdwg.mxu0
        %10033 = vmatprep.subr.bf16.mxu0 %v7024
        %10034 = vmatpush1.bf16.msra.mxu0 %v7023
        %10035 = vmatprep.subr.bf16.mxu0 %v7034
        %10036 = vmatpush1.bf16.msra.mxu0 %v7033
        %10037 = vmatprep.subr.bf16.mxu0 %v7044
        %10038 = vmatpush1.bf16.msra.mxu0 %v7043
        %10039 = vmatprep.subr.bf16.mxu0 %v7054
        %10040 = vmatpush1.bf16.msra.mxu0 %v7053
        %10041 = vmatprep.subr.bf16.mxu0 %v7064
        %10042 = vmatpush1.bf16.msra.mxu0 %v7063
        %10043 = vmatprep.subr.bf16.mxu0 %v7074
        %10044 = vmatpush1.bf16.msra.mxu0 %v7073
        %10045 = vmatprep.subr.bf16.mxu0 %v7084
        %10046 = vmatpush1.bf16.msra.mxu0 %v7083
        %10047 = vmatprep.subr.bf16.mxu0 %v7094
        %10048 = vmatpush1.bf16.msra.mxu0 %v7093
        %10049 = vmatprep.subr.bf16.mxu0 %v7104
        %10050 = vmatpush1.bf16.msra.mxu0 %v7103
        %10051 = vmatprep.subr.bf16.mxu0 %v7114
        %10052 = vmatpush1.bf16.msra.mxu0 %v7113
        %10053 = vmatprep.subr.bf16.mxu0 %v7124
        %10054 = vmatpush1.bf16.msra.mxu0 %v7123
        %10055 = vmatprep.subr.bf16.mxu0 %v7134
        %10056 = vmatpush1.bf16.msra.mxu0 %v7133
        %10057 = vmatprep.subr.bf16.mxu0 %v7144
        %10058 = vmatpush1.bf16.msra.mxu0 %v7143
        %10059 = vmatprep.subr.bf16.mxu0 %v7154
        %10060 = vmatpush1.bf16.msra.mxu0 %v7153
        %10061 = vmatprep.subr.bf16.mxu0 %v7164
        %10062 = vmatpush1.bf16.msra.mxu0 %v7163
        %10063 = vmatprep.subr.bf16.mxu0 %v7174
        %10064 = vmatpush1.bf16.msra.mxu0 %v7173
        %10065 = vmatprep.mubr.bf16.mxu0 %v2832
        %10066 = vmatmul.mubr.bf16.gmra.mrb[0].mxu0 %v2831
        %v10067 = vpop.f32.mrb[0].mxu0
        %v10068 = vadd.f32 %v10025, %v10067
        %v10069 = vpop.f32.mrb[0].mxu0
        %v10070 = vadd.f32 %v10027, %v10069
        %v10071 = vpop.f32.mrb[0].mxu0
        %v10072 = vadd.f32 %v10029, %v10071
        %v10073 = vpop.f32.mrb[0].mxu0
        %v10074 = vadd.f32 %v10031, %v10073
        %10075 = vdwg.mxu0
        %10076 = vmatprep.subr.bf16.mxu0 %v7184
        %10077 = vmatpush1.bf16.msra.mxu0 %v7183
        %10078 = vmatprep.subr.bf16.mxu0 %v7194
        %10079 = vmatpush1.bf16.msra.mxu0 %v7193
        %10080 = vmatprep.subr.bf16.mxu0 %v7204
        %10081 = vmatpush1.bf16.msra.mxu0 %v7203
        %10082 = vmatprep.subr.bf16.mxu0 %v7214
        %10083 = vmatpush1.bf16.msra.mxu0 %v7213
        %10084 = vmatprep.subr.bf16.mxu0 %v7224
        %10085 = vmatpush1.bf16.msra.mxu0 %v7223
        %10086 = vmatprep.subr.bf16.mxu0 %v7234
        %10087 = vmatpush1.bf16.msra.mxu0 %v7233
        %10088 = vmatprep.subr.bf16.mxu0 %v7244
        %10089 = vmatpush1.bf16.msra.mxu0 %v7243
        %10090 = vmatprep.subr.bf16.mxu0 %v7254
        %10091 = vmatpush1.bf16.msra.mxu0 %v7253
        %10092 = vmatprep.subr.bf16.mxu0 %v7264
        %10093 = vmatpush1.bf16.msra.mxu0 %v7263
        %10094 = vmatprep.subr.bf16.mxu0 %v7274
        %10095 = vmatpush1.bf16.msra.mxu0 %v7273
        %10096 = vmatprep.subr.bf16.mxu0 %v7284
        %10097 = vmatpush1.bf16.msra.mxu0 %v7283
        %10098 = vmatprep.subr.bf16.mxu0 %v7294
        %10099 = vmatpush1.bf16.msra.mxu0 %v7293
        %10100 = vmatprep.subr.bf16.mxu0 %v7304
        %10101 = vmatpush1.bf16.msra.mxu0 %v7303
        %10102 = vmatprep.subr.bf16.mxu0 %v7314
        %10103 = vmatpush1.bf16.msra.mxu0 %v7313
        %10104 = vmatprep.subr.bf16.mxu0 %v7324
        %10105 = vmatpush1.bf16.msra.mxu0 %v7323
        %10106 = vmatprep.subr.bf16.mxu0 %v7334
        %10107 = vmatpush1.bf16.msra.mxu0 %v7333
        %10108 = vmatprep.mubr.bf16.mxu0 %v2834
        %10109 = vmatmul.mubr.bf16.gmra.mrb[0].mxu0 %v2833
        %v10110 = vpop.f32.mrb[0].mxu0
        %v10111 = vadd.f32 %v10068, %v10110
        %v10112 = vpop.f32.mrb[0].mxu0
        %v10113 = vadd.f32 %v10070, %v10112
        %v10114 = vpop.f32.mrb[0].mxu0
        %v10115 = vadd.f32 %v10072, %v10114
        %v10116 = vpop.f32.mrb[0].mxu0
        %v10117 = vadd.f32 %v10074, %v10116
        %10118 = vdwg.mxu0
        %10119 = vmatprep.subr.bf16.mxu0 %v7344
        %10120 = vmatpush1.bf16.msra.mxu0 %v7343
        %10121 = vmatprep.subr.bf16.mxu0 %v7354
        %10122 = vmatpush1.bf16.msra.mxu0 %v7353
        %10123 = vmatprep.subr.bf16.mxu0 %v7364
        %10124 = vmatpush1.bf16.msra.mxu0 %v7363
        %10125 = vmatprep.subr.bf16.mxu0 %v7374
        %10126 = vmatpush1.bf16.msra.mxu0 %v7373
        %10127 = vmatprep.subr.bf16.mxu0 %v7384
        %10128 = vmatpush1.bf16.msra.mxu0 %v7383
        %10129 = vmatprep.subr.bf16.mxu0 %v7394
        %10130 = vmatpush1.bf16.msra.mxu0 %v7393
        %10131 = vmatprep.subr.bf16.mxu0 %v7404
        %10132 = vmatpush1.bf16.msra.mxu0 %v7403
        %10133 = vmatprep.subr.bf16.mxu0 %v7414
        %10134 = vmatpush1.bf16.msra.mxu0 %v7413
        %10135 = vmatprep.subr.bf16.mxu0 %v7424
        %10136 = vmatpush1.bf16.msra.mxu0 %v7423
        %10137 = vmatprep.subr.bf16.mxu0 %v7434
        %10138 = vmatpush1.bf16.msra.mxu0 %v7433
        %10139 = vmatprep.subr.bf16.mxu0 %v7444
        %10140 = vmatpush1.bf16.msra.mxu0 %v7443
        %10141 = vmatprep.subr.bf16.mxu0 %v7454
        %10142 = vmatpush1.bf16.msra.mxu0 %v7453
        %10143 = vmatprep.subr.bf16.mxu0 %v7464
        %10144 = vmatpush1.bf16.msra.mxu0 %v7463
        %10145 = vmatprep.subr.bf16.mxu0 %v7474
        %10146 = vmatpush1.bf16.msra.mxu0 %v7473
        %10147 = vmatprep.subr.bf16.mxu0 %v7484
        %10148 = vmatpush1.bf16.msra.mxu0 %v7483
        %10149 = vmatprep.subr.bf16.mxu0 %v7494
        %10150 = vmatpush1.bf16.msra.mxu0 %v7493
        %10151 = vmatprep.mubr.bf16.mxu0 %v2836
        %10152 = vmatmul.mubr.bf16.gmra.mrb[0].mxu0 %v2835
        %v10153 = vpop.f32.mrb[0].mxu0
        %v10154 = vadd.f32 %v10111, %v10153
        %v10155 = vpop.f32.mrb[0].mxu0
        %v10156 = vadd.f32 %v10113, %v10155
        %v10157 = vpop.f32.mrb[0].mxu0
        %v10158 = vadd.f32 %v10115, %v10157
        %v10159 = vpop.f32.mrb[0].mxu0
        %v10160 = vadd.f32 %v10117, %v10159
        %10161 = vdwg.mxu0
        %10162 = vmatprep.subr.bf16.mxu0 %v7504
        %10163 = vmatpush1.bf16.msra.mxu0 %v7503
        %10164 = vmatprep.subr.bf16.mxu0 %v7514
        %10165 = vmatpush1.bf16.msra.mxu0 %v7513
        %10166 = vmatprep.subr.bf16.mxu0 %v7524
        %10167 = vmatpush1.bf16.msra.mxu0 %v7523
        %10168 = vmatprep.subr.bf16.mxu0 %v7534
        %10169 = vmatpush1.bf16.msra.mxu0 %v7533
        %10170 = vmatprep.subr.bf16.mxu0 %v7544
        %10171 = vmatpush1.bf16.msra.mxu0 %v7543
        %10172 = vmatprep.subr.bf16.mxu0 %v7554
        %10173 = vmatpush1.bf16.msra.mxu0 %v7553
        %10174 = vmatprep.subr.bf16.mxu0 %v7564
        %10175 = vmatpush1.bf16.msra.mxu0 %v7563
        %10176 = vmatprep.subr.bf16.mxu0 %v7574
        %10177 = vmatpush1.bf16.msra.mxu0 %v7573
        %10178 = vmatprep.subr.bf16.mxu0 %v7584
        %10179 = vmatpush1.bf16.msra.mxu0 %v7583
        %10180 = vmatprep.subr.bf16.mxu0 %v7594
        %10181 = vmatpush1.bf16.msra.mxu0 %v7593
        %10182 = vmatprep.subr.bf16.mxu0 %v7604
        %10183 = vmatpush1.bf16.msra.mxu0 %v7603
        %10184 = vmatprep.subr.bf16.mxu0 %v7614
        %10185 = vmatpush1.bf16.msra.mxu0 %v7613
        %10186 = vmatprep.subr.bf16.mxu0 %v7624
        %10187 = vmatpush1.bf16.msra.mxu0 %v7623
        %10188 = vmatprep.subr.bf16.mxu0 %v7634
        %10189 = vmatpush1.bf16.msra.mxu0 %v7633
        %10190 = vmatprep.subr.bf16.mxu0 %v7644
        %10191 = vmatpush1.bf16.msra.mxu0 %v7643
        %10192 = vmatprep.subr.bf16.mxu0 %v7654
        %10193 = vmatpush1.bf16.msra.mxu0 %v7653
        %10194 = vmatprep.mubr.bf16.mxu0 %v2838
        %10195 = vmatmul.mubr.bf16.gmra.mrb[0].mxu0 %v2837
        %v10196 = vpop.f32.mrb[0].mxu0
        %v10197 = vadd.f32 %v10154, %v10196
        %v10198 = vpop.f32.mrb[0].mxu0
        %v10199 = vadd.f32 %v10156, %v10198
        %v10200 = vpop.f32.mrb[0].mxu0
        %v10201 = vadd.f32 %v10158, %v10200
        %v10202 = vpop.f32.mrb[0].mxu0
        %v10203 = vadd.f32 %v10160, %v10202
        %10204 = vdwg.mxu0
        %10205 = vmatprep.subr.bf16.mxu0 %v7664
        %10206 = vmatpush1.bf16.msra.mxu0 %v7663
        %10207 = vmatprep.subr.bf16.mxu0 %v7674
        %10208 = vmatpush1.bf16.msra.mxu0 %v7673
        %10209 = vmatprep.subr.bf16.mxu0 %v7684
        %10210 = vmatpush1.bf16.msra.mxu0 %v7683
        %10211 = vmatprep.subr.bf16.mxu0 %v7694
        %10212 = vmatpush1.bf16.msra.mxu0 %v7693
        %10213 = vmatprep.subr.bf16.mxu0 %v7704
        %10214 = vmatpush1.bf16.msra.mxu0 %v7703
        %10215 = vmatprep.subr.bf16.mxu0 %v7714
        %10216 = vmatpush1.bf16.msra.mxu0 %v7713
        %10217 = vmatprep.subr.bf16.mxu0 %v7724
        %10218 = vmatpush1.bf16.msra.mxu0 %v7723
        %10219 = vmatprep.subr.bf16.mxu0 %v7734
        %10220 = vmatpush1.bf16.msra.mxu0 %v7733
        %10221 = vmatprep.subr.bf16.mxu0 %v7744
        %10222 = vmatpush1.bf16.msra.mxu0 %v7743
        %10223 = vmatprep.subr.bf16.mxu0 %v7754
        %10224 = vmatpush1.bf16.msra.mxu0 %v7753
        %10225 = vmatprep.subr.bf16.mxu0 %v7764
        %10226 = vmatpush1.bf16.msra.mxu0 %v7763
        %10227 = vmatprep.subr.bf16.mxu0 %v7774
        %10228 = vmatpush1.bf16.msra.mxu0 %v7773
        %10229 = vmatprep.subr.bf16.mxu0 %v7784
        %10230 = vmatpush1.bf16.msra.mxu0 %v7783
        %10231 = vmatprep.subr.bf16.mxu0 %v7794
        %10232 = vmatpush1.bf16.msra.mxu0 %v7793
        %10233 = vmatprep.subr.bf16.mxu0 %v7804
        %10234 = vmatpush1.bf16.msra.mxu0 %v7803
        %10235 = vmatprep.subr.bf16.mxu0 %v7814
        %10236 = vmatpush1.bf16.msra.mxu0 %v7813
        %10237 = vmatprep.mubr.bf16.mxu0 %v2840
        %10238 = vmatmul.mubr.bf16.gmra.mrb[0].mxu0 %v2839
        %v10239 = vpop.f32.mrb[0].mxu0
        %v10240 = vadd.f32 %v10197, %v10239
        %v10241 = vpop.f32.mrb[0].mxu0
        %v10242 = vadd.f32 %v10199, %v10241
        %v10243 = vpop.f32.mrb[0].mxu0
        %v10244 = vadd.f32 %v10201, %v10243
        %v10245 = vpop.f32.mrb[0].mxu0
        %v10246 = vadd.f32 %v10203, %v10245
        %10247 = vdwg.mxu0
        %10248 = vmatprep.subr.bf16.mxu0 %v7824
        %10249 = vmatpush1.bf16.msra.mxu0 %v7823
        %10250 = vmatprep.subr.bf16.mxu0 %v7834
        %10251 = vmatpush1.bf16.msra.mxu0 %v7833
        %10252 = vmatprep.subr.bf16.mxu0 %v7844
        %10253 = vmatpush1.bf16.msra.mxu0 %v7843
        %10254 = vmatprep.subr.bf16.mxu0 %v7854
        %10255 = vmatpush1.bf16.msra.mxu0 %v7853
        %10256 = vmatprep.subr.bf16.mxu0 %v7864
        %10257 = vmatpush1.bf16.msra.mxu0 %v7863
        %10258 = vmatprep.subr.bf16.mxu0 %v7874
        %10259 = vmatpush1.bf16.msra.mxu0 %v7873
        %10260 = vmatprep.subr.bf16.mxu0 %v7884
        %10261 = vmatpush1.bf16.msra.mxu0 %v7883
        %10262 = vmatprep.subr.bf16.mxu0 %v7894
        %10263 = vmatpush1.bf16.msra.mxu0 %v7893
        %10264 = vmatprep.subr.bf16.mxu0 %v7904
        %10265 = vmatpush1.bf16.msra.mxu0 %v7903
        %10266 = vmatprep.subr.bf16.mxu0 %v7914
        %10267 = vmatpush1.bf16.msra.mxu0 %v7913
        %10268 = vmatprep.subr.bf16.mxu0 %v7924
        %10269 = vmatpush1.bf16.msra.mxu0 %v7923
        %10270 = vmatprep.subr.bf16.mxu0 %v7934
        %10271 = vmatpush1.bf16.msra.mxu0 %v7933
        %10272 = vmatprep.subr.bf16.mxu0 %v7944
        %10273 = vmatpush1.bf16.msra.mxu0 %v7943
        %10274 = vmatprep.subr.bf16.mxu0 %v7954
        %10275 = vmatpush1.bf16.msra.mxu0 %v7953
        %10276 = vmatprep.subr.bf16.mxu0 %v7964
        %10277 = vmatpush1.bf16.msra.mxu0 %v7963
        %10278 = vmatprep.subr.bf16.mxu0 %v7974
        %10279 = vmatpush1.bf16.msra.mxu0 %v7973
        %10280 = vmatprep.mubr.bf16.mxu0 %v2842
        %10281 = vmatmul.mubr.bf16.gmra.mrb[0].mxu0 %v2841
        %v10282 = vpop.f32.mrb[0].mxu0
        %v10283 = vadd.f32 %v10240, %v10282
        %v10284 = vpop.f32.mrb[0].mxu0
        %v10285 = vadd.f32 %v10242, %v10284
        %v10286 = vpop.f32.mrb[0].mxu0
        %v10287 = vadd.f32 %v10244, %v10286
        %v10288 = vpop.f32.mrb[0].mxu0
        %v10289 = vadd.f32 %v10246, %v10288
        %10290 = vdwg.mxu0
        %10291 = vmatprep.subr.bf16.mxu0 %v6706
        %10292 = vmatpush1.bf16.msra.mxu0 %v6705
        %10293 = vmatprep.subr.bf16.mxu0 %v6716
        %10294 = vmatpush1.bf16.msra.mxu0 %v6715
        %10295 = vmatprep.subr.bf16.mxu0 %v6726
        %10296 = vmatpush1.bf16.msra.mxu0 %v6725
        %10297 = vmatprep.subr.bf16.mxu0 %v6736
        %10298 = vmatpush1.bf16.msra.mxu0 %v6735
        %10299 = vmatprep.subr.bf16.mxu0 %v6746
        %10300 = vmatpush1.bf16.msra.mxu0 %v6745
        %10301 = vmatprep.subr.bf16.mxu0 %v6756
        %10302 = vmatpush1.bf16.msra.mxu0 %v6755
        %10303 = vmatprep.subr.bf16.mxu0 %v6766
        %10304 = vmatpush1.bf16.msra.mxu0 %v6765
        %10305 = vmatprep.subr.bf16.mxu0 %v6776
        %10306 = vmatpush1.bf16.msra.mxu0 %v6775
        %10307 = vmatprep.subr.bf16.mxu0 %v6786
        %10308 = vmatpush1.bf16.msra.mxu0 %v6785
        %10309 = vmatprep.subr.bf16.mxu0 %v6796
        %10310 = vmatpush1.bf16.msra.mxu0 %v6795
        %10311 = vmatprep.subr.bf16.mxu0 %v6806
        %10312 = vmatpush1.bf16.msra.mxu0 %v6805
        %10313 = vmatprep.subr.bf16.mxu0 %v6816
        %10314 = vmatpush1.bf16.msra.mxu0 %v6815
        %10315 = vmatprep.subr.bf16.mxu0 %v6826
        %10316 = vmatpush1.bf16.msra.mxu0 %v6825
        %10317 = vmatprep.subr.bf16.mxu0 %v6836
        %10318 = vmatpush1.bf16.msra.mxu0 %v6835
        %10319 = vmatprep.subr.bf16.mxu0 %v6846
        %10320 = vmatpush1.bf16.msra.mxu0 %v6845
        %10321 = vmatprep.subr.bf16.mxu0 %v6856
        %10322 = vmatpush1.bf16.msra.mxu0 %v6855
        %10323 = vmatprep.mubr.bf16.mxu0 %v2828
        %10324 = vmatmul.mubr.bf16.gmra.mrb[0].mxu0 %v2827
        %v10325 = vpop.f32.mrb[0].mxu0
        %v10326 = vadd.f32 %v2728, %v10325
        %v10327 = vpop.f32.mrb[0].mxu0
        %v10328 = vadd.f32 %v2730, %v10327
        %v10329 = vpop.f32.mrb[0].mxu0
        %v10330 = vadd.f32 %v2732, %v10329
        %v10331 = vpop.f32.mrb[0].mxu0
        %v10332 = vadd.f32 %v2734, %v10331
        %10333 = vdwg.mxu0
        %10334 = vmatprep.subr.bf16.mxu0 %v6866
        %10335 = vmatpush1.bf16.msra.mxu0 %v6865
        %10336 = vmatprep.subr.bf16.mxu0 %v6876
        %10337 = vmatpush1.bf16.msra.mxu0 %v6875
        %10338 = vmatprep.subr.bf16.mxu0 %v6886
        %10339 = vmatpush1.bf16.msra.mxu0 %v6885
        %10340 = vmatprep.subr.bf16.mxu0 %v6896
        %10341 = vmatpush1.bf16.msra.mxu0 %v6895
        %10342 = vmatprep.subr.bf16.mxu0 %v6906
        %10343 = vmatpush1.bf16.msra.mxu0 %v6905
        %10344 = vmatprep.subr.bf16.mxu0 %v6916
        %10345 = vmatpush1.bf16.msra.mxu0 %v6915
        %10346 = vmatprep.subr.bf16.mxu0 %v6926
        %10347 = vmatpush1.bf16.msra.mxu0 %v6925
        %10348 = vmatprep.subr.bf16.mxu0 %v6936
        %10349 = vmatpush1.bf16.msra.mxu0 %v6935
        %10350 = vmatprep.subr.bf16.mxu0 %v6946
        %10351 = vmatpush1.bf16.msra.mxu0 %v6945
        %10352 = vmatprep.subr.bf16.mxu0 %v6956
        %10353 = vmatpush1.bf16.msra.mxu0 %v6955
        %10354 = vmatprep.subr.bf16.mxu0 %v6966
        %10355 = vmatpush1.bf16.msra.mxu0 %v6965
        %10356 = vmatprep.subr.bf16.mxu0 %v6976
        %10357 = vmatpush1.bf16.msra.mxu0 %v6975
        %10358 = vmatprep.subr.bf16.mxu0 %v6986
        %10359 = vmatpush1.bf16.msra.mxu0 %v6985
        %10360 = vmatprep.subr.bf16.mxu0 %v6996
        %10361 = vmatpush1.bf16.msra.mxu0 %v6995
        %10362 = vmatprep.subr.bf16.mxu0 %v7006
        %10363 = vmatpush1.bf16.msra.mxu0 %v7005
        %10364 = vmatprep.subr.bf16.mxu0 %v7016
        %10365 = vmatpush1.bf16.msra.mxu0 %v7015
        %10366 = vmatprep.mubr.bf16.mxu0 %v2830
        %10367 = vmatmul.mubr.bf16.gmra.mrb[0].mxu0 %v2829
        %v10368 = vpop.f32.mrb[0].mxu0
        %v10369 = vadd.f32 %v10326, %v10368
        %v10370 = vpop.f32.mrb[0].mxu0
        %v10371 = vadd.f32 %v10328, %v10370
        %v10372 = vpop.f32.mrb[0].mxu0
        %v10373 = vadd.f32 %v10330, %v10372
        %v10374 = vpop.f32.mrb[0].mxu0
        %v10375 = vadd.f32 %v10332, %v10374
        %10376 = vdwg.mxu0
        %10377 = vmatprep.subr.bf16.mxu0 %v7026
        %10378 = vmatpush1.bf16.msra.mxu0 %v7025
        %10379 = vmatprep.subr.bf16.mxu0 %v7036
        %10380 = vmatpush1.bf16.msra.mxu0 %v7035
        %10381 = vmatprep.subr.bf16.mxu0 %v7046
        %10382 = vmatpush1.bf16.msra.mxu0 %v7045
        %10383 = vmatprep.subr.bf16.mxu0 %v7056
        %10384 = vmatpush1.bf16.msra.mxu0 %v7055
        %10385 = vmatprep.subr.bf16.mxu0 %v7066
        %10386 = vmatpush1.bf16.msra.mxu0 %v7065
        %10387 = vmatprep.subr.bf16.mxu0 %v7076
        %10388 = vmatpush1.bf16.msra.mxu0 %v7075
        %10389 = vmatprep.subr.bf16.mxu0 %v7086
        %10390 = vmatpush1.bf16.msra.mxu0 %v7085
        %10391 = vmatprep.subr.bf16.mxu0 %v7096
        %10392 = vmatpush1.bf16.msra.mxu0 %v7095
        %10393 = vmatprep.subr.bf16.mxu0 %v7106
        %10394 = vmatpush1.bf16.msra.mxu0 %v7105
        %10395 = vmatprep.subr.bf16.mxu0 %v7116
        %10396 = vmatpush1.bf16.msra.mxu0 %v7115
        %10397 = vmatprep.subr.bf16.mxu0 %v7126
        %10398 = vmatpush1.bf16.msra.mxu0 %v7125
        %10399 = vmatprep.subr.bf16.mxu0 %v7136
        %10400 = vmatpush1.bf16.msra.mxu0 %v7135
        %10401 = vmatprep.subr.bf16.mxu0 %v7146
        %10402 = vmatpush1.bf16.msra.mxu0 %v7145
        %10403 = vmatprep.subr.bf16.mxu0 %v7156
        %10404 = vmatpush1.bf16.msra.mxu0 %v7155
        %10405 = vmatprep.subr.bf16.mxu0 %v7166
        %10406 = vmatpush1.bf16.msra.mxu0 %v7165
        %10407 = vmatprep.subr.bf16.mxu0 %v7176
        %10408 = vmatpush1.bf16.msra.mxu0 %v7175
        %10409 = vmatprep.mubr.bf16.mxu0 %v2832
        %10410 = vmatmul.mubr.bf16.gmra.mrb[0].mxu0 %v2831
        %v10411 = vpop.f32.mrb[0].mxu0
        %v10412 = vadd.f32 %v10369, %v10411
        %v10413 = vpop.f32.mrb[0].mxu0
        %v10414 = vadd.f32 %v10371, %v10413
        %v10415 = vpop.f32.mrb[0].mxu0
        %v10416 = vadd.f32 %v10373, %v10415
        %v10417 = vpop.f32.mrb[0].mxu0
        %v10418 = vadd.f32 %v10375, %v10417
        %10419 = vdwg.mxu0
        %10420 = vmatprep.subr.bf16.mxu0 %v7186
        %10421 = vmatpush1.bf16.msra.mxu0 %v7185
        %10422 = vmatprep.subr.bf16.mxu0 %v7196
        %10423 = vmatpush1.bf16.msra.mxu0 %v7195
        %10424 = vmatprep.subr.bf16.mxu0 %v7206
        %10425 = vmatpush1.bf16.msra.mxu0 %v7205
        %10426 = vmatprep.subr.bf16.mxu0 %v7216
        %10427 = vmatpush1.bf16.msra.mxu0 %v7215
        %10428 = vmatprep.subr.bf16.mxu0 %v7226
        %10429 = vmatpush1.bf16.msra.mxu0 %v7225
        %10430 = vmatprep.subr.bf16.mxu0 %v7236
        %10431 = vmatpush1.bf16.msra.mxu0 %v7235
        %10432 = vmatprep.subr.bf16.mxu0 %v7246
        %10433 = vmatpush1.bf16.msra.mxu0 %v7245
        %10434 = vmatprep.subr.bf16.mxu0 %v7256
        %10435 = vmatpush1.bf16.msra.mxu0 %v7255
        %10436 = vmatprep.subr.bf16.mxu0 %v7266
        %10437 = vmatpush1.bf16.msra.mxu0 %v7265
        %10438 = vmatprep.subr.bf16.mxu0 %v7276
        %10439 = vmatpush1.bf16.msra.mxu0 %v7275
        %10440 = vmatprep.subr.bf16.mxu0 %v7286
        %10441 = vmatpush1.bf16.msra.mxu0 %v7285
        %10442 = vmatprep.subr.bf16.mxu0 %v7296
        %10443 = vmatpush1.bf16.msra.mxu0 %v7295
        %10444 = vmatprep.subr.bf16.mxu0 %v7306
        %10445 = vmatpush1.bf16.msra.mxu0 %v7305
        %10446 = vmatprep.subr.bf16.mxu0 %v7316
        %10447 = vmatpush1.bf16.msra.mxu0 %v7315
        %10448 = vmatprep.subr.bf16.mxu0 %v7326
        %10449 = vmatpush1.bf16.msra.mxu0 %v7325
        %10450 = vmatprep.subr.bf16.mxu0 %v7336
        %10451 = vmatpush1.bf16.msra.mxu0 %v7335
        %10452 = vmatprep.mubr.bf16.mxu0 %v2834
        %10453 = vmatmul.mubr.bf16.gmra.mrb[0].mxu0 %v2833
        %v10454 = vpop.f32.mrb[0].mxu0
        %v10455 = vadd.f32 %v10412, %v10454
        %v10456 = vpop.f32.mrb[0].mxu0
        %v10457 = vadd.f32 %v10414, %v10456
        %v10458 = vpop.f32.mrb[0].mxu0
        %v10459 = vadd.f32 %v10416, %v10458
        %v10460 = vpop.f32.mrb[0].mxu0
        %v10461 = vadd.f32 %v10418, %v10460
        %10462 = vdwg.mxu0
        %10463 = vmatprep.subr.bf16.mxu0 %v7346
        %10464 = vmatpush1.bf16.msra.mxu0 %v7345
        %10465 = vmatprep.subr.bf16.mxu0 %v7356
        %10466 = vmatpush1.bf16.msra.mxu0 %v7355
        %10467 = vmatprep.subr.bf16.mxu0 %v7366
        %10468 = vmatpush1.bf16.msra.mxu0 %v7365
        %10469 = vmatprep.subr.bf16.mxu0 %v7376
        %10470 = vmatpush1.bf16.msra.mxu0 %v7375
        %10471 = vmatprep.subr.bf16.mxu0 %v7386
        %10472 = vmatpush1.bf16.msra.mxu0 %v7385
        %10473 = vmatprep.subr.bf16.mxu0 %v7396
        %10474 = vmatpush1.bf16.msra.mxu0 %v7395
        %10475 = vmatprep.subr.bf16.mxu0 %v7406
        %10476 = vmatpush1.bf16.msra.mxu0 %v7405
        %10477 = vmatprep.subr.bf16.mxu0 %v7416
        %10478 = vmatpush1.bf16.msra.mxu0 %v7415
        %10479 = vmatprep.subr.bf16.mxu0 %v7426
        %10480 = vmatpush1.bf16.msra.mxu0 %v7425
        %10481 = vmatprep.subr.bf16.mxu0 %v7436
        %10482 = vmatpush1.bf16.msra.mxu0 %v7435
        %10483 = vmatprep.subr.bf16.mxu0 %v7446
        %10484 = vmatpush1.bf16.msra.mxu0 %v7445
        %10485 = vmatprep.subr.bf16.mxu0 %v7456
        %10486 = vmatpush1.bf16.msra.mxu0 %v7455
        %10487 = vmatprep.subr.bf16.mxu0 %v7466
        %10488 = vmatpush1.bf16.msra.mxu0 %v7465
        %10489 = vmatprep.subr.bf16.mxu0 %v7476
        %10490 = vmatpush1.bf16.msra.mxu0 %v7475
        %10491 = vmatprep.subr.bf16.mxu0 %v7486
        %10492 = vmatpush1.bf16.msra.mxu0 %v7485
        %10493 = vmatprep.subr.bf16.mxu0 %v7496
        %10494 = vmatpush1.bf16.msra.mxu0 %v7495
        %10495 = vmatprep.mubr.bf16.mxu0 %v2836
        %10496 = vmatmul.mubr.bf16.gmra.mrb[0].mxu0 %v2835
        %v10497 = vpop.f32.mrb[0].mxu0
        %v10498 = vadd.f32 %v10455, %v10497
        %v10499 = vpop.f32.mrb[0].mxu0
        %v10500 = vadd.f32 %v10457, %v10499
        %v10501 = vpop.f32.mrb[0].mxu0
        %v10502 = vadd.f32 %v10459, %v10501
        %v10503 = vpop.f32.mrb[0].mxu0
        %v10504 = vadd.f32 %v10461, %v10503
        %10505 = vdwg.mxu0
        %10506 = vmatprep.subr.bf16.mxu0 %v7506
        %10507 = vmatpush1.bf16.msra.mxu0 %v7505
        %10508 = vmatprep.subr.bf16.mxu0 %v7516
        %10509 = vmatpush1.bf16.msra.mxu0 %v7515
        %10510 = vmatprep.subr.bf16.mxu0 %v7526
        %10511 = vmatpush1.bf16.msra.mxu0 %v7525
        %10512 = vmatprep.subr.bf16.mxu0 %v7536
        %10513 = vmatpush1.bf16.msra.mxu0 %v7535
        %10514 = vmatprep.subr.bf16.mxu0 %v7546
        %10515 = vmatpush1.bf16.msra.mxu0 %v7545
        %10516 = vmatprep.subr.bf16.mxu0 %v7556
        %10517 = vmatpush1.bf16.msra.mxu0 %v7555
        %10518 = vmatprep.subr.bf16.mxu0 %v7566
        %10519 = vmatpush1.bf16.msra.mxu0 %v7565
        %10520 = vmatprep.subr.bf16.mxu0 %v7576
        %10521 = vmatpush1.bf16.msra.mxu0 %v7575
        %10522 = vmatprep.subr.bf16.mxu0 %v7586
        %10523 = vmatpush1.bf16.msra.mxu0 %v7585
        %10524 = vmatprep.subr.bf16.mxu0 %v7596
        %10525 = vmatpush1.bf16.msra.mxu0 %v7595
        %10526 = vmatprep.subr.bf16.mxu0 %v7606
        %10527 = vmatpush1.bf16.msra.mxu0 %v7605
        %10528 = vmatprep.subr.bf16.mxu0 %v7616
        %10529 = vmatpush1.bf16.msra.mxu0 %v7615
        %10530 = vmatprep.subr.bf16.mxu0 %v7626
        %10531 = vmatpush1.bf16.msra.mxu0 %v7625
        %10532 = vmatprep.subr.bf16.mxu0 %v7636
        %10533 = vmatpush1.bf16.msra.mxu0 %v7635
        %10534 = vmatprep.subr.bf16.mxu0 %v7646
        %10535 = vmatpush1.bf16.msra.mxu0 %v7645
        %10536 = vmatprep.subr.bf16.mxu0 %v7656
        %10537 = vmatpush1.bf16.msra.mxu0 %v7655
        %10538 = vmatprep.mubr.bf16.mxu0 %v2838
        %10539 = vmatmul.mubr.bf16.gmra.mrb[0].mxu0 %v2837
        %v10540 = vpop.f32.mrb[0].mxu0
        %v10541 = vadd.f32 %v10498, %v10540
        %v10542 = vpop.f32.mrb[0].mxu0
        %v10543 = vadd.f32 %v10500, %v10542
        %v10544 = vpop.f32.mrb[0].mxu0
        %v10545 = vadd.f32 %v10502, %v10544
        %v10546 = vpop.f32.mrb[0].mxu0
        %v10547 = vadd.f32 %v10504, %v10546
        %10548 = vdwg.mxu0
        %10549 = vmatprep.subr.bf16.mxu0 %v7666
        %10550 = vmatpush1.bf16.msra.mxu0 %v7665
        %10551 = vmatprep.subr.bf16.mxu0 %v7676
        %10552 = vmatpush1.bf16.msra.mxu0 %v7675
        %10553 = vmatprep.subr.bf16.mxu0 %v7686
        %10554 = vmatpush1.bf16.msra.mxu0 %v7685
        %10555 = vmatprep.subr.bf16.mxu0 %v7696
        %10556 = vmatpush1.bf16.msra.mxu0 %v7695
        %10557 = vmatprep.subr.bf16.mxu0 %v7706
        %10558 = vmatpush1.bf16.msra.mxu0 %v7705
        %10559 = vmatprep.subr.bf16.mxu0 %v7716
        %10560 = vmatpush1.bf16.msra.mxu0 %v7715
        %10561 = vmatprep.subr.bf16.mxu0 %v7726
        %10562 = vmatpush1.bf16.msra.mxu0 %v7725
        %10563 = vmatprep.subr.bf16.mxu0 %v7736
        %10564 = vmatpush1.bf16.msra.mxu0 %v7735
        %10565 = vmatprep.subr.bf16.mxu0 %v7746
        %10566 = vmatpush1.bf16.msra.mxu0 %v7745
        %10567 = vmatprep.subr.bf16.mxu0 %v7756
        %10568 = vmatpush1.bf16.msra.mxu0 %v7755
        %10569 = vmatprep.subr.bf16.mxu0 %v7766
        %10570 = vmatpush1.bf16.msra.mxu0 %v7765
        %10571 = vmatprep.subr.bf16.mxu0 %v7776
        %10572 = vmatpush1.bf16.msra.mxu0 %v7775
        %10573 = vmatprep.subr.bf16.mxu0 %v7786
        %10574 = vmatpush1.bf16.msra.mxu0 %v7785
        %10575 = vmatprep.subr.bf16.mxu0 %v7796
        %10576 = vmatpush1.bf16.msra.mxu0 %v7795
        %10577 = vmatprep.subr.bf16.mxu0 %v7806
        %10578 = vmatpush1.bf16.msra.mxu0 %v7805
        %10579 = vmatprep.subr.bf16.mxu0 %v7816
        %10580 = vmatpush1.bf16.msra.mxu0 %v7815
        %10581 = vmatprep.mubr.bf16.mxu0 %v2840
        %10582 = vmatmul.mubr.bf16.gmra.mrb[0].mxu0 %v2839
        %v10583 = vpop.f32.mrb[0].mxu0
        %v10584 = vadd.f32 %v10541, %v10583
        %v10585 = vpop.f32.mrb[0].mxu0
        %v10586 = vadd.f32 %v10543, %v10585
        %v10587 = vpop.f32.mrb[0].mxu0
        %v10588 = vadd.f32 %v10545, %v10587
        %v10589 = vpop.f32.mrb[0].mxu0
        %v10590 = vadd.f32 %v10547, %v10589
        %10591 = vdwg.mxu0
        %10592 = vmatprep.subr.bf16.mxu0 %v7826
        %10593 = vmatpush1.bf16.msra.mxu0 %v7825
        %10594 = vmatprep.subr.bf16.mxu0 %v7836
        %10595 = vmatpush1.bf16.msra.mxu0 %v7835
        %10596 = vmatprep.subr.bf16.mxu0 %v7846
        %10597 = vmatpush1.bf16.msra.mxu0 %v7845
        %10598 = vmatprep.subr.bf16.mxu0 %v7856
        %10599 = vmatpush1.bf16.msra.mxu0 %v7855
        %10600 = vmatprep.subr.bf16.mxu0 %v7866
        %10601 = vmatpush1.bf16.msra.mxu0 %v7865
        %10602 = vmatprep.subr.bf16.mxu0 %v7876
        %10603 = vmatpush1.bf16.msra.mxu0 %v7875
        %10604 = vmatprep.subr.bf16.mxu0 %v7886
        %10605 = vmatpush1.bf16.msra.mxu0 %v7885
        %10606 = vmatprep.subr.bf16.mxu0 %v7896
        %10607 = vmatpush1.bf16.msra.mxu0 %v7895
        %10608 = vmatprep.subr.bf16.mxu0 %v7906
        %10609 = vmatpush1.bf16.msra.mxu0 %v7905
        %10610 = vmatprep.subr.bf16.mxu0 %v7916
        %10611 = vmatpush1.bf16.msra.mxu0 %v7915
        %10612 = vmatprep.subr.bf16.mxu0 %v7926
        %10613 = vmatpush1.bf16.msra.mxu0 %v7925
        %10614 = vmatprep.subr.bf16.mxu0 %v7936
        %10615 = vmatpush1.bf16.msra.mxu0 %v7935
        %10616 = vmatprep.subr.bf16.mxu0 %v7946
        %10617 = vmatpush1.bf16.msra.mxu0 %v7945
        %10618 = vmatprep.subr.bf16.mxu0 %v7956
        %10619 = vmatpush1.bf16.msra.mxu0 %v7955
        %10620 = vmatprep.subr.bf16.mxu0 %v7966
        %10621 = vmatpush1.bf16.msra.mxu0 %v7965
        %10622 = vmatprep.subr.bf16.mxu0 %v7976
        %10623 = vmatpush1.bf16.msra.mxu0 %v7975
        %10624 = vmatprep.mubr.bf16.mxu0 %v2842
        %10625 = vmatmul.mubr.bf16.gmra.mrb[0].mxu0 %v2841
        %v10626 = vpop.f32.mrb[0].mxu0
        %v10627 = vadd.f32 %v10584, %v10626
        %v10628 = vpop.f32.mrb[0].mxu0
        %v10629 = vadd.f32 %v10586, %v10628
        %v10630 = vpop.f32.mrb[0].mxu0
        %v10631 = vadd.f32 %v10588, %v10630
        %v10632 = vpop.f32.mrb[0].mxu0
        %v10633 = vadd.f32 %v10590, %v10632
        %10634 = vdwg.mxu0
        %10635 = vmatprep.subr.bf16.mxu0 %v6708
        %10636 = vmatpush1.bf16.msra.mxu0 %v6707
        %10637 = vmatprep.subr.bf16.mxu0 %v6718
        %10638 = vmatpush1.bf16.msra.mxu0 %v6717
        %10639 = vmatprep.subr.bf16.mxu0 %v6728
        %10640 = vmatpush1.bf16.msra.mxu0 %v6727
        %10641 = vmatprep.subr.bf16.mxu0 %v6738
        %10642 = vmatpush1.bf16.msra.mxu0 %v6737
        %10643 = vmatprep.subr.bf16.mxu0 %v6748
        %10644 = vmatpush1.bf16.msra.mxu0 %v6747
        %10645 = vmatprep.subr.bf16.mxu0 %v6758
        %10646 = vmatpush1.bf16.msra.mxu0 %v6757
        %10647 = vmatprep.subr.bf16.mxu0 %v6768
        %10648 = vmatpush1.bf16.msra.mxu0 %v6767
        %10649 = vmatprep.subr.bf16.mxu0 %v6778
        %10650 = vmatpush1.bf16.msra.mxu0 %v6777
        %10651 = vmatprep.subr.bf16.mxu0 %v6788
        %10652 = vmatpush1.bf16.msra.mxu0 %v6787
        %10653 = vmatprep.subr.bf16.mxu0 %v6798
        %10654 = vmatpush1.bf16.msra.mxu0 %v6797
        %10655 = vmatprep.subr.bf16.mxu0 %v6808
        %10656 = vmatpush1.bf16.msra.mxu0 %v6807
        %10657 = vmatprep.subr.bf16.mxu0 %v6818
        %10658 = vmatpush1.bf16.msra.mxu0 %v6817
        %10659 = vmatprep.subr.bf16.mxu0 %v6828
        %10660 = vmatpush1.bf16.msra.mxu0 %v6827
        %10661 = vmatprep.subr.bf16.mxu0 %v6838
        %10662 = vmatpush1.bf16.msra.mxu0 %v6837
        %10663 = vmatprep.subr.bf16.mxu0 %v6848
        %10664 = vmatpush1.bf16.msra.mxu0 %v6847
        %10665 = vmatprep.subr.bf16.mxu0 %v6858
        %10666 = vmatpush1.bf16.msra.mxu0 %v6857
        %10667 = vmatprep.mubr.bf16.mxu0 %v2828
        %10668 = vmatmul.mubr.bf16.gmra.mrb[0].mxu0 %v2827
        %v10669 = vpop.f32.mrb[0].mxu0
        %v10670 = vadd.f32 %v2771, %v10669
        %v10671 = vpop.f32.mrb[0].mxu0
        %v10672 = vadd.f32 %v2773, %v10671
        %v10673 = vpop.f32.mrb[0].mxu0
        %v10674 = vadd.f32 %v2775, %v10673
        %v10675 = vpop.f32.mrb[0].mxu0
        %v10676 = vadd.f32 %v2777, %v10675
        %10677 = vdwg.mxu0
        %10678 = vmatprep.subr.bf16.mxu0 %v6868
        %10679 = vmatpush1.bf16.msra.mxu0 %v6867
        %10680 = vmatprep.subr.bf16.mxu0 %v6878
        %10681 = vmatpush1.bf16.msra.mxu0 %v6877
        %10682 = vmatprep.subr.bf16.mxu0 %v6888
        %10683 = vmatpush1.bf16.msra.mxu0 %v6887
        %10684 = vmatprep.subr.bf16.mxu0 %v6898
        %10685 = vmatpush1.bf16.msra.mxu0 %v6897
        %10686 = vmatprep.subr.bf16.mxu0 %v6908
        %10687 = vmatpush1.bf16.msra.mxu0 %v6907
        %10688 = vmatprep.subr.bf16.mxu0 %v6918
        %10689 = vmatpush1.bf16.msra.mxu0 %v6917
        %10690 = vmatprep.subr.bf16.mxu0 %v6928
        %10691 = vmatpush1.bf16.msra.mxu0 %v6927
        %10692 = vmatprep.subr.bf16.mxu0 %v6938
        %10693 = vmatpush1.bf16.msra.mxu0 %v6937
        %10694 = vmatprep.subr.bf16.mxu0 %v6948
        %10695 = vmatpush1.bf16.msra.mxu0 %v6947
        %10696 = vmatprep.subr.bf16.mxu0 %v6958
        %10697 = vmatpush1.bf16.msra.mxu0 %v6957
        %10698 = vmatprep.subr.bf16.mxu0 %v6968
        %10699 = vmatpush1.bf16.msra.mxu0 %v6967
        %10700 = vmatprep.subr.bf16.mxu0 %v6978
        %10701 = vmatpush1.bf16.msra.mxu0 %v6977
        %10702 = vmatprep.subr.bf16.mxu0 %v6988
        %10703 = vmatpush1.bf16.msra.mxu0 %v6987
        %10704 = vmatprep.subr.bf16.mxu0 %v6998
        %10705 = vmatpush1.bf16.msra.mxu0 %v6997
        %10706 = vmatprep.subr.bf16.mxu0 %v7008
        %10707 = vmatpush1.bf16.msra.mxu0 %v7007
        %10708 = vmatprep.subr.bf16.mxu0 %v7018
        %10709 = vmatpush1.bf16.msra.mxu0 %v7017
        %10710 = vmatprep.mubr.bf16.mxu0 %v2830
        %10711 = vmatmul.mubr.bf16.gmra.mrb[0].mxu0 %v2829
        %v10712 = vpop.f32.mrb[0].mxu0
        %v10713 = vadd.f32 %v10670, %v10712
        %v10714 = vpop.f32.mrb[0].mxu0
        %v10715 = vadd.f32 %v10672, %v10714
        %v10716 = vpop.f32.mrb[0].mxu0
        %v10717 = vadd.f32 %v10674, %v10716
        %v10718 = vpop.f32.mrb[0].mxu0
        %v10719 = vadd.f32 %v10676, %v10718
        %10720 = vdwg.mxu0
        %10721 = vmatprep.subr.bf16.mxu0 %v7028
        %10722 = vmatpush1.bf16.msra.mxu0 %v7027
        %10723 = vmatprep.subr.bf16.mxu0 %v7038
        %10724 = vmatpush1.bf16.msra.mxu0 %v7037
        %10725 = vmatprep.subr.bf16.mxu0 %v7048
        %10726 = vmatpush1.bf16.msra.mxu0 %v7047
        %10727 = vmatprep.subr.bf16.mxu0 %v7058
        %10728 = vmatpush1.bf16.msra.mxu0 %v7057
        %10729 = vmatprep.subr.bf16.mxu0 %v7068
        %10730 = vmatpush1.bf16.msra.mxu0 %v7067
        %10731 = vmatprep.subr.bf16.mxu0 %v7078
        %10732 = vmatpush1.bf16.msra.mxu0 %v7077
        %10733 = vmatprep.subr.bf16.mxu0 %v7088
        %10734 = vmatpush1.bf16.msra.mxu0 %v7087
        %10735 = vmatprep.subr.bf16.mxu0 %v7098
        %10736 = vmatpush1.bf16.msra.mxu0 %v7097
        %10737 = vmatprep.subr.bf16.mxu0 %v7108
        %10738 = vmatpush1.bf16.msra.mxu0 %v7107
        %10739 = vmatprep.subr.bf16.mxu0 %v7118
        %10740 = vmatpush1.bf16.msra.mxu0 %v7117
        %10741 = vmatprep.subr.bf16.mxu0 %v7128
        %10742 = vmatpush1.bf16.msra.mxu0 %v7127
        %10743 = vmatprep.subr.bf16.mxu0 %v7138
        %10744 = vmatpush1.bf16.msra.mxu0 %v7137
        %10745 = vmatprep.subr.bf16.mxu0 %v7148
        %10746 = vmatpush1.bf16.msra.mxu0 %v7147
        %10747 = vmatprep.subr.bf16.mxu0 %v7158
        %10748 = vmatpush1.bf16.msra.mxu0 %v7157
        %10749 = vmatprep.subr.bf16.mxu0 %v7168
        %10750 = vmatpush1.bf16.msra.mxu0 %v7167
        %10751 = vmatprep.subr.bf16.mxu0 %v7178
        %10752 = vmatpush1.bf16.msra.mxu0 %v7177
        %10753 = vmatprep.mubr.bf16.mxu0 %v2832
        %10754 = vmatmul.mubr.bf16.gmra.mrb[0].mxu0 %v2831
        %v10755 = vpop.f32.mrb[0].mxu0
        %v10756 = vadd.f32 %v10713, %v10755
        %v10757 = vpop.f32.mrb[0].mxu0
        %v10758 = vadd.f32 %v10715, %v10757
        %v10759 = vpop.f32.mrb[0].mxu0
        %v10760 = vadd.f32 %v10717, %v10759
        %v10761 = vpop.f32.mrb[0].mxu0
        %v10762 = vadd.f32 %v10719, %v10761
        %10763 = vdwg.mxu0
        %10764 = vmatprep.subr.bf16.mxu0 %v7188
        %10765 = vmatpush1.bf16.msra.mxu0 %v7187
        %10766 = vmatprep.subr.bf16.mxu0 %v7198
        %10767 = vmatpush1.bf16.msra.mxu0 %v7197
        %10768 = vmatprep.subr.bf16.mxu0 %v7208
        %10769 = vmatpush1.bf16.msra.mxu0 %v7207
        %10770 = vmatprep.subr.bf16.mxu0 %v7218
        %10771 = vmatpush1.bf16.msra.mxu0 %v7217
        %10772 = vmatprep.subr.bf16.mxu0 %v7228
        %10773 = vmatpush1.bf16.msra.mxu0 %v7227
        %10774 = vmatprep.subr.bf16.mxu0 %v7238
        %10775 = vmatpush1.bf16.msra.mxu0 %v7237
        %10776 = vmatprep.subr.bf16.mxu0 %v7248
        %10777 = vmatpush1.bf16.msra.mxu0 %v7247
        %10778 = vmatprep.subr.bf16.mxu0 %v7258
        %10779 = vmatpush1.bf16.msra.mxu0 %v7257
        %10780 = vmatprep.subr.bf16.mxu0 %v7268
        %10781 = vmatpush1.bf16.msra.mxu0 %v7267
        %10782 = vmatprep.subr.bf16.mxu0 %v7278
        %10783 = vmatpush1.bf16.msra.mxu0 %v7277
        %10784 = vmatprep.subr.bf16.mxu0 %v7288
        %10785 = vmatpush1.bf16.msra.mxu0 %v7287
        %10786 = vmatprep.subr.bf16.mxu0 %v7298
        %10787 = vmatpush1.bf16.msra.mxu0 %v7297
        %10788 = vmatprep.subr.bf16.mxu0 %v7308
        %10789 = vmatpush1.bf16.msra.mxu0 %v7307
        %10790 = vmatprep.subr.bf16.mxu0 %v7318
        %10791 = vmatpush1.bf16.msra.mxu0 %v7317
        %10792 = vmatprep.subr.bf16.mxu0 %v7328
        %10793 = vmatpush1.bf16.msra.mxu0 %v7327
        %10794 = vmatprep.subr.bf16.mxu0 %v7338
        %10795 = vmatpush1.bf16.msra.mxu0 %v7337
        %10796 = vmatprep.mubr.bf16.mxu0 %v2834
        %10797 = vmatmul.mubr.bf16.gmra.mrb[0].mxu0 %v2833
        %v10798 = vpop.f32.mrb[0].mxu0
        %v10799 = vadd.f32 %v10756, %v10798
        %v10800 = vpop.f32.mrb[0].mxu0
        %v10801 = vadd.f32 %v10758, %v10800
        %v10802 = vpop.f32.mrb[0].mxu0
        %v10803 = vadd.f32 %v10760, %v10802
        %v10804 = vpop.f32.mrb[0].mxu0
        %v10805 = vadd.f32 %v10762, %v10804
        %10806 = vdwg.mxu0
        %10807 = vmatprep.subr.bf16.mxu0 %v7348
        %10808 = vmatpush1.bf16.msra.mxu0 %v7347
        %10809 = vmatprep.subr.bf16.mxu0 %v7358
        %10810 = vmatpush1.bf16.msra.mxu0 %v7357
        %10811 = vmatprep.subr.bf16.mxu0 %v7368
        %10812 = vmatpush1.bf16.msra.mxu0 %v7367
        %10813 = vmatprep.subr.bf16.mxu0 %v7378
        %10814 = vmatpush1.bf16.msra.mxu0 %v7377
        %10815 = vmatprep.subr.bf16.mxu0 %v7388
        %10816 = vmatpush1.bf16.msra.mxu0 %v7387
        %10817 = vmatprep.subr.bf16.mxu0 %v7398
        %10818 = vmatpush1.bf16.msra.mxu0 %v7397
        %10819 = vmatprep.subr.bf16.mxu0 %v7408
        %10820 = vmatpush1.bf16.msra.mxu0 %v7407
        %10821 = vmatprep.subr.bf16.mxu0 %v7418
        %10822 = vmatpush1.bf16.msra.mxu0 %v7417
        %10823 = vmatprep.subr.bf16.mxu0 %v7428
        %10824 = vmatpush1.bf16.msra.mxu0 %v7427
        %10825 = vmatprep.subr.bf16.mxu0 %v7438
        %10826 = vmatpush1.bf16.msra.mxu0 %v7437
        %10827 = vmatprep.subr.bf16.mxu0 %v7448
        %10828 = vmatpush1.bf16.msra.mxu0 %v7447
        %10829 = vmatprep.subr.bf16.mxu0 %v7458
        %10830 = vmatpush1.bf16.msra.mxu0 %v7457
        %10831 = vmatprep.subr.bf16.mxu0 %v7468
        %10832 = vmatpush1.bf16.msra.mxu0 %v7467
        %10833 = vmatprep.subr.bf16.mxu0 %v7478
        %10834 = vmatpush1.bf16.msra.mxu0 %v7477
        %10835 = vmatprep.subr.bf16.mxu0 %v7488
        %10836 = vmatpush1.bf16.msra.mxu0 %v7487
        %10837 = vmatprep.subr.bf16.mxu0 %v7498
        %10838 = vmatpush1.bf16.msra.mxu0 %v7497
        %10839 = vmatprep.mubr.bf16.mxu0 %v2836
        %10840 = vmatmul.mubr.bf16.gmra.mrb[0].mxu0 %v2835
        %v10841 = vpop.f32.mrb[0].mxu0
        %v10842 = vadd.f32 %v10799, %v10841
        %v10843 = vpop.f32.mrb[0].mxu0
        %v10844 = vadd.f32 %v10801, %v10843
        %v10845 = vpop.f32.mrb[0].mxu0
        %v10846 = vadd.f32 %v10803, %v10845
        %v10847 = vpop.f32.mrb[0].mxu0
        %v10848 = vadd.f32 %v10805, %v10847
        %10849 = vdwg.mxu0
        %10850 = vmatprep.subr.bf16.mxu0 %v7508
        %10851 = vmatpush1.bf16.msra.mxu0 %v7507
        %10852 = vmatprep.subr.bf16.mxu0 %v7518
        %10853 = vmatpush1.bf16.msra.mxu0 %v7517
        %10854 = vmatprep.subr.bf16.mxu0 %v7528
        %10855 = vmatpush1.bf16.msra.mxu0 %v7527
        %10856 = vmatprep.subr.bf16.mxu0 %v7538
        %10857 = vmatpush1.bf16.msra.mxu0 %v7537
        %10858 = vmatprep.subr.bf16.mxu0 %v7548
        %10859 = vmatpush1.bf16.msra.mxu0 %v7547
        %10860 = vmatprep.subr.bf16.mxu0 %v7558
        %10861 = vmatpush1.bf16.msra.mxu0 %v7557
        %10862 = vmatprep.subr.bf16.mxu0 %v7568
        %10863 = vmatpush1.bf16.msra.mxu0 %v7567
        %10864 = vmatprep.subr.bf16.mxu0 %v7578
        %10865 = vmatpush1.bf16.msra.mxu0 %v7577
        %10866 = vmatprep.subr.bf16.mxu0 %v7588
        %10867 = vmatpush1.bf16.msra.mxu0 %v7587
        %10868 = vmatprep.subr.bf16.mxu0 %v7598
        %10869 = vmatpush1.bf16.msra.mxu0 %v7597
        %10870 = vmatprep.subr.bf16.mxu0 %v7608
        %10871 = vmatpush1.bf16.msra.mxu0 %v7607
        %10872 = vmatprep.subr.bf16.mxu0 %v7618
        %10873 = vmatpush1.bf16.msra.mxu0 %v7617
        %10874 = vmatprep.subr.bf16.mxu0 %v7628
        %10875 = vmatpush1.bf16.msra.mxu0 %v7627
        %10876 = vmatprep.subr.bf16.mxu0 %v7638
        %10877 = vmatpush1.bf16.msra.mxu0 %v7637
        %10878 = vmatprep.subr.bf16.mxu0 %v7648
        %10879 = vmatpush1.bf16.msra.mxu0 %v7647
        %10880 = vmatprep.subr.bf16.mxu0 %v7658
        %10881 = vmatpush1.bf16.msra.mxu0 %v7657
        %10882 = vmatprep.mubr.bf16.mxu0 %v2838
        %10883 = vmatmul.mubr.bf16.gmra.mrb[0].mxu0 %v2837
        %v10884 = vpop.f32.mrb[0].mxu0
        %v10885 = vadd.f32 %v10842, %v10884
        %v10886 = vpop.f32.mrb[0].mxu0
        %v10887 = vadd.f32 %v10844, %v10886
        %v10888 = vpop.f32.mrb[0].mxu0
        %v10889 = vadd.f32 %v10846, %v10888
        %v10890 = vpop.f32.mrb[0].mxu0
        %v10891 = vadd.f32 %v10848, %v10890
        %10892 = vdwg.mxu0
        %10893 = vmatprep.subr.bf16.mxu0 %v7668
        %10894 = vmatpush1.bf16.msra.mxu0 %v7667
        %10895 = vmatprep.subr.bf16.mxu0 %v7678
        %10896 = vmatpush1.bf16.msra.mxu0 %v7677
        %10897 = vmatprep.subr.bf16.mxu0 %v7688
        %10898 = vmatpush1.bf16.msra.mxu0 %v7687
        %10899 = vmatprep.subr.bf16.mxu0 %v7698
        %10900 = vmatpush1.bf16.msra.mxu0 %v7697
        %10901 = vmatprep.subr.bf16.mxu0 %v7708
        %10902 = vmatpush1.bf16.msra.mxu0 %v7707
        %10903 = vmatprep.subr.bf16.mxu0 %v7718
        %10904 = vmatpush1.bf16.msra.mxu0 %v7717
        %10905 = vmatprep.subr.bf16.mxu0 %v7728
        %10906 = vmatpush1.bf16.msra.mxu0 %v7727
        %10907 = vmatprep.subr.bf16.mxu0 %v7738
        %10908 = vmatpush1.bf16.msra.mxu0 %v7737
        %10909 = vmatprep.subr.bf16.mxu0 %v7748
        %10910 = vmatpush1.bf16.msra.mxu0 %v7747
        %10911 = vmatprep.subr.bf16.mxu0 %v7758
        %10912 = vmatpush1.bf16.msra.mxu0 %v7757
        %10913 = vmatprep.subr.bf16.mxu0 %v7768
        %10914 = vmatpush1.bf16.msra.mxu0 %v7767
        %10915 = vmatprep.subr.bf16.mxu0 %v7778
        %10916 = vmatpush1.bf16.msra.mxu0 %v7777
        %10917 = vmatprep.subr.bf16.mxu0 %v7788
        %10918 = vmatpush1.bf16.msra.mxu0 %v7787
        %10919 = vmatprep.subr.bf16.mxu0 %v7798
        %10920 = vmatpush1.bf16.msra.mxu0 %v7797
        %10921 = vmatprep.subr.bf16.mxu0 %v7808
        %10922 = vmatpush1.bf16.msra.mxu0 %v7807
        %10923 = vmatprep.subr.bf16.mxu0 %v7818
        %10924 = vmatpush1.bf16.msra.mxu0 %v7817
        %10925 = vmatprep.mubr.bf16.mxu0 %v2840
        %10926 = vmatmul.mubr.bf16.gmra.mrb[0].mxu0 %v2839
        %v10927 = vpop.f32.mrb[0].mxu0
        %v10928 = vadd.f32 %v10885, %v10927
        %v10929 = vpop.f32.mrb[0].mxu0
        %v10930 = vadd.f32 %v10887, %v10929
        %v10931 = vpop.f32.mrb[0].mxu0
        %v10932 = vadd.f32 %v10889, %v10931
        %v10933 = vpop.f32.mrb[0].mxu0
        %v10934 = vadd.f32 %v10891, %v10933
        %10935 = vdwg.mxu0
        %10936 = vmatprep.subr.bf16.mxu0 %v7828
        %10937 = vmatpush1.bf16.msra.mxu0 %v7827
        %10938 = vmatprep.subr.bf16.mxu0 %v7838
        %10939 = vmatpush1.bf16.msra.mxu0 %v7837
        %10940 = vmatprep.subr.bf16.mxu0 %v7848
        %10941 = vmatpush1.bf16.msra.mxu0 %v7847
        %10942 = vmatprep.subr.bf16.mxu0 %v7858
        %10943 = vmatpush1.bf16.msra.mxu0 %v7857
        %10944 = vmatprep.subr.bf16.mxu0 %v7868
        %10945 = vmatpush1.bf16.msra.mxu0 %v7867
        %10946 = vmatprep.subr.bf16.mxu0 %v7878
        %10947 = vmatpush1.bf16.msra.mxu0 %v7877
        %10948 = vmatprep.subr.bf16.mxu0 %v7888
        %10949 = vmatpush1.bf16.msra.mxu0 %v7887
        %10950 = vmatprep.subr.bf16.mxu0 %v7898
        %10951 = vmatpush1.bf16.msra.mxu0 %v7897
        %10952 = vmatprep.subr.bf16.mxu0 %v7908
        %10953 = vmatpush1.bf16.msra.mxu0 %v7907
        %10954 = vmatprep.subr.bf16.mxu0 %v7918
        %10955 = vmatpush1.bf16.msra.mxu0 %v7917
        %10956 = vmatprep.subr.bf16.mxu0 %v7928
        %10957 = vmatpush1.bf16.msra.mxu0 %v7927
        %10958 = vmatprep.subr.bf16.mxu0 %v7938
        %10959 = vmatpush1.bf16.msra.mxu0 %v7937
        %10960 = vmatprep.subr.bf16.mxu0 %v7948
        %10961 = vmatpush1.bf16.msra.mxu0 %v7947
        %10962 = vmatprep.subr.bf16.mxu0 %v7958
        %10963 = vmatpush1.bf16.msra.mxu0 %v7957
        %10964 = vmatprep.subr.bf16.mxu0 %v7968
        %10965 = vmatpush1.bf16.msra.mxu0 %v7967
        %10966 = vmatprep.subr.bf16.mxu0 %v7978
        %10967 = vmatpush1.bf16.msra.mxu0 %v7977
        %10968 = vmatprep.mubr.bf16.mxu0 %v2842
        %10969 = vmatmul.mubr.bf16.gmra.mrb[0].mxu0 %v2841
        %v10970 = vpop.f32.mrb[0].mxu0
        %v10971 = vadd.f32 %v10928, %v10970
        %v10972 = vpop.f32.mrb[0].mxu0
        %v10973 = vadd.f32 %v10930, %v10972
        %v10974 = vpop.f32.mrb[0].mxu0
        %v10975 = vadd.f32 %v10932, %v10974
        %v10976 = vpop.f32.mrb[0].mxu0
        %v10977 = vadd.f32 %v10934, %v10976
        %10978 = vdwg.mxu0
        %10979 = vst [vmem:[%s290] sm:$0xff] %v9595
        %10980 = vst [vmem:[%s290 + $0x8] sm:$0xff] %v9597
        %10981 = vst [vmem:[%s290 + $0x10] sm:$0xff] %v9939
        %10982 = vst [vmem:[%s290 + $0x18] sm:$0xff] %v9941
        %10983 = vst [vmem:[%s290 + $0x20] sm:$0xff] %v10283
        %10984 = vst [vmem:[%s290 + $0x28] sm:$0xff] %v10285
        %10985 = vst [vmem:[%s290 + $0x30] sm:$0xff] %v10627
        %10986 = vst [vmem:[%s290 + $0x38] sm:$0xff] %v10629
        %10987 = vst [vmem:[%s290 + $0x40] sm:$0xff] %v10971
        %10988 = vst [vmem:[%s290 + $0x48] sm:$0xff] %v10973
        %10989 = vst [vmem:[%s290 + $0x50] sm:$0xff] %v9599
        %10990 = vst [vmem:[%s290 + $0x58] sm:$0xff] %v9601
        %10991 = vst [vmem:[%s290 + $0x60] sm:$0xff] %v9943
        %10992 = vst [vmem:[%s290 + $0x68] sm:$0xff] %v9945
        %10993 = vst [vmem:[%s290 + $0x70] sm:$0xff] %v10287
        %10994 = vst [vmem:[%s290 + $0x78] sm:$0xff] %v10289
        %10995 = vst [vmem:[%s290 + $0x80] sm:$0xff] %v10631
        %10996 = vst [vmem:[%s290 + $0x88] sm:$0xff] %v10633
        %10997 = vst [vmem:[%s290 + $0x90] sm:$0xff] %v10975
        %10998 = vst [vmem:[%s290 + $0x98] sm:$0xff] %v10977
        %s10999 = sand.u32 %s131, 1
        %s11000 = scalar_lea.sflag [#allocation4], %s10999
        %s11001 = sand.u32 %s131, 1
        %s11002 = smul.addr %s11001, 160
        %s11003 = scalar_lea.vmem [#allocation10], %s11002
        // Predicated region
        $region53: #{tpu_custom_call.1} parent=35 // pred_check
          %p11004 = pneg %p141
        $region54: #{tpu_custom_call.1} parent=35 // pred_check_branch
          %11006 = sbr.rel (%p11004) target = $region56
        $region55: #{tpu_custom_call.1} parent=35 // pred_region
          %s11007 = smul.u32 10, %s25
          %s11009 = ssub.s32 2560, 2560
          %11010 = vsyncadd %s11000, %s11009
          %s11011 = smul.addr %s11007, 128
          %s11012 = scalar_lea.hbm %s4, %s11011
          %s11013 = sshll.u32 %s11003, 4
          %s11014 = int_to_ptr.vmem [resolvable:$true] %s11013
          %11019 = dma.vmem_to_hbm [thread:$0]  %s11014, 2560, %s11012, %s11000, 1280, 5120, 80
        $region56: #{tpu_custom_call.1} parent=35 // pred_fallthru
          _
      $region36: #{tpu_custom_call.1} parent=5 // pred_fallthru
        _
      %p11020 = scmp.le.s32.totalorder 2, %s20
      // Predicated region
      $region57: #{tpu_custom_call.1} parent=5 // pred_check
        %p11021 = pneg %p11020
      $region58: #{tpu_custom_call.1} parent=5 // pred_check_branch
        %11023 = sbr.rel (%p11021) target = $region60
      $region59: #{tpu_custom_call.1} parent=5 // pred_region
        %s11024 = ssub.s32 %s20, 2
        // Predicated region
        $region61: #{tpu_custom_call.1} parent=59 // pred_check
          %p11025 = pneg %p147
        $region62: #{tpu_custom_call.1} parent=59 // pred_check_branch
          %11027 = sbr.rel (%p11025) target = $region64
        $region63: #{tpu_custom_call.1} parent=59 // pred_region
          %s11028 = sand.u32 %s132, 1
          %s11029 = scalar_lea.sflag [#allocation4], %s11028
          %s11030 = sand.u32 %s132, 1
          %s11031 = smul.addr %s11030, 160
          %s11032 = scalar_lea.vmem [#allocation10], %s11031
          %11033 = dma.done %s11029, 2560
        $region64: #{tpu_custom_call.1} parent=59 // pred_fallthru
          _
      $region60: #{tpu_custom_call.1} parent=5 // pred_fallthru
        _
    $region6: #{tpu_custom_call.1} parent=1 // loop_footer
      %s24 = sadd.s32 1, %s20
    $region7: #{tpu_custom_call.1} parent=1 // loop_footer_branch
      %19 = sbr.rel target = $region3
    $region8: #{tpu_custom_call.1} parent=1 // loop_exit
      _
    %11034 = vsyncpa [#allocation3], 1
    %s11035 = scalar_lea.sflag [#allocation3], 1
    %11036 = vsyncpa %s11035, 1
    %11037 = vsyncpa [#allocation6], 1
    %s11038 = scalar_lea.sflag [#allocation6], 1
    %11039 = vsyncpa %s11038, 1
    %11040 = vsyncpa [#allocation9], 1
    %11041 = vsyncpa [#allocation4], 1
    %s11042 = scalar_lea.sflag [#allocation4], 1
    %11043 = vsyncpa %s11042, 1

</llo_original>
